<compile_context>
chip_gen: v7x
topology: tpu7x:2x2x1
jax: 0.10.0
libtpu: 0.0.40
codegen_flags: <defaults>
</compile_context>

<pallas_src>
import functools

import jax
import jax.numpy as jnp
from jax import lax
from jax.experimental import pallas as pl
from jax.experimental.pallas import tpu as pltpu


_PAR1 = pltpu.CompilerParams(dimension_semantics=("parallel",))


def _leaky(y):
    return jnp.where(y >= 0.0, y, 0.1 * y)          # nn.LeakyReLU(0.1)


def _erf(x):
    # Abramowitz & Stegun 7.1.26 (max abs err ~1.5e-7): erf-exact GELU parity
    # with PyTorch nn.GELU() using only exp / mul / add / where (safe lowering).
    p = 0.3275911
    a1, a2, a3 = 0.254829592, -0.284496736, 1.421413741
    a4, a5 = -1.453152027, 1.061405429
    ax = jnp.abs(x)
    t = 1.0 / (1.0 + p * ax)
    poly = ((((a5 * t + a4) * t + a3) * t + a2) * t + a1) * t
    y = 1.0 - poly * jnp.exp(-(ax * ax))
    return jnp.where(x >= 0.0, y, -y)


def _gelu_erf(x):
    return 0.5 * x * (1.0 + _erf(x * 0.7071067811865476))


# ----------------------------------------------------------------------------
# Kernel 1 (per batch element): projections, specific/invariant MLPs,
# common fusion, D0/D2 heads.
# ----------------------------------------------------------------------------
def _stage1_kernel(xv_ref, xa_ref, xl_ref,
                   wpv_ref, bpv_ref, wpa_ref, bpa_ref, wpl_ref, bpl_ref,
                   w1v_ref, b1v_ref, w1a_ref, b1a_ref, w1l_ref, b1l_ref,
                   wsv2_ref, bsv2_ref, wsa2_ref, bsa2_ref, wsl2_ref, bsl2_ref,
                   wi2_ref, bi2_ref,
                   wf1_ref, bf1_ref, wf2_ref, bf2_ref,
                   wd_ref, bd_ref,
                   xv_o, xa_o, xl_o, sv_o, sa_o, sl_o,
                   iv_o, ia_o, il_o, fc_o, d_o,
                   m_sc,
                   *, seq):
    f32, bf16 = jnp.float32, jnp.bfloat16

    def mm(x_b, w_ref, b_ref, leaky=False):
        y = jnp.dot(x_b, w_ref[...], preferred_element_type=f32) + b_ref[...]
        return _leaky(y) if leaky else y

    # --- modality projections (K lane-padded at init; Dropout == id in eval) -
    xv = mm(xv_ref[...].astype(bf16), wpv_ref, bpv_ref)           # (S, 256)
    xa = mm(xa_ref[...].astype(bf16), wpa_ref, bpa_ref)
    xl = mm(xl_ref[...].astype(bf16), wpl_ref, bpl_ref)
    xv_o[...] = xv
    xa_o[...] = xa
    xl_o[...] = xl

    # --- fused [specific | invariant] first layers: one matmul per modality --
    h_v = mm(xv.astype(bf16), w1v_ref, b1v_ref, leaky=True)       # (S, 256)
    h_a = mm(xa.astype(bf16), w1a_ref, b1a_ref, leaky=True)
    h_l = mm(xl.astype(bf16), w1l_ref, b1l_ref, leaky=True)

    # specific second layers (per-modality weights)
    sv = mm(h_v[:, :128].astype(bf16), wsv2_ref, bsv2_ref)        # (S, 128)
    sa = mm(h_a[:, :128].astype(bf16), wsa2_ref, bsa2_ref)
    sl = mm(h_l[:, :128].astype(bf16), wsl2_ref, bsl2_ref)
    sv_o[...] = sv
    sa_o[...] = sa
    sl_o[...] = sl

    # invariant second layer: shared weight -> one matmul over stacked rows
    h_i = jnp.concatenate([h_v[:, 128:], h_a[:, 128:], h_l[:, 128:]],
                          axis=0).astype(bf16)                     # (3S, 128)
    inv_all = mm(h_i, wi2_ref, bi2_ref)                            # (3S, 128)
    iv = inv_all[:seq]
    ia = inv_all[seq:2 * seq]
    il = inv_all[2 * seq:]
    iv_o[...] = iv
    ia_o[...] = ia
    il_o[...] = il

    # --- common fusion: the (S, 384) concat lives only in VMEM ---------------
    fc_in = jnp.concatenate([iv, ia, il], axis=-1).astype(bf16)    # (S, 384)
    fc = mm(mm(fc_in, wf1_ref, bf1_ref, leaky=True).astype(bf16),
            wf2_ref, bf2_ref)
    fc_o[...] = fc

    # --- D0/D2 heads: mean over the sequence first (as the module does), then
    # ONE matmul on the stacked (6,128) means and one dense lane-padded store.
    # (GradReverse / .detach() are identity in the forward pass.)
    m_sc[0:1, :] = jnp.sum(iv, axis=0, keepdims=True)
    m_sc[1:2, :] = jnp.sum(ia, axis=0, keepdims=True)
    m_sc[2:3, :] = jnp.sum(il, axis=0, keepdims=True)
    m_sc[3:4, :] = jnp.sum(sv, axis=0, keepdims=True)
    m_sc[4:5, :] = jnp.sum(sa, axis=0, keepdims=True)
    m_sc[5:6, :] = jnp.sum(sl, axis=0, keepdims=True)
    means = (m_sc[...] * (1.0 / seq)).astype(bf16)                 # (6, 128)
    d_o[...] = jnp.dot(means, wd_ref[...],
                       preferred_element_type=f32) + bd_ref[...]


# ----------------------------------------------------------------------------
# Kernel 2 (per batch element): CrossTransformer block + sequence mean + cls.
# ----------------------------------------------------------------------------
def _xform_kernel(tgt_ref, src_ref,
                  gq_ref, bq_ref, gkv_ref, bkv_ref, gff_ref, bff_ref,
                  wq_ref, wk_ref, wv_ref, wo_ref, bo_ref,
                  wff1_ref, bff1_ref, wff2_ref, bff2_ref,
                  wcls_ref, bcls_ref,
                  feat_o, cls_o,
                  o_sc,
                  *, heads, dim_head):
    f32, bf16 = jnp.float32, jnp.bfloat16
    scale = dim_head ** -0.5                       # 0.125 — exact power of two

    def ln(x, g_ref, b_ref, eps=1e-5):
        mu = jnp.mean(x, axis=-1, keepdims=True)
        var = jnp.mean(jnp.square(x - mu), axis=-1, keepdims=True)
        return (x - mu) * lax.rsqrt(var + eps) * g_ref[...] + b_ref[...]

    tgt = tgt_ref[...]                             # (Nt, 128) f32
    src = src_ref[...]                             # (Ns, 128) f32
    nt = tgt.shape[0]

    # PreNorm inputs, cast to bf16 once; fold the attention scale into q.
    q_in = (ln(tgt, gq_ref, bq_ref) * scale).astype(bf16)
    kv_in = ln(src, gkv_ref, bkv_ref).astype(bf16)

    # Fused Q/K/V projections: one (.,128)x(128,512) matmul each.
    q_all = jnp.dot(q_in, wq_ref[...], preferred_element_type=f32).astype(bf16)
    k_all = jnp.dot(kv_in, wk_ref[...], preferred_element_type=f32).astype(bf16)
    v_all = jnp.dot(kv_in, wv_ref[...], preferred_element_type=f32).astype(bf16)

    # Per-head score / softmax / PV (K = dim_head is fixed by the module).
    for h in range(heads):
        lo = h * dim_head
        qh = q_all[:, lo:lo + dim_head]            # (Nt, 64)
        kh = k_all[:, lo:lo + dim_head]            # (Ns, 64)
        vh = v_all[:, lo:lo + dim_head]
        s = lax.dot_general(qh, kh, (((1,), (1,)), ((), ())),
                            preferred_element_type=f32)           # (Nt, Ns)
        s = s - jnp.max(s, axis=-1, keepdims=True)
        p = jnp.exp(s)
        p = p * pl.reciprocal(jnp.sum(p, axis=-1, keepdims=True), approx=True)
        o_sc[:, lo:lo + dim_head] = jnp.dot(p.astype(bf16), vh,
                                            preferred_element_type=f32)

    # Single K=512 output projection + residual.
    attn = jnp.dot(o_sc[...].astype(bf16), wo_ref[...],
                   preferred_element_type=f32) + bo_ref[...]
    x1 = tgt + attn

    # PreNorm FFN with erf-exact GELU + residual (Dropout == id in eval).
    h1 = _gelu_erf(jnp.dot(ln(x1, gff_ref, bff_ref).astype(bf16), wff1_ref[...],
                           preferred_element_type=f32) + bff1_ref[...])
    x2 = x1 + jnp.dot(h1.astype(bf16), wff2_ref[...],
                      preferred_element_type=f32) + bff2_ref[...]

    # Sequence mean (1/N folded into a multiply) + lane-padded cls head.
    feat = jnp.sum(x2, axis=0, keepdims=True) * (1.0 / nt)        # (1, 128)
    feat_o[...] = feat
    cls_o[...] = jnp.dot(feat.astype(bf16), wcls_ref[...],
                         preferred_element_type=f32) + bcls_ref[...]


# ----------------------------------------------------------------------------
# Parameters (deterministic synthetic init; weights pre-cast to bf16 once,
# contraction dims pre-padded to lane multiples, tiny heads lane-padded to 128)
# ----------------------------------------------------------------------------
def init_params(key, num_classes=6, heads=8, dim_head=64, mlp_dim=256,
                src_frames=150, tgt_frames=50, dim=128):
    bf16, f32 = jnp.bfloat16, jnp.float32

    def lin(k, fi, fo, pad_k_to=None, pad_n_to=None):
        k1, k2 = jax.random.split(k)
        w = jax.random.normal(k1, (fi, fo), f32) * 0.02
        b = jax.random.normal(k2, (fo,), f32) * 0.02
        if pad_n_to is not None and pad_n_to > fo:
            w = jnp.pad(w, ((0, 0), (0, pad_n_to - fo)))
            b = jnp.pad(b, (0, pad_n_to - fo))
        if pad_k_to is not None and pad_k_to > fi:
            w = jnp.pad(w, ((0, pad_k_to - fi), (0, 0)))    # zero rows: exact no-op
        return w.astype(bf16), b.reshape(1, -1).astype(f32)

    keys = iter(jax.random.split(key, 32))
    p = {}
    p["proj_v"] = lin(next(keys), 709, 256, pad_k_to=768)
    p["proj_a"] = lin(next(keys), 33, 256, pad_k_to=128)
    p["proj_l"] = lin(next(keys), 768, 256)

    # fused [specific | invariant] first layers, per modality
    inv1_w, inv1_b = lin(next(keys), 256, 128)
    for m in ("v", "a", "l"):
        sw, sb = lin(next(keys), 256, 128)
        p["mlp1_" + m] = (jnp.concatenate([sw, inv1_w], axis=1),
                          jnp.concatenate([sb, inv1_b], axis=1))
    p["spec2_v"] = lin(next(keys), 128, 128)
    p["spec2_a"] = lin(next(keys), 128, 128)
    p["spec2_l"] = lin(next(keys), 128, 128)
    p["inv2"] = lin(next(keys), 128, 128)
    p["fuse_1"] = lin(next(keys), 384, 128)
    p["fuse_2"] = lin(next(keys), 128, 128)
    p["D0"] = lin(next(keys), 128, 3, pad_n_to=128)
    p["cls"] = lin(next(keys), dim, num_classes, pad_n_to=128)

    # CrossTransformer (depth=1) — see TODO at the top of the file.
    inner = heads * dim_head
    p["pos_s"] = jax.random.normal(next(keys), (src_frames + 1, dim), f32) * 0.02
    p["pos_t"] = jax.random.normal(next(keys), (tgt_frames + 1, dim), f32) * 0.02
    p["extra_token"] = jnp.zeros((1, dim), f32)
    ones, zeros = jnp.ones((1, dim), f32), jnp.zeros((1, dim), f32)
    p["ln_q"] = (ones, zeros)
    p["ln_kv"] = (ones, zeros)
    p["ln_ff"] = (ones, zeros)

    def w_only(k, fi, fo):
        return (jax.random.normal(k, (fi, fo), f32) * 0.02).astype(bf16)

    p["wq"] = w_only(next(keys), dim, inner)       # (128, 512) bf16
    p["wk"] = w_only(next(keys), dim, inner)
    p["wv"] = w_only(next(keys), dim, inner)
    p["wo"], p["bo"] = lin(next(keys), inner, dim)
    p["ff_1"] = lin(next(keys), dim, mlp_dim)
    p["ff_2"] = lin(next(keys), mlp_dim, dim)
    return p


# ----------------------------------------------------------------------------
# Forward pass (MMT_Test.forward, eval mode) — two pallas_calls, grid=(B,)
# ----------------------------------------------------------------------------
def mmt_forward(params, x_vision, x_audio, x_text,
                heads=8, dim_head=64, num_classes=6):
    f32 = jnp.float32
    B, S, dv = x_vision.shape
    da = x_audio.shape[-1]
    dl = x_text.shape[-1]

    # Zero-pad contraction dims to the lane-padded weights (exact no-op math).
    kv_pad = params["proj_v"][0].shape[0]
    ka_pad = params["proj_a"][0].shape[0]
    kl_pad = params["proj_l"][0].shape[0]
    xv_in = jnp.pad(x_vision, ((0, 0), (0, 0), (0, kv_pad - dv)))
    xa_in = jnp.pad(x_audio, ((0, 0), (0, 0), (0, ka_pad - da)))
    xl_in = jnp.pad(x_text, ((0, 0), (0, 0), (0, kl_pad - dl)))

    def rep_spec(a):                 # weight replicated across the batch grid
        nd = a.ndim
        return pl.BlockSpec(a.shape, lambda b, _n=nd: (0,) * _n)

    def seq_spec(last):              # one batch element per grid step
        return pl.BlockSpec((None, S, last), lambda b: (b, 0, 0))

    # ---------------- stage 1 -------------------------------------------------
    stage1_weights = (
        *params["proj_v"], *params["proj_a"], *params["proj_l"],
        *params["mlp1_v"], *params["mlp1_a"], *params["mlp1_l"],
        *params["spec2_v"], *params["spec2_a"], *params["spec2_l"],
        *params["inv2"],
        *params["fuse_1"], *params["fuse_2"],
        *params["D0"],
    )
    s1_in_specs = ([seq_spec(kv_pad), seq_spec(ka_pad), seq_spec(kl_pad)]
                   + [rep_spec(a) for a in stage1_weights])
    s1_out_shape = ([jax.ShapeDtypeStruct((B, S, 256), f32)] * 3
                    + [jax.ShapeDtypeStruct((B, S, 128), f32)] * 7
                    + [jax.ShapeDtypeStruct((B, 6, 128), f32)])
    s1_out_specs = ([seq_spec(256)] * 3 + [seq_spec(128)] * 7
                    + [pl.BlockSpec((None, 6, 128), lambda b: (b, 0, 0))])

    (xv, xa, xl, sv, sa, sl, iv, ia, il, fc, d_slab) = pl.pallas_call(
        functools.partial(_stage1_kernel, seq=S),
        grid=(B,),
        in_specs=s1_in_specs,
        out_specs=s1_out_specs,
        out_shape=s1_out_shape,
        scratch_shapes=[pltpu.VMEM((6, 128), f32)],
        compiler_params=_PAR1,
    )(xv_in, xa_in, xl_in, *stage1_weights)

    D0_v = d_slab[:, 0, :3]
    D0_a = d_slab[:, 1, :3]
    D0_l = d_slab[:, 2, :3]
    D2_v = d_slab[:, 3, :3]
    D2_a = d_slab[:, 4, :3]
    D2_l = d_slab[:, 5, :3]

    # ---------------- token assembly (tiny; left to XLA) ----------------------
    ns, nt = 3 * S + 1, S + 1
    assert ns <= params["pos_s"].shape[0], "source length exceeds learned pos emb"
    assert nt <= params["pos_t"].shape[0], "target length exceeds learned pos emb"
    extra = jnp.broadcast_to(params["extra_token"].reshape(1, 1, -1), (B, 1, 128))
    src = jnp.concatenate([extra, sv, sa, sl], axis=1) + params["pos_s"][None, :ns]
    tgt = jnp.concatenate([extra, fc], axis=1) + params["pos_t"][None, :nt]

    # ---------------- transformer + cls ---------------------------------------
    x2_weights = (
        *params["ln_q"], *params["ln_kv"], *params["ln_ff"],
        params["wq"], params["wk"], params["wv"], params["wo"], params["bo"],
        *params["ff_1"], *params["ff_2"],
        *params["cls"],
    )
    x2_in_specs = ([pl.BlockSpec((None, nt, 128), lambda b: (b, 0, 0)),
                    pl.BlockSpec((None, ns, 128), lambda b: (b, 0, 0))]
                   + [rep_spec(a) for a in x2_weights])
    x2_out_specs = [pl.BlockSpec((None, 1, 128), lambda b: (b, 0, 0))] * 2
    x2_out_shape = [jax.ShapeDtypeStruct((B, 1, 128), f32),
                    jax.ShapeDtypeStruct((B, 1, 128), f32)]

    feat3, cls3 = pl.pallas_call(
        functools.partial(_xform_kernel, heads=heads, dim_head=dim_head),
        grid=(B,),
        in_specs=x2_in_specs,
        out_specs=x2_out_specs,
        out_shape=x2_out_shape,
        scratch_shapes=[pltpu.VMEM((nt, heads * dim_head), f32)],
        compiler_params=_PAR1,
    )(tgt, src, *x2_weights)

    feat = feat3.reshape(B, 128)
    cls_out = cls3.reshape(B, -1)[:, :num_classes]

    return (D0_v, D0_a, D0_l, D2_v, D2_a, D2_l, cls_out, feat,
            sv, sa, sl, iv, ia, il, xv, xa, xl)


# ----------------------------------------------------------------------------
if __name__ == "__main__":
    key = jax.random.PRNGKey(0)
    kp, kvis, kaud, ktxt = jax.random.split(key, 4)

    B, S = 2, 8          # small seq length (<= 50 so pos. embeddings cover it)
    params = init_params(kp, num_classes=6)

    x_vision = jax.random.normal(kvis, (B, S, 709), jnp.float32)
    x_audio = jax.random.normal(kaud, (B, S, 33), jnp.float32)
    x_text = jax.random.normal(ktxt, (B, S, 768), jnp.float32)

    fwd = jax.jit(functools.partial(mmt_forward, heads=8, dim_head=64,
                                    num_classes=6))
    outs = fwd(params, x_vision, x_audio, x_text)
    jax.block_until_ready(outs)
    print("KERNEL_OK")
</pallas_src>

<mosaic_0001>
module attributes {stable_mosaic.version = 11 : i64} {
  func.func @_stage1_kernel(%arg0: i32, %arg1: memref<1x8x768xf32, #tpu.memory_space<vmem>>, %arg2: memref<1x8x128xf32, #tpu.memory_space<vmem>>, %arg3: memref<1x8x768xf32, #tpu.memory_space<vmem>>, %arg4: memref<768x256xbf16, #tpu.memory_space<vmem>>, %arg5: memref<1x256xf32, #tpu.memory_space<vmem>>, %arg6: memref<128x256xbf16, #tpu.memory_space<vmem>>, %arg7: memref<1x256xf32, #tpu.memory_space<vmem>>, %arg8: memref<768x256xbf16, #tpu.memory_space<vmem>>, %arg9: memref<1x256xf32, #tpu.memory_space<vmem>>, %arg10: memref<256x256xbf16, #tpu.memory_space<vmem>>, %arg11: memref<1x256xf32, #tpu.memory_space<vmem>>, %arg12: memref<256x256xbf16, #tpu.memory_space<vmem>>, %arg13: memref<1x256xf32, #tpu.memory_space<vmem>>, %arg14: memref<256x256xbf16, #tpu.memory_space<vmem>>, %arg15: memref<1x256xf32, #tpu.memory_space<vmem>>, %arg16: memref<128x128xbf16, #tpu.memory_space<vmem>>, %arg17: memref<1x128xf32, #tpu.memory_space<vmem>>, %arg18: memref<128x128xbf16, #tpu.memory_space<vmem>>, %arg19: memref<1x128xf32, #tpu.memory_space<vmem>>, %arg20: memref<128x128xbf16, #tpu.memory_space<vmem>>, %arg21: memref<1x128xf32, #tpu.memory_space<vmem>>, %arg22: memref<128x128xbf16, #tpu.memory_space<vmem>>, %arg23: memref<1x128xf32, #tpu.memory_space<vmem>>, %arg24: memref<384x128xbf16, #tpu.memory_space<vmem>>, %arg25: memref<1x128xf32, #tpu.memory_space<vmem>>, %arg26: memref<128x128xbf16, #tpu.memory_space<vmem>>, %arg27: memref<1x128xf32, #tpu.memory_space<vmem>>, %arg28: memref<128x128xbf16, #tpu.memory_space<vmem>>, %arg29: memref<1x128xf32, #tpu.memory_space<vmem>>, %arg30: memref<1x8x256xf32, #tpu.memory_space<vmem>>, %arg31: memref<1x8x256xf32, #tpu.memory_space<vmem>>, %arg32: memref<1x8x256xf32, #tpu.memory_space<vmem>>, %arg33: memref<1x8x128xf32, #tpu.memory_space<vmem>>, %arg34: memref<1x8x128xf32, #tpu.memory_space<vmem>>, %arg35: memref<1x8x128xf32, #tpu.memory_space<vmem>>, %arg36: memref<1x8x128xf32, #tpu.memory_space<vmem>>, %arg37: memref<1x8x128xf32, #tpu.memory_space<vmem>>, %arg38: memref<1x8x128xf32, #tpu.memory_space<vmem>>, %arg39: memref<1x8x128xf32, #tpu.memory_space<vmem>>, %arg40: memref<1x6x128xf32, #tpu.memory_space<vmem>>, %arg41: memref<6x128xf32, #tpu.memory_space<vmem>>) attributes {dimension_semantics = [#tpu.dimension_semantics<parallel>], iteration_bounds = array<i64: 2>, scalar_prefetch = 0 : i64, scratch_operands = 1 : i64, tpu.core_type = #tpu.core_type<tc>, window_params = [{transform_indices = @transform_0, window_bounds = array<i64: 1, 8, 768>}, {transform_indices = @transform_1, window_bounds = array<i64: 1, 8, 128>}, {transform_indices = @transform_2, window_bounds = array<i64: 1, 8, 768>}, {pipeline_mode = #tpu.pipeline_mode<synchronous>, transform_indices = @transform_3, window_bounds = array<i64: 768, 256>}, {pipeline_mode = #tpu.pipeline_mode<synchronous>, transform_indices = @transform_4, window_bounds = array<i64: 1, 256>}, {pipeline_mode = #tpu.pipeline_mode<synchronous>, transform_indices = @transform_5, window_bounds = array<i64: 128, 256>}, {pipeline_mode = #tpu.pipeline_mode<synchronous>, transform_indices = @transform_6, window_bounds = array<i64: 1, 256>}, {pipeline_mode = #tpu.pipeline_mode<synchronous>, transform_indices = @transform_7, window_bounds = array<i64: 768, 256>}, {pipeline_mode = #tpu.pipeline_mode<synchronous>, transform_indices = @transform_8, window_bounds = array<i64: 1, 256>}, {pipeline_mode = #tpu.pipeline_mode<synchronous>, transform_indices = @transform_9, window_bounds = array<i64: 256, 256>}, {pipeline_mode = #tpu.pipeline_mode<synchronous>, transform_indices = @transform_10, window_bounds = array<i64: 1, 256>}, {pipeline_mode = #tpu.pipeline_mode<synchronous>, transform_indices = @transform_11, window_bounds = array<i64: 256, 256>}, {pipeline_mode = #tpu.pipeline_mode<synchronous>, transform_indices = @transform_12, window_bounds = array<i64: 1, 256>}, {pipeline_mode = #tpu.pipeline_mode<synchronous>, transform_indices = @transform_13, window_bounds = array<i64: 256, 256>}, {pipeline_mode = #tpu.pipeline_mode<synchronous>, transform_indices = @transform_14, window_bounds = array<i64: 1, 256>}, {pipeline_mode = #tpu.pipeline_mode<synchronous>, transform_indices = @transform_15, window_bounds = array<i64: 128, 128>}, {pipeline_mode = #tpu.pipeline_mode<synchronous>, transform_indices = @transform_16, window_bounds = array<i64: 1, 128>}, {pipeline_mode = #tpu.pipeline_mode<synchronous>, transform_indices = @transform_17, window_bounds = array<i64: 128, 128>}, {pipeline_mode = #tpu.pipeline_mode<synchronous>, transform_indices = @transform_18, window_bounds = array<i64: 1, 128>}, {pipeline_mode = #tpu.pipeline_mode<synchronous>, transform_indices = @transform_19, window_bounds = array<i64: 128, 128>}, {pipeline_mode = #tpu.pipeline_mode<synchronous>, transform_indices = @transform_20, window_bounds = array<i64: 1, 128>}, {pipeline_mode = #tpu.pipeline_mode<synchronous>, transform_indices = @transform_21, window_bounds = array<i64: 128, 128>}, {pipeline_mode = #tpu.pipeline_mode<synchronous>, transform_indices = @transform_22, window_bounds = array<i64: 1, 128>}, {pipeline_mode = #tpu.pipeline_mode<synchronous>, transform_indices = @transform_23, window_bounds = array<i64: 384, 128>}, {pipeline_mode = #tpu.pipeline_mode<synchronous>, transform_indices = @transform_24, window_bounds = array<i64: 1, 128>}, {pipeline_mode = #tpu.pipeline_mode<synchronous>, transform_indices = @transform_25, window_bounds = array<i64: 128, 128>}, {pipeline_mode = #tpu.pipeline_mode<synchronous>, transform_indices = @transform_26, window_bounds = array<i64: 1, 128>}, {pipeline_mode = #tpu.pipeline_mode<synchronous>, transform_indices = @transform_27, window_bounds = array<i64: 128, 128>}, {pipeline_mode = #tpu.pipeline_mode<synchronous>, transform_indices = @transform_28, window_bounds = array<i64: 1, 128>}, {transform_indices = @transform_29, window_bounds = array<i64: 1, 8, 256>}, {transform_indices = @transform_30, window_bounds = array<i64: 1, 8, 256>}, {transform_indices = @transform_31, window_bounds = array<i64: 1, 8, 256>}, {transform_indices = @transform_32, window_bounds = array<i64: 1, 8, 128>}, {transform_indices = @transform_33, window_bounds = array<i64: 1, 8, 128>}, {transform_indices = @transform_34, window_bounds = array<i64: 1, 8, 128>}, {transform_indices = @transform_35, window_bounds = array<i64: 1, 8, 128>}, {transform_indices = @transform_36, window_bounds = array<i64: 1, 8, 128>}, {transform_indices = @transform_37, window_bounds = array<i64: 1, 8, 128>}, {transform_indices = @transform_38, window_bounds = array<i64: 1, 8, 128>}, {transform_indices = @transform_39, window_bounds = array<i64: 1, 6, 128>}]} {
    %c0 = arith.constant 0 : index
    %c0_0 = arith.constant 0 : index
    %c0_1 = arith.constant 0 : index
    %0 = vector.load %arg1[%c0, %c0_0, %c0_1] : memref<1x8x768xf32, #tpu.memory_space<vmem>>, vector<1x8x768xf32>
    %1 = vector.shape_cast %0 : vector<1x8x768xf32> to vector<8x768xf32>
    %2 = arith.truncf %1 : vector<8x768xf32> to vector<8x768xbf16>
    %c0_2 = arith.constant 0 : index
    %c0_3 = arith.constant 0 : index
    %3 = vector.load %arg4[%c0_2, %c0_3] : memref<768x256xbf16, #tpu.memory_space<vmem>>, vector<768x256xbf16>
    %cst = arith.constant dense<0.000000e+00> : vector<8x256xf32>
    %4 = tpu.matmul %2, %3, %cst {dimension_numbers = #tpu.dot_dimension_numbers<[1], [0], [0], [1], [0, 0, 1, 1], [], []>} : vector<8x768xbf16>, vector<768x256xbf16>, vector<8x256xf32> -> vector<8x256xf32>
    %c0_4 = arith.constant 0 : index
    %c0_5 = arith.constant 0 : index
    %5 = vector.load %arg5[%c0_4, %c0_5] : memref<1x256xf32, #tpu.memory_space<vmem>>, vector<1x256xf32>
    %6 = vector.broadcast %5 : vector<1x256xf32> to vector<8x256xf32>
    %7 = arith.addf %4, %6 : vector<8x256xf32>
    %c0_6 = arith.constant 0 : index
    %c0_7 = arith.constant 0 : index
    %c0_8 = arith.constant 0 : index
    %8 = vector.load %arg2[%c0_6, %c0_7, %c0_8] : memref<1x8x128xf32, #tpu.memory_space<vmem>>, vector<1x8x128xf32>
    %9 = vector.shape_cast %8 : vector<1x8x128xf32> to vector<8x128xf32>
    %10 = arith.truncf %9 : vector<8x128xf32> to vector<8x128xbf16>
    %c0_9 = arith.constant 0 : index
    %c0_10 = arith.constant 0 : index
    %11 = vector.load %arg6[%c0_9, %c0_10] : memref<128x256xbf16, #tpu.memory_space<vmem>>, vector<128x256xbf16>
    %cst_11 = arith.constant dense<0.000000e+00> : vector<8x256xf32>
    %12 = tpu.matmul %10, %11, %cst_11 {dimension_numbers = #tpu.dot_dimension_numbers<[1], [0], [0], [1], [0, 0, 1, 1], [], []>} : vector<8x128xbf16>, vector<128x256xbf16>, vector<8x256xf32> -> vector<8x256xf32>
    %c0_12 = arith.constant 0 : index
    %c0_13 = arith.constant 0 : index
    %13 = vector.load %arg7[%c0_12, %c0_13] : memref<1x256xf32, #tpu.memory_space<vmem>>, vector<1x256xf32>
    %14 = vector.broadcast %13 : vector<1x256xf32> to vector<8x256xf32>
    %15 = arith.addf %12, %14 : vector<8x256xf32>
    %c0_14 = arith.constant 0 : index
    %c0_15 = arith.constant 0 : index
    %c0_16 = arith.constant 0 : index
    %16 = vector.load %arg3[%c0_14, %c0_15, %c0_16] : memref<1x8x768xf32, #tpu.memory_space<vmem>>, vector<1x8x768xf32>
    %17 = vector.shape_cast %16 : vector<1x8x768xf32> to vector<8x768xf32>
    %18 = arith.truncf %17 : vector<8x768xf32> to vector<8x768xbf16>
    %c0_17 = arith.constant 0 : index
    %c0_18 = arith.constant 0 : index
    %19 = vector.load %arg8[%c0_17, %c0_18] : memref<768x256xbf16, #tpu.memory_space<vmem>>, vector<768x256xbf16>
    %cst_19 = arith.constant dense<0.000000e+00> : vector<8x256xf32>
    %20 = tpu.matmul %18, %19, %cst_19 {dimension_numbers = #tpu.dot_dimension_numbers<[1], [0], [0], [1], [0, 0, 1, 1], [], []>} : vector<8x768xbf16>, vector<768x256xbf16>, vector<8x256xf32> -> vector<8x256xf32>
    %c0_20 = arith.constant 0 : index
    %c0_21 = arith.constant 0 : index
    %21 = vector.load %arg9[%c0_20, %c0_21] : memref<1x256xf32, #tpu.memory_space<vmem>>, vector<1x256xf32>
    %22 = vector.broadcast %21 : vector<1x256xf32> to vector<8x256xf32>
    %23 = arith.addf %20, %22 : vector<8x256xf32>
    %c0_22 = arith.constant 0 : index
    %c0_23 = arith.constant 0 : index
    %c0_24 = arith.constant 0 : index
    %24 = vector.load %arg30[%c0_22, %c0_23, %c0_24] : memref<1x8x256xf32, #tpu.memory_space<vmem>>, vector<1x8x256xf32>
    %25 = vector.shape_cast %24 : vector<1x8x256xf32> to vector<8x256xf32>
    %26 = vector.shape_cast %7 : vector<8x256xf32> to vector<1x8x256xf32>
    tpu.vector_store %arg30[%c0_22, %c0_23, %c0_24], %26 {strides = array<i32>} : memref<1x8x256xf32, #tpu.memory_space<vmem>>, vector<1x8x256xf32>,
    %c0_25 = arith.constant 0 : index
    %c0_26 = arith.constant 0 : index
    %c0_27 = arith.constant 0 : index
    %27 = vector.load %arg31[%c0_25, %c0_26, %c0_27] : memref<1x8x256xf32, #tpu.memory_space<vmem>>, vector<1x8x256xf32>
    %28 = vector.shape_cast %27 : vector<1x8x256xf32> to vector<8x256xf32>
    %29 = vector.shape_cast %15 : vector<8x256xf32> to vector<1x8x256xf32>
    tpu.vector_store %arg31[%c0_25, %c0_26, %c0_27], %29 {strides = array<i32>} : memref<1x8x256xf32, #tpu.memory_space<vmem>>, vector<1x8x256xf32>,
    %c0_28 = arith.constant 0 : index
    %c0_29 = arith.constant 0 : index
    %c0_30 = arith.constant 0 : index
    %30 = vector.load %arg32[%c0_28, %c0_29, %c0_30] : memref<1x8x256xf32, #tpu.memory_space<vmem>>, vector<1x8x256xf32>
    %31 = vector.shape_cast %30 : vector<1x8x256xf32> to vector<8x256xf32>
    %32 = vector.shape_cast %23 : vector<8x256xf32> to vector<1x8x256xf32>
    tpu.vector_store %arg32[%c0_28, %c0_29, %c0_30], %32 {strides = array<i32>} : memref<1x8x256xf32, #tpu.memory_space<vmem>>, vector<1x8x256xf32>,
    %33 = arith.truncf %7 : vector<8x256xf32> to vector<8x256xbf16>
    %c0_31 = arith.constant 0 : index
    %c0_32 = arith.constant 0 : index
    %34 = vector.load %arg10[%c0_31, %c0_32] : memref<256x256xbf16, #tpu.memory_space<vmem>>, vector<256x256xbf16>
    %cst_33 = arith.constant dense<0.000000e+00> : vector<8x256xf32>
    %35 = tpu.matmul %33, %34, %cst_33 {dimension_numbers = #tpu.dot_dimension_numbers<[1], [0], [0], [1], [0, 0, 1, 1], [], []>} : vector<8x256xbf16>, vector<256x256xbf16>, vector<8x256xf32> -> vector<8x256xf32>
    %c0_34 = arith.constant 0 : index
    %c0_35 = arith.constant 0 : index
    %36 = vector.load %arg11[%c0_34, %c0_35] : memref<1x256xf32, #tpu.memory_space<vmem>>, vector<1x256xf32>
    %37 = vector.broadcast %36 : vector<1x256xf32> to vector<8x256xf32>
    %38 = arith.addf %35, %37 : vector<8x256xf32>
    %cst_36 = arith.constant 0.000000e+00 : f32
    %39 = vector.broadcast %cst_36 : f32 to vector<8x256xf32>
    %40 = arith.cmpf oge, %38, %39 : vector<8x256xf32>
    %cst_37 = arith.constant 1.000000e-01 : f32
    %41 = vector.broadcast %cst_37 : f32 to vector<8x256xf32>
    %42 = arith.mulf %41, %38 : vector<8x256xf32>
    %43 = arith.select %40, %38, %42 : vector<8x256xi1>, vector<8x256xf32>
    %44 = arith.truncf %15 : vector<8x256xf32> to vector<8x256xbf16>
    %c0_38 = arith.constant 0 : index
    %c0_39 = arith.constant 0 : index
    %45 = vector.load %arg12[%c0_38, %c0_39] : memref<256x256xbf16, #tpu.memory_space<vmem>>, vector<256x256xbf16>
    %cst_40 = arith.constant dense<0.000000e+00> : vector<8x256xf32>
    %46 = tpu.matmul %44, %45, %cst_40 {dimension_numbers = #tpu.dot_dimension_numbers<[1], [0], [0], [1], [0, 0, 1, 1], [], []>} : vector<8x256xbf16>, vector<256x256xbf16>, vector<8x256xf32> -> vector<8x256xf32>
    %c0_41 = arith.constant 0 : index
    %c0_42 = arith.constant 0 : index
    %47 = vector.load %arg13[%c0_41, %c0_42] : memref<1x256xf32, #tpu.memory_space<vmem>>, vector<1x256xf32>
    %48 = vector.broadcast %47 : vector<1x256xf32> to vector<8x256xf32>
    %49 = arith.addf %46, %48 : vector<8x256xf32>
    %cst_43 = arith.constant 0.000000e+00 : f32
    %50 = vector.broadcast %cst_43 : f32 to vector<8x256xf32>
    %51 = arith.cmpf oge, %49, %50 : vector<8x256xf32>
    %cst_44 = arith.constant 1.000000e-01 : f32
    %52 = vector.broadcast %cst_44 : f32 to vector<8x256xf32>
    %53 = arith.mulf %52, %49 : vector<8x256xf32>
    %54 = arith.select %51, %49, %53 : vector<8x256xi1>, vector<8x256xf32>
    %55 = arith.truncf %23 : vector<8x256xf32> to vector<8x256xbf16>
    %c0_45 = arith.constant 0 : index
    %c0_46 = arith.constant 0 : index
    %56 = vector.load %arg14[%c0_45, %c0_46] : memref<256x256xbf16, #tpu.memory_space<vmem>>, vector<256x256xbf16>
    %cst_47 = arith.constant dense<0.000000e+00> : vector<8x256xf32>
    %57 = tpu.matmul %55, %56, %cst_47 {dimension_numbers = #tpu.dot_dimension_numbers<[1], [0], [0], [1], [0, 0, 1, 1], [], []>} : vector<8x256xbf16>, vector<256x256xbf16>, vector<8x256xf32> -> vector<8x256xf32>
    %c0_48 = arith.constant 0 : index
    %c0_49 = arith.constant 0 : index
    %58 = vector.load %arg15[%c0_48, %c0_49] : memref<1x256xf32, #tpu.memory_space<vmem>>, vector<1x256xf32>
    %59 = vector.broadcast %58 : vector<1x256xf32> to vector<8x256xf32>
    %60 = arith.addf %57, %59 : vector<8x256xf32>
    %cst_50 = arith.constant 0.000000e+00 : f32
    %61 = vector.broadcast %cst_50 : f32 to vector<8x256xf32>
    %62 = arith.cmpf oge, %60, %61 : vector<8x256xf32>
    %cst_51 = arith.constant 1.000000e-01 : f32
    %63 = vector.broadcast %cst_51 : f32 to vector<8x256xf32>
    %64 = arith.mulf %63, %60 : vector<8x256xf32>
    %65 = arith.select %62, %60, %64 : vector<8x256xi1>, vector<8x256xf32>
    %66 = vector.extract_strided_slice %43 {offsets = [0, 0], sizes = [8, 128], strides = [1, 1]} : vector<8x256xf32> to vector<8x128xf32>
    %67 = arith.truncf %66 : vector<8x128xf32> to vector<8x128xbf16>
    %c0_52 = arith.constant 0 : index
    %c0_53 = arith.constant 0 : index
    %68 = vector.load %arg16[%c0_52, %c0_53] : memref<128x128xbf16, #tpu.memory_space<vmem>>, vector<128x128xbf16>
    %cst_54 = arith.constant dense<0.000000e+00> : vector<8x128xf32>
    %69 = tpu.matmul %67, %68, %cst_54 {dimension_numbers = #tpu.dot_dimension_numbers<[1], [0], [0], [1], [0, 0, 1, 1], [], []>} : vector<8x128xbf16>, vector<128x128xbf16>, vector<8x128xf32> -> vector<8x128xf32>
    %c0_55 = arith.constant 0 : index
    %c0_56 = arith.constant 0 : index
    %70 = vector.load %arg17[%c0_55, %c0_56] : memref<1x128xf32, #tpu.memory_space<vmem>>, vector<1x128xf32>
    %71 = vector.broadcast %70 : vector<1x128xf32> to vector<8x128xf32>
    %72 = arith.addf %69, %71 : vector<8x128xf32>
    %73 = vector.extract_strided_slice %54 {offsets = [0, 0], sizes = [8, 128], strides = [1, 1]} : vector<8x256xf32> to vector<8x128xf32>
    %74 = arith.truncf %73 : vector<8x128xf32> to vector<8x128xbf16>
    %c0_57 = arith.constant 0 : index
    %c0_58 = arith.constant 0 : index
    %75 = vector.load %arg18[%c0_57, %c0_58] : memref<128x128xbf16, #tpu.memory_space<vmem>>, vector<128x128xbf16>
    %cst_59 = arith.constant dense<0.000000e+00> : vector<8x128xf32>
    %76 = tpu.matmul %74, %75, %cst_59 {dimension_numbers = #tpu.dot_dimension_numbers<[1], [0], [0], [1], [0, 0, 1, 1], [], []>} : vector<8x128xbf16>, vector<128x128xbf16>, vector<8x128xf32> -> vector<8x128xf32>
    %c0_60 = arith.constant 0 : index
    %c0_61 = arith.constant 0 : index
    %77 = vector.load %arg19[%c0_60, %c0_61] : memref<1x128xf32, #tpu.memory_space<vmem>>, vector<1x128xf32>
    %78 = vector.broadcast %77 : vector<1x128xf32> to vector<8x128xf32>
    %79 = arith.addf %76, %78 : vector<8x128xf32>
    %80 = vector.extract_strided_slice %65 {offsets = [0, 0], sizes = [8, 128], strides = [1, 1]} : vector<8x256xf32> to vector<8x128xf32>
    %81 = arith.truncf %80 : vector<8x128xf32> to vector<8x128xbf16>
    %c0_62 = arith.constant 0 : index
    %c0_63 = arith.constant 0 : index
    %82 = vector.load %arg20[%c0_62, %c0_63] : memref<128x128xbf16, #tpu.memory_space<vmem>>, vector<128x128xbf16>
    %cst_64 = arith.constant dense<0.000000e+00> : vector<8x128xf32>
    %83 = tpu.matmul %81, %82, %cst_64 {dimension_numbers = #tpu.dot_dimension_numbers<[1], [0], [0], [1], [0, 0, 1, 1], [], []>} : vector<8x128xbf16>, vector<128x128xbf16>, vector<8x128xf32> -> vector<8x128xf32>
    %c0_65 = arith.constant 0 : index
    %c0_66 = arith.constant 0 : index
    %84 = vector.load %arg21[%c0_65, %c0_66] : memref<1x128xf32, #tpu.memory_space<vmem>>, vector<1x128xf32>
    %85 = vector.broadcast %84 : vector<1x128xf32> to vector<8x128xf32>
    %86 = arith.addf %83, %85 : vector<8x128xf32>
    %c0_67 = arith.constant 0 : index
    %c0_68 = arith.constant 0 : index
    %c0_69 = arith.constant 0 : index
    %87 = vector.load %arg33[%c0_67, %c0_68, %c0_69] : memref<1x8x128xf32, #tpu.memory_space<vmem>>, vector<1x8x128xf32>
    %88 = vector.shape_cast %87 : vector<1x8x128xf32> to vector<8x128xf32>
    %89 = vector.shape_cast %72 : vector<8x128xf32> to vector<1x8x128xf32>
    tpu.vector_store %arg33[%c0_67, %c0_68, %c0_69], %89 {strides = array<i32>} : memref<1x8x128xf32, #tpu.memory_space<vmem>>, vector<1x8x128xf32>,
    %c0_70 = arith.constant 0 : index
    %c0_71 = arith.constant 0 : index
    %c0_72 = arith.constant 0 : index
    %90 = vector.load %arg34[%c0_70, %c0_71, %c0_72] : memref<1x8x128xf32, #tpu.memory_space<vmem>>, vector<1x8x128xf32>
    %91 = vector.shape_cast %90 : vector<1x8x128xf32> to vector<8x128xf32>
    %92 = vector.shape_cast %79 : vector<8x128xf32> to vector<1x8x128xf32>
    tpu.vector_store %arg34[%c0_70, %c0_71, %c0_72], %92 {strides = array<i32>} : memref<1x8x128xf32, #tpu.memory_space<vmem>>, vector<1x8x128xf32>,
    %c0_73 = arith.constant 0 : index
    %c0_74 = arith.constant 0 : index
    %c0_75 = arith.constant 0 : index
    %93 = vector.load %arg35[%c0_73, %c0_74, %c0_75] : memref<1x8x128xf32, #tpu.memory_space<vmem>>, vector<1x8x128xf32>
    %94 = vector.shape_cast %93 : vector<1x8x128xf32> to vector<8x128xf32>
    %95 = vector.shape_cast %86 : vector<8x128xf32> to vector<1x8x128xf32>
    tpu.vector_store %arg35[%c0_73, %c0_74, %c0_75], %95 {strides = array<i32>} : memref<1x8x128xf32, #tpu.memory_space<vmem>>, vector<1x8x128xf32>,
    %96 = vector.extract_strided_slice %43 {offsets = [0, 128], sizes = [8, 128], strides = [1, 1]} : vector<8x256xf32> to vector<8x128xf32>
    %97 = vector.extract_strided_slice %54 {offsets = [0, 128], sizes = [8, 128], strides = [1, 1]} : vector<8x256xf32> to vector<8x128xf32>
    %98 = vector.extract_strided_slice %65 {offsets = [0, 128], sizes = [8, 128], strides = [1, 1]} : vector<8x256xf32> to vector<8x128xf32>
    %99 = tpu.concatenate %96, %97, %98 in 0 : vector<8x128xf32>, vector<8x128xf32>, vector<8x128xf32> -> vector<24x128xf32>
    %100 = arith.truncf %99 : vector<24x128xf32> to vector<24x128xbf16>
    %c0_76 = arith.constant 0 : index
    %c0_77 = arith.constant 0 : index
    %101 = vector.load %arg22[%c0_76, %c0_77] : memref<128x128xbf16, #tpu.memory_space<vmem>>, vector<128x128xbf16>
    %cst_78 = arith.constant dense<0.000000e+00> : vector<24x128xf32>
    %102 = tpu.matmul %100, %101, %cst_78 {dimension_numbers = #tpu.dot_dimension_numbers<[1], [0], [0], [1], [0, 0, 1, 1], [], []>} : vector<24x128xbf16>, vector<128x128xbf16>, vector<24x128xf32> -> vector<24x128xf32>
    %c0_79 = arith.constant 0 : index
    %c0_80 = arith.constant 0 : index
    %103 = vector.load %arg23[%c0_79, %c0_80] : memref<1x128xf32, #tpu.memory_space<vmem>>, vector<1x128xf32>
    %104 = vector.broadcast %103 : vector<1x128xf32> to vector<24x128xf32>
    %105 = arith.addf %102, %104 : vector<24x128xf32>
    %106 = vector.extract_strided_slice %105 {offsets = [0, 0], sizes = [8, 128], strides = [1, 1]} : vector<24x128xf32> to vector<8x128xf32>
    %107 = vector.extract_strided_slice %105 {offsets = [8, 0], sizes = [8, 128], strides = [1, 1]} : vector<24x128xf32> to vector<8x128xf32>
    %108 = vector.extract_strided_slice %105 {offsets = [16, 0], sizes = [8, 128], strides = [1, 1]} : vector<24x128xf32> to vector<8x128xf32>
    %c0_81 = arith.constant 0 : index
    %c0_82 = arith.constant 0 : index
    %c0_83 = arith.constant 0 : index
    %109 = vector.load %arg36[%c0_81, %c0_82, %c0_83] : memref<1x8x128xf32, #tpu.memory_space<vmem>>, vector<1x8x128xf32>
    %110 = vector.shape_cast %109 : vector<1x8x128xf32> to vector<8x128xf32>
    %111 = vector.shape_cast %106 : vector<8x128xf32> to vector<1x8x128xf32>
    tpu.vector_store %arg36[%c0_81, %c0_82, %c0_83], %111 {strides = array<i32>} : memref<1x8x128xf32, #tpu.memory_space<vmem>>, vector<1x8x128xf32>,
    %c0_84 = arith.constant 0 : index
    %c0_85 = arith.constant 0 : index
    %c0_86 = arith.constant 0 : index
    %112 = vector.load %arg37[%c0_84, %c0_85, %c0_86] : memref<1x8x128xf32, #tpu.memory_space<vmem>>, vector<1x8x128xf32>
    %113 = vector.shape_cast %112 : vector<1x8x128xf32> to vector<8x128xf32>
    %114 = vector.shape_cast %107 : vector<8x128xf32> to vector<1x8x128xf32>
    tpu.vector_store %arg37[%c0_84, %c0_85, %c0_86], %114 {strides = array<i32>} : memref<1x8x128xf32, #tpu.memory_space<vmem>>, vector<1x8x128xf32>,
    %c0_87 = arith.constant 0 : index
    %c0_88 = arith.constant 0 : index
    %c0_89 = arith.constant 0 : index
    %115 = vector.load %arg38[%c0_87, %c0_88, %c0_89] : memref<1x8x128xf32, #tpu.memory_space<vmem>>, vector<1x8x128xf32>
    %116 = vector.shape_cast %115 : vector<1x8x128xf32> to vector<8x128xf32>
    %117 = vector.shape_cast %108 : vector<8x128xf32> to vector<1x8x128xf32>
    tpu.vector_store %arg38[%c0_87, %c0_88, %c0_89], %117 {strides = array<i32>} : memref<1x8x128xf32, #tpu.memory_space<vmem>>, vector<1x8x128xf32>,
    %118 = tpu.concatenate %106, %107, %108 in 1 : vector<8x128xf32>, vector<8x128xf32>, vector<8x128xf32> -> vector<8x384xf32>
    %119 = arith.truncf %118 : vector<8x384xf32> to vector<8x384xbf16>
    %c0_90 = arith.constant 0 : index
    %c0_91 = arith.constant 0 : index
    %120 = vector.load %arg24[%c0_90, %c0_91] : memref<384x128xbf16, #tpu.memory_space<vmem>>, vector<384x128xbf16>
    %cst_92 = arith.constant dense<0.000000e+00> : vector<8x128xf32>
    %121 = tpu.matmul %119, %120, %cst_92 {dimension_numbers = #tpu.dot_dimension_numbers<[1], [0], [0], [1], [0, 0, 1, 1], [], []>} : vector<8x384xbf16>, vector<384x128xbf16>, vector<8x128xf32> -> vector<8x128xf32>
    %c0_93 = arith.constant 0 : index
    %c0_94 = arith.constant 0 : index
    %122 = vector.load %arg25[%c0_93, %c0_94] : memref<1x128xf32, #tpu.memory_space<vmem>>, vector<1x128xf32>
    %123 = vector.broadcast %122 : vector<1x128xf32> to vector<8x128xf32>
    %124 = arith.addf %121, %123 : vector<8x128xf32>
    %cst_95 = arith.constant 0.000000e+00 : f32
    %125 = vector.broadcast %cst_95 : f32 to vector<8x128xf32>
    %126 = arith.cmpf oge, %124, %125 : vector<8x128xf32>
    %cst_96 = arith.constant 1.000000e-01 : f32
    %127 = vector.broadcast %cst_96 : f32 to vector<8x128xf32>
    %128 = arith.mulf %127, %124 : vector<8x128xf32>
    %129 = arith.select %126, %124, %128 : vector<8x128xi1>, vector<8x128xf32>
    %130 = arith.truncf %129 : vector<8x128xf32> to vector<8x128xbf16>
    %c0_97 = arith.constant 0 : index
    %c0_98 = arith.constant 0 : index
    %131 = vector.load %arg26[%c0_97, %c0_98] : memref<128x128xbf16, #tpu.memory_space<vmem>>, vector<128x128xbf16>
    %cst_99 = arith.constant dense<0.000000e+00> : vector<8x128xf32>
    %132 = tpu.matmul %130, %131, %cst_99 {dimension_numbers = #tpu.dot_dimension_numbers<[1], [0], [0], [1], [0, 0, 1, 1], [], []>} : vector<8x128xbf16>, vector<128x128xbf16>, vector<8x128xf32> -> vector<8x128xf32>
    %c0_100 = arith.constant 0 : index
    %c0_101 = arith.constant 0 : index
    %133 = vector.load %arg27[%c0_100, %c0_101] : memref<1x128xf32, #tpu.memory_space<vmem>>, vector<1x128xf32>
    %134 = vector.broadcast %133 : vector<1x128xf32> to vector<8x128xf32>
    %135 = arith.addf %132, %134 : vector<8x128xf32>
    %c0_102 = arith.constant 0 : index
    %c0_103 = arith.constant 0 : index
    %c0_104 = arith.constant 0 : index
    %136 = vector.load %arg39[%c0_102, %c0_103, %c0_104] : memref<1x8x128xf32, #tpu.memory_space<vmem>>, vector<1x8x128xf32>
    %137 = vector.shape_cast %136 : vector<1x8x128xf32> to vector<8x128xf32>
    %138 = vector.shape_cast %135 : vector<8x128xf32> to vector<1x8x128xf32>
    tpu.vector_store %arg39[%c0_102, %c0_103, %c0_104], %138 {strides = array<i32>} : memref<1x8x128xf32, #tpu.memory_space<vmem>>, vector<1x8x128xf32>,
    %cst_105 = arith.constant dense<0.000000e+00> : vector<128xf32>
    %139 = vector.multi_reduction <add>, %106, %cst_105 [0] : vector<8x128xf32> to vector<128xf32>
    %140 = vector.shape_cast %139 : vector<128xf32> to vector<1x128xf32>
    %c0_106 = arith.constant 0 : index
    %c0_107 = arith.constant 0 : index
    %141 = vector.load %arg41[%c0_106, %c0_107] : memref<6x128xf32, #tpu.memory_space<vmem>>, vector<1x128xf32>
    tpu.vector_store %arg41[%c0_106, %c0_107], %140 {strides = array<i32>} : memref<6x128xf32, #tpu.memory_space<vmem>>, vector<1x128xf32>,
    %cst_108 = arith.constant dense<0.000000e+00> : vector<128xf32>
    %142 = vector.multi_reduction <add>, %107, %cst_108 [0] : vector<8x128xf32> to vector<128xf32>
    %143 = vector.shape_cast %142 : vector<128xf32> to vector<1x128xf32>
    %c1 = arith.constant 1 : index
    %c0_109 = arith.constant 0 : index
    %144 = vector.load %arg41[%c1, %c0_109] : memref<6x128xf32, #tpu.memory_space<vmem>>, vector<1x128xf32>
    tpu.vector_store %arg41[%c1, %c0_109], %143 {strides = array<i32>} : memref<6x128xf32, #tpu.memory_space<vmem>>, vector<1x128xf32>,
    %cst_110 = arith.constant dense<0.000000e+00> : vector<128xf32>
    %145 = vector.multi_reduction <add>, %108, %cst_110 [0] : vector<8x128xf32> to vector<128xf32>
    %146 = vector.shape_cast %145 : vector<128xf32> to vector<1x128xf32>
    %c2 = arith.constant 2 : index
    %c0_111 = arith.constant 0 : index
    %147 = vector.load %arg41[%c2, %c0_111] : memref<6x128xf32, #tpu.memory_space<vmem>>, vector<1x128xf32>
    tpu.vector_store %arg41[%c2, %c0_111], %146 {strides = array<i32>} : memref<6x128xf32, #tpu.memory_space<vmem>>, vector<1x128xf32>,
    %cst_112 = arith.constant dense<0.000000e+00> : vector<128xf32>
    %148 = vector.multi_reduction <add>, %72, %cst_112 [0] : vector<8x128xf32> to vector<128xf32>
    %149 = vector.shape_cast %148 : vector<128xf32> to vector<1x128xf32>
    %c3 = arith.constant 3 : index
    %c0_113 = arith.constant 0 : index
    %150 = vector.load %arg41[%c3, %c0_113] : memref<6x128xf32, #tpu.memory_space<vmem>>, vector<1x128xf32>
    tpu.vector_store %arg41[%c3, %c0_113], %149 {strides = array<i32>} : memref<6x128xf32, #tpu.memory_space<vmem>>, vector<1x128xf32>,
    %cst_114 = arith.constant dense<0.000000e+00> : vector<128xf32>
    %151 = vector.multi_reduction <add>, %79, %cst_114 [0] : vector<8x128xf32> to vector<128xf32>
    %152 = vector.shape_cast %151 : vector<128xf32> to vector<1x128xf32>
    %c4 = arith.constant 4 : index
    %c0_115 = arith.constant 0 : index
    %153 = vector.load %arg41[%c4, %c0_115] : memref<6x128xf32, #tpu.memory_space<vmem>>, vector<1x128xf32>
    tpu.vector_store %arg41[%c4, %c0_115], %152 {strides = array<i32>} : memref<6x128xf32, #tpu.memory_space<vmem>>, vector<1x128xf32>,
    %cst_116 = arith.constant dense<0.000000e+00> : vector<128xf32>
    %154 = vector.multi_reduction <add>, %86, %cst_116 [0] : vector<8x128xf32> to vector<128xf32>
    %155 = vector.shape_cast %154 : vector<128xf32> to vector<1x128xf32>
    %c5 = arith.constant 5 : index
    %c0_117 = arith.constant 0 : index
    %156 = vector.load %arg41[%c5, %c0_117] : memref<6x128xf32, #tpu.memory_space<vmem>>, vector<1x128xf32>
    tpu.vector_store %arg41[%c5, %c0_117], %155 {strides = array<i32>} : memref<6x128xf32, #tpu.memory_space<vmem>>, vector<1x128xf32>,
    %c0_118 = arith.constant 0 : index
    %c0_119 = arith.constant 0 : index
    %157 = vector.load %arg41[%c0_118, %c0_119] : memref<6x128xf32, #tpu.memory_space<vmem>>, vector<6x128xf32>
    %cst_120 = arith.constant 1.250000e-01 : f32
    %158 = vector.broadcast %cst_120 : f32 to vector<6x128xf32>
    %159 = arith.mulf %157, %158 : vector<6x128xf32>
    %160 = arith.truncf %159 : vector<6x128xf32> to vector<6x128xbf16>
    %c0_121 = arith.constant 0 : index
    %c0_122 = arith.constant 0 : index
    %161 = vector.load %arg28[%c0_121, %c0_122] : memref<128x128xbf16, #tpu.memory_space<vmem>>, vector<128x128xbf16>
    %cst_123 = arith.constant dense<0.000000e+00> : vector<6x128xf32>
    %162 = tpu.matmul %160, %161, %cst_123 {dimension_numbers = #tpu.dot_dimension_numbers<[1], [0], [0], [1], [0, 0, 1, 1], [], []>} : vector<6x128xbf16>, vector<128x128xbf16>, vector<6x128xf32> -> vector<6x128xf32>
    %c0_124 = arith.constant 0 : index
    %c0_125 = arith.constant 0 : index
    %163 = vector.load %arg29[%c0_124, %c0_125] : memref<1x128xf32, #tpu.memory_space<vmem>>, vector<1x128xf32>
    %164 = vector.broadcast %163 : vector<1x128xf32> to vector<6x128xf32>
    %165 = arith.addf %162, %164 : vector<6x128xf32>
    %c0_126 = arith.constant 0 : index
    %c0_127 = arith.constant 0 : index
    %c0_128 = arith.constant 0 : index
    %166 = vector.load %arg40[%c0_126, %c0_127, %c0_128] : memref<1x6x128xf32, #tpu.memory_space<vmem>>, vector<1x6x128xf32>
    %167 = vector.shape_cast %166 : vector<1x6x128xf32> to vector<6x128xf32>
    %168 = vector.shape_cast %165 : vector<6x128xf32> to vector<1x6x128xf32>
    tpu.vector_store %arg40[%c0_126, %c0_127, %c0_128], %168 {strides = array<i32>} : memref<1x6x128xf32, #tpu.memory_space<vmem>>, vector<1x6x128xf32>,
    return
  }
  func.func @transform_0(%arg0: i32) -> (i32, i32, i32) {
    %c0_i32 = arith.constant 0 : i32
    %c0_i32_0 = arith.constant 0 : i32
    %c0_i32_1 = arith.constant 0 : i32
    return %arg0, %c0_i32, %c0_i32_0 : i32, i32, i32
  }
  func.func @transform_1(%arg0: i32) -> (i32, i32, i32) {
    %c0_i32 = arith.constant 0 : i32
    %c0_i32_0 = arith.constant 0 : i32
    %c0_i32_1 = arith.constant 0 : i32
    return %arg0, %c0_i32, %c0_i32_0 : i32, i32, i32
  }
  func.func @transform_2(%arg0: i32) -> (i32, i32, i32) {
    %c0_i32 = arith.constant 0 : i32
    %c0_i32_0 = arith.constant 0 : i32
    %c0_i32_1 = arith.constant 0 : i32
    return %arg0, %c0_i32, %c0_i32_0 : i32, i32, i32
  }
  func.func @transform_3(%arg0: i32) -> (i32, i32) {
    %c0_i32 = arith.constant 0 : i32
    %c0_i32_0 = arith.constant 0 : i32
    %c0_i32_1 = arith.constant 0 : i32
    return %c0_i32, %c0_i32_0 : i32, i32
  }
  func.func @transform_4(%arg0: i32) -> (i32, i32) {
    %c0_i32 = arith.constant 0 : i32
    %c0_i32_0 = arith.constant 0 : i32
    %c0_i32_1 = arith.constant 0 : i32
    return %c0_i32, %c0_i32_0 : i32, i32
  }
  func.func @transform_5(%arg0: i32) -> (i32, i32) {
    %c0_i32 = arith.constant 0 : i32
    %c0_i32_0 = arith.constant 0 : i32
    %c0_i32_1 = arith.constant 0 : i32
    return %c0_i32, %c0_i32_0 : i32, i32
  }
  func.func @transform_6(%arg0: i32) -> (i32, i32) {
    %c0_i32 = arith.constant 0 : i32
    %c0_i32_0 = arith.constant 0 : i32
    %c0_i32_1 = arith.constant 0 : i32
    return %c0_i32, %c0_i32_0 : i32, i32
  }
  func.func @transform_7(%arg0: i32) -> (i32, i32) {
    %c0_i32 = arith.constant 0 : i32
    %c0_i32_0 = arith.constant 0 : i32
    %c0_i32_1 = arith.constant 0 : i32
    return %c0_i32, %c0_i32_0 : i32, i32
  }
  func.func @transform_8(%arg0: i32) -> (i32, i32) {
    %c0_i32 = arith.constant 0 : i32
    %c0_i32_0 = arith.constant 0 : i32
    %c0_i32_1 = arith.constant 0 : i32
    return %c0_i32, %c0_i32_0 : i32, i32
  }
  func.func @transform_9(%arg0: i32) -> (i32, i32) {
    %c0_i32 = arith.constant 0 : i32
    %c0_i32_0 = arith.constant 0 : i32
    %c0_i32_1 = arith.constant 0 : i32
    return %c0_i32, %c0_i32_0 : i32, i32
  }
  func.func @transform_10(%arg0: i32) -> (i32, i32) {
    %c0_i32 = arith.constant 0 : i32
    %c0_i32_0 = arith.constant 0 : i32
    %c0_i32_1 = arith.constant 0 : i32
    return %c0_i32, %c0_i32_0 : i32, i32
  }
  func.func @transform_11(%arg0: i32) -> (i32, i32) {
    %c0_i32 = arith.constant 0 : i32
    %c0_i32_0 = arith.constant 0 : i32
    %c0_i32_1 = arith.constant 0 : i32
    return %c0_i32, %c0_i32_0 : i32, i32
  }
  func.func @transform_12(%arg0: i32) -> (i32, i32) {
    %c0_i32 = arith.constant 0 : i32
    %c0_i32_0 = arith.constant 0 : i32
    %c0_i32_1 = arith.constant 0 : i32
    return %c0_i32, %c0_i32_0 : i32, i32
  }
  func.func @transform_13(%arg0: i32) -> (i32, i32) {
    %c0_i32 = arith.constant 0 : i32
    %c0_i32_0 = arith.constant 0 : i32
    %c0_i32_1 = arith.constant 0 : i32
    return %c0_i32, %c0_i32_0 : i32, i32
  }
  func.func @transform_14(%arg0: i32) -> (i32, i32) {
    %c0_i32 = arith.constant 0 : i32
    %c0_i32_0 = arith.constant 0 : i32
    %c0_i32_1 = arith.constant 0 : i32
    return %c0_i32, %c0_i32_0 : i32, i32
  }
  func.func @transform_15(%arg0: i32) -> (i32, i32) {
    %c0_i32 = arith.constant 0 : i32
    %c0_i32_0 = arith.constant 0 : i32
    %c0_i32_1 = arith.constant 0 : i32
    return %c0_i32, %c0_i32_0 : i32, i32
  }
  func.func @transform_16(%arg0: i32) -> (i32, i32) {
    %c0_i32 = arith.constant 0 : i32
    %c0_i32_0 = arith.constant 0 : i32
    %c0_i32_1 = arith.constant 0 : i32
    return %c0_i32, %c0_i32_0 : i32, i32
  }
  func.func @transform_17(%arg0: i32) -> (i32, i32) {
    %c0_i32 = arith.constant 0 : i32
    %c0_i32_0 = arith.constant 0 : i32
    %c0_i32_1 = arith.constant 0 : i32
    return %c0_i32, %c0_i32_0 : i32, i32
  }
  func.func @transform_18(%arg0: i32) -> (i32, i32) {
    %c0_i32 = arith.constant 0 : i32
    %c0_i32_0 = arith.constant 0 : i32
    %c0_i32_1 = arith.constant 0 : i32
    return %c0_i32, %c0_i32_0 : i32, i32
  }
  func.func @transform_19(%arg0: i32) -> (i32, i32) {
    %c0_i32 = arith.constant 0 : i32
    %c0_i32_0 = arith.constant 0 : i32
    %c0_i32_1 = arith.constant 0 : i32
    return %c0_i32, %c0_i32_0 : i32, i32
  }
  func.func @transform_20(%arg0: i32) -> (i32, i32) {
    %c0_i32 = arith.constant 0 : i32
    %c0_i32_0 = arith.constant 0 : i32
    %c0_i32_1 = arith.constant 0 : i32
    return %c0_i32, %c0_i32_0 : i32, i32
  }
  func.func @transform_21(%arg0: i32) -> (i32, i32) {
    %c0_i32 = arith.constant 0 : i32
    %c0_i32_0 = arith.constant 0 : i32
    %c0_i32_1 = arith.constant 0 : i32
    return %c0_i32, %c0_i32_0 : i32, i32
  }
  func.func @transform_22(%arg0: i32) -> (i32, i32) {
    %c0_i32 = arith.constant 0 : i32
    %c0_i32_0 = arith.constant 0 : i32
    %c0_i32_1 = arith.constant 0 : i32
    return %c0_i32, %c0_i32_0 : i32, i32
  }
  func.func @transform_23(%arg0: i32) -> (i32, i32) {
    %c0_i32 = arith.constant 0 : i32
    %c0_i32_0 = arith.constant 0 : i32
    %c0_i32_1 = arith.constant 0 : i32
    return %c0_i32, %c0_i32_0 : i32, i32
  }
  func.func @transform_24(%arg0: i32) -> (i32, i32) {
    %c0_i32 = arith.constant 0 : i32
    %c0_i32_0 = arith.constant 0 : i32
    %c0_i32_1 = arith.constant 0 : i32
    return %c0_i32, %c0_i32_0 : i32, i32
  }
  func.func @transform_25(%arg0: i32) -> (i32, i32) {
    %c0_i32 = arith.constant 0 : i32
    %c0_i32_0 = arith.constant 0 : i32
    %c0_i32_1 = arith.constant 0 : i32
    return %c0_i32, %c0_i32_0 : i32, i32
  }
  func.func @transform_26(%arg0: i32) -> (i32, i32) {
    %c0_i32 = arith.constant 0 : i32
    %c0_i32_0 = arith.constant 0 : i32
    %c0_i32_1 = arith.constant 0 : i32
    return %c0_i32, %c0_i32_0 : i32, i32
  }
  func.func @transform_27(%arg0: i32) -> (i32, i32) {
    %c0_i32 = arith.constant 0 : i32
    %c0_i32_0 = arith.constant 0 : i32
    %c0_i32_1 = arith.constant 0 : i32
    return %c0_i32, %c0_i32_0 : i32, i32
  }
  func.func @transform_28(%arg0: i32) -> (i32, i32) {
    %c0_i32 = arith.constant 0 : i32
    %c0_i32_0 = arith.constant 0 : i32
    %c0_i32_1 = arith.constant 0 : i32
    return %c0_i32, %c0_i32_0 : i32, i32
  }
  func.func @transform_29(%arg0: i32) -> (i32, i32, i32) {
    %c0_i32 = arith.constant 0 : i32
    %c0_i32_0 = arith.constant 0 : i32
    %c0_i32_1 = arith.constant 0 : i32
    return %arg0, %c0_i32, %c0_i32_0 : i32, i32, i32
  }
  func.func @transform_30(%arg0: i32) -> (i32, i32, i32) {
    %c0_i32 = arith.constant 0 : i32
    %c0_i32_0 = arith.constant 0 : i32
    %c0_i32_1 = arith.constant 0 : i32
    return %arg0, %c0_i32, %c0_i32_0 : i32, i32, i32
  }
  func.func @transform_31(%arg0: i32) -> (i32, i32, i32) {
    %c0_i32 = arith.constant 0 : i32
    %c0_i32_0 = arith.constant 0 : i32
    %c0_i32_1 = arith.constant 0 : i32
    return %arg0, %c0_i32, %c0_i32_0 : i32, i32, i32
  }
  func.func @transform_32(%arg0: i32) -> (i32, i32, i32) {
    %c0_i32 = arith.constant 0 : i32
    %c0_i32_0 = arith.constant 0 : i32
    %c0_i32_1 = arith.constant 0 : i32
    return %arg0, %c0_i32, %c0_i32_0 : i32, i32, i32
  }
  func.func @transform_33(%arg0: i32) -> (i32, i32, i32) {
    %c0_i32 = arith.constant 0 : i32
    %c0_i32_0 = arith.constant 0 : i32
    %c0_i32_1 = arith.constant 0 : i32
    return %arg0, %c0_i32, %c0_i32_0 : i32, i32, i32
  }
  func.func @transform_34(%arg0: i32) -> (i32, i32, i32) {
    %c0_i32 = arith.constant 0 : i32
    %c0_i32_0 = arith.constant 0 : i32
    %c0_i32_1 = arith.constant 0 : i32
    return %arg0, %c0_i32, %c0_i32_0 : i32, i32, i32
  }
  func.func @transform_35(%arg0: i32) -> (i32, i32, i32) {
    %c0_i32 = arith.constant 0 : i32
    %c0_i32_0 = arith.constant 0 : i32
    %c0_i32_1 = arith.constant 0 : i32
    return %arg0, %c0_i32, %c0_i32_0 : i32, i32, i32
  }
  func.func @transform_36(%arg0: i32) -> (i32, i32, i32) {
    %c0_i32 = arith.constant 0 : i32
    %c0_i32_0 = arith.constant 0 : i32
    %c0_i32_1 = arith.constant 0 : i32
    return %arg0, %c0_i32, %c0_i32_0 : i32, i32, i32
  }
  func.func @transform_37(%arg0: i32) -> (i32, i32, i32) {
    %c0_i32 = arith.constant 0 : i32
    %c0_i32_0 = arith.constant 0 : i32
    %c0_i32_1 = arith.constant 0 : i32
    return %arg0, %c0_i32, %c0_i32_0 : i32, i32, i32
  }
  func.func @transform_38(%arg0: i32) -> (i32, i32, i32) {
    %c0_i32 = arith.constant 0 : i32
    %c0_i32_0 = arith.constant 0 : i32
    %c0_i32_1 = arith.constant 0 : i32
    return %arg0, %c0_i32, %c0_i32_0 : i32, i32, i32
  }
  func.func @transform_39(%arg0: i32) -> (i32, i32, i32) {
    %c0_i32 = arith.constant 0 : i32
    %c0_i32_0 = arith.constant 0 : i32
    %c0_i32_1 = arith.constant 0 : i32
    return %arg0, %c0_i32, %c0_i32_0 : i32, i32, i32
  }
}

module attributes {stable_mosaic.version = 11 : i64} {
  func.func @_xform_kernel(%arg0: i32, %arg1: memref<1x9x128xf32, #tpu.memory_space<vmem>>, %arg2: memref<1x25x128xf32, #tpu.memory_space<vmem>>, %arg3: memref<1x128xf32, #tpu.memory_space<vmem>>, %arg4: memref<1x128xf32, #tpu.memory_space<vmem>>, %arg5: memref<1x128xf32, #tpu.memory_space<vmem>>, %arg6: memref<1x128xf32, #tpu.memory_space<vmem>>, %arg7: memref<1x128xf32, #tpu.memory_space<vmem>>, %arg8: memref<1x128xf32, #tpu.memory_space<vmem>>, %arg9: memref<128x512xbf16, #tpu.memory_space<vmem>>, %arg10: memref<128x512xbf16, #tpu.memory_space<vmem>>, %arg11: memref<128x512xbf16, #tpu.memory_space<vmem>>, %arg12: memref<512x128xbf16, #tpu.memory_space<vmem>>, %arg13: memref<1x128xf32, #tpu.memory_space<vmem>>, %arg14: memref<128x256xbf16, #tpu.memory_space<vmem>>, %arg15: memref<1x256xf32, #tpu.memory_space<vmem>>, %arg16: memref<256x128xbf16, #tpu.memory_space<vmem>>, %arg17: memref<1x128xf32, #tpu.memory_space<vmem>>, %arg18: memref<128x128xbf16, #tpu.memory_space<vmem>>, %arg19: memref<1x128xf32, #tpu.memory_space<vmem>>, %arg20: memref<1x1x128xf32, #tpu.memory_space<vmem>>, %arg21: memref<1x1x128xf32, #tpu.memory_space<vmem>>, %arg22: memref<9x512xf32, #tpu.memory_space<vmem>>) attributes {dimension_semantics = [#tpu.dimension_semantics<parallel>], iteration_bounds = array<i64: 2>, scalar_prefetch = 0 : i64, scratch_operands = 1 : i64, tpu.core_type = #tpu.core_type<tc>, window_params = [{transform_indices = @transform_0, window_bounds = array<i64: 1, 9, 128>}, {transform_indices = @transform_1, window_bounds = array<i64: 1, 25, 128>}, {pipeline_mode = #tpu.pipeline_mode<synchronous>, transform_indices = @transform_2, window_bounds = array<i64: 1, 128>}, {pipeline_mode = #tpu.pipeline_mode<synchronous>, transform_indices = @transform_3, window_bounds = array<i64: 1, 128>}, {pipeline_mode = #tpu.pipeline_mode<synchronous>, transform_indices = @transform_4, window_bounds = array<i64: 1, 128>}, {pipeline_mode = #tpu.pipeline_mode<synchronous>, transform_indices = @transform_5, window_bounds = array<i64: 1, 128>}, {pipeline_mode = #tpu.pipeline_mode<synchronous>, transform_indices = @transform_6, window_bounds = array<i64: 1, 128>}, {pipeline_mode = #tpu.pipeline_mode<synchronous>, transform_indices = @transform_7, window_bounds = array<i64: 1, 128>}, {pipeline_mode = #tpu.pipeline_mode<synchronous>, transform_indices = @transform_8, window_bounds = array<i64: 128, 512>}, {pipeline_mode = #tpu.pipeline_mode<synchronous>, transform_indices = @transform_9, window_bounds = array<i64: 128, 512>}, {pipeline_mode = #tpu.pipeline_mode<synchronous>, transform_indices = @transform_10, window_bounds = array<i64: 128, 512>}, {pipeline_mode = #tpu.pipeline_mode<synchronous>, transform_indices = @transform_11, window_bounds = array<i64: 512, 128>}, {pipeline_mode = #tpu.pipeline_mode<synchronous>, transform_indices = @transform_12, window_bounds = array<i64: 1, 128>}, {pipeline_mode = #tpu.pipeline_mode<synchronous>, transform_indices = @transform_13, window_bounds = array<i64: 128, 256>}, {pipeline_mode = #tpu.pipeline_mode<synchronous>, transform_indices = @transform_14, window_bounds = array<i64: 1, 256>}, {pipeline_mode = #tpu.pipeline_mode<synchronous>, transform_indices = @transform_15, window_bounds = array<i64: 256, 128>}, {pipeline_mode = #tpu.pipeline_mode<synchronous>, transform_indices = @transform_16, window_bounds = array<i64: 1, 128>}, {pipeline_mode = #tpu.pipeline_mode<synchronous>, transform_indices = @transform_17, window_bounds = array<i64: 128, 128>}, {pipeline_mode = #tpu.pipeline_mode<synchronous>, transform_indices = @transform_18, window_bounds = array<i64: 1, 128>}, {transform_indices = @transform_19, window_bounds = array<i64: 1, 1, 128>}, {transform_indices = @transform_20, window_bounds = array<i64: 1, 1, 128>}]} {
    %c0 = arith.constant 0 : index
    %c0_0 = arith.constant 0 : index
    %c0_1 = arith.constant 0 : index
    %0 = vector.load %arg1[%c0, %c0_0, %c0_1] : memref<1x9x128xf32, #tpu.memory_space<vmem>>, vector<1x9x128xf32>
    %1 = vector.shape_cast %0 : vector<1x9x128xf32> to vector<9x128xf32>
    %c0_2 = arith.constant 0 : index
    %c0_3 = arith.constant 0 : index
    %c0_4 = arith.constant 0 : index
    %2 = vector.load %arg2[%c0_2, %c0_3, %c0_4] : memref<1x25x128xf32, #tpu.memory_space<vmem>>, vector<1x25x128xf32>
    %3 = vector.shape_cast %2 : vector<1x25x128xf32> to vector<25x128xf32>
    %cst = arith.constant dense<0.000000e+00> : vector<9xf32>
    %4 = vector.multi_reduction <add>, %1, %cst [1] : vector<9x128xf32> to vector<9xf32>
    %5 = vector.shape_cast %4 : vector<9xf32> to vector<9x1xf32>
    %cst_5 = arith.constant 1.280000e+02 : f32
    %6 = vector.broadcast %cst_5 : f32 to vector<9x1xf32>
    %7 = arith.divf %5, %6 : vector<9x1xf32>
    %8 = vector.broadcast %7 : vector<9x1xf32> to vector<9x128xf32>
    %9 = arith.subf %1, %8 : vector<9x128xf32>
    %10 = arith.mulf %9, %9 : vector<9x128xf32>
    %cst_6 = arith.constant dense<0.000000e+00> : vector<9xf32>
    %11 = vector.multi_reduction <add>, %10, %cst_6 [1] : vector<9x128xf32> to vector<9xf32>
    %12 = vector.shape_cast %11 : vector<9xf32> to vector<9x1xf32>
    %cst_7 = arith.constant 1.280000e+02 : f32
    %13 = vector.broadcast %cst_7 : f32 to vector<9x1xf32>
    %14 = arith.divf %12, %13 : vector<9x1xf32>
    %15 = vector.broadcast %7 : vector<9x1xf32> to vector<9x128xf32>
    %16 = arith.subf %1, %15 : vector<9x128xf32>
    %cst_8 = arith.constant 9.99999974E-6 : f32
    %17 = vector.broadcast %cst_8 : f32 to vector<9x1xf32>
    %18 = arith.addf %14, %17 : vector<9x1xf32>
    %19 = math.rsqrt %18 : vector<9x1xf32>
    %20 = vector.broadcast %19 : vector<9x1xf32> to vector<9x128xf32>
    %21 = arith.mulf %16, %20 : vector<9x128xf32>
    %c0_9 = arith.constant 0 : index
    %c0_10 = arith.constant 0 : index
    %22 = vector.load %arg3[%c0_9, %c0_10] : memref<1x128xf32, #tpu.memory_space<vmem>>, vector<1x128xf32>
    %23 = vector.broadcast %22 : vector<1x128xf32> to vector<9x128xf32>
    %24 = arith.mulf %21, %23 : vector<9x128xf32>
    %c0_11 = arith.constant 0 : index
    %c0_12 = arith.constant 0 : index
    %25 = vector.load %arg4[%c0_11, %c0_12] : memref<1x128xf32, #tpu.memory_space<vmem>>, vector<1x128xf32>
    %26 = vector.broadcast %25 : vector<1x128xf32> to vector<9x128xf32>
    %27 = arith.addf %24, %26 : vector<9x128xf32>
    %cst_13 = arith.constant 1.250000e-01 : f32
    %28 = vector.broadcast %cst_13 : f32 to vector<9x128xf32>
    %29 = arith.mulf %27, %28 : vector<9x128xf32>
    %30 = arith.truncf %29 : vector<9x128xf32> to vector<9x128xbf16>
    %cst_14 = arith.constant dense<0.000000e+00> : vector<25xf32>
    %31 = vector.multi_reduction <add>, %3, %cst_14 [1] : vector<25x128xf32> to vector<25xf32>
    %32 = vector.shape_cast %31 : vector<25xf32> to vector<25x1xf32>
    %cst_15 = arith.constant 1.280000e+02 : f32
    %33 = vector.broadcast %cst_15 : f32 to vector<25x1xf32>
    %34 = arith.divf %32, %33 : vector<25x1xf32>
    %35 = vector.broadcast %34 : vector<25x1xf32> to vector<25x128xf32>
    %36 = arith.subf %3, %35 : vector<25x128xf32>
    %37 = arith.mulf %36, %36 : vector<25x128xf32>
    %cst_16 = arith.constant dense<0.000000e+00> : vector<25xf32>
    %38 = vector.multi_reduction <add>, %37, %cst_16 [1] : vector<25x128xf32> to vector<25xf32>
    %39 = vector.shape_cast %38 : vector<25xf32> to vector<25x1xf32>
    %cst_17 = arith.constant 1.280000e+02 : f32
    %40 = vector.broadcast %cst_17 : f32 to vector<25x1xf32>
    %41 = arith.divf %39, %40 : vector<25x1xf32>
    %42 = vector.broadcast %34 : vector<25x1xf32> to vector<25x128xf32>
    %43 = arith.subf %3, %42 : vector<25x128xf32>
    %cst_18 = arith.constant 9.99999974E-6 : f32
    %44 = vector.broadcast %cst_18 : f32 to vector<25x1xf32>
    %45 = arith.addf %41, %44 : vector<25x1xf32>
    %46 = math.rsqrt %45 : vector<25x1xf32>
    %47 = vector.broadcast %46 : vector<25x1xf32> to vector<25x128xf32>
    %48 = arith.mulf %43, %47 : vector<25x128xf32>
    %c0_19 = arith.constant 0 : index
    %c0_20 = arith.constant 0 : index
    %49 = vector.load %arg5[%c0_19, %c0_20] : memref<1x128xf32, #tpu.memory_space<vmem>>, vector<1x128xf32>
    %50 = vector.broadcast %49 : vector<1x128xf32> to vector<25x128xf32>
    %51 = arith.mulf %48, %50 : vector<25x128xf32>
    %c0_21 = arith.constant 0 : index
    %c0_22 = arith.constant 0 : index
    %52 = vector.load %arg6[%c0_21, %c0_22] : memref<1x128xf32, #tpu.memory_space<vmem>>, vector<1x128xf32>
    %53 = vector.broadcast %52 : vector<1x128xf32> to vector<25x128xf32>
    %54 = arith.addf %51, %53 : vector<25x128xf32>
    %55 = arith.truncf %54 : vector<25x128xf32> to vector<25x128xbf16>
    %c0_23 = arith.constant 0 : index
    %c0_24 = arith.constant 0 : index
    %56 = vector.load %arg9[%c0_23, %c0_24] : memref<128x512xbf16, #tpu.memory_space<vmem>>, vector<128x512xbf16>
    %cst_25 = arith.constant dense<0.000000e+00> : vector<9x512xf32>
    %57 = tpu.matmul %30, %56, %cst_25 {dimension_numbers = #tpu.dot_dimension_numbers<[1], [0], [0], [1], [0, 0, 1, 1], [], []>} : vector<9x128xbf16>, vector<128x512xbf16>, vector<9x512xf32> -> vector<9x512xf32>
    %58 = arith.truncf %57 : vector<9x512xf32> to vector<9x512xbf16>
    %c0_26 = arith.constant 0 : index
    %c0_27 = arith.constant 0 : index
    %59 = vector.load %arg10[%c0_26, %c0_27] : memref<128x512xbf16, #tpu.memory_space<vmem>>, vector<128x512xbf16>
    %cst_28 = arith.constant dense<0.000000e+00> : vector<25x512xf32>
    %60 = tpu.matmul %55, %59, %cst_28 {dimension_numbers = #tpu.dot_dimension_numbers<[1], [0], [0], [1], [0, 0, 1, 1], [], []>} : vector<25x128xbf16>, vector<128x512xbf16>, vector<25x512xf32> -> vector<25x512xf32>
    %61 = arith.truncf %60 : vector<25x512xf32> to vector<25x512xbf16>
    %c0_29 = arith.constant 0 : index
    %c0_30 = arith.constant 0 : index
    %62 = vector.load %arg11[%c0_29, %c0_30] : memref<128x512xbf16, #tpu.memory_space<vmem>>, vector<128x512xbf16>
    %cst_31 = arith.constant dense<0.000000e+00> : vector<25x512xf32>
    %63 = tpu.matmul %55, %62, %cst_31 {dimension_numbers = #tpu.dot_dimension_numbers<[1], [0], [0], [1], [0, 0, 1, 1], [], []>} : vector<25x128xbf16>, vector<128x512xbf16>, vector<25x512xf32> -> vector<25x512xf32>
    %64 = arith.truncf %63 : vector<25x512xf32> to vector<25x512xbf16>
    %65 = vector.extract_strided_slice %58 {offsets = [0, 0], sizes = [9, 64], strides = [1, 1]} : vector<9x512xbf16> to vector<9x64xbf16>
    %66 = vector.extract_strided_slice %61 {offsets = [0, 0], sizes = [25, 64], strides = [1, 1]} : vector<25x512xbf16> to vector<25x64xbf16>
    %67 = vector.extract_strided_slice %64 {offsets = [0, 0], sizes = [25, 64], strides = [1, 1]} : vector<25x512xbf16> to vector<25x64xbf16>
    %cst_32 = arith.constant dense<0.000000e+00> : vector<9x25xf32>
    %68 = tpu.matmul %65, %66, %cst_32 {dimension_numbers = #tpu.dot_dimension_numbers<[1], [1], [0], [0], [0, 0, 1, 0], [], []>} : vector<9x64xbf16>, vector<25x64xbf16>, vector<9x25xf32> -> vector<9x25xf32>
    %cst_33 = arith.constant dense<0xFF800000> : vector<9xf32>
    %69 = vector.multi_reduction <maximumf>, %68, %cst_33 [1] : vector<9x25xf32> to vector<9xf32>
    %70 = vector.shape_cast %69 : vector<9xf32> to vector<9x1xf32>
    %71 = vector.broadcast %70 : vector<9x1xf32> to vector<9x25xf32>
    %72 = arith.subf %68, %71 : vector<9x25xf32>
    %73 = math.exp %72 : vector<9x25xf32>
    %cst_34 = arith.constant dense<0.000000e+00> : vector<9xf32>
    %74 = vector.multi_reduction <add>, %73, %cst_34 [1] : vector<9x25xf32> to vector<9xf32>
    %75 = vector.shape_cast %74 : vector<9xf32> to vector<9x1xf32>
    %76 = tpu.reciprocal %75 {approx = true} : vector<9x1xf32> -> vector<9x1xf32>
    %77 = vector.broadcast %76 : vector<9x1xf32> to vector<9x25xf32>
    %78 = arith.mulf %73, %77 : vector<9x25xf32>
    %79 = arith.truncf %78 : vector<9x25xf32> to vector<9x25xbf16>
    %cst_35 = arith.constant dense<0.000000e+00> : vector<9x64xf32>
    %80 = tpu.matmul %79, %67, %cst_35 {dimension_numbers = #tpu.dot_dimension_numbers<[1], [0], [0], [1], [0, 0, 1, 1], [], []>} : vector<9x25xbf16>, vector<25x64xbf16>, vector<9x64xf32> -> vector<9x64xf32>
    %c0_36 = arith.constant 0 : index
    %c0_37 = arith.constant 0 : index
    %81 = vector.load %arg22[%c0_36, %c0_37] : memref<9x512xf32, #tpu.memory_space<vmem>>, vector<9x64xf32>
    tpu.vector_store %arg22[%c0_36, %c0_37], %80 {strides = array<i32>} : memref<9x512xf32, #tpu.memory_space<vmem>>, vector<9x64xf32>,
    %82 = vector.extract_strided_slice %58 {offsets = [0, 64], sizes = [9, 64], strides = [1, 1]} : vector<9x512xbf16> to vector<9x64xbf16>
    %83 = vector.extract_strided_slice %61 {offsets = [0, 64], sizes = [25, 64], strides = [1, 1]} : vector<25x512xbf16> to vector<25x64xbf16>
    %84 = vector.extract_strided_slice %64 {offsets = [0, 64], sizes = [25, 64], strides = [1, 1]} : vector<25x512xbf16> to vector<25x64xbf16>
    %cst_38 = arith.constant dense<0.000000e+00> : vector<9x25xf32>
    %85 = tpu.matmul %82, %83, %cst_38 {dimension_numbers = #tpu.dot_dimension_numbers<[1], [1], [0], [0], [0, 0, 1, 0], [], []>} : vector<9x64xbf16>, vector<25x64xbf16>, vector<9x25xf32> -> vector<9x25xf32>
    %cst_39 = arith.constant dense<0xFF800000> : vector<9xf32>
    %86 = vector.multi_reduction <maximumf>, %85, %cst_39 [1] : vector<9x25xf32> to vector<9xf32>
    %87 = vector.shape_cast %86 : vector<9xf32> to vector<9x1xf32>
    %88 = vector.broadcast %87 : vector<9x1xf32> to vector<9x25xf32>
    %89 = arith.subf %85, %88 : vector<9x25xf32>
    %90 = math.exp %89 : vector<9x25xf32>
    %cst_40 = arith.constant dense<0.000000e+00> : vector<9xf32>
    %91 = vector.multi_reduction <add>, %90, %cst_40 [1] : vector<9x25xf32> to vector<9xf32>
    %92 = vector.shape_cast %91 : vector<9xf32> to vector<9x1xf32>
    %93 = tpu.reciprocal %92 {approx = true} : vector<9x1xf32> -> vector<9x1xf32>
    %94 = vector.broadcast %93 : vector<9x1xf32> to vector<9x25xf32>
    %95 = arith.mulf %90, %94 : vector<9x25xf32>
    %96 = arith.truncf %95 : vector<9x25xf32> to vector<9x25xbf16>
    %cst_41 = arith.constant dense<0.000000e+00> : vector<9x64xf32>
    %97 = tpu.matmul %96, %84, %cst_41 {dimension_numbers = #tpu.dot_dimension_numbers<[1], [0], [0], [1], [0, 0, 1, 1], [], []>} : vector<9x25xbf16>, vector<25x64xbf16>, vector<9x64xf32> -> vector<9x64xf32>
    %c0_42 = arith.constant 0 : index
    %c64 = arith.constant 64 : index
    %98 = vector.load %arg22[%c0_42, %c64] : memref<9x512xf32, #tpu.memory_space<vmem>>, vector<9x64xf32>
    tpu.vector_store %arg22[%c0_42, %c64], %97 {strides = array<i32>} : memref<9x512xf32, #tpu.memory_space<vmem>>, vector<9x64xf32>,
    %99 = vector.extract_strided_slice %58 {offsets = [0, 128], sizes = [9, 64], strides = [1, 1]} : vector<9x512xbf16> to vector<9x64xbf16>
    %100 = vector.extract_strided_slice %61 {offsets = [0, 128], sizes = [25, 64], strides = [1, 1]} : vector<25x512xbf16> to vector<25x64xbf16>
    %101 = vector.extract_strided_slice %64 {offsets = [0, 128], sizes = [25, 64], strides = [1, 1]} : vector<25x512xbf16> to vector<25x64xbf16>
    %cst_43 = arith.constant dense<0.000000e+00> : vector<9x25xf32>
    %102 = tpu.matmul %99, %100, %cst_43 {dimension_numbers = #tpu.dot_dimension_numbers<[1], [1], [0], [0], [0, 0, 1, 0], [], []>} : vector<9x64xbf16>, vector<25x64xbf16>, vector<9x25xf32> -> vector<9x25xf32>
    %cst_44 = arith.constant dense<0xFF800000> : vector<9xf32>
    %103 = vector.multi_reduction <maximumf>, %102, %cst_44 [1] : vector<9x25xf32> to vector<9xf32>
    %104 = vector.shape_cast %103 : vector<9xf32> to vector<9x1xf32>
    %105 = vector.broadcast %104 : vector<9x1xf32> to vector<9x25xf32>
    %106 = arith.subf %102, %105 : vector<9x25xf32>
    %107 = math.exp %106 : vector<9x25xf32>
    %cst_45 = arith.constant dense<0.000000e+00> : vector<9xf32>
    %108 = vector.multi_reduction <add>, %107, %cst_45 [1] : vector<9x25xf32> to vector<9xf32>
    %109 = vector.shape_cast %108 : vector<9xf32> to vector<9x1xf32>
    %110 = tpu.reciprocal %109 {approx = true} : vector<9x1xf32> -> vector<9x1xf32>
    %111 = vector.broadcast %110 : vector<9x1xf32> to vector<9x25xf32>
    %112 = arith.mulf %107, %111 : vector<9x25xf32>
    %113 = arith.truncf %112 : vector<9x25xf32> to vector<9x25xbf16>
    %cst_46 = arith.constant dense<0.000000e+00> : vector<9x64xf32>
    %114 = tpu.matmul %113, %101, %cst_46 {dimension_numbers = #tpu.dot_dimension_numbers<[1], [0], [0], [1], [0, 0, 1, 1], [], []>} : vector<9x25xbf16>, vector<25x64xbf16>, vector<9x64xf32> -> vector<9x64xf32>
    %c0_47 = arith.constant 0 : index
    %c128 = arith.constant 128 : index
    %115 = vector.load %arg22[%c0_47, %c128] : memref<9x512xf32, #tpu.memory_space<vmem>>, vector<9x64xf32>
    tpu.vector_store %arg22[%c0_47, %c128], %114 {strides = array<i32>} : memref<9x512xf32, #tpu.memory_space<vmem>>, vector<9x64xf32>,
    %116 = vector.extract_strided_slice %58 {offsets = [0, 192], sizes = [9, 64], strides = [1, 1]} : vector<9x512xbf16> to vector<9x64xbf16>
    %117 = vector.extract_strided_slice %61 {offsets = [0, 192], sizes = [25, 64], strides = [1, 1]} : vector<25x512xbf16> to vector<25x64xbf16>
    %118 = vector.extract_strided_slice %64 {offsets = [0, 192], sizes = [25, 64], strides = [1, 1]} : vector<25x512xbf16> to vector<25x64xbf16>
    %cst_48 = arith.constant dense<0.000000e+00> : vector<9x25xf32>
    %119 = tpu.matmul %116, %117, %cst_48 {dimension_numbers = #tpu.dot_dimension_numbers<[1], [1], [0], [0], [0, 0, 1, 0], [], []>} : vector<9x64xbf16>, vector<25x64xbf16>, vector<9x25xf32> -> vector<9x25xf32>
    %cst_49 = arith.constant dense<0xFF800000> : vector<9xf32>
    %120 = vector.multi_reduction <maximumf>, %119, %cst_49 [1] : vector<9x25xf32> to vector<9xf32>
    %121 = vector.shape_cast %120 : vector<9xf32> to vector<9x1xf32>
    %122 = vector.broadcast %121 : vector<9x1xf32> to vector<9x25xf32>
    %123 = arith.subf %119, %122 : vector<9x25xf32>
    %124 = math.exp %123 : vector<9x25xf32>
    %cst_50 = arith.constant dense<0.000000e+00> : vector<9xf32>
    %125 = vector.multi_reduction <add>, %124, %cst_50 [1] : vector<9x25xf32> to vector<9xf32>
    %126 = vector.shape_cast %125 : vector<9xf32> to vector<9x1xf32>
    %127 = tpu.reciprocal %126 {approx = true} : vector<9x1xf32> -> vector<9x1xf32>
    %128 = vector.broadcast %127 : vector<9x1xf32> to vector<9x25xf32>
    %129 = arith.mulf %124, %128 : vector<9x25xf32>
    %130 = arith.truncf %129 : vector<9x25xf32> to vector<9x25xbf16>
    %cst_51 = arith.constant dense<0.000000e+00> : vector<9x64xf32>
    %131 = tpu.matmul %130, %118, %cst_51 {dimension_numbers = #tpu.dot_dimension_numbers<[1], [0], [0], [1], [0, 0, 1, 1], [], []>} : vector<9x25xbf16>, vector<25x64xbf16>, vector<9x64xf32> -> vector<9x64xf32>
    %c0_52 = arith.constant 0 : index
    %c192 = arith.constant 192 : index
    %132 = vector.load %arg22[%c0_52, %c192] : memref<9x512xf32, #tpu.memory_space<vmem>>, vector<9x64xf32>
    tpu.vector_store %arg22[%c0_52, %c192], %131 {strides = array<i32>} : memref<9x512xf32, #tpu.memory_space<vmem>>, vector<9x64xf32>,
    %133 = vector.extract_strided_slice %58 {offsets = [0, 256], sizes = [9, 64], strides = [1, 1]} : vector<9x512xbf16> to vector<9x64xbf16>
    %134 = vector.extract_strided_slice %61 {offsets = [0, 256], sizes = [25, 64], strides = [1, 1]} : vector<25x512xbf16> to vector<25x64xbf16>
    %135 = vector.extract_strided_slice %64 {offsets = [0, 256], sizes = [25, 64], strides = [1, 1]} : vector<25x512xbf16> to vector<25x64xbf16>
    %cst_53 = arith.constant dense<0.000000e+00> : vector<9x25xf32>
    %136 = tpu.matmul %133, %134, %cst_53 {dimension_numbers = #tpu.dot_dimension_numbers<[1], [1], [0], [0], [0, 0, 1, 0], [], []>} : vector<9x64xbf16>, vector<25x64xbf16>, vector<9x25xf32> -> vector<9x25xf32>
    %cst_54 = arith.constant dense<0xFF800000> : vector<9xf32>
    %137 = vector.multi_reduction <maximumf>, %136, %cst_54 [1] : vector<9x25xf32> to vector<9xf32>
    %138 = vector.shape_cast %137 : vector<9xf32> to vector<9x1xf32>
    %139 = vector.broadcast %138 : vector<9x1xf32> to vector<9x25xf32>
    %140 = arith.subf %136, %139 : vector<9x25xf32>
    %141 = math.exp %140 : vector<9x25xf32>
    %cst_55 = arith.constant dense<0.000000e+00> : vector<9xf32>
    %142 = vector.multi_reduction <add>, %141, %cst_55 [1] : vector<9x25xf32> to vector<9xf32>
    %143 = vector.shape_cast %142 : vector<9xf32> to vector<9x1xf32>
    %144 = tpu.reciprocal %143 {approx = true} : vector<9x1xf32> -> vector<9x1xf32>
    %145 = vector.broadcast %144 : vector<9x1xf32> to vector<9x25xf32>
    %146 = arith.mulf %141, %145 : vector<9x25xf32>
    %147 = arith.truncf %146 : vector<9x25xf32> to vector<9x25xbf16>
    %cst_56 = arith.constant dense<0.000000e+00> : vector<9x64xf32>
    %148 = tpu.matmul %147, %135, %cst_56 {dimension_numbers = #tpu.dot_dimension_numbers<[1], [0], [0], [1], [0, 0, 1, 1], [], []>} : vector<9x25xbf16>, vector<25x64xbf16>, vector<9x64xf32> -> vector<9x64xf32>
    %c0_57 = arith.constant 0 : index
    %c256 = arith.constant 256 : index
    %149 = vector.load %arg22[%c0_57, %c256] : memref<9x512xf32, #tpu.memory_space<vmem>>, vector<9x64xf32>
    tpu.vector_store %arg22[%c0_57, %c256], %148 {strides = array<i32>} : memref<9x512xf32, #tpu.memory_space<vmem>>, vector<9x64xf32>,
    %150 = vector.extract_strided_slice %58 {offsets = [0, 320], sizes = [9, 64], strides = [1, 1]} : vector<9x512xbf16> to vector<9x64xbf16>
    %151 = vector.extract_strided_slice %61 {offsets = [0, 320], sizes = [25, 64], strides = [1, 1]} : vector<25x512xbf16> to vector<25x64xbf16>
    %152 = vector.extract_strided_slice %64 {offsets = [0, 320], sizes = [25, 64], strides = [1, 1]} : vector<25x512xbf16> to vector<25x64xbf16>
    %cst_58 = arith.constant dense<0.000000e+00> : vector<9x25xf32>
    %153 = tpu.matmul %150, %151, %cst_58 {dimension_numbers = #tpu.dot_dimension_numbers<[1], [1], [0], [0], [0, 0, 1, 0], [], []>} : vector<9x64xbf16>, vector<25x64xbf16>, vector<9x25xf32> -> vector<9x25xf32>
    %cst_59 = arith.constant dense<0xFF800000> : vector<9xf32>
    %154 = vector.multi_reduction <maximumf>, %153, %cst_59 [1] : vector<9x25xf32> to vector<9xf32>
    %155 = vector.shape_cast %154 : vector<9xf32> to vector<9x1xf32>
    %156 = vector.broadcast %155 : vector<9x1xf32> to vector<9x25xf32>
    %157 = arith.subf %153, %156 : vector<9x25xf32>
    %158 = math.exp %157 : vector<9x25xf32>
    %cst_60 = arith.constant dense<0.000000e+00> : vector<9xf32>
    %159 = vector.multi_reduction <add>, %158, %cst_60 [1] : vector<9x25xf32> to vector<9xf32>
    %160 = vector.shape_cast %159 : vector<9xf32> to vector<9x1xf32>
    %161 = tpu.reciprocal %160 {approx = true} : vector<9x1xf32> -> vector<9x1xf32>
    %162 = vector.broadcast %161 : vector<9x1xf32> to vector<9x25xf32>
    %163 = arith.mulf %158, %162 : vector<9x25xf32>
    %164 = arith.truncf %163 : vector<9x25xf32> to vector<9x25xbf16>
    %cst_61 = arith.constant dense<0.000000e+00> : vector<9x64xf32>
    %165 = tpu.matmul %164, %152, %cst_61 {dimension_numbers = #tpu.dot_dimension_numbers<[1], [0], [0], [1], [0, 0, 1, 1], [], []>} : vector<9x25xbf16>, vector<25x64xbf16>, vector<9x64xf32> -> vector<9x64xf32>
    %c0_62 = arith.constant 0 : index
    %c320 = arith.constant 320 : index
    %166 = vector.load %arg22[%c0_62, %c320] : memref<9x512xf32, #tpu.memory_space<vmem>>, vector<9x64xf32>
    tpu.vector_store %arg22[%c0_62, %c320], %165 {strides = array<i32>} : memref<9x512xf32, #tpu.memory_space<vmem>>, vector<9x64xf32>,
    %167 = vector.extract_strided_slice %58 {offsets = [0, 384], sizes = [9, 64], strides = [1, 1]} : vector<9x512xbf16> to vector<9x64xbf16>
    %168 = vector.extract_strided_slice %61 {offsets = [0, 384], sizes = [25, 64], strides = [1, 1]} : vector<25x512xbf16> to vector<25x64xbf16>
    %169 = vector.extract_strided_slice %64 {offsets = [0, 384], sizes = [25, 64], strides = [1, 1]} : vector<25x512xbf16> to vector<25x64xbf16>
    %cst_63 = arith.constant dense<0.000000e+00> : vector<9x25xf32>
    %170 = tpu.matmul %167, %168, %cst_63 {dimension_numbers = #tpu.dot_dimension_numbers<[1], [1], [0], [0], [0, 0, 1, 0], [], []>} : vector<9x64xbf16>, vector<25x64xbf16>, vector<9x25xf32> -> vector<9x25xf32>
    %cst_64 = arith.constant dense<0xFF800000> : vector<9xf32>
    %171 = vector.multi_reduction <maximumf>, %170, %cst_64 [1] : vector<9x25xf32> to vector<9xf32>
    %172 = vector.shape_cast %171 : vector<9xf32> to vector<9x1xf32>
    %173 = vector.broadcast %172 : vector<9x1xf32> to vector<9x25xf32>
    %174 = arith.subf %170, %173 : vector<9x25xf32>
    %175 = math.exp %174 : vector<9x25xf32>
    %cst_65 = arith.constant dense<0.000000e+00> : vector<9xf32>
    %176 = vector.multi_reduction <add>, %175, %cst_65 [1] : vector<9x25xf32> to vector<9xf32>
    %177 = vector.shape_cast %176 : vector<9xf32> to vector<9x1xf32>
    %178 = tpu.reciprocal %177 {approx = true} : vector<9x1xf32> -> vector<9x1xf32>
    %179 = vector.broadcast %178 : vector<9x1xf32> to vector<9x25xf32>
    %180 = arith.mulf %175, %179 : vector<9x25xf32>
    %181 = arith.truncf %180 : vector<9x25xf32> to vector<9x25xbf16>
    %cst_66 = arith.constant dense<0.000000e+00> : vector<9x64xf32>
    %182 = tpu.matmul %181, %169, %cst_66 {dimension_numbers = #tpu.dot_dimension_numbers<[1], [0], [0], [1], [0, 0, 1, 1], [], []>} : vector<9x25xbf16>, vector<25x64xbf16>, vector<9x64xf32> -> vector<9x64xf32>
    %c0_67 = arith.constant 0 : index
    %c384 = arith.constant 384 : index
    %183 = vector.load %arg22[%c0_67, %c384] : memref<9x512xf32, #tpu.memory_space<vmem>>, vector<9x64xf32>
    tpu.vector_store %arg22[%c0_67, %c384], %182 {strides = array<i32>} : memref<9x512xf32, #tpu.memory_space<vmem>>, vector<9x64xf32>,
    %184 = vector.extract_strided_slice %58 {offsets = [0, 448], sizes = [9, 64], strides = [1, 1]} : vector<9x512xbf16> to vector<9x64xbf16>
    %185 = vector.extract_strided_slice %61 {offsets = [0, 448], sizes = [25, 64], strides = [1, 1]} : vector<25x512xbf16> to vector<25x64xbf16>
    %186 = vector.extract_strided_slice %64 {offsets = [0, 448], sizes = [25, 64], strides = [1, 1]} : vector<25x512xbf16> to vector<25x64xbf16>
    %cst_68 = arith.constant dense<0.000000e+00> : vector<9x25xf32>
    %187 = tpu.matmul %184, %185, %cst_68 {dimension_numbers = #tpu.dot_dimension_numbers<[1], [1], [0], [0], [0, 0, 1, 0], [], []>} : vector<9x64xbf16>, vector<25x64xbf16>, vector<9x25xf32> -> vector<9x25xf32>
    %cst_69 = arith.constant dense<0xFF800000> : vector<9xf32>
    %188 = vector.multi_reduction <maximumf>, %187, %cst_69 [1] : vector<9x25xf32> to vector<9xf32>
    %189 = vector.shape_cast %188 : vector<9xf32> to vector<9x1xf32>
    %190 = vector.broadcast %189 : vector<9x1xf32> to vector<9x25xf32>
    %191 = arith.subf %187, %190 : vector<9x25xf32>
    %192 = math.exp %191 : vector<9x25xf32>
    %cst_70 = arith.constant dense<0.000000e+00> : vector<9xf32>
    %193 = vector.multi_reduction <add>, %192, %cst_70 [1] : vector<9x25xf32> to vector<9xf32>
    %194 = vector.shape_cast %193 : vector<9xf32> to vector<9x1xf32>
    %195 = tpu.reciprocal %194 {approx = true} : vector<9x1xf32> -> vector<9x1xf32>
    %196 = vector.broadcast %195 : vector<9x1xf32> to vector<9x25xf32>
    %197 = arith.mulf %192, %196 : vector<9x25xf32>
    %198 = arith.truncf %197 : vector<9x25xf32> to vector<9x25xbf16>
    %cst_71 = arith.constant dense<0.000000e+00> : vector<9x64xf32>
    %199 = tpu.matmul %198, %186, %cst_71 {dimension_numbers = #tpu.dot_dimension_numbers<[1], [0], [0], [1], [0, 0, 1, 1], [], []>} : vector<9x25xbf16>, vector<25x64xbf16>, vector<9x64xf32> -> vector<9x64xf32>
    %c0_72 = arith.constant 0 : index
    %c448 = arith.constant 448 : index
    %200 = vector.load %arg22[%c0_72, %c448] : memref<9x512xf32, #tpu.memory_space<vmem>>, vector<9x64xf32>
    tpu.vector_store %arg22[%c0_72, %c448], %199 {strides = array<i32>} : memref<9x512xf32, #tpu.memory_space<vmem>>, vector<9x64xf32>,
    %c0_73 = arith.constant 0 : index
    %c0_74 = arith.constant 0 : index
    %201 = vector.load %arg22[%c0_73, %c0_74] : memref<9x512xf32, #tpu.memory_space<vmem>>, vector<9x512xf32>
    %202 = arith.truncf %201 : vector<9x512xf32> to vector<9x512xbf16>
    %c0_75 = arith.constant 0 : index
    %c0_76 = arith.constant 0 : index
    %203 = vector.load %arg12[%c0_75, %c0_76] : memref<512x128xbf16, #tpu.memory_space<vmem>>, vector<512x128xbf16>
    %cst_77 = arith.constant dense<0.000000e+00> : vector<9x128xf32>
    %204 = tpu.matmul %202, %203, %cst_77 {dimension_numbers = #tpu.dot_dimension_numbers<[1], [0], [0], [1], [0, 0, 1, 1], [], []>} : vector<9x512xbf16>, vector<512x128xbf16>, vector<9x128xf32> -> vector<9x128xf32>
    %c0_78 = arith.constant 0 : index
    %c0_79 = arith.constant 0 : index
    %205 = vector.load %arg13[%c0_78, %c0_79] : memref<1x128xf32, #tpu.memory_space<vmem>>, vector<1x128xf32>
    %206 = vector.broadcast %205 : vector<1x128xf32> to vector<9x128xf32>
    %207 = arith.addf %204, %206 : vector<9x128xf32>
    %208 = arith.addf %1, %207 : vector<9x128xf32>
    %cst_80 = arith.constant dense<0.000000e+00> : vector<9xf32>
    %209 = vector.multi_reduction <add>, %208, %cst_80 [1] : vector<9x128xf32> to vector<9xf32>
    %210 = vector.shape_cast %209 : vector<9xf32> to vector<9x1xf32>
    %cst_81 = arith.constant 1.280000e+02 : f32
    %211 = vector.broadcast %cst_81 : f32 to vector<9x1xf32>
    %212 = arith.divf %210, %211 : vector<9x1xf32>
    %213 = vector.broadcast %212 : vector<9x1xf32> to vector<9x128xf32>
    %214 = arith.subf %208, %213 : vector<9x128xf32>
    %215 = arith.mulf %214, %214 : vector<9x128xf32>
    %cst_82 = arith.constant dense<0.000000e+00> : vector<9xf32>
    %216 = vector.multi_reduction <add>, %215, %cst_82 [1] : vector<9x128xf32> to vector<9xf32>
    %217 = vector.shape_cast %216 : vector<9xf32> to vector<9x1xf32>
    %cst_83 = arith.constant 1.280000e+02 : f32
    %218 = vector.broadcast %cst_83 : f32 to vector<9x1xf32>
    %219 = arith.divf %217, %218 : vector<9x1xf32>
    %220 = vector.broadcast %212 : vector<9x1xf32> to vector<9x128xf32>
    %221 = arith.subf %208, %220 : vector<9x128xf32>
    %cst_84 = arith.constant 9.99999974E-6 : f32
    %222 = vector.broadcast %cst_84 : f32 to vector<9x1xf32>
    %223 = arith.addf %219, %222 : vector<9x1xf32>
    %224 = math.rsqrt %223 : vector<9x1xf32>
    %225 = vector.broadcast %224 : vector<9x1xf32> to vector<9x128xf32>
    %226 = arith.mulf %221, %225 : vector<9x128xf32>
    %c0_85 = arith.constant 0 : index
    %c0_86 = arith.constant 0 : index
    %227 = vector.load %arg7[%c0_85, %c0_86] : memref<1x128xf32, #tpu.memory_space<vmem>>, vector<1x128xf32>
    %228 = vector.broadcast %227 : vector<1x128xf32> to vector<9x128xf32>
    %229 = arith.mulf %226, %228 : vector<9x128xf32>
    %c0_87 = arith.constant 0 : index
    %c0_88 = arith.constant 0 : index
    %230 = vector.load %arg8[%c0_87, %c0_88] : memref<1x128xf32, #tpu.memory_space<vmem>>, vector<1x128xf32>
    %231 = vector.broadcast %230 : vector<1x128xf32> to vector<9x128xf32>
    %232 = arith.addf %229, %231 : vector<9x128xf32>
    %233 = arith.truncf %232 : vector<9x128xf32> to vector<9x128xbf16>
    %c0_89 = arith.constant 0 : index
    %c0_90 = arith.constant 0 : index
    %234 = vector.load %arg14[%c0_89, %c0_90] : memref<128x256xbf16, #tpu.memory_space<vmem>>, vector<128x256xbf16>
    %cst_91 = arith.constant dense<0.000000e+00> : vector<9x256xf32>
    %235 = tpu.matmul %233, %234, %cst_91 {dimension_numbers = #tpu.dot_dimension_numbers<[1], [0], [0], [1], [0, 0, 1, 1], [], []>} : vector<9x128xbf16>, vector<128x256xbf16>, vector<9x256xf32> -> vector<9x256xf32>
    %c0_92 = arith.constant 0 : index
    %c0_93 = arith.constant 0 : index
    %236 = vector.load %arg15[%c0_92, %c0_93] : memref<1x256xf32, #tpu.memory_space<vmem>>, vector<1x256xf32>
    %237 = vector.broadcast %236 : vector<1x256xf32> to vector<9x256xf32>
    %238 = arith.addf %235, %237 : vector<9x256xf32>
    %cst_94 = arith.constant 5.000000e-01 : f32
    %239 = vector.broadcast %cst_94 : f32 to vector<9x256xf32>
    %240 = arith.mulf %239, %238 : vector<9x256xf32>
    %cst_95 = arith.constant 0.707106769 : f32
    %241 = vector.broadcast %cst_95 : f32 to vector<9x256xf32>
    %242 = arith.mulf %238, %241 : vector<9x256xf32>
    %243 = math.absf %242 : vector<9x256xf32>
    %cst_96 = arith.constant 0.327591091 : f32
    %244 = vector.broadcast %cst_96 : f32 to vector<9x256xf32>
    %245 = arith.mulf %244, %243 : vector<9x256xf32>
    %cst_97 = arith.constant 1.000000e+00 : f32
    %246 = vector.broadcast %cst_97 : f32 to vector<9x256xf32>
    %247 = arith.addf %246, %245 : vector<9x256xf32>
    %cst_98 = arith.constant 1.000000e+00 : f32
    %248 = vector.broadcast %cst_98 : f32 to vector<9x256xf32>
    %249 = arith.divf %248, %247 : vector<9x256xf32>
    %cst_99 = arith.constant 1.06140542 : f32
    %250 = vector.broadcast %cst_99 : f32 to vector<9x256xf32>
    %251 = arith.mulf %250, %249 : vector<9x256xf32>
    %cst_100 = arith.constant -1.45315206 : f32
    %252 = vector.broadcast %cst_100 : f32 to vector<9x256xf32>
    %253 = arith.addf %251, %252 : vector<9x256xf32>
    %254 = arith.mulf %253, %249 : vector<9x256xf32>
    %cst_101 = arith.constant 1.42141378 : f32
    %255 = vector.broadcast %cst_101 : f32 to vector<9x256xf32>
    %256 = arith.addf %254, %255 : vector<9x256xf32>
    %257 = arith.mulf %256, %249 : vector<9x256xf32>
    %cst_102 = arith.constant -0.284496725 : f32
    %258 = vector.broadcast %cst_102 : f32 to vector<9x256xf32>
    %259 = arith.addf %257, %258 : vector<9x256xf32>
    %260 = arith.mulf %259, %249 : vector<9x256xf32>
    %cst_103 = arith.constant 0.254829586 : f32
    %261 = vector.broadcast %cst_103 : f32 to vector<9x256xf32>
    %262 = arith.addf %260, %261 : vector<9x256xf32>
    %263 = arith.mulf %262, %249 : vector<9x256xf32>
    %264 = arith.mulf %243, %243 : vector<9x256xf32>
    %cst_104 = arith.constant 0.000000e+00 : f32
    %265 = vector.broadcast %cst_104 : f32 to vector<9x256xf32>
    %266 = arith.subf %265, %264 : vector<9x256xf32>
    %267 = math.exp %266 : vector<9x256xf32>
    %268 = arith.mulf %263, %267 : vector<9x256xf32>
    %cst_105 = arith.constant 1.000000e+00 : f32
    %269 = vector.broadcast %cst_105 : f32 to vector<9x256xf32>
    %270 = arith.subf %269, %268 : vector<9x256xf32>
    %cst_106 = arith.constant 0.000000e+00 : f32
    %271 = vector.broadcast %cst_106 : f32 to vector<9x256xf32>
    %272 = arith.cmpf oge, %242, %271 : vector<9x256xf32>
    %cst_107 = arith.constant 0.000000e+00 : f32
    %273 = vector.broadcast %cst_107 : f32 to vector<9x256xf32>
    %274 = arith.subf %273, %270 : vector<9x256xf32>
    %275 = arith.select %272, %270, %274 : vector<9x256xi1>, vector<9x256xf32>
    %cst_108 = arith.constant 1.000000e+00 : f32
    %276 = vector.broadcast %cst_108 : f32 to vector<9x256xf32>
    %277 = arith.addf %276, %275 : vector<9x256xf32>
    %278 = arith.mulf %240, %277 : vector<9x256xf32>
    %279 = arith.truncf %278 : vector<9x256xf32> to vector<9x256xbf16>
    %c0_109 = arith.constant 0 : index
    %c0_110 = arith.constant 0 : index
    %280 = vector.load %arg16[%c0_109, %c0_110] : memref<256x128xbf16, #tpu.memory_space<vmem>>, vector<256x128xbf16>
    %cst_111 = arith.constant dense<0.000000e+00> : vector<9x128xf32>
    %281 = tpu.matmul %279, %280, %cst_111 {dimension_numbers = #tpu.dot_dimension_numbers<[1], [0], [0], [1], [0, 0, 1, 1], [], []>} : vector<9x256xbf16>, vector<256x128xbf16>, vector<9x128xf32> -> vector<9x128xf32>
    %282 = arith.addf %208, %281 : vector<9x128xf32>
    %c0_112 = arith.constant 0 : index
    %c0_113 = arith.constant 0 : index
    %283 = vector.load %arg17[%c0_112, %c0_113] : memref<1x128xf32, #tpu.memory_space<vmem>>, vector<1x128xf32>
    %284 = vector.broadcast %283 : vector<1x128xf32> to vector<9x128xf32>
    %285 = arith.addf %282, %284 : vector<9x128xf32>
    %cst_114 = arith.constant dense<0.000000e+00> : vector<128xf32>
    %286 = vector.multi_reduction <add>, %285, %cst_114 [0] : vector<9x128xf32> to vector<128xf32>
    %287 = vector.shape_cast %286 : vector<128xf32> to vector<1x128xf32>
    %cst_115 = arith.constant 0.111111112 : f32
    %288 = vector.broadcast %cst_115 : f32 to vector<1x128xf32>
    %289 = arith.mulf %287, %288 : vector<1x128xf32>
    %c0_116 = arith.constant 0 : index
    %c0_117 = arith.constant 0 : index
    %c0_118 = arith.constant 0 : index
    %290 = vector.load %arg20[%c0_116, %c0_117, %c0_118] : memref<1x1x128xf32, #tpu.memory_space<vmem>>, vector<1x1x128xf32>
    %291 = vector.shape_cast %290 : vector<1x1x128xf32> to vector<1x128xf32>
    %292 = vector.shape_cast %289 : vector<1x128xf32> to vector<1x1x128xf32>
    tpu.vector_store %arg20[%c0_116, %c0_117, %c0_118], %292 {strides = array<i32>} : memref<1x1x128xf32, #tpu.memory_space<vmem>>, vector<1x1x128xf32>,
    %293 = arith.truncf %289 : vector<1x128xf32> to vector<1x128xbf16>
    %c0_119 = arith.constant 0 : index
    %c0_120 = arith.constant 0 : index
    %294 = vector.load %arg18[%c0_119, %c0_120] : memref<128x128xbf16, #tpu.memory_space<vmem>>, vector<128x128xbf16>
    %cst_121 = arith.constant dense<0.000000e+00> : vector<1x128xf32>
    %295 = tpu.matmul %293, %294, %cst_121 {dimension_numbers = #tpu.dot_dimension_numbers<[1], [0], [0], [1], [0, 0, 1, 1], [], []>} : vector<1x128xbf16>, vector<128x128xbf16>, vector<1x128xf32> -> vector<1x128xf32>
    %c0_122 = arith.constant 0 : index
    %c0_123 = arith.constant 0 : index
    %296 = vector.load %arg19[%c0_122, %c0_123] : memref<1x128xf32, #tpu.memory_space<vmem>>, vector<1x128xf32>
    %297 = arith.addf %295, %296 : vector<1x128xf32>
    %c0_124 = arith.constant 0 : index
    %c0_125 = arith.constant 0 : index
    %c0_126 = arith.constant 0 : index
    %298 = vector.load %arg21[%c0_124, %c0_125, %c0_126] : memref<1x1x128xf32, #tpu.memory_space<vmem>>, vector<1x1x128xf32>
    %299 = vector.shape_cast %298 : vector<1x1x128xf32> to vector<1x128xf32>
    %300 = vector.shape_cast %297 : vector<1x128xf32> to vector<1x1x128xf32>
    tpu.vector_store %arg21[%c0_124, %c0_125, %c0_126], %300 {strides = array<i32>} : memref<1x1x128xf32, #tpu.memory_space<vmem>>, vector<1x1x128xf32>,
    return
  }
  func.func @transform_0(%arg0: i32) -> (i32, i32, i32) {
    %c0_i32 = arith.constant 0 : i32
    %c0_i32_0 = arith.constant 0 : i32
    %c0_i32_1 = arith.constant 0 : i32
    return %arg0, %c0_i32, %c0_i32_0 : i32, i32, i32
  }
  func.func @transform_1(%arg0: i32) -> (i32, i32, i32) {
    %c0_i32 = arith.constant 0 : i32
    %c0_i32_0 = arith.constant 0 : i32
    %c0_i32_1 = arith.constant 0 : i32
    return %arg0, %c0_i32, %c0_i32_0 : i32, i32, i32
  }
  func.func @transform_2(%arg0: i32) -> (i32, i32) {
    %c0_i32 = arith.constant 0 : i32
    %c0_i32_0 = arith.constant 0 : i32
    %c0_i32_1 = arith.constant 0 : i32
    return %c0_i32, %c0_i32_0 : i32, i32
  }
  func.func @transform_3(%arg0: i32) -> (i32, i32) {
    %c0_i32 = arith.constant 0 : i32
    %c0_i32_0 = arith.constant 0 : i32
    %c0_i32_1 = arith.constant 0 : i32
    return %c0_i32, %c0_i32_0 : i32, i32
  }
  func.func @transform_4(%arg0: i32) -> (i32, i32) {
    %c0_i32 = arith.constant 0 : i32
    %c0_i32_0 = arith.constant 0 : i32
    %c0_i32_1 = arith.constant 0 : i32
    return %c0_i32, %c0_i32_0 : i32, i32
  }
  func.func @transform_5(%arg0: i32) -> (i32, i32) {
    %c0_i32 = arith.constant 0 : i32
    %c0_i32_0 = arith.constant 0 : i32
    %c0_i32_1 = arith.constant 0 : i32
    return %c0_i32, %c0_i32_0 : i32, i32
  }
  func.func @transform_6(%arg0: i32) -> (i32, i32) {
    %c0_i32 = arith.constant 0 : i32
    %c0_i32_0 = arith.constant 0 : i32
    %c0_i32_1 = arith.constant 0 : i32
    return %c0_i32, %c0_i32_0 : i32, i32
  }
  func.func @transform_7(%arg0: i32) -> (i32, i32) {
    %c0_i32 = arith.constant 0 : i32
    %c0_i32_0 = arith.constant 0 : i32
    %c0_i32_1 = arith.constant 0 : i32
    return %c0_i32, %c0_i32_0 : i32, i32
  }
  func.func @transform_8(%arg0: i32) -> (i32, i32) {
    %c0_i32 = arith.constant 0 : i32
    %c0_i32_0 = arith.constant 0 : i32
    %c0_i32_1 = arith.constant 0 : i32
    return %c0_i32, %c0_i32_0 : i32, i32
  }
  func.func @transform_9(%arg0: i32) -> (i32, i32) {
    %c0_i32 = arith.constant 0 : i32
    %c0_i32_0 = arith.constant 0 : i32
    %c0_i32_1 = arith.constant 0 : i32
    return %c0_i32, %c0_i32_0 : i32, i32
  }
  func.func @transform_10(%arg0: i32) -> (i32, i32) {
    %c0_i32 = arith.constant 0 : i32
    %c0_i32_0 = arith.constant 0 : i32
    %c0_i32_1 = arith.constant 0 : i32
    return %c0_i32, %c0_i32_0 : i32, i32
  }
  func.func @transform_11(%arg0: i32) -> (i32, i32) {
    %c0_i32 = arith.constant 0 : i32
    %c0_i32_0 = arith.constant 0 : i32
    %c0_i32_1 = arith.constant 0 : i32
    return %c0_i32, %c0_i32_0 : i32, i32
  }
  func.func @transform_12(%arg0: i32) -> (i32, i32) {
    %c0_i32 = arith.constant 0 : i32
    %c0_i32_0 = arith.constant 0 : i32
    %c0_i32_1 = arith.constant 0 : i32
    return %c0_i32, %c0_i32_0 : i32, i32
  }
  func.func @transform_13(%arg0: i32) -> (i32, i32) {
    %c0_i32 = arith.constant 0 : i32
    %c0_i32_0 = arith.constant 0 : i32
    %c0_i32_1 = arith.constant 0 : i32
    return %c0_i32, %c0_i32_0 : i32, i32
  }
  func.func @transform_14(%arg0: i32) -> (i32, i32) {
    %c0_i32 = arith.constant 0 : i32
    %c0_i32_0 = arith.constant 0 : i32
    %c0_i32_1 = arith.constant 0 : i32
    return %c0_i32, %c0_i32_0 : i32, i32
  }
  func.func @transform_15(%arg0: i32) -> (i32, i32) {
    %c0_i32 = arith.constant 0 : i32
    %c0_i32_0 = arith.constant 0 : i32
    %c0_i32_1 = arith.constant 0 : i32
    return %c0_i32, %c0_i32_0 : i32, i32
  }
  func.func @transform_16(%arg0: i32) -> (i32, i32) {
    %c0_i32 = arith.constant 0 : i32
    %c0_i32_0 = arith.constant 0 : i32
    %c0_i32_1 = arith.constant 0 : i32
    return %c0_i32, %c0_i32_0 : i32, i32
  }
  func.func @transform_17(%arg0: i32) -> (i32, i32) {
    %c0_i32 = arith.constant 0 : i32
    %c0_i32_0 = arith.constant 0 : i32
    %c0_i32_1 = arith.constant 0 : i32
    return %c0_i32, %c0_i32_0 : i32, i32
  }
  func.func @transform_18(%arg0: i32) -> (i32, i32) {
    %c0_i32 = arith.constant 0 : i32
    %c0_i32_0 = arith.constant 0 : i32
    %c0_i32_1 = arith.constant 0 : i32
    return %c0_i32, %c0_i32_0 : i32, i32
  }
  func.func @transform_19(%arg0: i32) -> (i32, i32, i32) {
    %c0_i32 = arith.constant 0 : i32
    %c0_i32_0 = arith.constant 0 : i32
    %c0_i32_1 = arith.constant 0 : i32
    return %arg0, %c0_i32, %c0_i32_0 : i32, i32, i32
  }
  func.func @transform_20(%arg0: i32) -> (i32, i32, i32) {
    %c0_i32 = arith.constant 0 : i32
    %c0_i32_0 = arith.constant 0 : i32
    %c0_i32_1 = arith.constant 0 : i32
    return %arg0, %c0_i32, %c0_i32_0 : i32, i32, i32
  }
}

</mosaic_0001>

<llo_original>
// kernel: mmt_forward.3
$region0: #{mmt_forward.3}
  #allocation0 [shape = 'u32[]', space=smem, size = 0x4, offset = 0x4, fixed_abs, tag = 'smem constant byte address 0x4 - core index']
  #allocation1 [shape = 'u32[144,128]{1,0:T(1,128)}', space=vmem, size = 0x12000, scoped, tag = 'internal scratch']
  #allocation2 [shape = 'f32[9,512]{1,0:T(8,128)}', space=vmem, size = 0x8000, scoped, tag = 'scratch operand']
  %s0 = inlined_call_operand.vmem [shape: f32[2,9,128], index: 0, kind: input, shape index: {}]
  %s1 = inlined_call_operand.vmem [shape: f32[2,25,128], index: 1, kind: input, shape index: {}]
  %s2 = inlined_call_operand.vmem [shape: f32[1,128], index: 2, kind: input, shape index: {}]
  %s3 = inlined_call_operand.vmem [shape: f32[1,128], index: 3, kind: input, shape index: {}]
  %s4 = inlined_call_operand.vmem [shape: f32[1,128], index: 4, kind: input, shape index: {}]
  %s5 = inlined_call_operand.vmem [shape: f32[1,128], index: 5, kind: input, shape index: {}]
  %s6 = inlined_call_operand.vmem [shape: f32[1,128], index: 6, kind: input, shape index: {}]
  %s7 = inlined_call_operand.vmem [shape: f32[1,128], index: 7, kind: input, shape index: {}]
  %s8 = inlined_call_operand.vmem [shape: bf16[128,512], index: 8, kind: input, shape index: {}]
  %s9 = inlined_call_operand.vmem [shape: bf16[128,512], index: 9, kind: input, shape index: {}]
  %s10 = inlined_call_operand.vmem [shape: bf16[128,512], index: 10, kind: input, shape index: {}]
  %s11 = inlined_call_operand.vmem [shape: bf16[512,128], index: 11, kind: input, shape index: {}]
  %s12 = inlined_call_operand.vmem [shape: f32[1,128], index: 12, kind: input, shape index: {}]
  %s13 = inlined_call_operand.vmem [shape: bf16[128,256], index: 13, kind: input, shape index: {}]
  %s14 = inlined_call_operand.vmem [shape: f32[1,256], index: 14, kind: input, shape index: {}]
  %s15 = inlined_call_operand.vmem [shape: bf16[256,128], index: 15, kind: input, shape index: {}]
  %s16 = inlined_call_operand.vmem [shape: f32[1,128], index: 16, kind: input, shape index: {}]
  %s17 = inlined_call_operand.vmem [shape: bf16[128,128], index: 17, kind: input, shape index: {}]
  %s18 = inlined_call_operand.vmem [shape: f32[1,128], index: 18, kind: input, shape index: {}]
  %s19 = inlined_call_operand.hbm [shape: f32[2,1,128], index: 19, kind: output, shape index: {0}]
  %s20 = inlined_call_operand.hbm [shape: f32[2,1,128], index: 20, kind: output, shape index: {1}]
  %21 = xla_tuple %s19, %s20
  %s22 = sld [smem:[#allocation0]]
  $region117: #{mmt_forward.3} parent=0
    _
  %s24 = ssub.s32 1, %s22
  %s25 = scalar_select 0, %s24, %s22
  $region1: #{mmt_forward.3} parent=0
    #allocation3 [shape = 'u8[1024]{0}', space=vmem, size = 0x400, scoped, tag = 'output window, operand 0']
    #allocation4 [shape = 's32[2]{0}', space=sflag, size = 0x8, scoped, tag = 'scoped memory for mmt_forward.3']
    #allocation5 [shape = 'u8[1024]{0}', space=vmem, size = 0x400, scoped, tag = 'output window, operand 1']
    #allocation6 [shape = 's32[2]{0}', space=sflag, size = 0x8, scoped, tag = 'scoped memory for mmt_forward.3']
    %26 = vsyncpa [#allocation4], 0
    %s27 = scalar_lea.sflag [#allocation4], 1
    %28 = vsyncpa %s27, 0
    %29 = vsyncpa [#allocation6], 0
    %s30 = scalar_lea.sflag [#allocation6], 1
    %31 = vsyncpa %s30, 0
    loop: start=0, step=1, limit=4
    $region2: #{mmt_forward.3} parent=1 // loop_pre_header
      _
    $region3: #{mmt_forward.3} parent=1 // loop_header
      %s33 = sphi 0, %s37
      %p34 = scmp.ge.s32.totalorder %s33, 4
      %s43 = sphi 0, %s45
      %s46 = sphi 0, %s43
      %s47 = sphi 0, %s46
      %s63 = sphi 0, %s47
      %s69 = sphi 0, %s71
      %s72 = sphi 0, %s69
      %s73 = sphi 0, %s72
      %s89 = sphi 0, %s73
      %s93 = sphi 0, %s93
      %s95 = sphi 0, %s93
      %s96 = sphi 0, %s95
      %s110 = sphi 0, %s96
      %s114 = sphi 0, %s114
      %s116 = sphi 0, %s114
      %s117 = sphi 0, %s116
      %s131 = sphi 0, %s117
      %s135 = sphi 0, %s135
      %s137 = sphi 0, %s135
      %s138 = sphi 0, %s137
      %s152 = sphi 0, %s138
      %s156 = sphi 0, %s156
      %s158 = sphi 0, %s156
      %s159 = sphi 0, %s158
      %s173 = sphi 0, %s159
      %s177 = sphi 0, %s177
      %s179 = sphi 0, %s177
      %s180 = sphi 0, %s179
      %s194 = sphi 0, %s180
      %s198 = sphi 0, %s198
      %s200 = sphi 0, %s198
      %s201 = sphi 0, %s200
      %s215 = sphi 0, %s201
      %s219 = sphi 0, %s219
      %s221 = sphi 0, %s219
      %s222 = sphi 0, %s221
      %s236 = sphi 0, %s222
      %s240 = sphi 0, %s240
      %s242 = sphi 0, %s240
      %s243 = sphi 0, %s242
      %s257 = sphi 0, %s243
      %s261 = sphi 0, %s261
      %s263 = sphi 0, %s261
      %s264 = sphi 0, %s263
      %s278 = sphi 0, %s264
      %s282 = sphi 0, %s282
      %s284 = sphi 0, %s282
      %s285 = sphi 0, %s284
      %s299 = sphi 0, %s285
      %s303 = sphi 0, %s303
      %s305 = sphi 0, %s303
      %s306 = sphi 0, %s305
      %s320 = sphi 0, %s306
      %s324 = sphi 0, %s324
      %s326 = sphi 0, %s324
      %s327 = sphi 0, %s326
      %s341 = sphi 0, %s327
      %s345 = sphi 0, %s345
      %s347 = sphi 0, %s345
      %s348 = sphi 0, %s347
      %s362 = sphi 0, %s348
      %s366 = sphi 0, %s366
      %s368 = sphi 0, %s366
      %s369 = sphi 0, %s368
      %s383 = sphi 0, %s369
      %s387 = sphi 0, %s387
      %s389 = sphi 0, %s387
      %s390 = sphi 0, %s389
      %s404 = sphi 0, %s390
      %s408 = sphi 0, %s408
      %s410 = sphi 0, %s408
      %s411 = sphi 0, %s410
      %s425 = sphi 0, %s411
      %s429 = sphi 0, %s429
      %s431 = sphi 0, %s429
      %s432 = sphi 0, %s431
      %s446 = sphi 0, %s432
      %s452 = sphi 0, %s454
      %s455 = sphi 0, %s452
      %s456 = sphi 0, %s455
      %s472 = sphi 0, %s456
      %s478 = sphi 0, %s480
      %s481 = sphi 0, %s478
      %s482 = sphi 0, %s481
      %s498 = sphi 0, %s482
    $region4: #{mmt_forward.3} parent=1 // loop_header_branch
      %36 = sbr.rel (%p34) target = $region8
    $region5: #{mmt_forward.3} parent=1 // loop_body
      %s38 = ssub.s32 %s33, 1
      %s39 = ssub.s32 %s33, 2
      %s40 = sadd.s32 %s33, 1
      %s41 = ssub.s32 %s33, %s40
      %p42 = scmp.eq.s32.totalorder %s41, 0
      %s44 = sadd.s32 %s43, 1
      %s45 = scalar_select %p42, %s43, %s44
      %p48 = pneg %p42
      %p49 = scmp.eq.s32.totalorder %s33, 1
      %p50 = por %p48, %p49
      %p51 = scmp.ne.s32.totalorder %s43, %s46
      %p52 = scmp.eq.s32.totalorder %s33, 0
      %p53 = por %p51, %p52
      %p54 = scmp.ne.s32.totalorder %s43, %s46
      %p55 = scmp.eq.s32.totalorder %s38, 1
      %p56 = por %p54, %p55
      %p57 = scmp.ne.s32.totalorder %s46, %s47
      %p58 = scmp.eq.s32.totalorder %s38, 0
      %p59 = por %p57, %p58
      %p60 = scmp.ne.s32.totalorder %s46, %s47
      %p61 = scmp.eq.s32.totalorder %s39, 1
      %p62 = por %p60, %p61
      %p64 = scmp.ne.s32.totalorder %s47, %s63
      %p65 = scmp.eq.s32.totalorder %s39, 0
      %p66 = por %p64, %p65
      %s67 = ssub.s32 %s33, %s40
      %p68 = scmp.eq.s32.totalorder %s67, 0
      %s70 = sadd.s32 %s69, 1
      %s71 = scalar_select %p68, %s69, %s70
      %p74 = pneg %p68
      %p75 = scmp.eq.s32.totalorder %s33, 1
      %p76 = por %p74, %p75
      %p77 = scmp.ne.s32.totalorder %s69, %s72
      %p78 = scmp.eq.s32.totalorder %s33, 0
      %p79 = por %p77, %p78
      %p80 = scmp.ne.s32.totalorder %s69, %s72
      %p81 = scmp.eq.s32.totalorder %s38, 1
      %p82 = por %p80, %p81
      %p83 = scmp.ne.s32.totalorder %s72, %s73
      %p84 = scmp.eq.s32.totalorder %s38, 0
      %p85 = por %p83, %p84
      %p86 = scmp.ne.s32.totalorder %s72, %s73
      %p87 = scmp.eq.s32.totalorder %s39, 1
      %p88 = por %p86, %p87
      %p90 = scmp.ne.s32.totalorder %s73, %s89
      %p91 = scmp.eq.s32.totalorder %s39, 0
      %p92 = por %p90, %p91
      %s94 = sadd.s32 %s93, 1
      %p97 = scmp.eq.s32.totalorder %s33, 1
      %p98 = scmp.ne.s32.totalorder %s93, %s95
      %p99 = scmp.eq.s32.totalorder %s33, 0
      %p100 = por %p98, %p99
      %p101 = scmp.ne.s32.totalorder %s93, %s95
      %p102 = scmp.eq.s32.totalorder %s38, 1
      %p103 = por %p101, %p102
      %p104 = scmp.ne.s32.totalorder %s95, %s96
      %p105 = scmp.eq.s32.totalorder %s38, 0
      %p106 = por %p104, %p105
      %p107 = scmp.ne.s32.totalorder %s95, %s96
      %p108 = scmp.eq.s32.totalorder %s39, 1
      %p109 = por %p107, %p108
      %p111 = scmp.ne.s32.totalorder %s96, %s110
      %p112 = scmp.eq.s32.totalorder %s39, 0
      %p113 = por %p111, %p112
      %s115 = sadd.s32 %s114, 1
      %p118 = scmp.eq.s32.totalorder %s33, 1
      %p119 = scmp.ne.s32.totalorder %s114, %s116
      %p120 = scmp.eq.s32.totalorder %s33, 0
      %p121 = por %p119, %p120
      %p122 = scmp.ne.s32.totalorder %s114, %s116
      %p123 = scmp.eq.s32.totalorder %s38, 1
      %p124 = por %p122, %p123
      %p125 = scmp.ne.s32.totalorder %s116, %s117
      %p126 = scmp.eq.s32.totalorder %s38, 0
      %p127 = por %p125, %p126
      %p128 = scmp.ne.s32.totalorder %s116, %s117
      %p129 = scmp.eq.s32.totalorder %s39, 1
      %p130 = por %p128, %p129
      %p132 = scmp.ne.s32.totalorder %s117, %s131
      %p133 = scmp.eq.s32.totalorder %s39, 0
      %p134 = por %p132, %p133
      %s136 = sadd.s32 %s135, 1
      %p139 = scmp.eq.s32.totalorder %s33, 1
      %p140 = scmp.ne.s32.totalorder %s135, %s137
      %p141 = scmp.eq.s32.totalorder %s33, 0
      %p142 = por %p140, %p141
      %p143 = scmp.ne.s32.totalorder %s135, %s137
      %p144 = scmp.eq.s32.totalorder %s38, 1
      %p145 = por %p143, %p144
      %p146 = scmp.ne.s32.totalorder %s137, %s138
      %p147 = scmp.eq.s32.totalorder %s38, 0
      %p148 = por %p146, %p147
      %p149 = scmp.ne.s32.totalorder %s137, %s138
      %p150 = scmp.eq.s32.totalorder %s39, 1
      %p151 = por %p149, %p150
      %p153 = scmp.ne.s32.totalorder %s138, %s152
      %p154 = scmp.eq.s32.totalorder %s39, 0
      %p155 = por %p153, %p154
      %s157 = sadd.s32 %s156, 1
      %p160 = scmp.eq.s32.totalorder %s33, 1
      %p161 = scmp.ne.s32.totalorder %s156, %s158
      %p162 = scmp.eq.s32.totalorder %s33, 0
      %p163 = por %p161, %p162
      %p164 = scmp.ne.s32.totalorder %s156, %s158
      %p165 = scmp.eq.s32.totalorder %s38, 1
      %p166 = por %p164, %p165
      %p167 = scmp.ne.s32.totalorder %s158, %s159
      %p168 = scmp.eq.s32.totalorder %s38, 0
      %p169 = por %p167, %p168
      %p170 = scmp.ne.s32.totalorder %s158, %s159
      %p171 = scmp.eq.s32.totalorder %s39, 1
      %p172 = por %p170, %p171
      %p174 = scmp.ne.s32.totalorder %s159, %s173
      %p175 = scmp.eq.s32.totalorder %s39, 0
      %p176 = por %p174, %p175
      %s178 = sadd.s32 %s177, 1
      %p181 = scmp.eq.s32.totalorder %s33, 1
      %p182 = scmp.ne.s32.totalorder %s177, %s179
      %p183 = scmp.eq.s32.totalorder %s33, 0
      %p184 = por %p182, %p183
      %p185 = scmp.ne.s32.totalorder %s177, %s179
      %p186 = scmp.eq.s32.totalorder %s38, 1
      %p187 = por %p185, %p186
      %p188 = scmp.ne.s32.totalorder %s179, %s180
      %p189 = scmp.eq.s32.totalorder %s38, 0
      %p190 = por %p188, %p189
      %p191 = scmp.ne.s32.totalorder %s179, %s180
      %p192 = scmp.eq.s32.totalorder %s39, 1
      %p193 = por %p191, %p192
      %p195 = scmp.ne.s32.totalorder %s180, %s194
      %p196 = scmp.eq.s32.totalorder %s39, 0
      %p197 = por %p195, %p196
      %s199 = sadd.s32 %s198, 1
      %p202 = scmp.eq.s32.totalorder %s33, 1
      %p203 = scmp.ne.s32.totalorder %s198, %s200
      %p204 = scmp.eq.s32.totalorder %s33, 0
      %p205 = por %p203, %p204
      %p206 = scmp.ne.s32.totalorder %s198, %s200
      %p207 = scmp.eq.s32.totalorder %s38, 1
      %p208 = por %p206, %p207
      %p209 = scmp.ne.s32.totalorder %s200, %s201
      %p210 = scmp.eq.s32.totalorder %s38, 0
      %p211 = por %p209, %p210
      %p212 = scmp.ne.s32.totalorder %s200, %s201
      %p213 = scmp.eq.s32.totalorder %s39, 1
      %p214 = por %p212, %p213
      %p216 = scmp.ne.s32.totalorder %s201, %s215
      %p217 = scmp.eq.s32.totalorder %s39, 0
      %p218 = por %p216, %p217
      %s220 = sadd.s32 %s219, 1
      %p223 = scmp.eq.s32.totalorder %s33, 1
      %p224 = scmp.ne.s32.totalorder %s219, %s221
      %p225 = scmp.eq.s32.totalorder %s33, 0
      %p226 = por %p224, %p225
      %p227 = scmp.ne.s32.totalorder %s219, %s221
      %p228 = scmp.eq.s32.totalorder %s38, 1
      %p229 = por %p227, %p228
      %p230 = scmp.ne.s32.totalorder %s221, %s222
      %p231 = scmp.eq.s32.totalorder %s38, 0
      %p232 = por %p230, %p231
      %p233 = scmp.ne.s32.totalorder %s221, %s222
      %p234 = scmp.eq.s32.totalorder %s39, 1
      %p235 = por %p233, %p234
      %p237 = scmp.ne.s32.totalorder %s222, %s236
      %p238 = scmp.eq.s32.totalorder %s39, 0
      %p239 = por %p237, %p238
      %s241 = sadd.s32 %s240, 1
      %p244 = scmp.eq.s32.totalorder %s33, 1
      %p245 = scmp.ne.s32.totalorder %s240, %s242
      %p246 = scmp.eq.s32.totalorder %s33, 0
      %p247 = por %p245, %p246
      %p248 = scmp.ne.s32.totalorder %s240, %s242
      %p249 = scmp.eq.s32.totalorder %s38, 1
      %p250 = por %p248, %p249
      %p251 = scmp.ne.s32.totalorder %s242, %s243
      %p252 = scmp.eq.s32.totalorder %s38, 0
      %p253 = por %p251, %p252
      %p254 = scmp.ne.s32.totalorder %s242, %s243
      %p255 = scmp.eq.s32.totalorder %s39, 1
      %p256 = por %p254, %p255
      %p258 = scmp.ne.s32.totalorder %s243, %s257
      %p259 = scmp.eq.s32.totalorder %s39, 0
      %p260 = por %p258, %p259
      %s262 = sadd.s32 %s261, 1
      %p265 = scmp.eq.s32.totalorder %s33, 1
      %p266 = scmp.ne.s32.totalorder %s261, %s263
      %p267 = scmp.eq.s32.totalorder %s33, 0
      %p268 = por %p266, %p267
      %p269 = scmp.ne.s32.totalorder %s261, %s263
      %p270 = scmp.eq.s32.totalorder %s38, 1
      %p271 = por %p269, %p270
      %p272 = scmp.ne.s32.totalorder %s263, %s264
      %p273 = scmp.eq.s32.totalorder %s38, 0
      %p274 = por %p272, %p273
      %p275 = scmp.ne.s32.totalorder %s263, %s264
      %p276 = scmp.eq.s32.totalorder %s39, 1
      %p277 = por %p275, %p276
      %p279 = scmp.ne.s32.totalorder %s264, %s278
      %p280 = scmp.eq.s32.totalorder %s39, 0
      %p281 = por %p279, %p280
      %s283 = sadd.s32 %s282, 1
      %p286 = scmp.eq.s32.totalorder %s33, 1
      %p287 = scmp.ne.s32.totalorder %s282, %s284
      %p288 = scmp.eq.s32.totalorder %s33, 0
      %p289 = por %p287, %p288
      %p290 = scmp.ne.s32.totalorder %s282, %s284
      %p291 = scmp.eq.s32.totalorder %s38, 1
      %p292 = por %p290, %p291
      %p293 = scmp.ne.s32.totalorder %s284, %s285
      %p294 = scmp.eq.s32.totalorder %s38, 0
      %p295 = por %p293, %p294
      %p296 = scmp.ne.s32.totalorder %s284, %s285
      %p297 = scmp.eq.s32.totalorder %s39, 1
      %p298 = por %p296, %p297
      %p300 = scmp.ne.s32.totalorder %s285, %s299
      %p301 = scmp.eq.s32.totalorder %s39, 0
      %p302 = por %p300, %p301
      %s304 = sadd.s32 %s303, 1
      %p307 = scmp.eq.s32.totalorder %s33, 1
      %p308 = scmp.ne.s32.totalorder %s303, %s305
      %p309 = scmp.eq.s32.totalorder %s33, 0
      %p310 = por %p308, %p309
      %p311 = scmp.ne.s32.totalorder %s303, %s305
      %p312 = scmp.eq.s32.totalorder %s38, 1
      %p313 = por %p311, %p312
      %p314 = scmp.ne.s32.totalorder %s305, %s306
      %p315 = scmp.eq.s32.totalorder %s38, 0
      %p316 = por %p314, %p315
      %p317 = scmp.ne.s32.totalorder %s305, %s306
      %p318 = scmp.eq.s32.totalorder %s39, 1
      %p319 = por %p317, %p318
      %p321 = scmp.ne.s32.totalorder %s306, %s320
      %p322 = scmp.eq.s32.totalorder %s39, 0
      %p323 = por %p321, %p322
      %s325 = sadd.s32 %s324, 1
      %p328 = scmp.eq.s32.totalorder %s33, 1
      %p329 = scmp.ne.s32.totalorder %s324, %s326
      %p330 = scmp.eq.s32.totalorder %s33, 0
      %p331 = por %p329, %p330
      %p332 = scmp.ne.s32.totalorder %s324, %s326
      %p333 = scmp.eq.s32.totalorder %s38, 1
      %p334 = por %p332, %p333
      %p335 = scmp.ne.s32.totalorder %s326, %s327
      %p336 = scmp.eq.s32.totalorder %s38, 0
      %p337 = por %p335, %p336
      %p338 = scmp.ne.s32.totalorder %s326, %s327
      %p339 = scmp.eq.s32.totalorder %s39, 1
      %p340 = por %p338, %p339
      %p342 = scmp.ne.s32.totalorder %s327, %s341
      %p343 = scmp.eq.s32.totalorder %s39, 0
      %p344 = por %p342, %p343
      %s346 = sadd.s32 %s345, 1
      %p349 = scmp.eq.s32.totalorder %s33, 1
      %p350 = scmp.ne.s32.totalorder %s345, %s347
      %p351 = scmp.eq.s32.totalorder %s33, 0
      %p352 = por %p350, %p351
      %p353 = scmp.ne.s32.totalorder %s345, %s347
      %p354 = scmp.eq.s32.totalorder %s38, 1
      %p355 = por %p353, %p354
      %p356 = scmp.ne.s32.totalorder %s347, %s348
      %p357 = scmp.eq.s32.totalorder %s38, 0
      %p358 = por %p356, %p357
      %p359 = scmp.ne.s32.totalorder %s347, %s348
      %p360 = scmp.eq.s32.totalorder %s39, 1
      %p361 = por %p359, %p360
      %p363 = scmp.ne.s32.totalorder %s348, %s362
      %p364 = scmp.eq.s32.totalorder %s39, 0
      %p365 = por %p363, %p364
      %s367 = sadd.s32 %s366, 1
      %p370 = scmp.eq.s32.totalorder %s33, 1
      %p371 = scmp.ne.s32.totalorder %s366, %s368
      %p372 = scmp.eq.s32.totalorder %s33, 0
      %p373 = por %p371, %p372
      %p374 = scmp.ne.s32.totalorder %s366, %s368
      %p375 = scmp.eq.s32.totalorder %s38, 1
      %p376 = por %p374, %p375
      %p377 = scmp.ne.s32.totalorder %s368, %s369
      %p378 = scmp.eq.s32.totalorder %s38, 0
      %p379 = por %p377, %p378
      %p380 = scmp.ne.s32.totalorder %s368, %s369
      %p381 = scmp.eq.s32.totalorder %s39, 1
      %p382 = por %p380, %p381
      %p384 = scmp.ne.s32.totalorder %s369, %s383
      %p385 = scmp.eq.s32.totalorder %s39, 0
      %p386 = por %p384, %p385
      %s388 = sadd.s32 %s387, 1
      %p391 = scmp.eq.s32.totalorder %s33, 1
      %p392 = scmp.ne.s32.totalorder %s387, %s389
      %p393 = scmp.eq.s32.totalorder %s33, 0
      %p394 = por %p392, %p393
      %p395 = scmp.ne.s32.totalorder %s387, %s389
      %p396 = scmp.eq.s32.totalorder %s38, 1
      %p397 = por %p395, %p396
      %p398 = scmp.ne.s32.totalorder %s389, %s390
      %p399 = scmp.eq.s32.totalorder %s38, 0
      %p400 = por %p398, %p399
      %p401 = scmp.ne.s32.totalorder %s389, %s390
      %p402 = scmp.eq.s32.totalorder %s39, 1
      %p403 = por %p401, %p402
      %p405 = scmp.ne.s32.totalorder %s390, %s404
      %p406 = scmp.eq.s32.totalorder %s39, 0
      %p407 = por %p405, %p406
      %s409 = sadd.s32 %s408, 1
      %p412 = scmp.eq.s32.totalorder %s33, 1
      %p413 = scmp.ne.s32.totalorder %s408, %s410
      %p414 = scmp.eq.s32.totalorder %s33, 0
      %p415 = por %p413, %p414
      %p416 = scmp.ne.s32.totalorder %s408, %s410
      %p417 = scmp.eq.s32.totalorder %s38, 1
      %p418 = por %p416, %p417
      %p419 = scmp.ne.s32.totalorder %s410, %s411
      %p420 = scmp.eq.s32.totalorder %s38, 0
      %p421 = por %p419, %p420
      %p422 = scmp.ne.s32.totalorder %s410, %s411
      %p423 = scmp.eq.s32.totalorder %s39, 1
      %p424 = por %p422, %p423
      %p426 = scmp.ne.s32.totalorder %s411, %s425
      %p427 = scmp.eq.s32.totalorder %s39, 0
      %p428 = por %p426, %p427
      %s430 = sadd.s32 %s429, 1
      %p433 = scmp.eq.s32.totalorder %s33, 1
      %p434 = scmp.ne.s32.totalorder %s429, %s431
      %p435 = scmp.eq.s32.totalorder %s33, 0
      %p436 = por %p434, %p435
      %p437 = scmp.ne.s32.totalorder %s429, %s431
      %p438 = scmp.eq.s32.totalorder %s38, 1
      %p439 = por %p437, %p438
      %p440 = scmp.ne.s32.totalorder %s431, %s432
      %p441 = scmp.eq.s32.totalorder %s38, 0
      %p442 = por %p440, %p441
      %p443 = scmp.ne.s32.totalorder %s431, %s432
      %p444 = scmp.eq.s32.totalorder %s39, 1
      %p445 = por %p443, %p444
      %p447 = scmp.ne.s32.totalorder %s432, %s446
      %p448 = scmp.eq.s32.totalorder %s39, 0
      %p449 = por %p447, %p448
      %s450 = ssub.s32 %s33, %s40
      %p451 = scmp.eq.s32.totalorder %s450, 0
      %s453 = sadd.s32 %s452, 1
      %s454 = scalar_select %p451, %s452, %s453
      %p457 = pneg %p451
      %p458 = scmp.eq.s32.totalorder %s33, 1
      %p459 = por %p457, %p458
      %p460 = scmp.ne.s32.totalorder %s452, %s455
      %p461 = scmp.eq.s32.totalorder %s33, 0
      %p462 = por %p460, %p461
      %p463 = scmp.ne.s32.totalorder %s452, %s455
      %p464 = scmp.eq.s32.totalorder %s38, 1
      %p465 = por %p463, %p464
      %p466 = scmp.ne.s32.totalorder %s455, %s456
      %p467 = scmp.eq.s32.totalorder %s38, 0
      %p468 = por %p466, %p467
      %p469 = scmp.ne.s32.totalorder %s455, %s456
      %p470 = scmp.eq.s32.totalorder %s39, 1
      %p471 = por %p469, %p470
      %p473 = scmp.ne.s32.totalorder %s456, %s472
      %p474 = scmp.eq.s32.totalorder %s39, 0
      %p475 = por %p473, %p474
      %s476 = ssub.s32 %s33, %s40
      %p477 = scmp.eq.s32.totalorder %s476, 0
      %s479 = sadd.s32 %s478, 1
      %s480 = scalar_select %p477, %s478, %s479
      %p483 = pneg %p477
      %p484 = scmp.eq.s32.totalorder %s33, 1
      %p485 = por %p483, %p484
      %p486 = scmp.ne.s32.totalorder %s478, %s481
      %p487 = scmp.eq.s32.totalorder %s33, 0
      %p488 = por %p486, %p487
      %p489 = scmp.ne.s32.totalorder %s478, %s481
      %p490 = scmp.eq.s32.totalorder %s38, 1
      %p491 = por %p489, %p490
      %p492 = scmp.ne.s32.totalorder %s481, %s482
      %p493 = scmp.eq.s32.totalorder %s38, 0
      %p494 = por %p492, %p493
      %p495 = scmp.ne.s32.totalorder %s481, %s482
      %p496 = scmp.eq.s32.totalorder %s39, 1
      %p497 = por %p495, %p496
      %p499 = scmp.ne.s32.totalorder %s482, %s498
      %p500 = scmp.eq.s32.totalorder %s39, 0
      %p501 = por %p499, %p500
      %p502 = scmp.le.s32.totalorder 1, %s33
      %p503 = scmp.lt.s32.totalorder %s33, 3
      %p504 = pnand %p502, %p503
      %p505 = pneg %p504
      // Predicated region
      $region9: #{mmt_forward.3} parent=5 // pred_check
        _
      $region10: #{mmt_forward.3} parent=5 // pred_check_branch
        %507 = sbr.rel (%p504) target = $region12
      $region11: #{mmt_forward.3} parent=5 // pred_region
        %s508 = ssub.s32 %s33, 1
        // Predicated region
        $region13: #{mmt_forward.3} parent=11 // pred_check
          %p509 = pneg %p106
        $region14: #{mmt_forward.3} parent=11 // pred_check_branch
          %511 = sbr.rel (%p509) target = $region16
        $region15: #{mmt_forward.3} parent=11 // pred_region
          _
        $region16: #{mmt_forward.3} parent=11 // pred_fallthru
          _
        // Predicated region
        $region17: #{mmt_forward.3} parent=11 // pred_check
          %p512 = pneg %p127
        $region18: #{mmt_forward.3} parent=11 // pred_check_branch
          %514 = sbr.rel (%p512) target = $region20
        $region19: #{mmt_forward.3} parent=11 // pred_region
          _
        $region20: #{mmt_forward.3} parent=11 // pred_fallthru
          _
        // Predicated region
        $region21: #{mmt_forward.3} parent=11 // pred_check
          %p515 = pneg %p148
        $region22: #{mmt_forward.3} parent=11 // pred_check_branch
          %517 = sbr.rel (%p515) target = $region24
        $region23: #{mmt_forward.3} parent=11 // pred_region
          _
        $region24: #{mmt_forward.3} parent=11 // pred_fallthru
          _
        // Predicated region
        $region25: #{mmt_forward.3} parent=11 // pred_check
          %p518 = pneg %p169
        $region26: #{mmt_forward.3} parent=11 // pred_check_branch
          %520 = sbr.rel (%p518) target = $region28
        $region27: #{mmt_forward.3} parent=11 // pred_region
          _
        $region28: #{mmt_forward.3} parent=11 // pred_fallthru
          _
        // Predicated region
        $region29: #{mmt_forward.3} parent=11 // pred_check
          %p521 = pneg %p190
        $region30: #{mmt_forward.3} parent=11 // pred_check_branch
          %523 = sbr.rel (%p521) target = $region32
        $region31: #{mmt_forward.3} parent=11 // pred_region
          _
        $region32: #{mmt_forward.3} parent=11 // pred_fallthru
          _
        // Predicated region
        $region33: #{mmt_forward.3} parent=11 // pred_check
          %p524 = pneg %p211
        $region34: #{mmt_forward.3} parent=11 // pred_check_branch
          %526 = sbr.rel (%p524) target = $region36
        $region35: #{mmt_forward.3} parent=11 // pred_region
          _
        $region36: #{mmt_forward.3} parent=11 // pred_fallthru
          _
        // Predicated region
        $region37: #{mmt_forward.3} parent=11 // pred_check
          %p527 = pneg %p232
        $region38: #{mmt_forward.3} parent=11 // pred_check_branch
          %529 = sbr.rel (%p527) target = $region40
        $region39: #{mmt_forward.3} parent=11 // pred_region
          _
        $region40: #{mmt_forward.3} parent=11 // pred_fallthru
          _
        // Predicated region
        $region41: #{mmt_forward.3} parent=11 // pred_check
          %p530 = pneg %p253
        $region42: #{mmt_forward.3} parent=11 // pred_check_branch
          %532 = sbr.rel (%p530) target = $region44
        $region43: #{mmt_forward.3} parent=11 // pred_region
          _
        $region44: #{mmt_forward.3} parent=11 // pred_fallthru
          _
        // Predicated region
        $region45: #{mmt_forward.3} parent=11 // pred_check
          %p533 = pneg %p274
        $region46: #{mmt_forward.3} parent=11 // pred_check_branch
          %535 = sbr.rel (%p533) target = $region48
        $region47: #{mmt_forward.3} parent=11 // pred_region
          _
        $region48: #{mmt_forward.3} parent=11 // pred_fallthru
          _
        // Predicated region
        $region49: #{mmt_forward.3} parent=11 // pred_check
          %p536 = pneg %p295
        $region50: #{mmt_forward.3} parent=11 // pred_check_branch
          %538 = sbr.rel (%p536) target = $region52
        $region51: #{mmt_forward.3} parent=11 // pred_region
          _
        $region52: #{mmt_forward.3} parent=11 // pred_fallthru
          _
        // Predicated region
        $region53: #{mmt_forward.3} parent=11 // pred_check
          %p539 = pneg %p316
        $region54: #{mmt_forward.3} parent=11 // pred_check_branch
          %541 = sbr.rel (%p539) target = $region56
        $region55: #{mmt_forward.3} parent=11 // pred_region
          _
        $region56: #{mmt_forward.3} parent=11 // pred_fallthru
          _
        // Predicated region
        $region57: #{mmt_forward.3} parent=11 // pred_check
          %p542 = pneg %p337
        $region58: #{mmt_forward.3} parent=11 // pred_check_branch
          %544 = sbr.rel (%p542) target = $region60
        $region59: #{mmt_forward.3} parent=11 // pred_region
          _
        $region60: #{mmt_forward.3} parent=11 // pred_fallthru
          _
        // Predicated region
        $region61: #{mmt_forward.3} parent=11 // pred_check
          %p545 = pneg %p358
        $region62: #{mmt_forward.3} parent=11 // pred_check_branch
          %547 = sbr.rel (%p545) target = $region64
        $region63: #{mmt_forward.3} parent=11 // pred_region
          _
        $region64: #{mmt_forward.3} parent=11 // pred_fallthru
          _
        // Predicated region
        $region65: #{mmt_forward.3} parent=11 // pred_check
          %p548 = pneg %p379
        $region66: #{mmt_forward.3} parent=11 // pred_check_branch
          %550 = sbr.rel (%p548) target = $region68
        $region67: #{mmt_forward.3} parent=11 // pred_region
          _
        $region68: #{mmt_forward.3} parent=11 // pred_fallthru
          _
        // Predicated region
        $region69: #{mmt_forward.3} parent=11 // pred_check
          %p551 = pneg %p400
        $region70: #{mmt_forward.3} parent=11 // pred_check_branch
          %553 = sbr.rel (%p551) target = $region72
        $region71: #{mmt_forward.3} parent=11 // pred_region
          _
        $region72: #{mmt_forward.3} parent=11 // pred_fallthru
          _
        // Predicated region
        $region73: #{mmt_forward.3} parent=11 // pred_check
          %p554 = pneg %p421
        $region74: #{mmt_forward.3} parent=11 // pred_check_branch
          %556 = sbr.rel (%p554) target = $region76
        $region75: #{mmt_forward.3} parent=11 // pred_region
          _
        $region76: #{mmt_forward.3} parent=11 // pred_fallthru
          _
        // Predicated region
        $region77: #{mmt_forward.3} parent=11 // pred_check
          %p557 = pneg %p442
        $region78: #{mmt_forward.3} parent=11 // pred_check_branch
          %559 = sbr.rel (%p557) target = $region80
        $region79: #{mmt_forward.3} parent=11 // pred_region
          _
        $region80: #{mmt_forward.3} parent=11 // pred_fallthru
          _
      $region12: #{mmt_forward.3} parent=5 // pred_fallthru
        _
      %p560 = scmp.lt.s32.totalorder %s33, 2
      // Predicated region
      $region81: #{mmt_forward.3} parent=5 // pred_check
        %p561 = pneg %p560
      $region82: #{mmt_forward.3} parent=5 // pred_check_branch
        %563 = sbr.rel (%p561) target = $region84
      $region83: #{mmt_forward.3} parent=5 // pred_region
        // Predicated region
        $region85: #{mmt_forward.3} parent=83 // pred_check
          %p564 = pneg %p53
        $region86: #{mmt_forward.3} parent=83 // pred_check_branch
          %566 = sbr.rel (%p564) target = $region88
        $region87: #{mmt_forward.3} parent=83 // pred_region
          %p567 = scmp.lt.s32.totalorder %s33, 1
          %s568 = scalar_select %p567, %s33, 1
          %s569 = smul.addr %s568, 2
          %s570 = smul.addr %s569, 8
          %s571 = scalar_lea.vmem %s0, %s570
        $region88: #{mmt_forward.3} parent=83 // pred_fallthru
          _
        // Predicated region
        $region89: #{mmt_forward.3} parent=83 // pred_check
          %p572 = pneg %p79
        $region90: #{mmt_forward.3} parent=83 // pred_check_branch
          %574 = sbr.rel (%p572) target = $region92
        $region91: #{mmt_forward.3} parent=83 // pred_region
          %p575 = scmp.lt.s32.totalorder %s33, 1
          %s576 = scalar_select %p575, %s33, 1
          %s577 = smul.addr %s576, 4
          %s578 = smul.addr %s577, 8
          %s579 = scalar_lea.vmem %s1, %s578
        $region92: #{mmt_forward.3} parent=83 // pred_fallthru
          _
      $region84: #{mmt_forward.3} parent=5 // pred_fallthru
        _
      %p580 = scmp.le.s32.totalorder 1, %s33
      %p581 = scmp.lt.s32.totalorder %s33, 3
      %p582 = pnand %p580, %p581
      %p583 = pneg %p582
      // Predicated region
      $region93: #{mmt_forward.3} parent=5 // pred_check
        _
      $region94: #{mmt_forward.3} parent=5 // pred_check_branch
        %585 = sbr.rel (%p582) target = $region96
      $region95: #{mmt_forward.3} parent=5 // pred_region
        %s586 = ssub.s32 %s33, 1
        %p587 = scmp.lt.s32.totalorder %s38, 1
        %s588 = scalar_select %p587, %s38, 1
        %s589 = smul.addr %s588, 2
        %s590 = smul.addr %s589, 8
        %s591 = scalar_lea.vmem %s0, %s590
        %p592 = pneg %p59
        %p593 = pneg %p56
        %p594 = scmp.lt.s32.totalorder %s38, 1
        %s595 = scalar_select %p594, %s38, 1
        %s596 = smul.addr %s595, 4
        %s597 = smul.addr %s596, 8
        %s598 = scalar_lea.vmem %s1, %s597
        %p599 = pneg %p85
        %p600 = pneg %p82
        %p601 = pneg %p106
        %p602 = pneg %p103
        %p603 = pneg %p127
        %p604 = pneg %p124
        %p605 = pneg %p148
        %p606 = pneg %p145
        %p607 = pneg %p169
        %p608 = pneg %p166
        %p609 = pneg %p190
        %p610 = pneg %p187
        %p611 = pneg %p211
        %p612 = pneg %p208
        %p613 = pneg %p232
        %p614 = pneg %p229
        %p615 = pneg %p253
        %p616 = pneg %p250
        %p617 = pneg %p274
        %p618 = pneg %p271
        %p619 = pneg %p295
        %p620 = pneg %p292
        %p621 = pneg %p316
        %p622 = pneg %p313
        %p623 = pneg %p337
        %p624 = pneg %p334
        %p625 = pneg %p358
        %p626 = pneg %p355
        %p627 = pneg %p379
        %p628 = pneg %p376
        %p629 = pneg %p400
        %p630 = pneg %p397
        %p631 = pneg %p421
        %p632 = pneg %p418
        %p633 = pneg %p442
        %p634 = pneg %p439
        %p635 = pneg %p468
        %p636 = pneg %p465
        %s637 = sand.u32 %s455, 1
        %s638 = scalar_lea.sflag [#allocation4], %s637
        %s639 = sand.u32 %s455, 1
        %s640 = scalar_lea.vmem [#allocation3], %s639
        %p641 = pneg %p494
        %p642 = pneg %p491
        %s643 = sand.u32 %s481, 1
        %s644 = scalar_lea.sflag [#allocation6], %s643
        %s645 = sand.u32 %s481, 1
        %s646 = scalar_lea.vmem [#allocation5], %s645
        %p647 = scmp.lt.s32.totalorder %s38, 1
        %s648 = scalar_select %p647, %s38, 1
        %s649 = smul.addr %s648, 2
        %s650 = smul.addr %s649, 8
        %s651 = scalar_lea.vmem %s0, %s650
        %p652 = scmp.lt.s32.totalorder %s38, 1
        %s653 = scalar_select %p652, %s38, 1
        %s654 = smul.addr %s653, 4
        %s655 = smul.addr %s654, 8
        %s656 = scalar_lea.vmem %s1, %s655
        %v658 = vld [vmem:[%s651] sm:$0xff]
        %v659 = vld [vmem:[%s651 + $0x8] sm:$0x1]
        %v660 = vld [vmem:[%s656] sm:$0xff]
        %v661 = vld [vmem:[%s656 + $0x8] sm:$0xff]
        %v662 = vld [vmem:[%s656 + $0x10] sm:$0xff]
        %v663 = vld [vmem:[%s656 + $0x18] sm:$0x1]
        %664 = vadd.xlane.f32.xlu0 %v658
        %v665 = vpop.xlane.xlu0 %664
        %vm666 = vcmask 1040384
        %v667 = vsel %vm666, %v659, 0.0
        %668 = vadd.xlane.f32.xlu0 %v667
        %v669 = vpop.xlane.xlu0 %668
        %v670 = vrcp.pop 128.0
        %v671 = vmul.f32 %v665, %v670
        %v672 = vmul.f32 %v669, %v670
        %v673 = vsub.f32 %v658, %v671
        %v674 = vsub.f32 %v659, %v672
        %v675 = vmul.f32 %v673, %v673
        %v676 = vmul.f32 %v674, %v674
        %677 = vadd.xlane.f32.xlu0 %v675
        %v678 = vpop.xlane.xlu0 %677
        %v679 = vsel %vm666, %v676, 0.0
        %680 = vadd.xlane.f32.xlu0 %v679
        %v681 = vpop.xlane.xlu0 %680
        %v682 = vmul.f32 %v678, %v670
        %v683 = vmul.f32 %v681, %v670
        %v684 = vadd.f32 %v682, 1e-05
        %v685 = vadd.f32 %v683, 1e-05
        %v686 = vrsqrt.pop %v684
        %v687 = vrsqrt.pop %v685
        %v688 = vmul.f32 %v673, %v686
        %v689 = vmul.f32 %v674, %v687
        %v690 = vld [vmem:[%s2] sm:$0x1]
        %v692 = vlaneseq
        %v693 = vshrl.u32 %v692, 7
        %v694 = vsub.s32 0, %v693
        %v695 = vrot.slane %v690, %v694
        %v697 = vmul.f32 %v688, %v695
        %v698 = vmul.f32 %v689, %v695
        %v699 = vld [vmem:[%s3] sm:$0x1]
        %v701 = vlaneseq
        %v702 = vshrl.u32 %v701, 7
        %v703 = vsub.s32 0, %v702
        %v704 = vrot.slane %v699, %v703
        %v706 = vadd.f32 %v697, %v704
        %v707 = vadd.f32 %v698, %v704
        %v708 = vmul.f32 %v706, 0.125
        %v709 = vmul.f32 %v707, 0.125
        %v710 = vpack.c.bf16 %v709, %v708
        %711 = vadd.xlane.f32.xlu0 %v660
        %v712 = vpop.xlane.xlu0 %711
        %713 = vadd.xlane.f32.xlu0 %v661
        %v714 = vpop.xlane.xlu0 %713
        %715 = vadd.xlane.f32.xlu0 %v662
        %v716 = vpop.xlane.xlu0 %715
        %v717 = vsel %vm666, %v663, 0.0
        %718 = vadd.xlane.f32.xlu0 %v717
        %v719 = vpop.xlane.xlu0 %718
        %v720 = vmul.f32 %v712, %v670
        %v721 = vmul.f32 %v714, %v670
        %v722 = vmul.f32 %v716, %v670
        %v723 = vmul.f32 %v719, %v670
        %v724 = vsub.f32 %v660, %v720
        %v725 = vsub.f32 %v661, %v721
        %v726 = vsub.f32 %v662, %v722
        %v727 = vsub.f32 %v663, %v723
        %v728 = vmul.f32 %v724, %v724
        %v729 = vmul.f32 %v725, %v725
        %v730 = vmul.f32 %v726, %v726
        %v731 = vmul.f32 %v727, %v727
        %732 = vadd.xlane.f32.xlu0 %v728
        %v733 = vpop.xlane.xlu0 %732
        %734 = vadd.xlane.f32.xlu0 %v729
        %v735 = vpop.xlane.xlu0 %734
        %736 = vadd.xlane.f32.xlu0 %v730
        %v737 = vpop.xlane.xlu0 %736
        %v738 = vsel %vm666, %v731, 0.0
        %739 = vadd.xlane.f32.xlu0 %v738
        %v740 = vpop.xlane.xlu0 %739
        %v741 = vmul.f32 %v733, %v670
        %v742 = vmul.f32 %v735, %v670
        %v743 = vmul.f32 %v737, %v670
        %v744 = vmul.f32 %v740, %v670
        %v745 = vadd.f32 %v741, 1e-05
        %v746 = vadd.f32 %v742, 1e-05
        %v747 = vadd.f32 %v743, 1e-05
        %v748 = vadd.f32 %v744, 1e-05
        %v749 = vrsqrt.pop %v745
        %v750 = vrsqrt.pop %v746
        %v751 = vrsqrt.pop %v747
        %v752 = vrsqrt.pop %v748
        %v753 = vmul.f32 %v724, %v749
        %v754 = vmul.f32 %v725, %v750
        %v755 = vmul.f32 %v726, %v751
        %v756 = vmul.f32 %v727, %v752
        %v757 = vld [vmem:[%s4] sm:$0x1]
        %v759 = vlaneseq
        %v760 = vshrl.u32 %v759, 7
        %v761 = vsub.s32 0, %v760
        %v762 = vrot.slane %v757, %v761
        %v764 = vmul.f32 %v753, %v762
        %v765 = vmul.f32 %v754, %v762
        %v766 = vmul.f32 %v755, %v762
        %v767 = vmul.f32 %v756, %v762
        %v768 = vld [vmem:[%s5] sm:$0x1]
        %v770 = vlaneseq
        %v771 = vshrl.u32 %v770, 7
        %v772 = vsub.s32 0, %v771
        %v773 = vrot.slane %v768, %v772
        %v775 = vadd.f32 %v764, %v773
        %v776 = vadd.f32 %v765, %v773
        %v777 = vadd.f32 %v766, %v773
        %v778 = vadd.f32 %v767, %v773
        %v779 = vpack.c.bf16 %v776, %v775
        %v780 = vpack.c.bf16 %v778, %v777
        %v781 = vld [vmem:[%s8] sm:$0xff]
        %v782 = vld [vmem:[%s8 + $0x8] sm:$0xff]
        %v783 = vld [vmem:[%s8 + $0x10] sm:$0xff]
        %v784 = vld [vmem:[%s8 + $0x18] sm:$0xff]
        %v785 = vld [vmem:[%s8 + $0x20] sm:$0xff]
        %v786 = vld [vmem:[%s8 + $0x28] sm:$0xff]
        %v787 = vld [vmem:[%s8 + $0x30] sm:$0xff]
        %v788 = vld [vmem:[%s8 + $0x38] sm:$0xff]
        %v789 = vld [vmem:[%s8 + $0x40] sm:$0xff]
        %v790 = vld [vmem:[%s8 + $0x48] sm:$0xff]
        %v791 = vld [vmem:[%s8 + $0x50] sm:$0xff]
        %v792 = vld [vmem:[%s8 + $0x58] sm:$0xff]
        %v793 = vld [vmem:[%s8 + $0x60] sm:$0xff]
        %v794 = vld [vmem:[%s8 + $0x68] sm:$0xff]
        %v795 = vld [vmem:[%s8 + $0x70] sm:$0xff]
        %v796 = vld [vmem:[%s8 + $0x78] sm:$0xff]
        %v797 = vld [vmem:[%s8 + $0x80] sm:$0xff]
        %v798 = vld [vmem:[%s8 + $0x88] sm:$0xff]
        %v799 = vld [vmem:[%s8 + $0x90] sm:$0xff]
        %v800 = vld [vmem:[%s8 + $0x98] sm:$0xff]
        %v801 = vld [vmem:[%s8 + $0xa0] sm:$0xff]
        %v802 = vld [vmem:[%s8 + $0xa8] sm:$0xff]
        %v803 = vld [vmem:[%s8 + $0xb0] sm:$0xff]
        %v804 = vld [vmem:[%s8 + $0xb8] sm:$0xff]
        %v805 = vld [vmem:[%s8 + $0xc0] sm:$0xff]
        %v806 = vld [vmem:[%s8 + $0xc8] sm:$0xff]
        %v807 = vld [vmem:[%s8 + $0xd0] sm:$0xff]
        %v808 = vld [vmem:[%s8 + $0xd8] sm:$0xff]
        %v809 = vld [vmem:[%s8 + $0xe0] sm:$0xff]
        %v810 = vld [vmem:[%s8 + $0xe8] sm:$0xff]
        %v811 = vld [vmem:[%s8 + $0xf0] sm:$0xff]
        %v812 = vld [vmem:[%s8 + $0xf8] sm:$0xff]
        %v845 = vunpack.c.l.b16 %v781
        %v846 = vunpack.c.h.b16 %v781
        %v847 = vunpack.c.l.b16 %v782
        %v848 = vunpack.c.h.b16 %v782
        %v849 = vunpack.c.l.b16 %v783
        %v850 = vunpack.c.h.b16 %v783
        %v851 = vunpack.c.l.b16 %v784
        %v852 = vunpack.c.h.b16 %v784
        %v853 = vunpack.c.l.b16 %v785
        %v854 = vunpack.c.h.b16 %v785
        %v855 = vunpack.c.l.b16 %v786
        %v856 = vunpack.c.h.b16 %v786
        %v857 = vunpack.c.l.b16 %v787
        %v858 = vunpack.c.h.b16 %v787
        %v859 = vunpack.c.l.b16 %v788
        %v860 = vunpack.c.h.b16 %v788
        %v861 = vunpack.c.l.b16 %v789
        %v862 = vunpack.c.h.b16 %v789
        %v863 = vunpack.c.l.b16 %v790
        %v864 = vunpack.c.h.b16 %v790
        %v865 = vunpack.c.l.b16 %v791
        %v866 = vunpack.c.h.b16 %v791
        %v867 = vunpack.c.l.b16 %v792
        %v868 = vunpack.c.h.b16 %v792
        %v869 = vunpack.c.l.b16 %v793
        %v870 = vunpack.c.h.b16 %v793
        %v871 = vunpack.c.l.b16 %v794
        %v872 = vunpack.c.h.b16 %v794
        %v873 = vunpack.c.l.b16 %v795
        %v874 = vunpack.c.h.b16 %v795
        %v875 = vunpack.c.l.b16 %v796
        %v876 = vunpack.c.h.b16 %v796
        %v877 = vunpack.c.l.b16 %v797
        %v878 = vunpack.c.h.b16 %v797
        %v879 = vunpack.c.l.b16 %v798
        %v880 = vunpack.c.h.b16 %v798
        %v881 = vunpack.c.l.b16 %v799
        %v882 = vunpack.c.h.b16 %v799
        %v883 = vunpack.c.l.b16 %v800
        %v884 = vunpack.c.h.b16 %v800
        %v885 = vunpack.c.l.b16 %v801
        %v886 = vunpack.c.h.b16 %v801
        %v887 = vunpack.c.l.b16 %v802
        %v888 = vunpack.c.h.b16 %v802
        %v889 = vunpack.c.l.b16 %v803
        %v890 = vunpack.c.h.b16 %v803
        %v891 = vunpack.c.l.b16 %v804
        %v892 = vunpack.c.h.b16 %v804
        %v893 = vunpack.c.l.b16 %v805
        %v894 = vunpack.c.h.b16 %v805
        %v895 = vunpack.c.l.b16 %v806
        %v896 = vunpack.c.h.b16 %v806
        %v897 = vunpack.c.l.b16 %v807
        %v898 = vunpack.c.h.b16 %v807
        %v899 = vunpack.c.l.b16 %v808
        %v900 = vunpack.c.h.b16 %v808
        %v901 = vunpack.c.l.b16 %v809
        %v902 = vunpack.c.h.b16 %v809
        %v903 = vunpack.c.l.b16 %v810
        %v904 = vunpack.c.h.b16 %v810
        %v905 = vunpack.c.l.b16 %v811
        %v906 = vunpack.c.h.b16 %v811
        %v907 = vunpack.c.l.b16 %v812
        %v908 = vunpack.c.h.b16 %v812
        %v909 = vpack.c.b16 %v849, %v845
        %v910 = vpack.c.b16 %v850, %v846
        %v911 = vpack.c.b16 %v851, %v847
        %v912 = vpack.c.b16 %v852, %v848
        %v913 = vpack.c.b16 %v857, %v853
        %v914 = vpack.c.b16 %v858, %v854
        %v915 = vpack.c.b16 %v859, %v855
        %v916 = vpack.c.b16 %v860, %v856
        %v917 = vpack.c.b16 %v865, %v861
        %v918 = vpack.c.b16 %v866, %v862
        %v919 = vpack.c.b16 %v867, %v863
        %v920 = vpack.c.b16 %v868, %v864
        %v921 = vpack.c.b16 %v873, %v869
        %v922 = vpack.c.b16 %v874, %v870
        %v923 = vpack.c.b16 %v875, %v871
        %v924 = vpack.c.b16 %v876, %v872
        %v925 = vpack.c.b16 %v881, %v877
        %v926 = vpack.c.b16 %v882, %v878
        %v927 = vpack.c.b16 %v883, %v879
        %v928 = vpack.c.b16 %v884, %v880
        %v929 = vpack.c.b16 %v889, %v885
        %v930 = vpack.c.b16 %v890, %v886
        %v931 = vpack.c.b16 %v891, %v887
        %v932 = vpack.c.b16 %v892, %v888
        %v933 = vpack.c.b16 %v897, %v893
        %v934 = vpack.c.b16 %v898, %v894
        %v935 = vpack.c.b16 %v899, %v895
        %v936 = vpack.c.b16 %v900, %v896
        %v937 = vpack.c.b16 %v905, %v901
        %v938 = vpack.c.b16 %v906, %v902
        %v939 = vpack.c.b16 %v907, %v903
        %v940 = vpack.c.b16 %v908, %v904
        %973 = vmatprep.subr.bf16.mxu0 %v910
        %974 = vmatpush1.bf16.msra.mxu0 %v909
        %975 = vmatprep.subr.bf16.mxu0 %v914
        %976 = vmatpush1.bf16.msra.mxu0 %v913
        %977 = vmatprep.subr.bf16.mxu0 %v918
        %978 = vmatpush1.bf16.msra.mxu0 %v917
        %979 = vmatprep.subr.bf16.mxu0 %v922
        %980 = vmatpush1.bf16.msra.mxu0 %v921
        %981 = vmatprep.subr.bf16.mxu0 %v926
        %982 = vmatpush1.bf16.msra.mxu0 %v925
        %983 = vmatprep.subr.bf16.mxu0 %v930
        %984 = vmatpush1.bf16.msra.mxu0 %v929
        %985 = vmatprep.subr.bf16.mxu0 %v934
        %986 = vmatpush1.bf16.msra.mxu0 %v933
        %987 = vmatprep.subr.bf16.mxu0 %v938
        %988 = vmatpush1.bf16.msra.mxu0 %v937
        %989 = vmatprep.subr.bf16.mxu0 0
        %990 = vmatpush1.bf16.msra.mxu0 0
        %991 = vmatprep.subr.bf16.mxu0 0
        %992 = vmatpush1.bf16.msra.mxu0 0
        %993 = vmatprep.subr.bf16.mxu0 0
        %994 = vmatpush1.bf16.msra.mxu0 0
        %995 = vmatprep.subr.bf16.mxu0 0
        %996 = vmatpush1.bf16.msra.mxu0 0
        %997 = vmatprep.subr.bf16.mxu0 0
        %998 = vmatpush1.bf16.msra.mxu0 0
        %999 = vmatprep.subr.bf16.mxu0 0
        %1000 = vmatpush1.bf16.msra.mxu0 0
        %1001 = vmatprep.subr.bf16.mxu0 0
        %1002 = vmatpush1.bf16.msra.mxu0 0
        %1003 = vmatprep.subr.bf16.mxu0 0
        %1004 = vmatpush1.bf16.msra.mxu0 0
        %1005 = vmatprep.mubr.bf16.mxu0 0
        %1006 = vmatmul.mubr.bf16.gmra.mrb[0].mxu0 %v710
        %v1007 = vpop.f32.mrb[0].mxu0
        %v1008 = vadd.f32 0.0, %v1007
        %v1009 = vpop.f32.mrb[0].mxu0
        %v1010 = vadd.f32 0.0, %v1009
        %v1011 = vpop.f32.mrb[0].mxu0
        %v1012 = vadd.f32 0.0, %v1011
        %v1013 = vpop.f32.mrb[0].mxu0
        %v1014 = vadd.f32 0.0, %v1013
        %1015 = vdwg.mxu0
        %1016 = vmatprep.subr.bf16.mxu0 %v912
        %1017 = vmatpush1.bf16.msra.mxu0 %v911
        %1018 = vmatprep.subr.bf16.mxu0 %v916
        %1019 = vmatpush1.bf16.msra.mxu0 %v915
        %1020 = vmatprep.subr.bf16.mxu0 %v920
        %1021 = vmatpush1.bf16.msra.mxu0 %v919
        %1022 = vmatprep.subr.bf16.mxu0 %v924
        %1023 = vmatpush1.bf16.msra.mxu0 %v923
        %1024 = vmatprep.subr.bf16.mxu0 %v928
        %1025 = vmatpush1.bf16.msra.mxu0 %v927
        %1026 = vmatprep.subr.bf16.mxu0 %v932
        %1027 = vmatpush1.bf16.msra.mxu0 %v931
        %1028 = vmatprep.subr.bf16.mxu0 %v936
        %1029 = vmatpush1.bf16.msra.mxu0 %v935
        %1030 = vmatprep.subr.bf16.mxu0 %v940
        %1031 = vmatpush1.bf16.msra.mxu0 %v939
        %1032 = vmatprep.subr.bf16.mxu0 0
        %1033 = vmatpush1.bf16.msra.mxu0 0
        %1034 = vmatprep.subr.bf16.mxu0 0
        %1035 = vmatpush1.bf16.msra.mxu0 0
        %1036 = vmatprep.subr.bf16.mxu0 0
        %1037 = vmatpush1.bf16.msra.mxu0 0
        %1038 = vmatprep.subr.bf16.mxu0 0
        %1039 = vmatpush1.bf16.msra.mxu0 0
        %1040 = vmatprep.subr.bf16.mxu0 0
        %1041 = vmatpush1.bf16.msra.mxu0 0
        %1042 = vmatprep.subr.bf16.mxu0 0
        %1043 = vmatpush1.bf16.msra.mxu0 0
        %1044 = vmatprep.subr.bf16.mxu0 0
        %1045 = vmatpush1.bf16.msra.mxu0 0
        %1046 = vmatprep.subr.bf16.mxu0 0
        %1047 = vmatpush1.bf16.msra.mxu0 0
        %1048 = vmatprep.mubr.bf16.mxu0 0
        %1049 = vmatmul.mubr.bf16.gmra.mrb[0].mxu0 %v710
        %v1050 = vpop.f32.mrb[0].mxu0
        %v1051 = vadd.f32 0.0, %v1050
        %v1052 = vpop.f32.mrb[0].mxu0
        %v1053 = vadd.f32 0.0, %v1052
        %v1054 = vpop.f32.mrb[0].mxu0
        %v1055 = vadd.f32 0.0, %v1054
        %v1056 = vpop.f32.mrb[0].mxu0
        %v1057 = vadd.f32 0.0, %v1056
        %1058 = vdwg.mxu0
        %v1059 = vpack.c.bf16 %v1012, %v1008
        %v1060 = vpack.c.bf16 %v1014, %v1010
        %v1061 = vpack.c.bf16 %v1055, %v1051
        %v1062 = vpack.c.bf16 %v1057, %v1053
        %v1063 = vld [vmem:[%s9] sm:$0xff]
        %v1064 = vld [vmem:[%s9 + $0x8] sm:$0xff]
        %v1065 = vld [vmem:[%s9 + $0x10] sm:$0xff]
        %v1066 = vld [vmem:[%s9 + $0x18] sm:$0xff]
        %v1067 = vld [vmem:[%s9 + $0x20] sm:$0xff]
        %v1068 = vld [vmem:[%s9 + $0x28] sm:$0xff]
        %v1069 = vld [vmem:[%s9 + $0x30] sm:$0xff]
        %v1070 = vld [vmem:[%s9 + $0x38] sm:$0xff]
        %v1071 = vld [vmem:[%s9 + $0x40] sm:$0xff]
        %v1072 = vld [vmem:[%s9 + $0x48] sm:$0xff]
        %v1073 = vld [vmem:[%s9 + $0x50] sm:$0xff]
        %v1074 = vld [vmem:[%s9 + $0x58] sm:$0xff]
        %v1075 = vld [vmem:[%s9 + $0x60] sm:$0xff]
        %v1076 = vld [vmem:[%s9 + $0x68] sm:$0xff]
        %v1077 = vld [vmem:[%s9 + $0x70] sm:$0xff]
        %v1078 = vld [vmem:[%s9 + $0x78] sm:$0xff]
        %v1079 = vld [vmem:[%s9 + $0x80] sm:$0xff]
        %v1080 = vld [vmem:[%s9 + $0x88] sm:$0xff]
        %v1081 = vld [vmem:[%s9 + $0x90] sm:$0xff]
        %v1082 = vld [vmem:[%s9 + $0x98] sm:$0xff]
        %v1083 = vld [vmem:[%s9 + $0xa0] sm:$0xff]
        %v1084 = vld [vmem:[%s9 + $0xa8] sm:$0xff]
        %v1085 = vld [vmem:[%s9 + $0xb0] sm:$0xff]
        %v1086 = vld [vmem:[%s9 + $0xb8] sm:$0xff]
        %v1087 = vld [vmem:[%s9 + $0xc0] sm:$0xff]
        %v1088 = vld [vmem:[%s9 + $0xc8] sm:$0xff]
        %v1089 = vld [vmem:[%s9 + $0xd0] sm:$0xff]
        %v1090 = vld [vmem:[%s9 + $0xd8] sm:$0xff]
        %v1091 = vld [vmem:[%s9 + $0xe0] sm:$0xff]
        %v1092 = vld [vmem:[%s9 + $0xe8] sm:$0xff]
        %v1093 = vld [vmem:[%s9 + $0xf0] sm:$0xff]
        %v1094 = vld [vmem:[%s9 + $0xf8] sm:$0xff]
        %v1127 = vunpack.c.l.b16 %v1063
        %v1128 = vunpack.c.h.b16 %v1063
        %v1129 = vunpack.c.l.b16 %v1064
        %v1130 = vunpack.c.h.b16 %v1064
        %v1131 = vunpack.c.l.b16 %v1065
        %v1132 = vunpack.c.h.b16 %v1065
        %v1133 = vunpack.c.l.b16 %v1066
        %v1134 = vunpack.c.h.b16 %v1066
        %v1135 = vunpack.c.l.b16 %v1067
        %v1136 = vunpack.c.h.b16 %v1067
        %v1137 = vunpack.c.l.b16 %v1068
        %v1138 = vunpack.c.h.b16 %v1068
        %v1139 = vunpack.c.l.b16 %v1069
        %v1140 = vunpack.c.h.b16 %v1069
        %v1141 = vunpack.c.l.b16 %v1070
        %v1142 = vunpack.c.h.b16 %v1070
        %v1143 = vunpack.c.l.b16 %v1071
        %v1144 = vunpack.c.h.b16 %v1071
        %v1145 = vunpack.c.l.b16 %v1072
        %v1146 = vunpack.c.h.b16 %v1072
        %v1147 = vunpack.c.l.b16 %v1073
        %v1148 = vunpack.c.h.b16 %v1073
        %v1149 = vunpack.c.l.b16 %v1074
        %v1150 = vunpack.c.h.b16 %v1074
        %v1151 = vunpack.c.l.b16 %v1075
        %v1152 = vunpack.c.h.b16 %v1075
        %v1153 = vunpack.c.l.b16 %v1076
        %v1154 = vunpack.c.h.b16 %v1076
        %v1155 = vunpack.c.l.b16 %v1077
        %v1156 = vunpack.c.h.b16 %v1077
        %v1157 = vunpack.c.l.b16 %v1078
        %v1158 = vunpack.c.h.b16 %v1078
        %v1159 = vunpack.c.l.b16 %v1079
        %v1160 = vunpack.c.h.b16 %v1079
        %v1161 = vunpack.c.l.b16 %v1080
        %v1162 = vunpack.c.h.b16 %v1080
        %v1163 = vunpack.c.l.b16 %v1081
        %v1164 = vunpack.c.h.b16 %v1081
        %v1165 = vunpack.c.l.b16 %v1082
        %v1166 = vunpack.c.h.b16 %v1082
        %v1167 = vunpack.c.l.b16 %v1083
        %v1168 = vunpack.c.h.b16 %v1083
        %v1169 = vunpack.c.l.b16 %v1084
        %v1170 = vunpack.c.h.b16 %v1084
        %v1171 = vunpack.c.l.b16 %v1085
        %v1172 = vunpack.c.h.b16 %v1085
        %v1173 = vunpack.c.l.b16 %v1086
        %v1174 = vunpack.c.h.b16 %v1086
        %v1175 = vunpack.c.l.b16 %v1087
        %v1176 = vunpack.c.h.b16 %v1087
        %v1177 = vunpack.c.l.b16 %v1088
        %v1178 = vunpack.c.h.b16 %v1088
        %v1179 = vunpack.c.l.b16 %v1089
        %v1180 = vunpack.c.h.b16 %v1089
        %v1181 = vunpack.c.l.b16 %v1090
        %v1182 = vunpack.c.h.b16 %v1090
        %v1183 = vunpack.c.l.b16 %v1091
        %v1184 = vunpack.c.h.b16 %v1091
        %v1185 = vunpack.c.l.b16 %v1092
        %v1186 = vunpack.c.h.b16 %v1092
        %v1187 = vunpack.c.l.b16 %v1093
        %v1188 = vunpack.c.h.b16 %v1093
        %v1189 = vunpack.c.l.b16 %v1094
        %v1190 = vunpack.c.h.b16 %v1094
        %v1191 = vpack.c.b16 %v1131, %v1127
        %v1192 = vpack.c.b16 %v1132, %v1128
        %v1193 = vpack.c.b16 %v1133, %v1129
        %v1194 = vpack.c.b16 %v1134, %v1130
        %v1195 = vpack.c.b16 %v1139, %v1135
        %v1196 = vpack.c.b16 %v1140, %v1136
        %v1197 = vpack.c.b16 %v1141, %v1137
        %v1198 = vpack.c.b16 %v1142, %v1138
        %v1199 = vpack.c.b16 %v1147, %v1143
        %v1200 = vpack.c.b16 %v1148, %v1144
        %v1201 = vpack.c.b16 %v1149, %v1145
        %v1202 = vpack.c.b16 %v1150, %v1146
        %v1203 = vpack.c.b16 %v1155, %v1151
        %v1204 = vpack.c.b16 %v1156, %v1152
        %v1205 = vpack.c.b16 %v1157, %v1153
        %v1206 = vpack.c.b16 %v1158, %v1154
        %v1207 = vpack.c.b16 %v1163, %v1159
        %v1208 = vpack.c.b16 %v1164, %v1160
        %v1209 = vpack.c.b16 %v1165, %v1161
        %v1210 = vpack.c.b16 %v1166, %v1162
        %v1211 = vpack.c.b16 %v1171, %v1167
        %v1212 = vpack.c.b16 %v1172, %v1168
        %v1213 = vpack.c.b16 %v1173, %v1169
        %v1214 = vpack.c.b16 %v1174, %v1170
        %v1215 = vpack.c.b16 %v1179, %v1175
        %v1216 = vpack.c.b16 %v1180, %v1176
        %v1217 = vpack.c.b16 %v1181, %v1177
        %v1218 = vpack.c.b16 %v1182, %v1178
        %v1219 = vpack.c.b16 %v1187, %v1183
        %v1220 = vpack.c.b16 %v1188, %v1184
        %v1221 = vpack.c.b16 %v1189, %v1185
        %v1222 = vpack.c.b16 %v1190, %v1186
        %1255 = vmatprep.subr.bf16.mxu0 %v1192
        %1256 = vmatpush1.bf16.msra.mxu0 %v1191
        %1257 = vmatprep.subr.bf16.mxu0 %v1196
        %1258 = vmatpush1.bf16.msra.mxu0 %v1195
        %1259 = vmatprep.subr.bf16.mxu0 %v1200
        %1260 = vmatpush1.bf16.msra.mxu0 %v1199
        %1261 = vmatprep.subr.bf16.mxu0 %v1204
        %1262 = vmatpush1.bf16.msra.mxu0 %v1203
        %1263 = vmatprep.subr.bf16.mxu0 %v1208
        %1264 = vmatpush1.bf16.msra.mxu0 %v1207
        %1265 = vmatprep.subr.bf16.mxu0 %v1212
        %1266 = vmatpush1.bf16.msra.mxu0 %v1211
        %1267 = vmatprep.subr.bf16.mxu0 %v1216
        %1268 = vmatpush1.bf16.msra.mxu0 %v1215
        %1269 = vmatprep.subr.bf16.mxu0 %v1220
        %1270 = vmatpush1.bf16.msra.mxu0 %v1219
        %1271 = vmatprep.subr.bf16.mxu0 0
        %1272 = vmatpush1.bf16.msra.mxu0 0
        %1273 = vmatprep.subr.bf16.mxu0 0
        %1274 = vmatpush1.bf16.msra.mxu0 0
        %1275 = vmatprep.subr.bf16.mxu0 0
        %1276 = vmatpush1.bf16.msra.mxu0 0
        %1277 = vmatprep.subr.bf16.mxu0 0
        %1278 = vmatpush1.bf16.msra.mxu0 0
        %1279 = vmatprep.subr.bf16.mxu0 0
        %1280 = vmatpush1.bf16.msra.mxu0 0
        %1281 = vmatprep.subr.bf16.mxu0 0
        %1282 = vmatpush1.bf16.msra.mxu0 0
        %1283 = vmatprep.subr.bf16.mxu0 0
        %1284 = vmatpush1.bf16.msra.mxu0 0
        %1285 = vmatprep.subr.bf16.mxu0 0
        %1286 = vmatpush1.bf16.msra.mxu0 0
        %1287 = vmatprep.mubr.bf16.mxu0 0
        %1288 = vmatmul.mubr.bf16.gmra.mrb[0].mxu0 %v779
        %v1289 = vpop.f32.mrb[0].mxu0
        %v1290 = vadd.f32 0.0, %v1289
        %v1291 = vpop.f32.mrb[0].mxu0
        %v1292 = vadd.f32 0.0, %v1291
        %v1293 = vpop.f32.mrb[0].mxu0
        %v1294 = vadd.f32 0.0, %v1293
        %v1295 = vpop.f32.mrb[0].mxu0
        %v1296 = vadd.f32 0.0, %v1295
        %1297 = vmatprep.mubr.bf16.mxu0 0
        %1298 = vmatmul.mubr.bf16.gmra.mrb[0].mxu0 %v780
        %v1299 = vpop.f32.mrb[0].mxu0
        %v1300 = vadd.f32 0.0, %v1299
        %v1301 = vpop.f32.mrb[0].mxu0
        %v1302 = vadd.f32 0.0, %v1301
        %v1303 = vpop.f32.mrb[0].mxu0
        %v1304 = vadd.f32 0.0, %v1303
        %v1305 = vpop.f32.mrb[0].mxu0
        %v1306 = vadd.f32 0.0, %v1305
        %1307 = vdwg.mxu0
        %1308 = vmatprep.subr.bf16.mxu0 %v1194
        %1309 = vmatpush1.bf16.msra.mxu0 %v1193
        %1310 = vmatprep.subr.bf16.mxu0 %v1198
        %1311 = vmatpush1.bf16.msra.mxu0 %v1197
        %1312 = vmatprep.subr.bf16.mxu0 %v1202
        %1313 = vmatpush1.bf16.msra.mxu0 %v1201
        %1314 = vmatprep.subr.bf16.mxu0 %v1206
        %1315 = vmatpush1.bf16.msra.mxu0 %v1205
        %1316 = vmatprep.subr.bf16.mxu0 %v1210
        %1317 = vmatpush1.bf16.msra.mxu0 %v1209
        %1318 = vmatprep.subr.bf16.mxu0 %v1214
        %1319 = vmatpush1.bf16.msra.mxu0 %v1213
        %1320 = vmatprep.subr.bf16.mxu0 %v1218
        %1321 = vmatpush1.bf16.msra.mxu0 %v1217
        %1322 = vmatprep.subr.bf16.mxu0 %v1222
        %1323 = vmatpush1.bf16.msra.mxu0 %v1221
        %1324 = vmatprep.subr.bf16.mxu0 0
        %1325 = vmatpush1.bf16.msra.mxu0 0
        %1326 = vmatprep.subr.bf16.mxu0 0
        %1327 = vmatpush1.bf16.msra.mxu0 0
        %1328 = vmatprep.subr.bf16.mxu0 0
        %1329 = vmatpush1.bf16.msra.mxu0 0
        %1330 = vmatprep.subr.bf16.mxu0 0
        %1331 = vmatpush1.bf16.msra.mxu0 0
        %1332 = vmatprep.subr.bf16.mxu0 0
        %1333 = vmatpush1.bf16.msra.mxu0 0
        %1334 = vmatprep.subr.bf16.mxu0 0
        %1335 = vmatpush1.bf16.msra.mxu0 0
        %1336 = vmatprep.subr.bf16.mxu0 0
        %1337 = vmatpush1.bf16.msra.mxu0 0
        %1338 = vmatprep.subr.bf16.mxu0 0
        %1339 = vmatpush1.bf16.msra.mxu0 0
        %1340 = vmatprep.mubr.bf16.mxu0 0
        %1341 = vmatmul.mubr.bf16.gmra.mrb[0].mxu0 %v779
        %v1342 = vpop.f32.mrb[0].mxu0
        %v1343 = vadd.f32 0.0, %v1342
        %v1344 = vpop.f32.mrb[0].mxu0
        %v1345 = vadd.f32 0.0, %v1344
        %v1346 = vpop.f32.mrb[0].mxu0
        %v1347 = vadd.f32 0.0, %v1346
        %v1348 = vpop.f32.mrb[0].mxu0
        %v1349 = vadd.f32 0.0, %v1348
        %1350 = vmatprep.mubr.bf16.mxu0 0
        %1351 = vmatmul.mubr.bf16.gmra.mrb[0].mxu0 %v780
        %v1352 = vpop.f32.mrb[0].mxu0
        %v1353 = vadd.f32 0.0, %v1352
        %v1354 = vpop.f32.mrb[0].mxu0
        %v1355 = vadd.f32 0.0, %v1354
        %v1356 = vpop.f32.mrb[0].mxu0
        %v1357 = vadd.f32 0.0, %v1356
        %v1358 = vpop.f32.mrb[0].mxu0
        %v1359 = vadd.f32 0.0, %v1358
        %1360 = vdwg.mxu0
        %v1361 = vpack.c.bf16 %v1294, %v1290
        %v1362 = vpack.c.bf16 %v1296, %v1292
        %v1363 = vpack.c.bf16 %v1347, %v1343
        %v1364 = vpack.c.bf16 %v1349, %v1345
        %v1365 = vpack.c.bf16 %v1304, %v1300
        %v1366 = vpack.c.bf16 %v1306, %v1302
        %v1367 = vpack.c.bf16 %v1357, %v1353
        %v1368 = vpack.c.bf16 %v1359, %v1355
        %v1369 = vld [vmem:[%s10] sm:$0xff]
        %v1370 = vld [vmem:[%s10 + $0x8] sm:$0xff]
        %v1371 = vld [vmem:[%s10 + $0x10] sm:$0xff]
        %v1372 = vld [vmem:[%s10 + $0x18] sm:$0xff]
        %v1373 = vld [vmem:[%s10 + $0x20] sm:$0xff]
        %v1374 = vld [vmem:[%s10 + $0x28] sm:$0xff]
        %v1375 = vld [vmem:[%s10 + $0x30] sm:$0xff]
        %v1376 = vld [vmem:[%s10 + $0x38] sm:$0xff]
        %v1377 = vld [vmem:[%s10 + $0x40] sm:$0xff]
        %v1378 = vld [vmem:[%s10 + $0x48] sm:$0xff]
        %v1379 = vld [vmem:[%s10 + $0x50] sm:$0xff]
        %v1380 = vld [vmem:[%s10 + $0x58] sm:$0xff]
        %v1381 = vld [vmem:[%s10 + $0x60] sm:$0xff]
        %v1382 = vld [vmem:[%s10 + $0x68] sm:$0xff]
        %v1383 = vld [vmem:[%s10 + $0x70] sm:$0xff]
        %v1384 = vld [vmem:[%s10 + $0x78] sm:$0xff]
        %v1385 = vld [vmem:[%s10 + $0x80] sm:$0xff]
        %v1386 = vld [vmem:[%s10 + $0x88] sm:$0xff]
        %v1387 = vld [vmem:[%s10 + $0x90] sm:$0xff]
        %v1388 = vld [vmem:[%s10 + $0x98] sm:$0xff]
        %v1389 = vld [vmem:[%s10 + $0xa0] sm:$0xff]
        %v1390 = vld [vmem:[%s10 + $0xa8] sm:$0xff]
        %v1391 = vld [vmem:[%s10 + $0xb0] sm:$0xff]
        %v1392 = vld [vmem:[%s10 + $0xb8] sm:$0xff]
        %v1393 = vld [vmem:[%s10 + $0xc0] sm:$0xff]
        %v1394 = vld [vmem:[%s10 + $0xc8] sm:$0xff]
        %v1395 = vld [vmem:[%s10 + $0xd0] sm:$0xff]
        %v1396 = vld [vmem:[%s10 + $0xd8] sm:$0xff]
        %v1397 = vld [vmem:[%s10 + $0xe0] sm:$0xff]
        %v1398 = vld [vmem:[%s10 + $0xe8] sm:$0xff]
        %v1399 = vld [vmem:[%s10 + $0xf0] sm:$0xff]
        %v1400 = vld [vmem:[%s10 + $0xf8] sm:$0xff]
        %v1433 = vunpack.c.l.b16 %v1369
        %v1434 = vunpack.c.h.b16 %v1369
        %v1435 = vunpack.c.l.b16 %v1370
        %v1436 = vunpack.c.h.b16 %v1370
        %v1437 = vunpack.c.l.b16 %v1371
        %v1438 = vunpack.c.h.b16 %v1371
        %v1439 = vunpack.c.l.b16 %v1372
        %v1440 = vunpack.c.h.b16 %v1372
        %v1441 = vunpack.c.l.b16 %v1373
        %v1442 = vunpack.c.h.b16 %v1373
        %v1443 = vunpack.c.l.b16 %v1374
        %v1444 = vunpack.c.h.b16 %v1374
        %v1445 = vunpack.c.l.b16 %v1375
        %v1446 = vunpack.c.h.b16 %v1375
        %v1447 = vunpack.c.l.b16 %v1376
        %v1448 = vunpack.c.h.b16 %v1376
        %v1449 = vunpack.c.l.b16 %v1377
        %v1450 = vunpack.c.h.b16 %v1377
        %v1451 = vunpack.c.l.b16 %v1378
        %v1452 = vunpack.c.h.b16 %v1378
        %v1453 = vunpack.c.l.b16 %v1379
        %v1454 = vunpack.c.h.b16 %v1379
        %v1455 = vunpack.c.l.b16 %v1380
        %v1456 = vunpack.c.h.b16 %v1380
        %v1457 = vunpack.c.l.b16 %v1381
        %v1458 = vunpack.c.h.b16 %v1381
        %v1459 = vunpack.c.l.b16 %v1382
        %v1460 = vunpack.c.h.b16 %v1382
        %v1461 = vunpack.c.l.b16 %v1383
        %v1462 = vunpack.c.h.b16 %v1383
        %v1463 = vunpack.c.l.b16 %v1384
        %v1464 = vunpack.c.h.b16 %v1384
        %v1465 = vunpack.c.l.b16 %v1385
        %v1466 = vunpack.c.h.b16 %v1385
        %v1467 = vunpack.c.l.b16 %v1386
        %v1468 = vunpack.c.h.b16 %v1386
        %v1469 = vunpack.c.l.b16 %v1387
        %v1470 = vunpack.c.h.b16 %v1387
        %v1471 = vunpack.c.l.b16 %v1388
        %v1472 = vunpack.c.h.b16 %v1388
        %v1473 = vunpack.c.l.b16 %v1389
        %v1474 = vunpack.c.h.b16 %v1389
        %v1475 = vunpack.c.l.b16 %v1390
        %v1476 = vunpack.c.h.b16 %v1390
        %v1477 = vunpack.c.l.b16 %v1391
        %v1478 = vunpack.c.h.b16 %v1391
        %v1479 = vunpack.c.l.b16 %v1392
        %v1480 = vunpack.c.h.b16 %v1392
        %v1481 = vunpack.c.l.b16 %v1393
        %v1482 = vunpack.c.h.b16 %v1393
        %v1483 = vunpack.c.l.b16 %v1394
        %v1484 = vunpack.c.h.b16 %v1394
        %v1485 = vunpack.c.l.b16 %v1395
        %v1486 = vunpack.c.h.b16 %v1395
        %v1487 = vunpack.c.l.b16 %v1396
        %v1488 = vunpack.c.h.b16 %v1396
        %v1489 = vunpack.c.l.b16 %v1397
        %v1490 = vunpack.c.h.b16 %v1397
        %v1491 = vunpack.c.l.b16 %v1398
        %v1492 = vunpack.c.h.b16 %v1398
        %v1493 = vunpack.c.l.b16 %v1399
        %v1494 = vunpack.c.h.b16 %v1399
        %v1495 = vunpack.c.l.b16 %v1400
        %v1496 = vunpack.c.h.b16 %v1400
        %v1497 = vpack.c.b16 %v1437, %v1433
        %v1498 = vpack.c.b16 %v1438, %v1434
        %v1499 = vpack.c.b16 %v1439, %v1435
        %v1500 = vpack.c.b16 %v1440, %v1436
        %v1501 = vpack.c.b16 %v1445, %v1441
        %v1502 = vpack.c.b16 %v1446, %v1442
        %v1503 = vpack.c.b16 %v1447, %v1443
        %v1504 = vpack.c.b16 %v1448, %v1444
        %v1505 = vpack.c.b16 %v1453, %v1449
        %v1506 = vpack.c.b16 %v1454, %v1450
        %v1507 = vpack.c.b16 %v1455, %v1451
        %v1508 = vpack.c.b16 %v1456, %v1452
        %v1509 = vpack.c.b16 %v1461, %v1457
        %v1510 = vpack.c.b16 %v1462, %v1458
        %v1511 = vpack.c.b16 %v1463, %v1459
        %v1512 = vpack.c.b16 %v1464, %v1460
        %v1513 = vpack.c.b16 %v1469, %v1465
        %v1514 = vpack.c.b16 %v1470, %v1466
        %v1515 = vpack.c.b16 %v1471, %v1467
        %v1516 = vpack.c.b16 %v1472, %v1468
        %v1517 = vpack.c.b16 %v1477, %v1473
        %v1518 = vpack.c.b16 %v1478, %v1474
        %v1519 = vpack.c.b16 %v1479, %v1475
        %v1520 = vpack.c.b16 %v1480, %v1476
        %v1521 = vpack.c.b16 %v1485, %v1481
        %v1522 = vpack.c.b16 %v1486, %v1482
        %v1523 = vpack.c.b16 %v1487, %v1483
        %v1524 = vpack.c.b16 %v1488, %v1484
        %v1525 = vpack.c.b16 %v1493, %v1489
        %v1526 = vpack.c.b16 %v1494, %v1490
        %v1527 = vpack.c.b16 %v1495, %v1491
        %v1528 = vpack.c.b16 %v1496, %v1492
        %1561 = vmatprep.subr.bf16.mxu0 %v1498
        %1562 = vmatpush1.bf16.msra.mxu0 %v1497
        %1563 = vmatprep.subr.bf16.mxu0 %v1502
        %1564 = vmatpush1.bf16.msra.mxu0 %v1501
        %1565 = vmatprep.subr.bf16.mxu0 %v1506
        %1566 = vmatpush1.bf16.msra.mxu0 %v1505
        %1567 = vmatprep.subr.bf16.mxu0 %v1510
        %1568 = vmatpush1.bf16.msra.mxu0 %v1509
        %1569 = vmatprep.subr.bf16.mxu0 %v1514
        %1570 = vmatpush1.bf16.msra.mxu0 %v1513
        %1571 = vmatprep.subr.bf16.mxu0 %v1518
        %1572 = vmatpush1.bf16.msra.mxu0 %v1517
        %1573 = vmatprep.subr.bf16.mxu0 %v1522
        %1574 = vmatpush1.bf16.msra.mxu0 %v1521
        %1575 = vmatprep.subr.bf16.mxu0 %v1526
        %1576 = vmatpush1.bf16.msra.mxu0 %v1525
        %1577 = vmatprep.subr.bf16.mxu0 0
        %1578 = vmatpush1.bf16.msra.mxu0 0
        %1579 = vmatprep.subr.bf16.mxu0 0
        %1580 = vmatpush1.bf16.msra.mxu0 0
        %1581 = vmatprep.subr.bf16.mxu0 0
        %1582 = vmatpush1.bf16.msra.mxu0 0
        %1583 = vmatprep.subr.bf16.mxu0 0
        %1584 = vmatpush1.bf16.msra.mxu0 0
        %1585 = vmatprep.subr.bf16.mxu0 0
        %1586 = vmatpush1.bf16.msra.mxu0 0
        %1587 = vmatprep.subr.bf16.mxu0 0
        %1588 = vmatpush1.bf16.msra.mxu0 0
        %1589 = vmatprep.subr.bf16.mxu0 0
        %1590 = vmatpush1.bf16.msra.mxu0 0
        %1591 = vmatprep.subr.bf16.mxu0 0
        %1592 = vmatpush1.bf16.msra.mxu0 0
        %1593 = vmatprep.mubr.bf16.mxu0 0
        %1594 = vmatmul.mubr.bf16.gmra.mrb[0].mxu0 %v779
        %v1595 = vpop.f32.mrb[0].mxu0
        %v1596 = vadd.f32 0.0, %v1595
        %v1597 = vpop.f32.mrb[0].mxu0
        %v1598 = vadd.f32 0.0, %v1597
        %v1599 = vpop.f32.mrb[0].mxu0
        %v1600 = vadd.f32 0.0, %v1599
        %v1601 = vpop.f32.mrb[0].mxu0
        %v1602 = vadd.f32 0.0, %v1601
        %1603 = vmatprep.mubr.bf16.mxu0 0
        %1604 = vmatmul.mubr.bf16.gmra.mrb[0].mxu0 %v780
        %v1605 = vpop.f32.mrb[0].mxu0
        %v1606 = vadd.f32 0.0, %v1605
        %v1607 = vpop.f32.mrb[0].mxu0
        %v1608 = vadd.f32 0.0, %v1607
        %v1609 = vpop.f32.mrb[0].mxu0
        %v1610 = vadd.f32 0.0, %v1609
        %v1611 = vpop.f32.mrb[0].mxu0
        %v1612 = vadd.f32 0.0, %v1611
        %1613 = vdwg.mxu0
        %1614 = vmatprep.subr.bf16.mxu0 %v1500
        %1615 = vmatpush1.bf16.msra.mxu0 %v1499
        %1616 = vmatprep.subr.bf16.mxu0 %v1504
        %1617 = vmatpush1.bf16.msra.mxu0 %v1503
        %1618 = vmatprep.subr.bf16.mxu0 %v1508
        %1619 = vmatpush1.bf16.msra.mxu0 %v1507
        %1620 = vmatprep.subr.bf16.mxu0 %v1512
        %1621 = vmatpush1.bf16.msra.mxu0 %v1511
        %1622 = vmatprep.subr.bf16.mxu0 %v1516
        %1623 = vmatpush1.bf16.msra.mxu0 %v1515
        %1624 = vmatprep.subr.bf16.mxu0 %v1520
        %1625 = vmatpush1.bf16.msra.mxu0 %v1519
        %1626 = vmatprep.subr.bf16.mxu0 %v1524
        %1627 = vmatpush1.bf16.msra.mxu0 %v1523
        %1628 = vmatprep.subr.bf16.mxu0 %v1528
        %1629 = vmatpush1.bf16.msra.mxu0 %v1527
        %1630 = vmatprep.subr.bf16.mxu0 0
        %1631 = vmatpush1.bf16.msra.mxu0 0
        %1632 = vmatprep.subr.bf16.mxu0 0
        %1633 = vmatpush1.bf16.msra.mxu0 0
        %1634 = vmatprep.subr.bf16.mxu0 0
        %1635 = vmatpush1.bf16.msra.mxu0 0
        %1636 = vmatprep.subr.bf16.mxu0 0
        %1637 = vmatpush1.bf16.msra.mxu0 0
        %1638 = vmatprep.subr.bf16.mxu0 0
        %1639 = vmatpush1.bf16.msra.mxu0 0
        %1640 = vmatprep.subr.bf16.mxu0 0
        %1641 = vmatpush1.bf16.msra.mxu0 0
        %1642 = vmatprep.subr.bf16.mxu0 0
        %1643 = vmatpush1.bf16.msra.mxu0 0
        %1644 = vmatprep.subr.bf16.mxu0 0
        %1645 = vmatpush1.bf16.msra.mxu0 0
        %1646 = vmatprep.mubr.bf16.mxu0 0
        %1647 = vmatmul.mubr.bf16.gmra.mrb[0].mxu0 %v779
        %v1648 = vpop.f32.mrb[0].mxu0
        %v1649 = vadd.f32 0.0, %v1648
        %v1650 = vpop.f32.mrb[0].mxu0
        %v1651 = vadd.f32 0.0, %v1650
        %v1652 = vpop.f32.mrb[0].mxu0
        %v1653 = vadd.f32 0.0, %v1652
        %v1654 = vpop.f32.mrb[0].mxu0
        %v1655 = vadd.f32 0.0, %v1654
        %1656 = vmatprep.mubr.bf16.mxu0 0
        %1657 = vmatmul.mubr.bf16.gmra.mrb[0].mxu0 %v780
        %v1658 = vpop.f32.mrb[0].mxu0
        %v1659 = vadd.f32 0.0, %v1658
        %v1660 = vpop.f32.mrb[0].mxu0
        %v1661 = vadd.f32 0.0, %v1660
        %v1662 = vpop.f32.mrb[0].mxu0
        %v1663 = vadd.f32 0.0, %v1662
        %v1664 = vpop.f32.mrb[0].mxu0
        %v1665 = vadd.f32 0.0, %v1664
        %1666 = vdwg.mxu0
        %v1667 = vpack.c.bf16 %v1600, %v1596
        %v1668 = vpack.c.bf16 %v1602, %v1598
        %v1669 = vpack.c.bf16 %v1653, %v1649
        %v1670 = vpack.c.bf16 %v1655, %v1651
        %v1671 = vpack.c.bf16 %v1610, %v1606
        %v1672 = vpack.c.bf16 %v1612, %v1608
        %v1673 = vpack.c.bf16 %v1663, %v1659
        %v1674 = vpack.c.bf16 %v1665, %v1661
        %vm1675 = vcmask 523264
        %v1677 = vsel %vm1675, %v1059, 0
        %v1680 = vsel %vm1675, %v1361, 0
        %v1683 = vsel %vm1675, %v1365, 0
        %1685 = vmatprep.subr.bf16.mxu0 0
        %1686 = vmatpush1.bf16.xpose.msra.mxu0 %v1680
        %1687 = vmatprep.subr.bf16.mxu0 0
        %1688 = vmatpush1.bf16.xpose.msra.mxu0 %v1683
        %1689 = vmatprep.subr.bf16.mxu0 0
        %1690 = vmatpush1.bf16.xpose.msra.mxu0 0
        %1691 = vmatprep.subr.bf16.mxu0 0
        %1692 = vmatpush1.bf16.xpose.msra.mxu0 0
        %1693 = vmatprep.subr.bf16.mxu0 0
        %1694 = vmatpush1.bf16.xpose.msra.mxu0 0
        %1695 = vmatprep.subr.bf16.mxu0 0
        %1696 = vmatpush1.bf16.xpose.msra.mxu0 0
        %1697 = vmatprep.subr.bf16.mxu0 0
        %1698 = vmatpush1.bf16.xpose.msra.mxu0 0
        %1699 = vmatprep.subr.bf16.mxu0 0
        %1700 = vmatpush1.bf16.xpose.msra.mxu0 0
        %1701 = vmatprep.subr.bf16.mxu0 0
        %1702 = vmatpush1.bf16.xpose.msra.mxu0 0
        %1703 = vmatprep.subr.bf16.mxu0 0
        %1704 = vmatpush1.bf16.xpose.msra.mxu0 0
        %1705 = vmatprep.subr.bf16.mxu0 0
        %1706 = vmatpush1.bf16.xpose.msra.mxu0 0
        %1707 = vmatprep.subr.bf16.mxu0 0
        %1708 = vmatpush1.bf16.xpose.msra.mxu0 0
        %1709 = vmatprep.subr.bf16.mxu0 0
        %1710 = vmatpush1.bf16.xpose.msra.mxu0 0
        %1711 = vmatprep.subr.bf16.mxu0 0
        %1712 = vmatpush1.bf16.xpose.msra.mxu0 0
        %1713 = vmatprep.subr.bf16.mxu0 0
        %1714 = vmatpush1.bf16.xpose.msra.mxu0 0
        %1715 = vmatprep.subr.bf16.mxu0 0
        %1716 = vmatpush1.bf16.xpose.msra.mxu0 0
        %1717 = vmatprep.mubr.bf16.mxu0 0
        %1718 = vmatmul.mubr.bf16.gmra.mrb[0].mxu0 %v1677
        %v1719 = vpop.f32.mrb[0].mxu0
        %v1720 = vadd.f32 0.0, %v1719
        %v1721 = vpop.f32.mrb[0].mxu0
        %v1722 = vpop.f32.mrb[0].mxu0
        %v1723 = vadd.f32 0.0, %v1722
        %v1724 = vpop.f32.mrb[0].mxu0
        %1725 = vdwg.mxu0
        %vm1726 = vcmask 203776
        %v1727 = vsel %vm1726, %v1720, -inf
        %1728 = vmax.xlane.f32.xlu0 %v1727
        %v1729 = vpop.xlane.xlu0 %1728
        %vm1730 = vcmask 196608
        %v1731 = vsel %vm1730, %v1723, -inf
        %1732 = vmax.xlane.f32.xlu0 %v1731
        %v1733 = vpop.xlane.xlu0 %1732
        %v1734 = vsub.f32 %v1720, %v1729
        %v1735 = vsub.f32 %v1723, %v1733
        %v1736 = vmul.f32 %v1734, 1.442695
        %v1737 = vpow.pop %v1736
        %v1738 = vmul.f32 %v1735, 1.442695
        %v1739 = vpow.pop %v1738
        %v1740 = vsel %vm1726, %v1737, 0.0
        %1741 = vadd.xlane.f32.xlu0 %v1740
        %v1742 = vpop.xlane.xlu0 %1741
        %v1743 = vsel %vm1730, %v1739, 0.0
        %1744 = vadd.xlane.f32.xlu0 %v1743
        %v1745 = vpop.xlane.xlu0 %1744
        %v1746 = vrcp.pop %v1742
        %v1747 = vrcp.pop %v1745
        %v1748 = vmul.f32 %v1737, %v1746
        %v1749 = vmul.f32 %v1739, %v1747
        %v1750 = vpack.c.bf16 %v1749, %v1748
        %v1752 = vsel %vm1726, %v1750, 0
        %vm1754 = vcmask 1043456
        %vm1755 = vcmask 1044480
        %v1756 = vsel %vm1754, 4294967295, 65535
        %v1757 = vsel %vm1755, %v1756, 0
        %v1759 = vand.u32 %v1671, %v1757
        %1761 = vmatprep.subr.bf16.mxu0 0
        %1762 = vmatpush1.bf16.msra.mxu0 %v1667
        %1763 = vmatprep.subr.bf16.mxu0 0
        %1764 = vmatpush1.bf16.msra.mxu0 %v1759
        %1765 = vmatprep.subr.bf16.mxu0 0
        %1766 = vmatpush1.bf16.msra.mxu0 0
        %1767 = vmatprep.subr.bf16.mxu0 0
        %1768 = vmatpush1.bf16.msra.mxu0 0
        %1769 = vmatprep.subr.bf16.mxu0 0
        %1770 = vmatpush1.bf16.msra.mxu0 0
        %1771 = vmatprep.subr.bf16.mxu0 0
        %1772 = vmatpush1.bf16.msra.mxu0 0
        %1773 = vmatprep.subr.bf16.mxu0 0
        %1774 = vmatpush1.bf16.msra.mxu0 0
        %1775 = vmatprep.subr.bf16.mxu0 0
        %1776 = vmatpush1.bf16.msra.mxu0 0
        %1777 = vmatprep.subr.bf16.mxu0 0
        %1778 = vmatpush1.bf16.msra.mxu0 0
        %1779 = vmatprep.subr.bf16.mxu0 0
        %1780 = vmatpush1.bf16.msra.mxu0 0
        %1781 = vmatprep.subr.bf16.mxu0 0
        %1782 = vmatpush1.bf16.msra.mxu0 0
        %1783 = vmatprep.subr.bf16.mxu0 0
        %1784 = vmatpush1.bf16.msra.mxu0 0
        %1785 = vmatprep.subr.bf16.mxu0 0
        %1786 = vmatpush1.bf16.msra.mxu0 0
        %1787 = vmatprep.subr.bf16.mxu0 0
        %1788 = vmatpush1.bf16.msra.mxu0 0
        %1789 = vmatprep.subr.bf16.mxu0 0
        %1790 = vmatpush1.bf16.msra.mxu0 0
        %1791 = vmatprep.subr.bf16.mxu0 0
        %1792 = vmatpush1.bf16.msra.mxu0 0
        %1793 = vmatprep.mubr.bf16.mxu0 0
        %1794 = vmatmul.mubr.bf16.gmra.mrb[0].mxu0 %v1752
        %v1795 = vpop.f32.mrb[0].mxu0
        %v1796 = vadd.f32 0.0, %v1795
        %v1797 = vpop.f32.mrb[0].mxu0
        %v1798 = vpop.f32.mrb[0].mxu0
        %v1799 = vadd.f32 0.0, %v1798
        %v1800 = vpop.f32.mrb[0].mxu0
        %1801 = vdwg.mxu0
        %1802 = vst.msk [vmem:[#allocation2] sm:$0xff] %vm1675, %v1796
        %vm1803 = vcmask 516096
        %1804 = vst.msk [vmem:[#allocation2 + $0x20] sm:$0x1] %vm1803, %v1799
        %1806 = vrot.lane.b32.xlu0 %v1059, 64
        %v1807 = vpop.permute.xlu0 %1806
        %1810 = vrot.lane.b32.xlu0 %v1361, 64
        %v1811 = vpop.permute.xlu0 %1810
        %1812 = vrot.lane.b32.xlu0 %v1365, 64
        %v1813 = vpop.permute.xlu0 %1812
        %v1815 = vsel %vm1675, %v1807, 0
        %v1818 = vsel %vm1675, %v1811, 0
        %v1821 = vsel %vm1675, %v1813, 0
        %1823 = vmatprep.subr.bf16.mxu0 0
        %1824 = vmatpush1.bf16.xpose.msra.mxu0 %v1818
        %1825 = vmatprep.subr.bf16.mxu0 0
        %1826 = vmatpush1.bf16.xpose.msra.mxu0 %v1821
        %1827 = vmatprep.subr.bf16.mxu0 0
        %1828 = vmatpush1.bf16.xpose.msra.mxu0 0
        %1829 = vmatprep.subr.bf16.mxu0 0
        %1830 = vmatpush1.bf16.xpose.msra.mxu0 0
        %1831 = vmatprep.subr.bf16.mxu0 0
        %1832 = vmatpush1.bf16.xpose.msra.mxu0 0
        %1833 = vmatprep.subr.bf16.mxu0 0
        %1834 = vmatpush1.bf16.xpose.msra.mxu0 0
        %1835 = vmatprep.subr.bf16.mxu0 0
        %1836 = vmatpush1.bf16.xpose.msra.mxu0 0
        %1837 = vmatprep.subr.bf16.mxu0 0
        %1838 = vmatpush1.bf16.xpose.msra.mxu0 0
        %1839 = vmatprep.subr.bf16.mxu0 0
        %1840 = vmatpush1.bf16.xpose.msra.mxu0 0
        %1841 = vmatprep.subr.bf16.mxu0 0
        %1842 = vmatpush1.bf16.xpose.msra.mxu0 0
        %1843 = vmatprep.subr.bf16.mxu0 0
        %1844 = vmatpush1.bf16.xpose.msra.mxu0 0
        %1845 = vmatprep.subr.bf16.mxu0 0
        %1846 = vmatpush1.bf16.xpose.msra.mxu0 0
        %1847 = vmatprep.subr.bf16.mxu0 0
        %1848 = vmatpush1.bf16.xpose.msra.mxu0 0
        %1849 = vmatprep.subr.bf16.mxu0 0
        %1850 = vmatpush1.bf16.xpose.msra.mxu0 0
        %1851 = vmatprep.subr.bf16.mxu0 0
        %1852 = vmatpush1.bf16.xpose.msra.mxu0 0
        %1853 = vmatprep.subr.bf16.mxu0 0
        %1854 = vmatpush1.bf16.xpose.msra.mxu0 0
        %1855 = vmatprep.mubr.bf16.mxu0 0
        %1856 = vmatmul.mubr.bf16.gmra.mrb[0].mxu0 %v1815
        %v1857 = vpop.f32.mrb[0].mxu0
        %v1858 = vadd.f32 0.0, %v1857
        %v1859 = vpop.f32.mrb[0].mxu0
        %v1860 = vpop.f32.mrb[0].mxu0
        %v1861 = vadd.f32 0.0, %v1860
        %v1862 = vpop.f32.mrb[0].mxu0
        %1863 = vdwg.mxu0
        %v1864 = vsel %vm1726, %v1858, -inf
        %1865 = vmax.xlane.f32.xlu0 %v1864
        %v1866 = vpop.xlane.xlu0 %1865
        %v1867 = vsel %vm1730, %v1861, -inf
        %1868 = vmax.xlane.f32.xlu0 %v1867
        %v1869 = vpop.xlane.xlu0 %1868
        %v1870 = vsub.f32 %v1858, %v1866
        %v1871 = vsub.f32 %v1861, %v1869
        %v1872 = vmul.f32 %v1870, 1.442695
        %v1873 = vpow.pop %v1872
        %v1874 = vmul.f32 %v1871, 1.442695
        %v1875 = vpow.pop %v1874
        %v1876 = vsel %vm1726, %v1873, 0.0
        %1877 = vadd.xlane.f32.xlu0 %v1876
        %v1878 = vpop.xlane.xlu0 %1877
        %v1879 = vsel %vm1730, %v1875, 0.0
        %1880 = vadd.xlane.f32.xlu0 %v1879
        %v1881 = vpop.xlane.xlu0 %1880
        %v1882 = vrcp.pop %v1878
        %v1883 = vrcp.pop %v1881
        %v1884 = vmul.f32 %v1873, %v1882
        %v1885 = vmul.f32 %v1875, %v1883
        %v1886 = vpack.c.bf16 %v1885, %v1884
        %1889 = vrot.lane.b32.xlu0 %v1667, 64
        %v1890 = vpop.permute.xlu0 %1889
        %1891 = vrot.lane.b32.xlu0 %v1671, 64
        %v1892 = vpop.permute.xlu0 %1891
        %v1895 = vsel %vm1726, %v1886, 0
        %v1898 = vand.u32 %v1892, %v1757
        %1900 = vmatprep.subr.bf16.mxu0 0
        %1901 = vmatpush1.bf16.msra.mxu0 %v1890
        %1902 = vmatprep.subr.bf16.mxu0 0
        %1903 = vmatpush1.bf16.msra.mxu0 %v1898
        %1904 = vmatprep.subr.bf16.mxu0 0
        %1905 = vmatpush1.bf16.msra.mxu0 0
        %1906 = vmatprep.subr.bf16.mxu0 0
        %1907 = vmatpush1.bf16.msra.mxu0 0
        %1908 = vmatprep.subr.bf16.mxu0 0
        %1909 = vmatpush1.bf16.msra.mxu0 0
        %1910 = vmatprep.subr.bf16.mxu0 0
        %1911 = vmatpush1.bf16.msra.mxu0 0
        %1912 = vmatprep.subr.bf16.mxu0 0
        %1913 = vmatpush1.bf16.msra.mxu0 0
        %1914 = vmatprep.subr.bf16.mxu0 0
        %1915 = vmatpush1.bf16.msra.mxu0 0
        %1916 = vmatprep.subr.bf16.mxu0 0
        %1917 = vmatpush1.bf16.msra.mxu0 0
        %1918 = vmatprep.subr.bf16.mxu0 0
        %1919 = vmatpush1.bf16.msra.mxu0 0
        %1920 = vmatprep.subr.bf16.mxu0 0
        %1921 = vmatpush1.bf16.msra.mxu0 0
        %1922 = vmatprep.subr.bf16.mxu0 0
        %1923 = vmatpush1.bf16.msra.mxu0 0
        %1924 = vmatprep.subr.bf16.mxu0 0
        %1925 = vmatpush1.bf16.msra.mxu0 0
        %1926 = vmatprep.subr.bf16.mxu0 0
        %1927 = vmatpush1.bf16.msra.mxu0 0
        %1928 = vmatprep.subr.bf16.mxu0 0
        %1929 = vmatpush1.bf16.msra.mxu0 0
        %1930 = vmatprep.subr.bf16.mxu0 0
        %1931 = vmatpush1.bf16.msra.mxu0 0
        %1932 = vmatprep.mubr.bf16.mxu0 0
        %1933 = vmatmul.mubr.bf16.gmra.mrb[0].mxu0 %v1895
        %v1934 = vpop.f32.mrb[0].mxu0
        %v1935 = vadd.f32 0.0, %v1934
        %v1936 = vpop.f32.mrb[0].mxu0
        %v1937 = vpop.f32.mrb[0].mxu0
        %v1938 = vadd.f32 0.0, %v1937
        %v1939 = vpop.f32.mrb[0].mxu0
        %1940 = vdwg.mxu0
        %1943 = vrot.lane.b32.xlu0 %v1935, 64
        %v1944 = vpop.permute.xlu0 %1943
        %1945 = vrot.lane.b32.xlu0 %v1938, 64
        %v1946 = vpop.permute.xlu0 %1945
        %vm1949 = vcmask 1048064
        %1950 = vst.msk [vmem:[#allocation2] sm:$0xff] %vm1949, %v1944
        %vm1951 = vcmask 1040896
        %1952 = vst.msk [vmem:[#allocation2 + $0x20] sm:$0x1] %vm1951, %v1946
        %v1954 = vsel %vm1675, %v1060, 0
        %v1957 = vsel %vm1675, %v1362, 0
        %v1960 = vsel %vm1675, %v1366, 0
        %1962 = vmatprep.subr.bf16.mxu0 0
        %1963 = vmatpush1.bf16.xpose.msra.mxu0 %v1957
        %1964 = vmatprep.subr.bf16.mxu0 0
        %1965 = vmatpush1.bf16.xpose.msra.mxu0 %v1960
        %1966 = vmatprep.subr.bf16.mxu0 0
        %1967 = vmatpush1.bf16.xpose.msra.mxu0 0
        %1968 = vmatprep.subr.bf16.mxu0 0
        %1969 = vmatpush1.bf16.xpose.msra.mxu0 0
        %1970 = vmatprep.subr.bf16.mxu0 0
        %1971 = vmatpush1.bf16.xpose.msra.mxu0 0
        %1972 = vmatprep.subr.bf16.mxu0 0
        %1973 = vmatpush1.bf16.xpose.msra.mxu0 0
        %1974 = vmatprep.subr.bf16.mxu0 0
        %1975 = vmatpush1.bf16.xpose.msra.mxu0 0
        %1976 = vmatprep.subr.bf16.mxu0 0
        %1977 = vmatpush1.bf16.xpose.msra.mxu0 0
        %1978 = vmatprep.subr.bf16.mxu0 0
        %1979 = vmatpush1.bf16.xpose.msra.mxu0 0
        %1980 = vmatprep.subr.bf16.mxu0 0
        %1981 = vmatpush1.bf16.xpose.msra.mxu0 0
        %1982 = vmatprep.subr.bf16.mxu0 0
        %1983 = vmatpush1.bf16.xpose.msra.mxu0 0
        %1984 = vmatprep.subr.bf16.mxu0 0
        %1985 = vmatpush1.bf16.xpose.msra.mxu0 0
        %1986 = vmatprep.subr.bf16.mxu0 0
        %1987 = vmatpush1.bf16.xpose.msra.mxu0 0
        %1988 = vmatprep.subr.bf16.mxu0 0
        %1989 = vmatpush1.bf16.xpose.msra.mxu0 0
        %1990 = vmatprep.subr.bf16.mxu0 0
        %1991 = vmatpush1.bf16.xpose.msra.mxu0 0
        %1992 = vmatprep.subr.bf16.mxu0 0
        %1993 = vmatpush1.bf16.xpose.msra.mxu0 0
        %1994 = vmatprep.mubr.bf16.mxu0 0
        %1995 = vmatmul.mubr.bf16.gmra.mrb[0].mxu0 %v1954
        %v1996 = vpop.f32.mrb[0].mxu0
        %v1997 = vadd.f32 0.0, %v1996
        %v1998 = vpop.f32.mrb[0].mxu0
        %v1999 = vpop.f32.mrb[0].mxu0
        %v2000 = vadd.f32 0.0, %v1999
        %v2001 = vpop.f32.mrb[0].mxu0
        %2002 = vdwg.mxu0
        %v2003 = vsel %vm1726, %v1997, -inf
        %2004 = vmax.xlane.f32.xlu0 %v2003
        %v2005 = vpop.xlane.xlu0 %2004
        %v2006 = vsel %vm1730, %v2000, -inf
        %2007 = vmax.xlane.f32.xlu0 %v2006
        %v2008 = vpop.xlane.xlu0 %2007
        %v2009 = vsub.f32 %v1997, %v2005
        %v2010 = vsub.f32 %v2000, %v2008
        %v2011 = vmul.f32 %v2009, 1.442695
        %v2012 = vpow.pop %v2011
        %v2013 = vmul.f32 %v2010, 1.442695
        %v2014 = vpow.pop %v2013
        %v2015 = vsel %vm1726, %v2012, 0.0
        %2016 = vadd.xlane.f32.xlu0 %v2015
        %v2017 = vpop.xlane.xlu0 %2016
        %v2018 = vsel %vm1730, %v2014, 0.0
        %2019 = vadd.xlane.f32.xlu0 %v2018
        %v2020 = vpop.xlane.xlu0 %2019
        %v2021 = vrcp.pop %v2017
        %v2022 = vrcp.pop %v2020
        %v2023 = vmul.f32 %v2012, %v2021
        %v2024 = vmul.f32 %v2014, %v2022
        %v2025 = vpack.c.bf16 %v2024, %v2023
        %v2027 = vsel %vm1726, %v2025, 0
        %v2030 = vand.u32 %v1672, %v1757
        %2032 = vmatprep.subr.bf16.mxu0 0
        %2033 = vmatpush1.bf16.msra.mxu0 %v1668
        %2034 = vmatprep.subr.bf16.mxu0 0
        %2035 = vmatpush1.bf16.msra.mxu0 %v2030
        %2036 = vmatprep.subr.bf16.mxu0 0
        %2037 = vmatpush1.bf16.msra.mxu0 0
        %2038 = vmatprep.subr.bf16.mxu0 0
        %2039 = vmatpush1.bf16.msra.mxu0 0
        %2040 = vmatprep.subr.bf16.mxu0 0
        %2041 = vmatpush1.bf16.msra.mxu0 0
        %2042 = vmatprep.subr.bf16.mxu0 0
        %2043 = vmatpush1.bf16.msra.mxu0 0
        %2044 = vmatprep.subr.bf16.mxu0 0
        %2045 = vmatpush1.bf16.msra.mxu0 0
        %2046 = vmatprep.subr.bf16.mxu0 0
        %2047 = vmatpush1.bf16.msra.mxu0 0
        %2048 = vmatprep.subr.bf16.mxu0 0
        %2049 = vmatpush1.bf16.msra.mxu0 0
        %2050 = vmatprep.subr.bf16.mxu0 0
        %2051 = vmatpush1.bf16.msra.mxu0 0
        %2052 = vmatprep.subr.bf16.mxu0 0
        %2053 = vmatpush1.bf16.msra.mxu0 0
        %2054 = vmatprep.subr.bf16.mxu0 0
        %2055 = vmatpush1.bf16.msra.mxu0 0
        %2056 = vmatprep.subr.bf16.mxu0 0
        %2057 = vmatpush1.bf16.msra.mxu0 0
        %2058 = vmatprep.subr.bf16.mxu0 0
        %2059 = vmatpush1.bf16.msra.mxu0 0
        %2060 = vmatprep.subr.bf16.mxu0 0
        %2061 = vmatpush1.bf16.msra.mxu0 0
        %2062 = vmatprep.subr.bf16.mxu0 0
        %2063 = vmatpush1.bf16.msra.mxu0 0
        %2064 = vmatprep.mubr.bf16.mxu0 0
        %2065 = vmatmul.mubr.bf16.gmra.mrb[0].mxu0 %v2027
        %v2066 = vpop.f32.mrb[0].mxu0
        %v2067 = vadd.f32 0.0, %v2066
        %v2068 = vpop.f32.mrb[0].mxu0
        %v2069 = vpop.f32.mrb[0].mxu0
        %v2070 = vadd.f32 0.0, %v2069
        %v2071 = vpop.f32.mrb[0].mxu0
        %2072 = vdwg.mxu0
        %2073 = vst.msk [vmem:[#allocation2 + $0x8] sm:$0xff] %vm1675, %v2067
        %2074 = vst.msk [vmem:[#allocation2 + $0x28] sm:$0x1] %vm1803, %v2070
        %2076 = vrot.lane.b32.xlu0 %v1060, 64
        %v2077 = vpop.permute.xlu0 %2076
        %2080 = vrot.lane.b32.xlu0 %v1362, 64
        %v2081 = vpop.permute.xlu0 %2080
        %2082 = vrot.lane.b32.xlu0 %v1366, 64
        %v2083 = vpop.permute.xlu0 %2082
        %v2085 = vsel %vm1675, %v2077, 0
        %v2088 = vsel %vm1675, %v2081, 0
        %v2091 = vsel %vm1675, %v2083, 0
        %2093 = vmatprep.subr.bf16.mxu0 0
        %2094 = vmatpush1.bf16.xpose.msra.mxu0 %v2088
        %2095 = vmatprep.subr.bf16.mxu0 0
        %2096 = vmatpush1.bf16.xpose.msra.mxu0 %v2091
        %2097 = vmatprep.subr.bf16.mxu0 0
        %2098 = vmatpush1.bf16.xpose.msra.mxu0 0
        %2099 = vmatprep.subr.bf16.mxu0 0
        %2100 = vmatpush1.bf16.xpose.msra.mxu0 0
        %2101 = vmatprep.subr.bf16.mxu0 0
        %2102 = vmatpush1.bf16.xpose.msra.mxu0 0
        %2103 = vmatprep.subr.bf16.mxu0 0
        %2104 = vmatpush1.bf16.xpose.msra.mxu0 0
        %2105 = vmatprep.subr.bf16.mxu0 0
        %2106 = vmatpush1.bf16.xpose.msra.mxu0 0
        %2107 = vmatprep.subr.bf16.mxu0 0
        %2108 = vmatpush1.bf16.xpose.msra.mxu0 0
        %2109 = vmatprep.subr.bf16.mxu0 0
        %2110 = vmatpush1.bf16.xpose.msra.mxu0 0
        %2111 = vmatprep.subr.bf16.mxu0 0
        %2112 = vmatpush1.bf16.xpose.msra.mxu0 0
        %2113 = vmatprep.subr.bf16.mxu0 0
        %2114 = vmatpush1.bf16.xpose.msra.mxu0 0
        %2115 = vmatprep.subr.bf16.mxu0 0
        %2116 = vmatpush1.bf16.xpose.msra.mxu0 0
        %2117 = vmatprep.subr.bf16.mxu0 0
        %2118 = vmatpush1.bf16.xpose.msra.mxu0 0
        %2119 = vmatprep.subr.bf16.mxu0 0
        %2120 = vmatpush1.bf16.xpose.msra.mxu0 0
        %2121 = vmatprep.subr.bf16.mxu0 0
        %2122 = vmatpush1.bf16.xpose.msra.mxu0 0
        %2123 = vmatprep.subr.bf16.mxu0 0
        %2124 = vmatpush1.bf16.xpose.msra.mxu0 0
        %2125 = vmatprep.mubr.bf16.mxu0 0
        %2126 = vmatmul.mubr.bf16.gmra.mrb[0].mxu0 %v2085
        %v2127 = vpop.f32.mrb[0].mxu0
        %v2128 = vadd.f32 0.0, %v2127
        %v2129 = vpop.f32.mrb[0].mxu0
        %v2130 = vpop.f32.mrb[0].mxu0
        %v2131 = vadd.f32 0.0, %v2130
        %v2132 = vpop.f32.mrb[0].mxu0
        %2133 = vdwg.mxu0
        %v2134 = vsel %vm1726, %v2128, -inf
        %2135 = vmax.xlane.f32.xlu0 %v2134
        %v2136 = vpop.xlane.xlu0 %2135
        %v2137 = vsel %vm1730, %v2131, -inf
        %2138 = vmax.xlane.f32.xlu0 %v2137
        %v2139 = vpop.xlane.xlu0 %2138
        %v2140 = vsub.f32 %v2128, %v2136
        %v2141 = vsub.f32 %v2131, %v2139
        %v2142 = vmul.f32 %v2140, 1.442695
        %v2143 = vpow.pop %v2142
        %v2144 = vmul.f32 %v2141, 1.442695
        %v2145 = vpow.pop %v2144
        %v2146 = vsel %vm1726, %v2143, 0.0
        %2147 = vadd.xlane.f32.xlu0 %v2146
        %v2148 = vpop.xlane.xlu0 %2147
        %v2149 = vsel %vm1730, %v2145, 0.0
        %2150 = vadd.xlane.f32.xlu0 %v2149
        %v2151 = vpop.xlane.xlu0 %2150
        %v2152 = vrcp.pop %v2148
        %v2153 = vrcp.pop %v2151
        %v2154 = vmul.f32 %v2143, %v2152
        %v2155 = vmul.f32 %v2145, %v2153
        %v2156 = vpack.c.bf16 %v2155, %v2154
        %2159 = vrot.lane.b32.xlu0 %v1668, 64
        %v2160 = vpop.permute.xlu0 %2159
        %2161 = vrot.lane.b32.xlu0 %v1672, 64
        %v2162 = vpop.permute.xlu0 %2161
        %v2165 = vsel %vm1726, %v2156, 0
        %v2168 = vand.u32 %v2162, %v1757
        %2170 = vmatprep.subr.bf16.mxu0 0
        %2171 = vmatpush1.bf16.msra.mxu0 %v2160
        %2172 = vmatprep.subr.bf16.mxu0 0
        %2173 = vmatpush1.bf16.msra.mxu0 %v2168
        %2174 = vmatprep.subr.bf16.mxu0 0
        %2175 = vmatpush1.bf16.msra.mxu0 0
        %2176 = vmatprep.subr.bf16.mxu0 0
        %2177 = vmatpush1.bf16.msra.mxu0 0
        %2178 = vmatprep.subr.bf16.mxu0 0
        %2179 = vmatpush1.bf16.msra.mxu0 0
        %2180 = vmatprep.subr.bf16.mxu0 0
        %2181 = vmatpush1.bf16.msra.mxu0 0
        %2182 = vmatprep.subr.bf16.mxu0 0
        %2183 = vmatpush1.bf16.msra.mxu0 0
        %2184 = vmatprep.subr.bf16.mxu0 0
        %2185 = vmatpush1.bf16.msra.mxu0 0
        %2186 = vmatprep.subr.bf16.mxu0 0
        %2187 = vmatpush1.bf16.msra.mxu0 0
        %2188 = vmatprep.subr.bf16.mxu0 0
        %2189 = vmatpush1.bf16.msra.mxu0 0
        %2190 = vmatprep.subr.bf16.mxu0 0
        %2191 = vmatpush1.bf16.msra.mxu0 0
        %2192 = vmatprep.subr.bf16.mxu0 0
        %2193 = vmatpush1.bf16.msra.mxu0 0
        %2194 = vmatprep.subr.bf16.mxu0 0
        %2195 = vmatpush1.bf16.msra.mxu0 0
        %2196 = vmatprep.subr.bf16.mxu0 0
        %2197 = vmatpush1.bf16.msra.mxu0 0
        %2198 = vmatprep.subr.bf16.mxu0 0
        %2199 = vmatpush1.bf16.msra.mxu0 0
        %2200 = vmatprep.subr.bf16.mxu0 0
        %2201 = vmatpush1.bf16.msra.mxu0 0
        %2202 = vmatprep.mubr.bf16.mxu0 0
        %2203 = vmatmul.mubr.bf16.gmra.mrb[0].mxu0 %v2165
        %v2204 = vpop.f32.mrb[0].mxu0
        %v2205 = vadd.f32 0.0, %v2204
        %v2206 = vpop.f32.mrb[0].mxu0
        %v2207 = vpop.f32.mrb[0].mxu0
        %v2208 = vadd.f32 0.0, %v2207
        %v2209 = vpop.f32.mrb[0].mxu0
        %2210 = vdwg.mxu0
        %2213 = vrot.lane.b32.xlu0 %v2205, 64
        %v2214 = vpop.permute.xlu0 %2213
        %2215 = vrot.lane.b32.xlu0 %v2208, 64
        %v2216 = vpop.permute.xlu0 %2215
        %2219 = vst.msk [vmem:[#allocation2 + $0x8] sm:$0xff] %vm1949, %v2214
        %2220 = vst.msk [vmem:[#allocation2 + $0x28] sm:$0x1] %vm1951, %v2216
        %v2222 = vsel %vm1675, %v1061, 0
        %v2225 = vsel %vm1675, %v1363, 0
        %v2228 = vsel %vm1675, %v1367, 0
        %2230 = vmatprep.subr.bf16.mxu0 0
        %2231 = vmatpush1.bf16.xpose.msra.mxu0 %v2225
        %2232 = vmatprep.subr.bf16.mxu0 0
        %2233 = vmatpush1.bf16.xpose.msra.mxu0 %v2228
        %2234 = vmatprep.subr.bf16.mxu0 0
        %2235 = vmatpush1.bf16.xpose.msra.mxu0 0
        %2236 = vmatprep.subr.bf16.mxu0 0
        %2237 = vmatpush1.bf16.xpose.msra.mxu0 0
        %2238 = vmatprep.subr.bf16.mxu0 0
        %2239 = vmatpush1.bf16.xpose.msra.mxu0 0
        %2240 = vmatprep.subr.bf16.mxu0 0
        %2241 = vmatpush1.bf16.xpose.msra.mxu0 0
        %2242 = vmatprep.subr.bf16.mxu0 0
        %2243 = vmatpush1.bf16.xpose.msra.mxu0 0
        %2244 = vmatprep.subr.bf16.mxu0 0
        %2245 = vmatpush1.bf16.xpose.msra.mxu0 0
        %2246 = vmatprep.subr.bf16.mxu0 0
        %2247 = vmatpush1.bf16.xpose.msra.mxu0 0
        %2248 = vmatprep.subr.bf16.mxu0 0
        %2249 = vmatpush1.bf16.xpose.msra.mxu0 0
        %2250 = vmatprep.subr.bf16.mxu0 0
        %2251 = vmatpush1.bf16.xpose.msra.mxu0 0
        %2252 = vmatprep.subr.bf16.mxu0 0
        %2253 = vmatpush1.bf16.xpose.msra.mxu0 0
        %2254 = vmatprep.subr.bf16.mxu0 0
        %2255 = vmatpush1.bf16.xpose.msra.mxu0 0
        %2256 = vmatprep.subr.bf16.mxu0 0
        %2257 = vmatpush1.bf16.xpose.msra.mxu0 0
        %2258 = vmatprep.subr.bf16.mxu0 0
        %2259 = vmatpush1.bf16.xpose.msra.mxu0 0
        %2260 = vmatprep.subr.bf16.mxu0 0
        %2261 = vmatpush1.bf16.xpose.msra.mxu0 0
        %2262 = vmatprep.mubr.bf16.mxu0 0
        %2263 = vmatmul.mubr.bf16.gmra.mrb[0].mxu0 %v2222
        %v2264 = vpop.f32.mrb[0].mxu0
        %v2265 = vadd.f32 0.0, %v2264
        %v2266 = vpop.f32.mrb[0].mxu0
        %v2267 = vpop.f32.mrb[0].mxu0
        %v2268 = vadd.f32 0.0, %v2267
        %v2269 = vpop.f32.mrb[0].mxu0
        %2270 = vdwg.mxu0
        %v2271 = vsel %vm1726, %v2265, -inf
        %2272 = vmax.xlane.f32.xlu0 %v2271
        %v2273 = vpop.xlane.xlu0 %2272
        %v2274 = vsel %vm1730, %v2268, -inf
        %2275 = vmax.xlane.f32.xlu0 %v2274
        %v2276 = vpop.xlane.xlu0 %2275
        %v2277 = vsub.f32 %v2265, %v2273
        %v2278 = vsub.f32 %v2268, %v2276
        %v2279 = vmul.f32 %v2277, 1.442695
        %v2280 = vpow.pop %v2279
        %v2281 = vmul.f32 %v2278, 1.442695
        %v2282 = vpow.pop %v2281
        %v2283 = vsel %vm1726, %v2280, 0.0
        %2284 = vadd.xlane.f32.xlu0 %v2283
        %v2285 = vpop.xlane.xlu0 %2284
        %v2286 = vsel %vm1730, %v2282, 0.0
        %2287 = vadd.xlane.f32.xlu0 %v2286
        %v2288 = vpop.xlane.xlu0 %2287
        %v2289 = vrcp.pop %v2285
        %v2290 = vrcp.pop %v2288
        %v2291 = vmul.f32 %v2280, %v2289
        %v2292 = vmul.f32 %v2282, %v2290
        %v2293 = vpack.c.bf16 %v2292, %v2291
        %v2295 = vsel %vm1726, %v2293, 0
        %v2298 = vand.u32 %v1673, %v1757
        %2300 = vmatprep.subr.bf16.mxu0 0
        %2301 = vmatpush1.bf16.msra.mxu0 %v1669
        %2302 = vmatprep.subr.bf16.mxu0 0
        %2303 = vmatpush1.bf16.msra.mxu0 %v2298
        %2304 = vmatprep.subr.bf16.mxu0 0
        %2305 = vmatpush1.bf16.msra.mxu0 0
        %2306 = vmatprep.subr.bf16.mxu0 0
        %2307 = vmatpush1.bf16.msra.mxu0 0
        %2308 = vmatprep.subr.bf16.mxu0 0
        %2309 = vmatpush1.bf16.msra.mxu0 0
        %2310 = vmatprep.subr.bf16.mxu0 0
        %2311 = vmatpush1.bf16.msra.mxu0 0
        %2312 = vmatprep.subr.bf16.mxu0 0
        %2313 = vmatpush1.bf16.msra.mxu0 0
        %2314 = vmatprep.subr.bf16.mxu0 0
        %2315 = vmatpush1.bf16.msra.mxu0 0
        %2316 = vmatprep.subr.bf16.mxu0 0
        %2317 = vmatpush1.bf16.msra.mxu0 0
        %2318 = vmatprep.subr.bf16.mxu0 0
        %2319 = vmatpush1.bf16.msra.mxu0 0
        %2320 = vmatprep.subr.bf16.mxu0 0
        %2321 = vmatpush1.bf16.msra.mxu0 0
        %2322 = vmatprep.subr.bf16.mxu0 0
        %2323 = vmatpush1.bf16.msra.mxu0 0
        %2324 = vmatprep.subr.bf16.mxu0 0
        %2325 = vmatpush1.bf16.msra.mxu0 0
        %2326 = vmatprep.subr.bf16.mxu0 0
        %2327 = vmatpush1.bf16.msra.mxu0 0
        %2328 = vmatprep.subr.bf16.mxu0 0
        %2329 = vmatpush1.bf16.msra.mxu0 0
        %2330 = vmatprep.subr.bf16.mxu0 0
        %2331 = vmatpush1.bf16.msra.mxu0 0
        %2332 = vmatprep.mubr.bf16.mxu0 0
        %2333 = vmatmul.mubr.bf16.gmra.mrb[0].mxu0 %v2295
        %v2334 = vpop.f32.mrb[0].mxu0
        %v2335 = vadd.f32 0.0, %v2334
        %v2336 = vpop.f32.mrb[0].mxu0
        %v2337 = vpop.f32.mrb[0].mxu0
        %v2338 = vadd.f32 0.0, %v2337
        %v2339 = vpop.f32.mrb[0].mxu0
        %2340 = vdwg.mxu0
        %2341 = vst.msk [vmem:[#allocation2 + $0x10] sm:$0xff] %vm1675, %v2335
        %2342 = vst.msk [vmem:[#allocation2 + $0x30] sm:$0x1] %vm1803, %v2338
        %2344 = vrot.lane.b32.xlu0 %v1061, 64
        %v2345 = vpop.permute.xlu0 %2344
        %2348 = vrot.lane.b32.xlu0 %v1363, 64
        %v2349 = vpop.permute.xlu0 %2348
        %2350 = vrot.lane.b32.xlu0 %v1367, 64
        %v2351 = vpop.permute.xlu0 %2350
        %v2353 = vsel %vm1675, %v2345, 0
        %v2356 = vsel %vm1675, %v2349, 0
        %v2359 = vsel %vm1675, %v2351, 0
        %2361 = vmatprep.subr.bf16.mxu0 0
        %2362 = vmatpush1.bf16.xpose.msra.mxu0 %v2356
        %2363 = vmatprep.subr.bf16.mxu0 0
        %2364 = vmatpush1.bf16.xpose.msra.mxu0 %v2359
        %2365 = vmatprep.subr.bf16.mxu0 0
        %2366 = vmatpush1.bf16.xpose.msra.mxu0 0
        %2367 = vmatprep.subr.bf16.mxu0 0
        %2368 = vmatpush1.bf16.xpose.msra.mxu0 0
        %2369 = vmatprep.subr.bf16.mxu0 0
        %2370 = vmatpush1.bf16.xpose.msra.mxu0 0
        %2371 = vmatprep.subr.bf16.mxu0 0
        %2372 = vmatpush1.bf16.xpose.msra.mxu0 0
        %2373 = vmatprep.subr.bf16.mxu0 0
        %2374 = vmatpush1.bf16.xpose.msra.mxu0 0
        %2375 = vmatprep.subr.bf16.mxu0 0
        %2376 = vmatpush1.bf16.xpose.msra.mxu0 0
        %2377 = vmatprep.subr.bf16.mxu0 0
        %2378 = vmatpush1.bf16.xpose.msra.mxu0 0
        %2379 = vmatprep.subr.bf16.mxu0 0
        %2380 = vmatpush1.bf16.xpose.msra.mxu0 0
        %2381 = vmatprep.subr.bf16.mxu0 0
        %2382 = vmatpush1.bf16.xpose.msra.mxu0 0
        %2383 = vmatprep.subr.bf16.mxu0 0
        %2384 = vmatpush1.bf16.xpose.msra.mxu0 0
        %2385 = vmatprep.subr.bf16.mxu0 0
        %2386 = vmatpush1.bf16.xpose.msra.mxu0 0
        %2387 = vmatprep.subr.bf16.mxu0 0
        %2388 = vmatpush1.bf16.xpose.msra.mxu0 0
        %2389 = vmatprep.subr.bf16.mxu0 0
        %2390 = vmatpush1.bf16.xpose.msra.mxu0 0
        %2391 = vmatprep.subr.bf16.mxu0 0
        %2392 = vmatpush1.bf16.xpose.msra.mxu0 0
        %2393 = vmatprep.mubr.bf16.mxu0 0
        %2394 = vmatmul.mubr.bf16.gmra.mrb[0].mxu0 %v2353
        %v2395 = vpop.f32.mrb[0].mxu0
        %v2396 = vadd.f32 0.0, %v2395
        %v2397 = vpop.f32.mrb[0].mxu0
        %v2398 = vpop.f32.mrb[0].mxu0
        %v2399 = vadd.f32 0.0, %v2398
        %v2400 = vpop.f32.mrb[0].mxu0
        %2401 = vdwg.mxu0
        %v2402 = vsel %vm1726, %v2396, -inf
        %2403 = vmax.xlane.f32.xlu0 %v2402
        %v2404 = vpop.xlane.xlu0 %2403
        %v2405 = vsel %vm1730, %v2399, -inf
        %2406 = vmax.xlane.f32.xlu0 %v2405
        %v2407 = vpop.xlane.xlu0 %2406
        %v2408 = vsub.f32 %v2396, %v2404
        %v2409 = vsub.f32 %v2399, %v2407
        %v2410 = vmul.f32 %v2408, 1.442695
        %v2411 = vpow.pop %v2410
        %v2412 = vmul.f32 %v2409, 1.442695
        %v2413 = vpow.pop %v2412
        %v2414 = vsel %vm1726, %v2411, 0.0
        %2415 = vadd.xlane.f32.xlu0 %v2414
        %v2416 = vpop.xlane.xlu0 %2415
        %v2417 = vsel %vm1730, %v2413, 0.0
        %2418 = vadd.xlane.f32.xlu0 %v2417
        %v2419 = vpop.xlane.xlu0 %2418
        %v2420 = vrcp.pop %v2416
        %v2421 = vrcp.pop %v2419
        %v2422 = vmul.f32 %v2411, %v2420
        %v2423 = vmul.f32 %v2413, %v2421
        %v2424 = vpack.c.bf16 %v2423, %v2422
        %2427 = vrot.lane.b32.xlu0 %v1669, 64
        %v2428 = vpop.permute.xlu0 %2427
        %2429 = vrot.lane.b32.xlu0 %v1673, 64
        %v2430 = vpop.permute.xlu0 %2429
        %v2433 = vsel %vm1726, %v2424, 0
        %v2436 = vand.u32 %v2430, %v1757
        %2438 = vmatprep.subr.bf16.mxu0 0
        %2439 = vmatpush1.bf16.msra.mxu0 %v2428
        %2440 = vmatprep.subr.bf16.mxu0 0
        %2441 = vmatpush1.bf16.msra.mxu0 %v2436
        %2442 = vmatprep.subr.bf16.mxu0 0
        %2443 = vmatpush1.bf16.msra.mxu0 0
        %2444 = vmatprep.subr.bf16.mxu0 0
        %2445 = vmatpush1.bf16.msra.mxu0 0
        %2446 = vmatprep.subr.bf16.mxu0 0
        %2447 = vmatpush1.bf16.msra.mxu0 0
        %2448 = vmatprep.subr.bf16.mxu0 0
        %2449 = vmatpush1.bf16.msra.mxu0 0
        %2450 = vmatprep.subr.bf16.mxu0 0
        %2451 = vmatpush1.bf16.msra.mxu0 0
        %2452 = vmatprep.subr.bf16.mxu0 0
        %2453 = vmatpush1.bf16.msra.mxu0 0
        %2454 = vmatprep.subr.bf16.mxu0 0
        %2455 = vmatpush1.bf16.msra.mxu0 0
        %2456 = vmatprep.subr.bf16.mxu0 0
        %2457 = vmatpush1.bf16.msra.mxu0 0
        %2458 = vmatprep.subr.bf16.mxu0 0
        %2459 = vmatpush1.bf16.msra.mxu0 0
        %2460 = vmatprep.subr.bf16.mxu0 0
        %2461 = vmatpush1.bf16.msra.mxu0 0
        %2462 = vmatprep.subr.bf16.mxu0 0
        %2463 = vmatpush1.bf16.msra.mxu0 0
        %2464 = vmatprep.subr.bf16.mxu0 0
        %2465 = vmatpush1.bf16.msra.mxu0 0
        %2466 = vmatprep.subr.bf16.mxu0 0
        %2467 = vmatpush1.bf16.msra.mxu0 0
        %2468 = vmatprep.subr.bf16.mxu0 0
        %2469 = vmatpush1.bf16.msra.mxu0 0
        %2470 = vmatprep.mubr.bf16.mxu0 0
        %2471 = vmatmul.mubr.bf16.gmra.mrb[0].mxu0 %v2433
        %v2472 = vpop.f32.mrb[0].mxu0
        %v2473 = vadd.f32 0.0, %v2472
        %v2474 = vpop.f32.mrb[0].mxu0
        %v2475 = vpop.f32.mrb[0].mxu0
        %v2476 = vadd.f32 0.0, %v2475
        %v2477 = vpop.f32.mrb[0].mxu0
        %2478 = vdwg.mxu0
        %2481 = vrot.lane.b32.xlu0 %v2473, 64
        %v2482 = vpop.permute.xlu0 %2481
        %2483 = vrot.lane.b32.xlu0 %v2476, 64
        %v2484 = vpop.permute.xlu0 %2483
        %2487 = vst.msk [vmem:[#allocation2 + $0x10] sm:$0xff] %vm1949, %v2482
        %2488 = vst.msk [vmem:[#allocation2 + $0x30] sm:$0x1] %vm1951, %v2484
        %v2490 = vsel %vm1675, %v1062, 0
        %v2493 = vsel %vm1675, %v1364, 0
        %v2496 = vsel %vm1675, %v1368, 0
        %2498 = vmatprep.subr.bf16.mxu0 0
        %2499 = vmatpush1.bf16.xpose.msra.mxu0 %v2493
        %2500 = vmatprep.subr.bf16.mxu0 0
        %2501 = vmatpush1.bf16.xpose.msra.mxu0 %v2496
        %2502 = vmatprep.subr.bf16.mxu0 0
        %2503 = vmatpush1.bf16.xpose.msra.mxu0 0
        %2504 = vmatprep.subr.bf16.mxu0 0
        %2505 = vmatpush1.bf16.xpose.msra.mxu0 0
        %2506 = vmatprep.subr.bf16.mxu0 0
        %2507 = vmatpush1.bf16.xpose.msra.mxu0 0
        %2508 = vmatprep.subr.bf16.mxu0 0
        %2509 = vmatpush1.bf16.xpose.msra.mxu0 0
        %2510 = vmatprep.subr.bf16.mxu0 0
        %2511 = vmatpush1.bf16.xpose.msra.mxu0 0
        %2512 = vmatprep.subr.bf16.mxu0 0
        %2513 = vmatpush1.bf16.xpose.msra.mxu0 0
        %2514 = vmatprep.subr.bf16.mxu0 0
        %2515 = vmatpush1.bf16.xpose.msra.mxu0 0
        %2516 = vmatprep.subr.bf16.mxu0 0
        %2517 = vmatpush1.bf16.xpose.msra.mxu0 0
        %2518 = vmatprep.subr.bf16.mxu0 0
        %2519 = vmatpush1.bf16.xpose.msra.mxu0 0
        %2520 = vmatprep.subr.bf16.mxu0 0
        %2521 = vmatpush1.bf16.xpose.msra.mxu0 0
        %2522 = vmatprep.subr.bf16.mxu0 0
        %2523 = vmatpush1.bf16.xpose.msra.mxu0 0
        %2524 = vmatprep.subr.bf16.mxu0 0
        %2525 = vmatpush1.bf16.xpose.msra.mxu0 0
        %2526 = vmatprep.subr.bf16.mxu0 0
        %2527 = vmatpush1.bf16.xpose.msra.mxu0 0
        %2528 = vmatprep.subr.bf16.mxu0 0
        %2529 = vmatpush1.bf16.xpose.msra.mxu0 0
        %2530 = vmatprep.mubr.bf16.mxu0 0
        %2531 = vmatmul.mubr.bf16.gmra.mrb[0].mxu0 %v2490
        %v2532 = vpop.f32.mrb[0].mxu0
        %v2533 = vadd.f32 0.0, %v2532
        %v2534 = vpop.f32.mrb[0].mxu0
        %v2535 = vpop.f32.mrb[0].mxu0
        %v2536 = vadd.f32 0.0, %v2535
        %v2537 = vpop.f32.mrb[0].mxu0
        %2538 = vdwg.mxu0
        %v2539 = vsel %vm1726, %v2533, -inf
        %2540 = vmax.xlane.f32.xlu0 %v2539
        %v2541 = vpop.xlane.xlu0 %2540
        %v2542 = vsel %vm1730, %v2536, -inf
        %2543 = vmax.xlane.f32.xlu0 %v2542
        %v2544 = vpop.xlane.xlu0 %2543
        %v2545 = vsub.f32 %v2533, %v2541
        %v2546 = vsub.f32 %v2536, %v2544
        %v2547 = vmul.f32 %v2545, 1.442695
        %v2548 = vpow.pop %v2547
        %v2549 = vmul.f32 %v2546, 1.442695
        %v2550 = vpow.pop %v2549
        %v2551 = vsel %vm1726, %v2548, 0.0
        %2552 = vadd.xlane.f32.xlu0 %v2551
        %v2553 = vpop.xlane.xlu0 %2552
        %v2554 = vsel %vm1730, %v2550, 0.0
        %2555 = vadd.xlane.f32.xlu0 %v2554
        %v2556 = vpop.xlane.xlu0 %2555
        %v2557 = vrcp.pop %v2553
        %v2558 = vrcp.pop %v2556
        %v2559 = vmul.f32 %v2548, %v2557
        %v2560 = vmul.f32 %v2550, %v2558
        %v2561 = vpack.c.bf16 %v2560, %v2559
        %v2563 = vsel %vm1726, %v2561, 0
        %v2566 = vand.u32 %v1674, %v1757
        %2568 = vmatprep.subr.bf16.mxu0 0
        %2569 = vmatpush1.bf16.msra.mxu0 %v1670
        %2570 = vmatprep.subr.bf16.mxu0 0
        %2571 = vmatpush1.bf16.msra.mxu0 %v2566
        %2572 = vmatprep.subr.bf16.mxu0 0
        %2573 = vmatpush1.bf16.msra.mxu0 0
        %2574 = vmatprep.subr.bf16.mxu0 0
        %2575 = vmatpush1.bf16.msra.mxu0 0
        %2576 = vmatprep.subr.bf16.mxu0 0
        %2577 = vmatpush1.bf16.msra.mxu0 0
        %2578 = vmatprep.subr.bf16.mxu0 0
        %2579 = vmatpush1.bf16.msra.mxu0 0
        %2580 = vmatprep.subr.bf16.mxu0 0
        %2581 = vmatpush1.bf16.msra.mxu0 0
        %2582 = vmatprep.subr.bf16.mxu0 0
        %2583 = vmatpush1.bf16.msra.mxu0 0
        %2584 = vmatprep.subr.bf16.mxu0 0
        %2585 = vmatpush1.bf16.msra.mxu0 0
        %2586 = vmatprep.subr.bf16.mxu0 0
        %2587 = vmatpush1.bf16.msra.mxu0 0
        %2588 = vmatprep.subr.bf16.mxu0 0
        %2589 = vmatpush1.bf16.msra.mxu0 0
        %2590 = vmatprep.subr.bf16.mxu0 0
        %2591 = vmatpush1.bf16.msra.mxu0 0
        %2592 = vmatprep.subr.bf16.mxu0 0
        %2593 = vmatpush1.bf16.msra.mxu0 0
        %2594 = vmatprep.subr.bf16.mxu0 0
        %2595 = vmatpush1.bf16.msra.mxu0 0
        %2596 = vmatprep.subr.bf16.mxu0 0
        %2597 = vmatpush1.bf16.msra.mxu0 0
        %2598 = vmatprep.subr.bf16.mxu0 0
        %2599 = vmatpush1.bf16.msra.mxu0 0
        %2600 = vmatprep.mubr.bf16.mxu0 0
        %2601 = vmatmul.mubr.bf16.gmra.mrb[0].mxu0 %v2563
        %v2602 = vpop.f32.mrb[0].mxu0
        %v2603 = vadd.f32 0.0, %v2602
        %v2604 = vpop.f32.mrb[0].mxu0
        %v2605 = vpop.f32.mrb[0].mxu0
        %v2606 = vadd.f32 0.0, %v2605
        %v2607 = vpop.f32.mrb[0].mxu0
        %2608 = vdwg.mxu0
        %2609 = vst.msk [vmem:[#allocation2 + $0x18] sm:$0xff] %vm1675, %v2603
        %2610 = vst.msk [vmem:[#allocation2 + $0x38] sm:$0x1] %vm1803, %v2606
        %2612 = vrot.lane.b32.xlu0 %v1062, 64
        %v2613 = vpop.permute.xlu0 %2612
        %2616 = vrot.lane.b32.xlu0 %v1364, 64
        %v2617 = vpop.permute.xlu0 %2616
        %2618 = vrot.lane.b32.xlu0 %v1368, 64
        %v2619 = vpop.permute.xlu0 %2618
        %v2621 = vsel %vm1675, %v2613, 0
        %v2624 = vsel %vm1675, %v2617, 0
        %v2627 = vsel %vm1675, %v2619, 0
        %2629 = vmatprep.subr.bf16.mxu0 0
        %2630 = vmatpush1.bf16.xpose.msra.mxu0 %v2624
        %2631 = vmatprep.subr.bf16.mxu0 0
        %2632 = vmatpush1.bf16.xpose.msra.mxu0 %v2627
        %2633 = vmatprep.subr.bf16.mxu0 0
        %2634 = vmatpush1.bf16.xpose.msra.mxu0 0
        %2635 = vmatprep.subr.bf16.mxu0 0
        %2636 = vmatpush1.bf16.xpose.msra.mxu0 0
        %2637 = vmatprep.subr.bf16.mxu0 0
        %2638 = vmatpush1.bf16.xpose.msra.mxu0 0
        %2639 = vmatprep.subr.bf16.mxu0 0
        %2640 = vmatpush1.bf16.xpose.msra.mxu0 0
        %2641 = vmatprep.subr.bf16.mxu0 0
        %2642 = vmatpush1.bf16.xpose.msra.mxu0 0
        %2643 = vmatprep.subr.bf16.mxu0 0
        %2644 = vmatpush1.bf16.xpose.msra.mxu0 0
        %2645 = vmatprep.subr.bf16.mxu0 0
        %2646 = vmatpush1.bf16.xpose.msra.mxu0 0
        %2647 = vmatprep.subr.bf16.mxu0 0
        %2648 = vmatpush1.bf16.xpose.msra.mxu0 0
        %2649 = vmatprep.subr.bf16.mxu0 0
        %2650 = vmatpush1.bf16.xpose.msra.mxu0 0
        %2651 = vmatprep.subr.bf16.mxu0 0
        %2652 = vmatpush1.bf16.xpose.msra.mxu0 0
        %2653 = vmatprep.subr.bf16.mxu0 0
        %2654 = vmatpush1.bf16.xpose.msra.mxu0 0
        %2655 = vmatprep.subr.bf16.mxu0 0
        %2656 = vmatpush1.bf16.xpose.msra.mxu0 0
        %2657 = vmatprep.subr.bf16.mxu0 0
        %2658 = vmatpush1.bf16.xpose.msra.mxu0 0
        %2659 = vmatprep.subr.bf16.mxu0 0
        %2660 = vmatpush1.bf16.xpose.msra.mxu0 0
        %2661 = vmatprep.mubr.bf16.mxu0 0
        %2662 = vmatmul.mubr.bf16.gmra.mrb[0].mxu0 %v2621
        %v2663 = vpop.f32.mrb[0].mxu0
        %v2664 = vadd.f32 0.0, %v2663
        %v2665 = vpop.f32.mrb[0].mxu0
        %v2666 = vpop.f32.mrb[0].mxu0
        %v2667 = vadd.f32 0.0, %v2666
        %v2668 = vpop.f32.mrb[0].mxu0
        %2669 = vdwg.mxu0
        %v2670 = vsel %vm1726, %v2664, -inf
        %2671 = vmax.xlane.f32.xlu0 %v2670
        %v2672 = vpop.xlane.xlu0 %2671
        %v2673 = vsel %vm1730, %v2667, -inf
        %2674 = vmax.xlane.f32.xlu0 %v2673
        %v2675 = vpop.xlane.xlu0 %2674
        %v2676 = vsub.f32 %v2664, %v2672
        %v2677 = vsub.f32 %v2667, %v2675
        %v2678 = vmul.f32 %v2676, 1.442695
        %v2679 = vpow.pop %v2678
        %v2680 = vmul.f32 %v2677, 1.442695
        %v2681 = vpow.pop %v2680
        %v2682 = vsel %vm1726, %v2679, 0.0
        %2683 = vadd.xlane.f32.xlu0 %v2682
        %v2684 = vpop.xlane.xlu0 %2683
        %v2685 = vsel %vm1730, %v2681, 0.0
        %2686 = vadd.xlane.f32.xlu0 %v2685
        %v2687 = vpop.xlane.xlu0 %2686
        %v2688 = vrcp.pop %v2684
        %v2689 = vrcp.pop %v2687
        %v2690 = vmul.f32 %v2679, %v2688
        %v2691 = vmul.f32 %v2681, %v2689
        %v2692 = vpack.c.bf16 %v2691, %v2690
        %2695 = vrot.lane.b32.xlu0 %v1670, 64
        %v2696 = vpop.permute.xlu0 %2695
        %2697 = vrot.lane.b32.xlu0 %v1674, 64
        %v2698 = vpop.permute.xlu0 %2697
        %v2701 = vsel %vm1726, %v2692, 0
        %v2704 = vand.u32 %v2698, %v1757
        %2706 = vmatprep.subr.bf16.mxu0 0
        %2707 = vmatpush1.bf16.msra.mxu0 %v2696
        %2708 = vmatprep.subr.bf16.mxu0 0
        %2709 = vmatpush1.bf16.msra.mxu0 %v2704
        %2710 = vmatprep.subr.bf16.mxu0 0
        %2711 = vmatpush1.bf16.msra.mxu0 0
        %2712 = vmatprep.subr.bf16.mxu0 0
        %2713 = vmatpush1.bf16.msra.mxu0 0
        %2714 = vmatprep.subr.bf16.mxu0 0
        %2715 = vmatpush1.bf16.msra.mxu0 0
        %2716 = vmatprep.subr.bf16.mxu0 0
        %2717 = vmatpush1.bf16.msra.mxu0 0
        %2718 = vmatprep.subr.bf16.mxu0 0
        %2719 = vmatpush1.bf16.msra.mxu0 0
        %2720 = vmatprep.subr.bf16.mxu0 0
        %2721 = vmatpush1.bf16.msra.mxu0 0
        %2722 = vmatprep.subr.bf16.mxu0 0
        %2723 = vmatpush1.bf16.msra.mxu0 0
        %2724 = vmatprep.subr.bf16.mxu0 0
        %2725 = vmatpush1.bf16.msra.mxu0 0
        %2726 = vmatprep.subr.bf16.mxu0 0
        %2727 = vmatpush1.bf16.msra.mxu0 0
        %2728 = vmatprep.subr.bf16.mxu0 0
        %2729 = vmatpush1.bf16.msra.mxu0 0
        %2730 = vmatprep.subr.bf16.mxu0 0
        %2731 = vmatpush1.bf16.msra.mxu0 0
        %2732 = vmatprep.subr.bf16.mxu0 0
        %2733 = vmatpush1.bf16.msra.mxu0 0
        %2734 = vmatprep.subr.bf16.mxu0 0
        %2735 = vmatpush1.bf16.msra.mxu0 0
        %2736 = vmatprep.subr.bf16.mxu0 0
        %2737 = vmatpush1.bf16.msra.mxu0 0
        %2738 = vmatprep.mubr.bf16.mxu0 0
        %2739 = vmatmul.mubr.bf16.gmra.mrb[0].mxu0 %v2701
        %v2740 = vpop.f32.mrb[0].mxu0
        %v2741 = vadd.f32 0.0, %v2740
        %v2742 = vpop.f32.mrb[0].mxu0
        %v2743 = vpop.f32.mrb[0].mxu0
        %v2744 = vadd.f32 0.0, %v2743
        %v2745 = vpop.f32.mrb[0].mxu0
        %2746 = vdwg.mxu0
        %2749 = vrot.lane.b32.xlu0 %v2741, 64
        %v2750 = vpop.permute.xlu0 %2749
        %2751 = vrot.lane.b32.xlu0 %v2744, 64
        %v2752 = vpop.permute.xlu0 %2751
        %2755 = vst.msk [vmem:[#allocation2 + $0x18] sm:$0xff] %vm1949, %v2750
        %2756 = vst.msk [vmem:[#allocation2 + $0x38] sm:$0x1] %vm1951, %v2752
        %v2757 = vld [vmem:[#allocation2] sm:$0xff]
        %v2758 = vld [vmem:[#allocation2 + $0x8] sm:$0xff]
        %v2759 = vld [vmem:[#allocation2 + $0x10] sm:$0xff]
        %v2760 = vld [vmem:[#allocation2 + $0x18] sm:$0xff]
        %v2761 = vld [vmem:[#allocation2 + $0x20] sm:$0x1]
        %v2762 = vld [vmem:[#allocation2 + $0x28] sm:$0x1]
        %v2763 = vld [vmem:[#allocation2 + $0x30] sm:$0x1]
        %v2764 = vld [vmem:[#allocation2 + $0x38] sm:$0x1]
        %v2765 = vpack.c.bf16 %v2761, %v2757
        %v2766 = vpack.c.bf16 %v2762, %v2758
        %v2767 = vpack.c.bf16 %v2763, %v2759
        %v2768 = vpack.c.bf16 %v2764, %v2760
        %v2769 = vld [vmem:[%s11] sm:$0xf]
        %v2770 = vld [vmem:[%s11 + $0x4] sm:$0xf]
        %v2771 = vld [vmem:[%s11 + $0x8] sm:$0xf]
        %v2772 = vld [vmem:[%s11 + $0xc] sm:$0xf]
        %v2773 = vld [vmem:[%s11 + $0x10] sm:$0xf]
        %v2774 = vld [vmem:[%s11 + $0x14] sm:$0xf]
        %v2775 = vld [vmem:[%s11 + $0x18] sm:$0xf]
        %v2776 = vld [vmem:[%s11 + $0x1c] sm:$0xf]
        %v2777 = vld [vmem:[%s11 + $0x20] sm:$0xf]
        %v2778 = vld [vmem:[%s11 + $0x24] sm:$0xf]
        %v2779 = vld [vmem:[%s11 + $0x28] sm:$0xf]
        %v2780 = vld [vmem:[%s11 + $0x2c] sm:$0xf]
        %v2781 = vld [vmem:[%s11 + $0x30] sm:$0xf]
        %v2782 = vld [vmem:[%s11 + $0x34] sm:$0xf]
        %v2783 = vld [vmem:[%s11 + $0x38] sm:$0xf]
        %v2784 = vld [vmem:[%s11 + $0x3c] sm:$0xf]
        %v2785 = vld [vmem:[%s11 + $0x40] sm:$0xf]
        %v2786 = vld [vmem:[%s11 + $0x44] sm:$0xf]
        %v2787 = vld [vmem:[%s11 + $0x48] sm:$0xf]
        %v2788 = vld [vmem:[%s11 + $0x4c] sm:$0xf]
        %v2789 = vld [vmem:[%s11 + $0x50] sm:$0xf]
        %v2790 = vld [vmem:[%s11 + $0x54] sm:$0xf]
        %v2791 = vld [vmem:[%s11 + $0x58] sm:$0xf]
        %v2792 = vld [vmem:[%s11 + $0x5c] sm:$0xf]
        %v2793 = vld [vmem:[%s11 + $0x60] sm:$0xf]
        %v2794 = vld [vmem:[%s11 + $0x64] sm:$0xf]
        %v2795 = vld [vmem:[%s11 + $0x68] sm:$0xf]
        %v2796 = vld [vmem:[%s11 + $0x6c] sm:$0xf]
        %v2797 = vld [vmem:[%s11 + $0x70] sm:$0xf]
        %v2798 = vld [vmem:[%s11 + $0x74] sm:$0xf]
        %v2799 = vld [vmem:[%s11 + $0x78] sm:$0xf]
        %v2800 = vld [vmem:[%s11 + $0x7c] sm:$0xf]
        %v2801 = vld [vmem:[%s11 + $0x80] sm:$0xf]
        %v2802 = vld [vmem:[%s11 + $0x84] sm:$0xf]
        %v2803 = vld [vmem:[%s11 + $0x88] sm:$0xf]
        %v2804 = vld [vmem:[%s11 + $0x8c] sm:$0xf]
        %v2805 = vld [vmem:[%s11 + $0x90] sm:$0xf]
        %v2806 = vld [vmem:[%s11 + $0x94] sm:$0xf]
        %v2807 = vld [vmem:[%s11 + $0x98] sm:$0xf]
        %v2808 = vld [vmem:[%s11 + $0x9c] sm:$0xf]
        %v2809 = vld [vmem:[%s11 + $0xa0] sm:$0xf]
        %v2810 = vld [vmem:[%s11 + $0xa4] sm:$0xf]
        %v2811 = vld [vmem:[%s11 + $0xa8] sm:$0xf]
        %v2812 = vld [vmem:[%s11 + $0xac] sm:$0xf]
        %v2813 = vld [vmem:[%s11 + $0xb0] sm:$0xf]
        %v2814 = vld [vmem:[%s11 + $0xb4] sm:$0xf]
        %v2815 = vld [vmem:[%s11 + $0xb8] sm:$0xf]
        %v2816 = vld [vmem:[%s11 + $0xbc] sm:$0xf]
        %v2817 = vld [vmem:[%s11 + $0xc0] sm:$0xf]
        %v2818 = vld [vmem:[%s11 + $0xc4] sm:$0xf]
        %v2819 = vld [vmem:[%s11 + $0xc8] sm:$0xf]
        %v2820 = vld [vmem:[%s11 + $0xcc] sm:$0xf]
        %v2821 = vld [vmem:[%s11 + $0xd0] sm:$0xf]
        %v2822 = vld [vmem:[%s11 + $0xd4] sm:$0xf]
        %v2823 = vld [vmem:[%s11 + $0xd8] sm:$0xf]
        %v2824 = vld [vmem:[%s11 + $0xdc] sm:$0xf]
        %v2825 = vld [vmem:[%s11 + $0xe0] sm:$0xf]
        %v2826 = vld [vmem:[%s11 + $0xe4] sm:$0xf]
        %v2827 = vld [vmem:[%s11 + $0xe8] sm:$0xf]
        %v2828 = vld [vmem:[%s11 + $0xec] sm:$0xf]
        %v2829 = vld [vmem:[%s11 + $0xf0] sm:$0xf]
        %v2830 = vld [vmem:[%s11 + $0xf4] sm:$0xf]
        %v2831 = vld [vmem:[%s11 + $0xf8] sm:$0xf]
        %v2832 = vld [vmem:[%s11 + $0xfc] sm:$0xf]
        %v2833 = vld [vmem:[%s12] sm:$0x1]
        %v2835 = vlaneseq
        %v2836 = vshrl.u32 %v2835, 7
        %v2837 = vsub.s32 0, %v2836
        %v2838 = vrot.slane %v2833, %v2837
        %v2904 = vunpack.c.l.b16 %v2769
        %v2905 = vunpack.c.l.b16 %v2770
        %v2906 = vunpack.c.l.b16 %v2771
        %v2907 = vunpack.c.l.b16 %v2772
        %v2908 = vunpack.c.l.b16 %v2773
        %v2909 = vunpack.c.l.b16 %v2774
        %v2910 = vunpack.c.l.b16 %v2775
        %v2911 = vunpack.c.l.b16 %v2776
        %v2912 = vunpack.c.l.b16 %v2777
        %v2913 = vunpack.c.l.b16 %v2778
        %v2914 = vunpack.c.l.b16 %v2779
        %v2915 = vunpack.c.l.b16 %v2780
        %v2916 = vunpack.c.l.b16 %v2781
        %v2917 = vunpack.c.l.b16 %v2782
        %v2918 = vunpack.c.l.b16 %v2783
        %v2919 = vunpack.c.l.b16 %v2784
        %v2920 = vunpack.c.l.b16 %v2785
        %v2921 = vunpack.c.l.b16 %v2786
        %v2922 = vunpack.c.l.b16 %v2787
        %v2923 = vunpack.c.l.b16 %v2788
        %v2924 = vunpack.c.l.b16 %v2789
        %v2925 = vunpack.c.l.b16 %v2790
        %v2926 = vunpack.c.l.b16 %v2791
        %v2927 = vunpack.c.l.b16 %v2792
        %v2928 = vunpack.c.l.b16 %v2793
        %v2929 = vunpack.c.l.b16 %v2794
        %v2930 = vunpack.c.l.b16 %v2795
        %v2931 = vunpack.c.l.b16 %v2796
        %v2932 = vunpack.c.l.b16 %v2797
        %v2933 = vunpack.c.l.b16 %v2798
        %v2934 = vunpack.c.l.b16 %v2799
        %v2935 = vunpack.c.l.b16 %v2800
        %v2936 = vunpack.c.l.b16 %v2801
        %v2937 = vunpack.c.l.b16 %v2802
        %v2938 = vunpack.c.l.b16 %v2803
        %v2939 = vunpack.c.l.b16 %v2804
        %v2940 = vunpack.c.l.b16 %v2805
        %v2941 = vunpack.c.l.b16 %v2806
        %v2942 = vunpack.c.l.b16 %v2807
        %v2943 = vunpack.c.l.b16 %v2808
        %v2944 = vunpack.c.l.b16 %v2809
        %v2945 = vunpack.c.l.b16 %v2810
        %v2946 = vunpack.c.l.b16 %v2811
        %v2947 = vunpack.c.l.b16 %v2812
        %v2948 = vunpack.c.l.b16 %v2813
        %v2949 = vunpack.c.l.b16 %v2814
        %v2950 = vunpack.c.l.b16 %v2815
        %v2951 = vunpack.c.l.b16 %v2816
        %v2952 = vunpack.c.l.b16 %v2817
        %v2953 = vunpack.c.l.b16 %v2818
        %v2954 = vunpack.c.l.b16 %v2819
        %v2955 = vunpack.c.l.b16 %v2820
        %v2956 = vunpack.c.l.b16 %v2821
        %v2957 = vunpack.c.l.b16 %v2822
        %v2958 = vunpack.c.l.b16 %v2823
        %v2959 = vunpack.c.l.b16 %v2824
        %v2960 = vunpack.c.l.b16 %v2825
        %v2961 = vunpack.c.l.b16 %v2826
        %v2962 = vunpack.c.l.b16 %v2827
        %v2963 = vunpack.c.l.b16 %v2828
        %v2964 = vunpack.c.l.b16 %v2829
        %v2965 = vunpack.c.l.b16 %v2830
        %v2966 = vunpack.c.l.b16 %v2831
        %v2967 = vunpack.c.l.b16 %v2832
        %v2968 = vpack.c.b16 %v2905, %v2904
        %v2969 = vpack.c.b16 %v2907, %v2906
        %v2970 = vpack.c.b16 %v2909, %v2908
        %v2971 = vpack.c.b16 %v2911, %v2910
        %v2972 = vpack.c.b16 %v2913, %v2912
        %v2973 = vpack.c.b16 %v2915, %v2914
        %v2974 = vpack.c.b16 %v2917, %v2916
        %v2975 = vpack.c.b16 %v2919, %v2918
        %v2976 = vpack.c.b16 %v2921, %v2920
        %v2977 = vpack.c.b16 %v2923, %v2922
        %v2978 = vpack.c.b16 %v2925, %v2924
        %v2979 = vpack.c.b16 %v2927, %v2926
        %v2980 = vpack.c.b16 %v2929, %v2928
        %v2981 = vpack.c.b16 %v2931, %v2930
        %v2982 = vpack.c.b16 %v2933, %v2932
        %v2983 = vpack.c.b16 %v2935, %v2934
        %v2984 = vpack.c.b16 %v2937, %v2936
        %v2985 = vpack.c.b16 %v2939, %v2938
        %v2986 = vpack.c.b16 %v2941, %v2940
        %v2987 = vpack.c.b16 %v2943, %v2942
        %v2988 = vpack.c.b16 %v2945, %v2944
        %v2989 = vpack.c.b16 %v2947, %v2946
        %v2990 = vpack.c.b16 %v2949, %v2948
        %v2991 = vpack.c.b16 %v2951, %v2950
        %v2992 = vpack.c.b16 %v2953, %v2952
        %v2993 = vpack.c.b16 %v2955, %v2954
        %v2994 = vpack.c.b16 %v2957, %v2956
        %v2995 = vpack.c.b16 %v2959, %v2958
        %v2996 = vpack.c.b16 %v2961, %v2960
        %v2997 = vpack.c.b16 %v2963, %v2962
        %v2998 = vpack.c.b16 %v2965, %v2964
        %v2999 = vpack.c.b16 %v2967, %v2966
        %3032 = vmatprep.subr.bf16.mxu0 0
        %3033 = vmatpush1.bf16.msra.mxu0 %v2968
        %3034 = vmatprep.subr.bf16.mxu0 0
        %3035 = vmatpush1.bf16.msra.mxu0 %v2969
        %3036 = vmatprep.subr.bf16.mxu0 0
        %3037 = vmatpush1.bf16.msra.mxu0 %v2970
        %3038 = vmatprep.subr.bf16.mxu0 0
        %3039 = vmatpush1.bf16.msra.mxu0 %v2971
        %3040 = vmatprep.subr.bf16.mxu0 0
        %3041 = vmatpush1.bf16.msra.mxu0 %v2972
        %3042 = vmatprep.subr.bf16.mxu0 0
        %3043 = vmatpush1.bf16.msra.mxu0 %v2973
        %3044 = vmatprep.subr.bf16.mxu0 0
        %3045 = vmatpush1.bf16.msra.mxu0 %v2974
        %3046 = vmatprep.subr.bf16.mxu0 0
        %3047 = vmatpush1.bf16.msra.mxu0 %v2975
        %3048 = vmatprep.subr.bf16.mxu0 0
        %3049 = vmatpush1.bf16.msra.mxu0 %v2976
        %3050 = vmatprep.subr.bf16.mxu0 0
        %3051 = vmatpush1.bf16.msra.mxu0 %v2977
        %3052 = vmatprep.subr.bf16.mxu0 0
        %3053 = vmatpush1.bf16.msra.mxu0 %v2978
        %3054 = vmatprep.subr.bf16.mxu0 0
        %3055 = vmatpush1.bf16.msra.mxu0 %v2979
        %3056 = vmatprep.subr.bf16.mxu0 0
        %3057 = vmatpush1.bf16.msra.mxu0 %v2980
        %3058 = vmatprep.subr.bf16.mxu0 0
        %3059 = vmatpush1.bf16.msra.mxu0 %v2981
        %3060 = vmatprep.subr.bf16.mxu0 0
        %3061 = vmatpush1.bf16.msra.mxu0 %v2982
        %3062 = vmatprep.subr.bf16.mxu0 0
        %3063 = vmatpush1.bf16.msra.mxu0 %v2983
        %3064 = vmatprep.mubr.bf16.mxu0 %v2766
        %3065 = vmatmul.mubr.bf16.gmra.mrb[0].mxu0 %v2765
        %v3066 = vpop.f32.mrb[0].mxu0
        %v3067 = vadd.f32 %v2838, %v3066
        %v3068 = vpop.f32.mrb[0].mxu0
        %v3069 = vpop.f32.mrb[0].mxu0
        %v3070 = vadd.f32 %v2838, %v3069
        %v3071 = vpop.f32.mrb[0].mxu0
        %3072 = vdwg.mxu0
        %3073 = vmatprep.subr.bf16.mxu0 0
        %3074 = vmatpush1.bf16.msra.mxu0 %v2984
        %3075 = vmatprep.subr.bf16.mxu0 0
        %3076 = vmatpush1.bf16.msra.mxu0 %v2985
        %3077 = vmatprep.subr.bf16.mxu0 0
        %3078 = vmatpush1.bf16.msra.mxu0 %v2986
        %3079 = vmatprep.subr.bf16.mxu0 0
        %3080 = vmatpush1.bf16.msra.mxu0 %v2987
        %3081 = vmatprep.subr.bf16.mxu0 0
        %3082 = vmatpush1.bf16.msra.mxu0 %v2988
        %3083 = vmatprep.subr.bf16.mxu0 0
        %3084 = vmatpush1.bf16.msra.mxu0 %v2989
        %3085 = vmatprep.subr.bf16.mxu0 0
        %3086 = vmatpush1.bf16.msra.mxu0 %v2990
        %3087 = vmatprep.subr.bf16.mxu0 0
        %3088 = vmatpush1.bf16.msra.mxu0 %v2991
        %3089 = vmatprep.subr.bf16.mxu0 0
        %3090 = vmatpush1.bf16.msra.mxu0 %v2992
        %3091 = vmatprep.subr.bf16.mxu0 0
        %3092 = vmatpush1.bf16.msra.mxu0 %v2993
        %3093 = vmatprep.subr.bf16.mxu0 0
        %3094 = vmatpush1.bf16.msra.mxu0 %v2994
        %3095 = vmatprep.subr.bf16.mxu0 0
        %3096 = vmatpush1.bf16.msra.mxu0 %v2995
        %3097 = vmatprep.subr.bf16.mxu0 0
        %3098 = vmatpush1.bf16.msra.mxu0 %v2996
        %3099 = vmatprep.subr.bf16.mxu0 0
        %3100 = vmatpush1.bf16.msra.mxu0 %v2997
        %3101 = vmatprep.subr.bf16.mxu0 0
        %3102 = vmatpush1.bf16.msra.mxu0 %v2998
        %3103 = vmatprep.subr.bf16.mxu0 0
        %3104 = vmatpush1.bf16.msra.mxu0 %v2999
        %3105 = vmatprep.mubr.bf16.mxu0 %v2768
        %3106 = vmatmul.mubr.bf16.gmra.mrb[0].mxu0 %v2767
        %v3107 = vpop.f32.mrb[0].mxu0
        %v3108 = vadd.f32 %v3067, %v3107
        %v3109 = vpop.f32.mrb[0].mxu0
        %v3110 = vpop.f32.mrb[0].mxu0
        %v3111 = vadd.f32 %v3070, %v3110
        %v3112 = vpop.f32.mrb[0].mxu0
        %3113 = vdwg.mxu0
        %v3114 = vadd.f32 %v658, %v3108
        %v3115 = vadd.f32 %v659, %v3111
        %3116 = vadd.xlane.f32.xlu0 %v3114
        %v3117 = vpop.xlane.xlu0 %3116
        %v3118 = vsel %vm666, %v3115, 0.0
        %3119 = vadd.xlane.f32.xlu0 %v3118
        %v3120 = vpop.xlane.xlu0 %3119
        %v3121 = vmul.f32 %v3117, %v670
        %v3122 = vmul.f32 %v3120, %v670
        %v3123 = vsub.f32 %v3114, %v3121
        %v3124 = vsub.f32 %v3115, %v3122
        %v3125 = vmul.f32 %v3123, %v3123
        %v3126 = vmul.f32 %v3124, %v3124
        %3127 = vadd.xlane.f32.xlu0 %v3125
        %v3128 = vpop.xlane.xlu0 %3127
        %v3129 = vsel %vm666, %v3126, 0.0
        %3130 = vadd.xlane.f32.xlu0 %v3129
        %v3131 = vpop.xlane.xlu0 %3130
        %v3132 = vmul.f32 %v3128, %v670
        %v3133 = vmul.f32 %v3131, %v670
        %v3134 = vadd.f32 %v3132, 1e-05
        %v3135 = vadd.f32 %v3133, 1e-05
        %v3136 = vrsqrt.pop %v3134
        %v3137 = vrsqrt.pop %v3135
        %v3138 = vmul.f32 %v3123, %v3136
        %v3139 = vmul.f32 %v3124, %v3137
        %v3140 = vld [vmem:[%s6] sm:$0x1]
        %v3142 = vlaneseq
        %v3143 = vshrl.u32 %v3142, 7
        %v3144 = vsub.s32 0, %v3143
        %v3145 = vrot.slane %v3140, %v3144
        %v3147 = vmul.f32 %v3138, %v3145
        %v3148 = vmul.f32 %v3139, %v3145
        %v3149 = vld [vmem:[%s7] sm:$0x1]
        %v3151 = vlaneseq
        %v3152 = vshrl.u32 %v3151, 7
        %v3153 = vsub.s32 0, %v3152
        %v3154 = vrot.slane %v3149, %v3153
        %v3156 = vadd.f32 %v3147, %v3154
        %v3157 = vadd.f32 %v3148, %v3154
        %v3158 = vpack.c.bf16 %v3157, %v3156
        %v3159 = vld [vmem:[%s13] sm:$0xff]
        %v3160 = vld [vmem:[%s13 + $0x8] sm:$0xff]
        %v3161 = vld [vmem:[%s13 + $0x10] sm:$0xff]
        %v3162 = vld [vmem:[%s13 + $0x18] sm:$0xff]
        %v3163 = vld [vmem:[%s13 + $0x20] sm:$0xff]
        %v3164 = vld [vmem:[%s13 + $0x28] sm:$0xff]
        %v3165 = vld [vmem:[%s13 + $0x30] sm:$0xff]
        %v3166 = vld [vmem:[%s13 + $0x38] sm:$0xff]
        %v3167 = vld [vmem:[%s13 + $0x40] sm:$0xff]
        %v3168 = vld [vmem:[%s13 + $0x48] sm:$0xff]
        %v3169 = vld [vmem:[%s13 + $0x50] sm:$0xff]
        %v3170 = vld [vmem:[%s13 + $0x58] sm:$0xff]
        %v3171 = vld [vmem:[%s13 + $0x60] sm:$0xff]
        %v3172 = vld [vmem:[%s13 + $0x68] sm:$0xff]
        %v3173 = vld [vmem:[%s13 + $0x70] sm:$0xff]
        %v3174 = vld [vmem:[%s13 + $0x78] sm:$0xff]
        %v3175 = vld [vmem:[%s14] sm:$0x3]
        %v3177 = vlaneseq
        %v3178 = vshrl.u32 %v3177, 7
        %v3179 = vsub.s32 0, %v3178
        %v3180 = vrot.slane %v3175, %v3179
        %v3181 = vlaneseq
        %v3182 = vshrl.u32 %v3181, 7
        %v3183 = vsub.s32 1, %v3182
        %v3184 = vrot.slane %v3175, %v3183
        %v3203 = vunpack.c.l.b16 %v3159
        %v3204 = vunpack.c.h.b16 %v3159
        %v3205 = vunpack.c.l.b16 %v3160
        %v3206 = vunpack.c.h.b16 %v3160
        %v3207 = vunpack.c.l.b16 %v3161
        %v3208 = vunpack.c.h.b16 %v3161
        %v3209 = vunpack.c.l.b16 %v3162
        %v3210 = vunpack.c.h.b16 %v3162
        %v3211 = vunpack.c.l.b16 %v3163
        %v3212 = vunpack.c.h.b16 %v3163
        %v3213 = vunpack.c.l.b16 %v3164
        %v3214 = vunpack.c.h.b16 %v3164
        %v3215 = vunpack.c.l.b16 %v3165
        %v3216 = vunpack.c.h.b16 %v3165
        %v3217 = vunpack.c.l.b16 %v3166
        %v3218 = vunpack.c.h.b16 %v3166
        %v3219 = vunpack.c.l.b16 %v3167
        %v3220 = vunpack.c.h.b16 %v3167
        %v3221 = vunpack.c.l.b16 %v3168
        %v3222 = vunpack.c.h.b16 %v3168
        %v3223 = vunpack.c.l.b16 %v3169
        %v3224 = vunpack.c.h.b16 %v3169
        %v3225 = vunpack.c.l.b16 %v3170
        %v3226 = vunpack.c.h.b16 %v3170
        %v3227 = vunpack.c.l.b16 %v3171
        %v3228 = vunpack.c.h.b16 %v3171
        %v3229 = vunpack.c.l.b16 %v3172
        %v3230 = vunpack.c.h.b16 %v3172
        %v3231 = vunpack.c.l.b16 %v3173
        %v3232 = vunpack.c.h.b16 %v3173
        %v3233 = vunpack.c.l.b16 %v3174
        %v3234 = vunpack.c.h.b16 %v3174
        %v3235 = vpack.c.b16 %v3205, %v3203
        %v3236 = vpack.c.b16 %v3206, %v3204
        %v3237 = vpack.c.b16 %v3209, %v3207
        %v3238 = vpack.c.b16 %v3210, %v3208
        %v3239 = vpack.c.b16 %v3213, %v3211
        %v3240 = vpack.c.b16 %v3214, %v3212
        %v3241 = vpack.c.b16 %v3217, %v3215
        %v3242 = vpack.c.b16 %v3218, %v3216
        %v3243 = vpack.c.b16 %v3221, %v3219
        %v3244 = vpack.c.b16 %v3222, %v3220
        %v3245 = vpack.c.b16 %v3225, %v3223
        %v3246 = vpack.c.b16 %v3226, %v3224
        %v3247 = vpack.c.b16 %v3229, %v3227
        %v3248 = vpack.c.b16 %v3230, %v3228
        %v3249 = vpack.c.b16 %v3233, %v3231
        %v3250 = vpack.c.b16 %v3234, %v3232
        %3267 = vmatprep.subr.bf16.mxu0 %v3236
        %3268 = vmatpush1.bf16.msra.mxu0 %v3235
        %3269 = vmatprep.subr.bf16.mxu0 %v3238
        %3270 = vmatpush1.bf16.msra.mxu0 %v3237
        %3271 = vmatprep.subr.bf16.mxu0 %v3240
        %3272 = vmatpush1.bf16.msra.mxu0 %v3239
        %3273 = vmatprep.subr.bf16.mxu0 %v3242
        %3274 = vmatpush1.bf16.msra.mxu0 %v3241
        %3275 = vmatprep.subr.bf16.mxu0 %v3244
        %3276 = vmatpush1.bf16.msra.mxu0 %v3243
        %3277 = vmatprep.subr.bf16.mxu0 %v3246
        %3278 = vmatpush1.bf16.msra.mxu0 %v3245
        %3279 = vmatprep.subr.bf16.mxu0 %v3248
        %3280 = vmatpush1.bf16.msra.mxu0 %v3247
        %3281 = vmatprep.subr.bf16.mxu0 %v3250
        %3282 = vmatpush1.bf16.msra.mxu0 %v3249
        %3283 = vmatprep.subr.bf16.mxu0 0
        %3284 = vmatpush1.bf16.msra.mxu0 0
        %3285 = vmatprep.subr.bf16.mxu0 0
        %3286 = vmatpush1.bf16.msra.mxu0 0
        %3287 = vmatprep.subr.bf16.mxu0 0
        %3288 = vmatpush1.bf16.msra.mxu0 0
        %3289 = vmatprep.subr.bf16.mxu0 0
        %3290 = vmatpush1.bf16.msra.mxu0 0
        %3291 = vmatprep.subr.bf16.mxu0 0
        %3292 = vmatpush1.bf16.msra.mxu0 0
        %3293 = vmatprep.subr.bf16.mxu0 0
        %3294 = vmatpush1.bf16.msra.mxu0 0
        %3295 = vmatprep.subr.bf16.mxu0 0
        %3296 = vmatpush1.bf16.msra.mxu0 0
        %3297 = vmatprep.subr.bf16.mxu0 0
        %3298 = vmatpush1.bf16.msra.mxu0 0
        %3299 = vmatprep.mubr.bf16.mxu0 0
        %3300 = vmatmul.mubr.bf16.gmra.mrb[0].mxu0 %v3158
        %v3301 = vpop.f32.mrb[0].mxu0
        %v3302 = vadd.f32 %v3180, %v3301
        %v3303 = vpop.f32.mrb[0].mxu0
        %v3304 = vadd.f32 %v3184, %v3303
        %v3305 = vpop.f32.mrb[0].mxu0
        %v3306 = vadd.f32 %v3180, %v3305
        %v3307 = vpop.f32.mrb[0].mxu0
        %v3308 = vadd.f32 %v3184, %v3307
        %3309 = vdwg.mxu0
        %v3310 = vmul.f32 %v3302, 0.5
        %v3311 = vmul.f32 %v3304, 0.5
        %v3312 = vmul.f32 %v3306, 0.5
        %v3313 = vmul.f32 %v3308, 0.5
        %v3314 = vmul.f32 %v3302, 0.70710677
        %v3315 = vmul.f32 %v3304, 0.70710677
        %v3316 = vmul.f32 %v3306, 0.70710677
        %v3317 = vmul.f32 %v3308, 0.70710677
        %v3318 = vand.u32 2147483647, %v3314
        %v3319 = vand.u32 2147483647, %v3315
        %v3320 = vand.u32 2147483647, %v3316
        %v3321 = vand.u32 2147483647, %v3317
        %v3322 = vmul.f32 %v3318, 0.3275911
        %v3323 = vmul.f32 %v3319, 0.3275911
        %v3324 = vmul.f32 %v3320, 0.3275911
        %v3325 = vmul.f32 %v3321, 0.3275911
        %v3326 = vadd.f32 %v3322, 1.0
        %v3327 = vadd.f32 %v3323, 1.0
        %v3328 = vadd.f32 %v3324, 1.0
        %v3329 = vadd.f32 %v3325, 1.0
        %v3330 = vrcp.pop %v3326
        %v3331 = vmul.f32 1.0, %v3330
        %v3332 = vrcp.pop %v3327
        %v3333 = vmul.f32 1.0, %v3332
        %v3334 = vrcp.pop %v3328
        %v3335 = vmul.f32 1.0, %v3334
        %v3336 = vrcp.pop %v3329
        %v3337 = vmul.f32 1.0, %v3336
        %v3338 = vmul.f32 %v3331, 1.0614054
        %v3339 = vmul.f32 %v3333, 1.0614054
        %v3340 = vmul.f32 %v3335, 1.0614054
        %v3341 = vmul.f32 %v3337, 1.0614054
        %v3342 = vadd.f32 %v3338, -1.4531521
        %v3343 = vadd.f32 %v3339, -1.4531521
        %v3344 = vadd.f32 %v3340, -1.4531521
        %v3345 = vadd.f32 %v3341, -1.4531521
        %v3346 = vmul.f32 %v3342, %v3331
        %v3347 = vmul.f32 %v3343, %v3333
        %v3348 = vmul.f32 %v3344, %v3335
        %v3349 = vmul.f32 %v3345, %v3337
        %v3350 = vadd.f32 %v3346, 1.4214138
        %v3351 = vadd.f32 %v3347, 1.4214138
        %v3352 = vadd.f32 %v3348, 1.4214138
        %v3353 = vadd.f32 %v3349, 1.4214138
        %v3354 = vmul.f32 %v3350, %v3331
        %v3355 = vmul.f32 %v3351, %v3333
        %v3356 = vmul.f32 %v3352, %v3335
        %v3357 = vmul.f32 %v3353, %v3337
        %v3358 = vadd.f32 %v3354, -0.28449672
        %v3359 = vadd.f32 %v3355, -0.28449672
        %v3360 = vadd.f32 %v3356, -0.28449672
        %v3361 = vadd.f32 %v3357, -0.28449672
        %v3362 = vmul.f32 %v3358, %v3331
        %v3363 = vmul.f32 %v3359, %v3333
        %v3364 = vmul.f32 %v3360, %v3335
        %v3365 = vmul.f32 %v3361, %v3337
        %v3366 = vadd.f32 %v3362, 0.2548296
        %v3367 = vadd.f32 %v3363, 0.2548296
        %v3368 = vadd.f32 %v3364, 0.2548296
        %v3369 = vadd.f32 %v3365, 0.2548296
        %v3370 = vmul.f32 %v3366, %v3331
        %v3371 = vmul.f32 %v3367, %v3333
        %v3372 = vmul.f32 %v3368, %v3335
        %v3373 = vmul.f32 %v3369, %v3337
        %v3374 = vmul.f32 %v3318, %v3318
        %v3375 = vmul.f32 %v3319, %v3319
        %v3376 = vmul.f32 %v3320, %v3320
        %v3377 = vmul.f32 %v3321, %v3321
        %v3378 = vsub.f32 0.0, %v3374
        %v3379 = vsub.f32 0.0, %v3375
        %v3380 = vsub.f32 0.0, %v3376
        %v3381 = vsub.f32 0.0, %v3377
        %v3382 = vmul.f32 %v3378, 1.442695
        %v3383 = vpow.pop %v3382
        %v3384 = vmul.f32 %v3379, 1.442695
        %v3385 = vpow.pop %v3384
        %v3386 = vmul.f32 %v3380, 1.442695
        %v3387 = vpow.pop %v3386
        %v3388 = vmul.f32 %v3381, 1.442695
        %v3389 = vpow.pop %v3388
        %v3390 = vmul.f32 %v3370, %v3383
        %v3391 = vmul.f32 %v3371, %v3385
        %v3392 = vmul.f32 %v3372, %v3387
        %v3393 = vmul.f32 %v3373, %v3389
        %v3394 = vsub.f32 1.0, %v3390
        %v3395 = vsub.f32 1.0, %v3391
        %v3396 = vsub.f32 1.0, %v3392
        %v3397 = vsub.f32 1.0, %v3393
        %vm3398 = vcmp.ge.f32.partialorder %v3314, 0.0
        %vm3399 = vcmp.ge.f32.partialorder %v3315, 0.0
        %vm3400 = vcmp.ge.f32.partialorder %v3316, 0.0
        %vm3401 = vcmp.ge.f32.partialorder %v3317, 0.0
        %v3402 = vsub.f32 0.0, %v3394
        %v3403 = vsub.f32 0.0, %v3395
        %v3404 = vsub.f32 0.0, %v3396
        %v3405 = vsub.f32 0.0, %v3397
        %v3406 = vsel %vm3398, %v3394, %v3402
        %v3407 = vsel %vm3399, %v3395, %v3403
        %v3408 = vsel %vm3400, %v3396, %v3404
        %v3409 = vsel %vm3401, %v3397, %v3405
        %v3410 = vadd.f32 %v3406, 1.0
        %v3411 = vadd.f32 %v3407, 1.0
        %v3412 = vadd.f32 %v3408, 1.0
        %v3413 = vadd.f32 %v3409, 1.0
        %v3414 = vmul.f32 %v3310, %v3410
        %v3415 = vmul.f32 %v3311, %v3411
        %v3416 = vmul.f32 %v3312, %v3412
        %v3417 = vmul.f32 %v3313, %v3413
        %v3418 = vpack.c.bf16 %v3416, %v3414
        %v3419 = vpack.c.bf16 %v3417, %v3415
        %v3420 = vld [vmem:[%s15] sm:$0xf]
        %v3421 = vld [vmem:[%s15 + $0x4] sm:$0xf]
        %v3422 = vld [vmem:[%s15 + $0x8] sm:$0xf]
        %v3423 = vld [vmem:[%s15 + $0xc] sm:$0xf]
        %v3424 = vld [vmem:[%s15 + $0x10] sm:$0xf]
        %v3425 = vld [vmem:[%s15 + $0x14] sm:$0xf]
        %v3426 = vld [vmem:[%s15 + $0x18] sm:$0xf]
        %v3427 = vld [vmem:[%s15 + $0x1c] sm:$0xf]
        %v3428 = vld [vmem:[%s15 + $0x20] sm:$0xf]
        %v3429 = vld [vmem:[%s15 + $0x24] sm:$0xf]
        %v3430 = vld [vmem:[%s15 + $0x28] sm:$0xf]
        %v3431 = vld [vmem:[%s15 + $0x2c] sm:$0xf]
        %v3432 = vld [vmem:[%s15 + $0x30] sm:$0xf]
        %v3433 = vld [vmem:[%s15 + $0x34] sm:$0xf]
        %v3434 = vld [vmem:[%s15 + $0x38] sm:$0xf]
        %v3435 = vld [vmem:[%s15 + $0x3c] sm:$0xf]
        %v3436 = vld [vmem:[%s15 + $0x40] sm:$0xf]
        %v3437 = vld [vmem:[%s15 + $0x44] sm:$0xf]
        %v3438 = vld [vmem:[%s15 + $0x48] sm:$0xf]
        %v3439 = vld [vmem:[%s15 + $0x4c] sm:$0xf]
        %v3440 = vld [vmem:[%s15 + $0x50] sm:$0xf]
        %v3441 = vld [vmem:[%s15 + $0x54] sm:$0xf]
        %v3442 = vld [vmem:[%s15 + $0x58] sm:$0xf]
        %v3443 = vld [vmem:[%s15 + $0x5c] sm:$0xf]
        %v3444 = vld [vmem:[%s15 + $0x60] sm:$0xf]
        %v3445 = vld [vmem:[%s15 + $0x64] sm:$0xf]
        %v3446 = vld [vmem:[%s15 + $0x68] sm:$0xf]
        %v3447 = vld [vmem:[%s15 + $0x6c] sm:$0xf]
        %v3448 = vld [vmem:[%s15 + $0x70] sm:$0xf]
        %v3449 = vld [vmem:[%s15 + $0x74] sm:$0xf]
        %v3450 = vld [vmem:[%s15 + $0x78] sm:$0xf]
        %v3451 = vld [vmem:[%s15 + $0x7c] sm:$0xf]
        %v3484 = vunpack.c.l.b16 %v3420
        %v3485 = vunpack.c.l.b16 %v3421
        %v3486 = vunpack.c.l.b16 %v3422
        %v3487 = vunpack.c.l.b16 %v3423
        %v3488 = vunpack.c.l.b16 %v3424
        %v3489 = vunpack.c.l.b16 %v3425
        %v3490 = vunpack.c.l.b16 %v3426
        %v3491 = vunpack.c.l.b16 %v3427
        %v3492 = vunpack.c.l.b16 %v3428
        %v3493 = vunpack.c.l.b16 %v3429
        %v3494 = vunpack.c.l.b16 %v3430
        %v3495 = vunpack.c.l.b16 %v3431
        %v3496 = vunpack.c.l.b16 %v3432
        %v3497 = vunpack.c.l.b16 %v3433
        %v3498 = vunpack.c.l.b16 %v3434
        %v3499 = vunpack.c.l.b16 %v3435
        %v3500 = vunpack.c.l.b16 %v3436
        %v3501 = vunpack.c.l.b16 %v3437
        %v3502 = vunpack.c.l.b16 %v3438
        %v3503 = vunpack.c.l.b16 %v3439
        %v3504 = vunpack.c.l.b16 %v3440
        %v3505 = vunpack.c.l.b16 %v3441
        %v3506 = vunpack.c.l.b16 %v3442
        %v3507 = vunpack.c.l.b16 %v3443
        %v3508 = vunpack.c.l.b16 %v3444
        %v3509 = vunpack.c.l.b16 %v3445
        %v3510 = vunpack.c.l.b16 %v3446
        %v3511 = vunpack.c.l.b16 %v3447
        %v3512 = vunpack.c.l.b16 %v3448
        %v3513 = vunpack.c.l.b16 %v3449
        %v3514 = vunpack.c.l.b16 %v3450
        %v3515 = vunpack.c.l.b16 %v3451
        %v3516 = vpack.c.b16 %v3485, %v3484
        %v3517 = vpack.c.b16 %v3487, %v3486
        %v3518 = vpack.c.b16 %v3489, %v3488
        %v3519 = vpack.c.b16 %v3491, %v3490
        %v3520 = vpack.c.b16 %v3493, %v3492
        %v3521 = vpack.c.b16 %v3495, %v3494
        %v3522 = vpack.c.b16 %v3497, %v3496
        %v3523 = vpack.c.b16 %v3499, %v3498
        %v3524 = vpack.c.b16 %v3501, %v3500
        %v3525 = vpack.c.b16 %v3503, %v3502
        %v3526 = vpack.c.b16 %v3505, %v3504
        %v3527 = vpack.c.b16 %v3507, %v3506
        %v3528 = vpack.c.b16 %v3509, %v3508
        %v3529 = vpack.c.b16 %v3511, %v3510
        %v3530 = vpack.c.b16 %v3513, %v3512
        %v3531 = vpack.c.b16 %v3515, %v3514
        %3548 = vmatprep.subr.bf16.mxu0 0
        %3549 = vmatpush1.bf16.msra.mxu0 %v3516
        %3550 = vmatprep.subr.bf16.mxu0 0
        %3551 = vmatpush1.bf16.msra.mxu0 %v3517
        %3552 = vmatprep.subr.bf16.mxu0 0
        %3553 = vmatpush1.bf16.msra.mxu0 %v3518
        %3554 = vmatprep.subr.bf16.mxu0 0
        %3555 = vmatpush1.bf16.msra.mxu0 %v3519
        %3556 = vmatprep.subr.bf16.mxu0 0
        %3557 = vmatpush1.bf16.msra.mxu0 %v3520
        %3558 = vmatprep.subr.bf16.mxu0 0
        %3559 = vmatpush1.bf16.msra.mxu0 %v3521
        %3560 = vmatprep.subr.bf16.mxu0 0
        %3561 = vmatpush1.bf16.msra.mxu0 %v3522
        %3562 = vmatprep.subr.bf16.mxu0 0
        %3563 = vmatpush1.bf16.msra.mxu0 %v3523
        %3564 = vmatprep.subr.bf16.mxu0 0
        %3565 = vmatpush1.bf16.msra.mxu0 %v3524
        %3566 = vmatprep.subr.bf16.mxu0 0
        %3567 = vmatpush1.bf16.msra.mxu0 %v3525
        %3568 = vmatprep.subr.bf16.mxu0 0
        %3569 = vmatpush1.bf16.msra.mxu0 %v3526
        %3570 = vmatprep.subr.bf16.mxu0 0
        %3571 = vmatpush1.bf16.msra.mxu0 %v3527
        %3572 = vmatprep.subr.bf16.mxu0 0
        %3573 = vmatpush1.bf16.msra.mxu0 %v3528
        %3574 = vmatprep.subr.bf16.mxu0 0
        %3575 = vmatpush1.bf16.msra.mxu0 %v3529
        %3576 = vmatprep.subr.bf16.mxu0 0
        %3577 = vmatpush1.bf16.msra.mxu0 %v3530
        %3578 = vmatprep.subr.bf16.mxu0 0
        %3579 = vmatpush1.bf16.msra.mxu0 %v3531
        %3580 = vmatprep.mubr.bf16.mxu0 %v3419
        %3581 = vmatmul.mubr.bf16.gmra.mrb[0].mxu0 %v3418
        %v3582 = vpop.f32.mrb[0].mxu0
        %v3583 = vadd.f32 0.0, %v3582
        %v3584 = vpop.f32.mrb[0].mxu0
        %v3585 = vpop.f32.mrb[0].mxu0
        %v3586 = vadd.f32 0.0, %v3585
        %v3587 = vpop.f32.mrb[0].mxu0
        %3588 = vdwg.mxu0
        %v3589 = vadd.f32 %v3114, %v3583
        %v3590 = vadd.f32 %v3115, %v3586
        %v3591 = vld [vmem:[%s16] sm:$0x1]
        %v3593 = vlaneseq
        %v3594 = vshrl.u32 %v3593, 7
        %v3595 = vsub.s32 0, %v3594
        %v3596 = vrot.slane %v3591, %v3595
        %v3598 = vadd.f32 %v3589, %v3596
        %v3599 = vadd.f32 %v3590, %v3596
        %v3600 = vsel %vm666, %v3599, 0.0
        %v3601 = vadd.f32 %v3598, %v3600
        %v3602 = vrot.slane %v3601, 4
        %v3603 = vadd.f32 %v3601, %v3602
        %v3604 = vrot.slane %v3603, 2
        %v3605 = vadd.f32 %v3603, %v3604
        %v3606 = vrot.slane %v3605, 1
        %v3607 = vadd.f32 %v3605, %v3606
        %v3608 = vmul.f32 %v3607, 0.11111111
        %3609 = vst [vmem:[%s640] sm:$0x1] %v3608
        %v3610 = vpack.c.bf16 %v3608, %v3608
        %v3611 = vld [vmem:[%s17] sm:$0xf]
        %v3612 = vld [vmem:[%s17 + $0x4] sm:$0xf]
        %v3613 = vld [vmem:[%s17 + $0x8] sm:$0xf]
        %v3614 = vld [vmem:[%s17 + $0xc] sm:$0xf]
        %v3615 = vld [vmem:[%s17 + $0x10] sm:$0xf]
        %v3616 = vld [vmem:[%s17 + $0x14] sm:$0xf]
        %v3617 = vld [vmem:[%s17 + $0x18] sm:$0xf]
        %v3618 = vld [vmem:[%s17 + $0x1c] sm:$0xf]
        %v3619 = vld [vmem:[%s17 + $0x20] sm:$0xf]
        %v3620 = vld [vmem:[%s17 + $0x24] sm:$0xf]
        %v3621 = vld [vmem:[%s17 + $0x28] sm:$0xf]
        %v3622 = vld [vmem:[%s17 + $0x2c] sm:$0xf]
        %v3623 = vld [vmem:[%s17 + $0x30] sm:$0xf]
        %v3624 = vld [vmem:[%s17 + $0x34] sm:$0xf]
        %v3625 = vld [vmem:[%s17 + $0x38] sm:$0xf]
        %v3626 = vld [vmem:[%s17 + $0x3c] sm:$0xf]
        %v3627 = vld [vmem:[%s18] sm:$0x1]
        %v3644 = vunpack.c.l.b16 %v3611
        %v3645 = vunpack.c.l.b16 %v3612
        %v3646 = vunpack.c.l.b16 %v3613
        %v3647 = vunpack.c.l.b16 %v3614
        %v3648 = vunpack.c.l.b16 %v3615
        %v3649 = vunpack.c.l.b16 %v3616
        %v3650 = vunpack.c.l.b16 %v3617
        %v3651 = vunpack.c.l.b16 %v3618
        %v3652 = vunpack.c.l.b16 %v3619
        %v3653 = vunpack.c.l.b16 %v3620
        %v3654 = vunpack.c.l.b16 %v3621
        %v3655 = vunpack.c.l.b16 %v3622
        %v3656 = vunpack.c.l.b16 %v3623
        %v3657 = vunpack.c.l.b16 %v3624
        %v3658 = vunpack.c.l.b16 %v3625
        %v3659 = vunpack.c.l.b16 %v3626
        %v3660 = vpack.c.b16 %v3645, %v3644
        %v3661 = vpack.c.b16 %v3647, %v3646
        %v3662 = vpack.c.b16 %v3649, %v3648
        %v3663 = vpack.c.b16 %v3651, %v3650
        %v3664 = vpack.c.b16 %v3653, %v3652
        %v3665 = vpack.c.b16 %v3655, %v3654
        %v3666 = vpack.c.b16 %v3657, %v3656
        %v3667 = vpack.c.b16 %v3659, %v3658
        %3676 = vmatprep.subr.bf16.mxu0 0
        %3677 = vmatpush1.bf16.msra.mxu0 %v3660
        %3678 = vmatprep.subr.bf16.mxu0 0
        %3679 = vmatpush1.bf16.msra.mxu0 %v3661
        %3680 = vmatprep.subr.bf16.mxu0 0
        %3681 = vmatpush1.bf16.msra.mxu0 %v3662
        %3682 = vmatprep.subr.bf16.mxu0 0
        %3683 = vmatpush1.bf16.msra.mxu0 %v3663
        %3684 = vmatprep.subr.bf16.mxu0 0
        %3685 = vmatpush1.bf16.msra.mxu0 %v3664
        %3686 = vmatprep.subr.bf16.mxu0 0
        %3687 = vmatpush1.bf16.msra.mxu0 %v3665
        %3688 = vmatprep.subr.bf16.mxu0 0
        %3689 = vmatpush1.bf16.msra.mxu0 %v3666
        %3690 = vmatprep.subr.bf16.mxu0 0
        %3691 = vmatpush1.bf16.msra.mxu0 %v3667
        %3692 = vmatprep.subr.bf16.mxu0 0
        %3693 = vmatpush1.bf16.msra.mxu0 0
        %3694 = vmatprep.subr.bf16.mxu0 0
        %3695 = vmatpush1.bf16.msra.mxu0 0
        %3696 = vmatprep.subr.bf16.mxu0 0
        %3697 = vmatpush1.bf16.msra.mxu0 0
        %3698 = vmatprep.subr.bf16.mxu0 0
        %3699 = vmatpush1.bf16.msra.mxu0 0
        %3700 = vmatprep.subr.bf16.mxu0 0
        %3701 = vmatpush1.bf16.msra.mxu0 0
        %3702 = vmatprep.subr.bf16.mxu0 0
        %3703 = vmatpush1.bf16.msra.mxu0 0
        %3704 = vmatprep.subr.bf16.mxu0 0
        %3705 = vmatpush1.bf16.msra.mxu0 0
        %3706 = vmatprep.subr.bf16.mxu0 0
        %3707 = vmatpush1.bf16.msra.mxu0 0
        %3708 = vmatprep.mubr.bf16.mxu0 0
        %3709 = vmatmul.mubr.bf16.gmra.mrb[0].mxu0 %v3610
        %v3710 = vpop.f32.mrb[0].mxu0
        %v3711 = vadd.f32 %v3627, %v3710
        %v3712 = vpop.f32.mrb[0].mxu0
        %v3713 = vpop.f32.mrb[0].mxu0
        %v3714 = vpop.f32.mrb[0].mxu0
        %3715 = vdwg.mxu0
        %3716 = vst [vmem:[%s646] sm:$0x1] %v3711
        %s3717 = sand.u32 %s455, 1
        %s3718 = scalar_lea.sflag [#allocation4], %s3717
        %s3719 = sand.u32 %s455, 1
        %s3720 = scalar_lea.vmem [#allocation3], %s3719
        %s3721 = sand.u32 %s481, 1
        %s3722 = scalar_lea.sflag [#allocation6], %s3721
        %s3723 = sand.u32 %s481, 1
        %s3724 = scalar_lea.vmem [#allocation5], %s3723
        // Predicated region
        $region97: #{mmt_forward.3} parent=95 // pred_check
          %p3725 = pneg %p465
        $region98: #{mmt_forward.3} parent=95 // pred_check_branch
          %3727 = sbr.rel (%p3725) target = $region100
        $region99: #{mmt_forward.3} parent=95 // pred_region
          %s3729 = ssub.s32 16, 16
          %3730 = vsyncadd %s3718, %s3729
          %s3731 = smul.addr %s38, 16
          %s3732 = scalar_lea.hbm %s19, %s3731
          %s3734 = sshll.u32 %s3720, 4
          %s3735 = int_to_ptr.vmem [resolvable:$true] %s3734
          %3737 = dma.vmem_to_hbm [thread:$0]  %s3735, 16, %s3732, %s3718
        $region100: #{mmt_forward.3} parent=95 // pred_fallthru
          _
        // Predicated region
        $region101: #{mmt_forward.3} parent=95 // pred_check
          %p3738 = pneg %p491
        $region102: #{mmt_forward.3} parent=95 // pred_check_branch
          %3740 = sbr.rel (%p3738) target = $region104
        $region103: #{mmt_forward.3} parent=95 // pred_region
          %s3742 = ssub.s32 16, 16
          %3743 = vsyncadd %s3722, %s3742
          %s3744 = smul.addr %s38, 16
          %s3745 = scalar_lea.hbm %s20, %s3744
          %s3747 = sshll.u32 %s3724, 4
          %s3748 = int_to_ptr.vmem [resolvable:$true] %s3747
          %3750 = dma.vmem_to_hbm [thread:$0]  %s3748, 16, %s3745, %s3722
        $region104: #{mmt_forward.3} parent=95 // pred_fallthru
          _
      $region96: #{mmt_forward.3} parent=5 // pred_fallthru
        _
      %p3751 = scmp.le.s32.totalorder 2, %s33
      // Predicated region
      $region105: #{mmt_forward.3} parent=5 // pred_check
        %p3752 = pneg %p3751
      $region106: #{mmt_forward.3} parent=5 // pred_check_branch
        %3754 = sbr.rel (%p3752) target = $region108
      $region107: #{mmt_forward.3} parent=5 // pred_region
        %s3755 = ssub.s32 %s33, 2
        // Predicated region
        $region109: #{mmt_forward.3} parent=107 // pred_check
          %p3756 = pneg %p471
        $region110: #{mmt_forward.3} parent=107 // pred_check_branch
          %3758 = sbr.rel (%p3756) target = $region112
        $region111: #{mmt_forward.3} parent=107 // pred_region
          %s3759 = sand.u32 %s456, 1
          %s3760 = scalar_lea.sflag [#allocation4], %s3759
          %s3761 = sand.u32 %s456, 1
          %s3762 = scalar_lea.vmem [#allocation3], %s3761
          %3763 = dma.done %s3760, 16
        $region112: #{mmt_forward.3} parent=107 // pred_fallthru
          _
        // Predicated region
        $region113: #{mmt_forward.3} parent=107 // pred_check
          %p3764 = pneg %p497
        $region114: #{mmt_forward.3} parent=107 // pred_check_branch
          %3766 = sbr.rel (%p3764) target = $region116
        $region115: #{mmt_forward.3} parent=107 // pred_region
          %s3767 = sand.u32 %s482, 1
          %s3768 = scalar_lea.sflag [#allocation6], %s3767
          %s3769 = sand.u32 %s482, 1
          %s3770 = scalar_lea.vmem [#allocation5], %s3769
          %3771 = dma.done %s3768, 16
        $region116: #{mmt_forward.3} parent=107 // pred_fallthru
          _
      $region108: #{mmt_forward.3} parent=5 // pred_fallthru
        _
    $region6: #{mmt_forward.3} parent=1 // loop_footer
      %s37 = sadd.s32 1, %s33
    $region7: #{mmt_forward.3} parent=1 // loop_footer_branch
      %32 = sbr.rel target = $region3
    $region8: #{mmt_forward.3} parent=1 // loop_exit
      _
    %3772 = vsyncpa [#allocation4], 1
    %s3773 = scalar_lea.sflag [#allocation4], 1
    %3774 = vsyncpa %s3773, 1
    %3775 = vsyncpa [#allocation6], 1
    %s3776 = scalar_lea.sflag [#allocation6], 1
    %3777 = vsyncpa %s3776, 1

// kernel: mmt_forward.2
$region0: #{mmt_forward.2}
  #allocation0 [shape = 'u32[]', space=smem, size = 0x4, offset = 0x4, fixed_abs, tag = 'smem constant byte address 0x4 - core index']
  #allocation1 [shape = 'u32[144,128]{1,0:T(1,128)}', space=vmem, size = 0x12000, scoped, tag = 'internal scratch']
  #allocation2 [shape = 'f32[6,128]{1,0:T(8,128)}', space=vmem, size = 0x1000, scoped, tag = 'scratch operand']
  %s0 = inlined_call_operand.smem [shape: u32[40], index: -1, kind: input, shape index: {}]
  %s1 = sld [smem:[%s0]]
  %s2 = scalar_lea.smem %s0, 1
  %s3 = sld [smem:[%s2]]
  %s4 = scalar_lea.smem %s0, 2
  %s5 = sld [smem:[%s4]]
  %s6 = scalar_lea.smem %s0, 3
  %s7 = sld [smem:[%s6]]
  %s8 = scalar_lea.smem %s0, 4
  %s9 = sld [smem:[%s8]]
  %s10 = scalar_lea.smem %s0, 5
  %s11 = sld [smem:[%s10]]
  %s12 = scalar_lea.smem %s0, 6
  %s13 = sld [smem:[%s12]]
  %s14 = scalar_lea.smem %s0, 7
  %s15 = sld [smem:[%s14]]
  %s16 = scalar_lea.smem %s0, 8
  %s17 = sld [smem:[%s16]]
  %s18 = scalar_lea.smem %s0, 9
  %s19 = sld [smem:[%s18]]
  %s20 = scalar_lea.smem %s0, 10
  %s21 = sld [smem:[%s20]]
  %s22 = scalar_lea.smem %s0, 11
  %s23 = sld [smem:[%s22]]
  %s24 = scalar_lea.smem %s0, 12
  %s25 = sld [smem:[%s24]]
  %s26 = scalar_lea.smem %s0, 13
  %s27 = sld [smem:[%s26]]
  %s28 = scalar_lea.smem %s0, 14
  %s29 = sld [smem:[%s28]]
  %s30 = scalar_lea.smem %s0, 15
  %s31 = sld [smem:[%s30]]
  %s32 = scalar_lea.smem %s0, 16
  %s33 = sld [smem:[%s32]]
  %s34 = scalar_lea.smem %s0, 17
  %s35 = sld [smem:[%s34]]
  %s36 = scalar_lea.smem %s0, 18
  %s37 = sld [smem:[%s36]]
  %s38 = scalar_lea.smem %s0, 19
  %s39 = sld [smem:[%s38]]
  %s40 = scalar_lea.smem %s0, 20
  %s41 = sld [smem:[%s40]]
  %s42 = scalar_lea.smem %s0, 21
  %s43 = sld [smem:[%s42]]
  %s44 = scalar_lea.smem %s0, 22
  %s45 = sld [smem:[%s44]]
  %s46 = scalar_lea.smem %s0, 23
  %s47 = sld [smem:[%s46]]
  %s48 = scalar_lea.smem %s0, 24
  %s49 = sld [smem:[%s48]]
  %s50 = scalar_lea.smem %s0, 25
  %s51 = sld [smem:[%s50]]
  %s52 = scalar_lea.smem %s0, 26
  %s53 = sld [smem:[%s52]]
  %s54 = scalar_lea.smem %s0, 27
  %s55 = sld [smem:[%s54]]
  %s56 = scalar_lea.smem %s0, 28
  %s57 = sld [smem:[%s56]]
  %s58 = scalar_lea.smem %s0, 29
  %s59 = sld [smem:[%s58]]
  %s60 = scalar_lea.smem %s0, 30
  %s61 = sld [smem:[%s60]]
  %s62 = scalar_lea.smem %s0, 31
  %s63 = sld [smem:[%s62]]
  %s64 = scalar_lea.smem %s0, 32
  %s65 = sld [smem:[%s64]]
  %s66 = scalar_lea.smem %s0, 33
  %s67 = sld [smem:[%s66]]
  %s68 = scalar_lea.smem %s0, 34
  %s69 = sld [smem:[%s68]]
  %s70 = scalar_lea.smem %s0, 35
  %s71 = sld [smem:[%s70]]
  %s72 = scalar_lea.smem %s0, 36
  %s73 = sld [smem:[%s72]]
  %s74 = scalar_lea.smem %s0, 37
  %s75 = sld [smem:[%s74]]
  %s76 = scalar_lea.smem %s0, 38
  %s77 = sld [smem:[%s76]]
  %s78 = scalar_lea.smem %s0, 39
  %s79 = sld [smem:[%s78]]
  %80 = xla_tuple %s59, %s61, %s63, %s65, %s67, %s69, %s71, %s73, %s75, %s77, %s79
  %s81 = sld [smem:[#allocation0]]
  $region329: #{mmt_forward.2} parent=0
    _
  %s83 = ssub.s32 1, %s81
  %s84 = scalar_select 0, %s83, %s81
  $region1: #{mmt_forward.2} parent=0
    #allocation3 [shape = 'u8[49152]{0}', space=vmem, size = 0xc000, scoped, tag = 'input window, operand 2']
    #allocation4 [shape = 's32[2]{0}', space=sflag, size = 0x8, scoped, tag = 'scoped memory for mmt_forward.2']
    #allocation5 [shape = 's32[2]{0}', space=sflag, size = 0x8, scoped, tag = 'scoped memory for mmt_forward.2']
    #allocation6 [shape = 'u8[393216]{0}', space=vmem, size = 0x60000, scoped, tag = 'input window, operand 3, single buffered']
    #allocation7 [shape = 's32[1]{0}', space=sflag, size = 0x4, scoped, tag = 'scoped memory for mmt_forward.2']
    #allocation8 [shape = 'u8[1024]{0}', space=vmem, size = 0x400, scoped, tag = 'input window, operand 4, single buffered']
    #allocation9 [shape = 'u8[1024]{0}', space=vmem, size = 0x400, scoped, tag = 'input window, operand 6, single buffered']
    #allocation10 [shape = 's32[1]{0}', space=sflag, size = 0x4, scoped, tag = 'scoped memory for mmt_forward.2']
    #allocation11 [shape = 'u8[393216]{0}', space=vmem, size = 0x60000, scoped, tag = 'input window, operand 7, single buffered']
    #allocation12 [shape = 'u8[1024]{0}', space=vmem, size = 0x400, scoped, tag = 'input window, operand 8, single buffered']
    #allocation13 [shape = 's32[1]{0}', space=sflag, size = 0x4, scoped, tag = 'scoped memory for mmt_forward.2']
    #allocation14 [shape = 'u8[1024]{0}', space=vmem, size = 0x400, scoped, tag = 'input window, operand 10, single buffered']
    #allocation15 [shape = 'u8[131072]{0}', space=vmem, size = 0x20000, scoped, tag = 'input window, operand 11, single buffered']
    #allocation16 [shape = 's32[1]{0}', space=sflag, size = 0x4, scoped, tag = 'scoped memory for mmt_forward.2']
    #allocation17 [shape = 'u8[1024]{0}', space=vmem, size = 0x400, scoped, tag = 'input window, operand 12, single buffered']
    #allocation18 [shape = 'u8[131072]{0}', space=vmem, size = 0x20000, scoped, tag = 'input window, operand 13, single buffered']
    #allocation19 [shape = 's32[1]{0}', space=sflag, size = 0x4, scoped, tag = 'scoped memory for mmt_forward.2']
    #allocation20 [shape = 'u8[1024]{0}', space=vmem, size = 0x400, scoped, tag = 'input window, operand 14, single buffered']
    #allocation21 [shape = 'u8[32768]{0}', space=vmem, size = 0x8000, scoped, tag = 'input window, operand 15, single buffered']
    #allocation22 [shape = 's32[1]{0}', space=sflag, size = 0x4, scoped, tag = 'scoped memory for mmt_forward.2']
    #allocation23 [shape = 'u8[512]{0}', space=vmem, size = 0x400, scoped, tag = 'input window, operand 16, single buffered']
    #allocation24 [shape = 'u8[32768]{0}', space=vmem, size = 0x8000, scoped, tag = 'input window, operand 17, single buffered']
    #allocation25 [shape = 's32[1]{0}', space=sflag, size = 0x4, scoped, tag = 'scoped memory for mmt_forward.2']
    #allocation26 [shape = 'u8[512]{0}', space=vmem, size = 0x400, scoped, tag = 'input window, operand 18, single buffered']
    #allocation27 [shape = 'u8[32768]{0}', space=vmem, size = 0x8000, scoped, tag = 'input window, operand 19, single buffered']
    #allocation28 [shape = 's32[1]{0}', space=sflag, size = 0x4, scoped, tag = 'scoped memory for mmt_forward.2']
    #allocation29 [shape = 'u8[512]{0}', space=vmem, size = 0x400, scoped, tag = 'input window, operand 20, single buffered']
    #allocation30 [shape = 'u8[32768]{0}', space=vmem, size = 0x8000, scoped, tag = 'input window, operand 21, single buffered']
    #allocation31 [shape = 's32[1]{0}', space=sflag, size = 0x4, scoped, tag = 'scoped memory for mmt_forward.2']
    #allocation32 [shape = 'u8[512]{0}', space=vmem, size = 0x400, scoped, tag = 'input window, operand 22, single buffered']
    #allocation33 [shape = 'u8[98304]{0}', space=vmem, size = 0x18000, scoped, tag = 'input window, operand 23, single buffered']
    #allocation34 [shape = 's32[1]{0}', space=sflag, size = 0x4, scoped, tag = 'scoped memory for mmt_forward.2']
    #allocation35 [shape = 'u8[512]{0}', space=vmem, size = 0x400, scoped, tag = 'input window, operand 24, single buffered']
    #allocation36 [shape = 'u8[32768]{0}', space=vmem, size = 0x8000, scoped, tag = 'input window, operand 25, single buffered']
    #allocation37 [shape = 's32[1]{0}', space=sflag, size = 0x4, scoped, tag = 'scoped memory for mmt_forward.2']
    #allocation38 [shape = 'u8[512]{0}', space=vmem, size = 0x400, scoped, tag = 'input window, operand 26, single buffered']
    #allocation39 [shape = 'u8[32768]{0}', space=vmem, size = 0x8000, scoped, tag = 'input window, operand 27, single buffered']
    #allocation40 [shape = 's32[1]{0}', space=sflag, size = 0x4, scoped, tag = 'scoped memory for mmt_forward.2']
    #allocation41 [shape = 'u8[512]{0}', space=vmem, size = 0x400, scoped, tag = 'input window, operand 28, single buffered']
    #allocation42 [shape = 'u8[16384]{0}', space=vmem, size = 0x4000, scoped, tag = 'output window, operand 0']
    #allocation43 [shape = 'u8[16384]{0}', space=vmem, size = 0x4000, scoped, tag = 'output window, operand 1']
    #allocation44 [shape = 's32[2]{0}', space=sflag, size = 0x8, scoped, tag = 'scoped memory for mmt_forward.2']
    #allocation45 [shape = 'u8[16384]{0}', space=vmem, size = 0x4000, scoped, tag = 'output window, operand 2']
    #allocation46 [shape = 'u8[8192]{0}', space=vmem, size = 0x2000, scoped, tag = 'output window, operand 6']
    #allocation47 [shape = 's32[2]{0}', space=sflag, size = 0x8, scoped, tag = 'scoped memory for mmt_forward.2']
    #allocation48 [shape = 'u8[8192]{0}', space=vmem, size = 0x2000, scoped, tag = 'output window, operand 7']
    #allocation49 [shape = 'u8[8192]{0}', space=vmem, size = 0x2000, scoped, tag = 'output window, operand 8']
    #allocation50 [shape = 's32[2]{0}', space=sflag, size = 0x8, scoped, tag = 'scoped memory for mmt_forward.2']
    %85 = vsyncpa [#allocation4], 0
    %s86 = scalar_lea.sflag [#allocation4], 1
    %87 = vsyncpa %s86, 0
    %88 = vsyncpa [#allocation7], 0
    %89 = vsyncpa [#allocation10], 0
    %90 = vsyncpa [#allocation13], 0
    %91 = vsyncpa [#allocation16], 0
    %92 = vsyncpa [#allocation19], 0
    %93 = vsyncpa [#allocation22], 0
    %94 = vsyncpa [#allocation25], 0
    %95 = vsyncpa [#allocation28], 0
    %96 = vsyncpa [#allocation31], 0
    %97 = vsyncpa [#allocation34], 0
    %98 = vsyncpa [#allocation37], 0
    %99 = vsyncpa [#allocation40], 0
    %100 = vsyncpa [#allocation5], 0
    %s101 = scalar_lea.sflag [#allocation5], 1
    %102 = vsyncpa %s101, 0
    %103 = vsyncpa [#allocation44], 0
    %s104 = scalar_lea.sflag [#allocation44], 1
    %105 = vsyncpa %s104, 0
    %106 = vsyncpa [#allocation47], 0
    %s107 = scalar_lea.sflag [#allocation47], 1
    %108 = vsyncpa %s107, 0
    %109 = vsyncpa [#allocation50], 0
    %s110 = scalar_lea.sflag [#allocation50], 1
    %111 = vsyncpa %s110, 0
    loop: start=0, step=1, limit=4
    $region2: #{mmt_forward.2} parent=1 // loop_pre_header
      _
    $region3: #{mmt_forward.2} parent=1 // loop_header
      %s113 = sphi 0, %s117
      %p114 = scmp.ge.s32.totalorder %s113, 4
      %s123 = sphi 0, %s125
      %s126 = sphi 0, %s123
      %s127 = sphi 0, %s126
      %s143 = sphi 0, %s127
      %s149 = sphi 0, %s151
      %s152 = sphi 0, %s149
      %s153 = sphi 0, %s152
      %s169 = sphi 0, %s153
      %s175 = sphi 0, %s177
      %s178 = sphi 0, %s175
      %s179 = sphi 0, %s178
      %s195 = sphi 0, %s179
      %s199 = sphi 0, %s199
      %s201 = sphi 0, %s199
      %s202 = sphi 0, %s201
      %s216 = sphi 0, %s202
      %s220 = sphi 0, %s220
      %s222 = sphi 0, %s220
      %s223 = sphi 0, %s222
      %s237 = sphi 0, %s223
      %s241 = sphi 0, %s241
      %s243 = sphi 0, %s241
      %s244 = sphi 0, %s243
      %s258 = sphi 0, %s244
      %s262 = sphi 0, %s262
      %s264 = sphi 0, %s262
      %s265 = sphi 0, %s264
      %s279 = sphi 0, %s265
      %s283 = sphi 0, %s283
      %s285 = sphi 0, %s283
      %s286 = sphi 0, %s285
      %s300 = sphi 0, %s286
      %s304 = sphi 0, %s304
      %s306 = sphi 0, %s304
      %s307 = sphi 0, %s306
      %s321 = sphi 0, %s307
      %s325 = sphi 0, %s325
      %s327 = sphi 0, %s325
      %s328 = sphi 0, %s327
      %s342 = sphi 0, %s328
      %s346 = sphi 0, %s346
      %s348 = sphi 0, %s346
      %s349 = sphi 0, %s348
      %s363 = sphi 0, %s349
      %s367 = sphi 0, %s367
      %s369 = sphi 0, %s367
      %s370 = sphi 0, %s369
      %s384 = sphi 0, %s370
      %s388 = sphi 0, %s388
      %s390 = sphi 0, %s388
      %s391 = sphi 0, %s390
      %s405 = sphi 0, %s391
      %s409 = sphi 0, %s409
      %s411 = sphi 0, %s409
      %s412 = sphi 0, %s411
      %s426 = sphi 0, %s412
      %s430 = sphi 0, %s430
      %s432 = sphi 0, %s430
      %s433 = sphi 0, %s432
      %s447 = sphi 0, %s433
      %s451 = sphi 0, %s451
      %s453 = sphi 0, %s451
      %s454 = sphi 0, %s453
      %s468 = sphi 0, %s454
      %s472 = sphi 0, %s472
      %s474 = sphi 0, %s472
      %s475 = sphi 0, %s474
      %s489 = sphi 0, %s475
      %s493 = sphi 0, %s493
      %s495 = sphi 0, %s493
      %s496 = sphi 0, %s495
      %s510 = sphi 0, %s496
      %s514 = sphi 0, %s514
      %s516 = sphi 0, %s514
      %s517 = sphi 0, %s516
      %s531 = sphi 0, %s517
      %s535 = sphi 0, %s535
      %s537 = sphi 0, %s535
      %s538 = sphi 0, %s537
      %s552 = sphi 0, %s538
      %s556 = sphi 0, %s556
      %s558 = sphi 0, %s556
      %s559 = sphi 0, %s558
      %s573 = sphi 0, %s559
      %s577 = sphi 0, %s577
      %s579 = sphi 0, %s577
      %s580 = sphi 0, %s579
      %s594 = sphi 0, %s580
      %s598 = sphi 0, %s598
      %s600 = sphi 0, %s598
      %s601 = sphi 0, %s600
      %s615 = sphi 0, %s601
      %s619 = sphi 0, %s619
      %s621 = sphi 0, %s619
      %s622 = sphi 0, %s621
      %s636 = sphi 0, %s622
      %s640 = sphi 0, %s640
      %s642 = sphi 0, %s640
      %s643 = sphi 0, %s642
      %s657 = sphi 0, %s643
      %s661 = sphi 0, %s661
      %s663 = sphi 0, %s661
      %s664 = sphi 0, %s663
      %s678 = sphi 0, %s664
      %s682 = sphi 0, %s682
      %s684 = sphi 0, %s682
      %s685 = sphi 0, %s684
      %s699 = sphi 0, %s685
      %s703 = sphi 0, %s703
      %s705 = sphi 0, %s703
      %s706 = sphi 0, %s705
      %s720 = sphi 0, %s706
      %s724 = sphi 0, %s724
      %s726 = sphi 0, %s724
      %s727 = sphi 0, %s726
      %s741 = sphi 0, %s727
      %s747 = sphi 0, %s749
      %s750 = sphi 0, %s747
      %s751 = sphi 0, %s750
      %s767 = sphi 0, %s751
      %s773 = sphi 0, %s775
      %s776 = sphi 0, %s773
      %s777 = sphi 0, %s776
      %s793 = sphi 0, %s777
      %s799 = sphi 0, %s801
      %s802 = sphi 0, %s799
      %s803 = sphi 0, %s802
      %s819 = sphi 0, %s803
      %s825 = sphi 0, %s827
      %s828 = sphi 0, %s825
      %s829 = sphi 0, %s828
      %s845 = sphi 0, %s829
      %s851 = sphi 0, %s853
      %s854 = sphi 0, %s851
      %s855 = sphi 0, %s854
      %s871 = sphi 0, %s855
      %s877 = sphi 0, %s879
      %s880 = sphi 0, %s877
      %s881 = sphi 0, %s880
      %s897 = sphi 0, %s881
      %s903 = sphi 0, %s905
      %s906 = sphi 0, %s903
      %s907 = sphi 0, %s906
      %s923 = sphi 0, %s907
      %s929 = sphi 0, %s931
      %s932 = sphi 0, %s929
      %s933 = sphi 0, %s932
      %s949 = sphi 0, %s933
      %s955 = sphi 0, %s957
      %s958 = sphi 0, %s955
      %s959 = sphi 0, %s958
      %s975 = sphi 0, %s959
      %s981 = sphi 0, %s983
      %s984 = sphi 0, %s981
      %s985 = sphi 0, %s984
      %s1001 = sphi 0, %s985
      %s1007 = sphi 0, %s1009
      %s1010 = sphi 0, %s1007
      %s1011 = sphi 0, %s1010
      %s1027 = sphi 0, %s1011
    $region4: #{mmt_forward.2} parent=1 // loop_header_branch
      %116 = sbr.rel (%p114) target = $region8
    $region5: #{mmt_forward.2} parent=1 // loop_body
      %s118 = ssub.s32 %s113, 1
      %s119 = ssub.s32 %s113, 2
      %s120 = sadd.s32 %s113, 1
      %s121 = ssub.s32 %s113, %s120
      %p122 = scmp.eq.s32.totalorder %s121, 0
      %s124 = sadd.s32 %s123, 1
      %s125 = scalar_select %p122, %s123, %s124
      %p128 = pneg %p122
      %p129 = scmp.eq.s32.totalorder %s113, 1
      %p130 = por %p128, %p129
      %p131 = scmp.ne.s32.totalorder %s123, %s126
      %p132 = scmp.eq.s32.totalorder %s113, 0
      %p133 = por %p131, %p132
      %p134 = scmp.ne.s32.totalorder %s123, %s126
      %p135 = scmp.eq.s32.totalorder %s118, 1
      %p136 = por %p134, %p135
      %p137 = scmp.ne.s32.totalorder %s126, %s127
      %p138 = scmp.eq.s32.totalorder %s118, 0
      %p139 = por %p137, %p138
      %p140 = scmp.ne.s32.totalorder %s126, %s127
      %p141 = scmp.eq.s32.totalorder %s119, 1
      %p142 = por %p140, %p141
      %p144 = scmp.ne.s32.totalorder %s127, %s143
      %p145 = scmp.eq.s32.totalorder %s119, 0
      %p146 = por %p144, %p145
      %s147 = ssub.s32 %s113, %s120
      %p148 = scmp.eq.s32.totalorder %s147, 0
      %s150 = sadd.s32 %s149, 1
      %s151 = scalar_select %p148, %s149, %s150
      %p154 = pneg %p148
      %p155 = scmp.eq.s32.totalorder %s113, 1
      %p156 = por %p154, %p155
      %p157 = scmp.ne.s32.totalorder %s149, %s152
      %p158 = scmp.eq.s32.totalorder %s113, 0
      %p159 = por %p157, %p158
      %p160 = scmp.ne.s32.totalorder %s149, %s152
      %p161 = scmp.eq.s32.totalorder %s118, 1
      %p162 = por %p160, %p161
      %p163 = scmp.ne.s32.totalorder %s152, %s153
      %p164 = scmp.eq.s32.totalorder %s118, 0
      %p165 = por %p163, %p164
      %p166 = scmp.ne.s32.totalorder %s152, %s153
      %p167 = scmp.eq.s32.totalorder %s119, 1
      %p168 = por %p166, %p167
      %p170 = scmp.ne.s32.totalorder %s153, %s169
      %p171 = scmp.eq.s32.totalorder %s119, 0
      %p172 = por %p170, %p171
      %s173 = ssub.s32 %s113, %s120
      %p174 = scmp.eq.s32.totalorder %s173, 0
      %s176 = sadd.s32 %s175, 1
      %s177 = scalar_select %p174, %s175, %s176
      %p180 = pneg %p174
      %p181 = scmp.eq.s32.totalorder %s113, 1
      %p182 = por %p180, %p181
      %p183 = scmp.ne.s32.totalorder %s175, %s178
      %p184 = scmp.eq.s32.totalorder %s113, 0
      %p185 = por %p183, %p184
      %p186 = scmp.ne.s32.totalorder %s175, %s178
      %p187 = scmp.eq.s32.totalorder %s118, 1
      %p188 = por %p186, %p187
      %p189 = scmp.ne.s32.totalorder %s178, %s179
      %p190 = scmp.eq.s32.totalorder %s118, 0
      %p191 = por %p189, %p190
      %p192 = scmp.ne.s32.totalorder %s178, %s179
      %p193 = scmp.eq.s32.totalorder %s119, 1
      %p194 = por %p192, %p193
      %p196 = scmp.ne.s32.totalorder %s179, %s195
      %p197 = scmp.eq.s32.totalorder %s119, 0
      %p198 = por %p196, %p197
      %s200 = sadd.s32 %s199, 1
      %p203 = scmp.eq.s32.totalorder %s113, 1
      %p204 = scmp.ne.s32.totalorder %s199, %s201
      %p205 = scmp.eq.s32.totalorder %s113, 0
      %p206 = por %p204, %p205
      %p207 = scmp.ne.s32.totalorder %s199, %s201
      %p208 = scmp.eq.s32.totalorder %s118, 1
      %p209 = por %p207, %p208
      %p210 = scmp.ne.s32.totalorder %s201, %s202
      %p211 = scmp.eq.s32.totalorder %s118, 0
      %p212 = por %p210, %p211
      %p213 = scmp.ne.s32.totalorder %s201, %s202
      %p214 = scmp.eq.s32.totalorder %s119, 1
      %p215 = por %p213, %p214
      %p217 = scmp.ne.s32.totalorder %s202, %s216
      %p218 = scmp.eq.s32.totalorder %s119, 0
      %p219 = por %p217, %p218
      %s221 = sadd.s32 %s220, 1
      %p224 = scmp.eq.s32.totalorder %s113, 1
      %p225 = scmp.ne.s32.totalorder %s220, %s222
      %p226 = scmp.eq.s32.totalorder %s113, 0
      %p227 = por %p225, %p226
      %p228 = scmp.ne.s32.totalorder %s220, %s222
      %p229 = scmp.eq.s32.totalorder %s118, 1
      %p230 = por %p228, %p229
      %p231 = scmp.ne.s32.totalorder %s222, %s223
      %p232 = scmp.eq.s32.totalorder %s118, 0
      %p233 = por %p231, %p232
      %p234 = scmp.ne.s32.totalorder %s222, %s223
      %p235 = scmp.eq.s32.totalorder %s119, 1
      %p236 = por %p234, %p235
      %p238 = scmp.ne.s32.totalorder %s223, %s237
      %p239 = scmp.eq.s32.totalorder %s119, 0
      %p240 = por %p238, %p239
      %s242 = sadd.s32 %s241, 1
      %p245 = scmp.eq.s32.totalorder %s113, 1
      %p246 = scmp.ne.s32.totalorder %s241, %s243
      %p247 = scmp.eq.s32.totalorder %s113, 0
      %p248 = por %p246, %p247
      %p249 = scmp.ne.s32.totalorder %s241, %s243
      %p250 = scmp.eq.s32.totalorder %s118, 1
      %p251 = por %p249, %p250
      %p252 = scmp.ne.s32.totalorder %s243, %s244
      %p253 = scmp.eq.s32.totalorder %s118, 0
      %p254 = por %p252, %p253
      %p255 = scmp.ne.s32.totalorder %s243, %s244
      %p256 = scmp.eq.s32.totalorder %s119, 1
      %p257 = por %p255, %p256
      %p259 = scmp.ne.s32.totalorder %s244, %s258
      %p260 = scmp.eq.s32.totalorder %s119, 0
      %p261 = por %p259, %p260
      %s263 = sadd.s32 %s262, 1
      %p266 = scmp.eq.s32.totalorder %s113, 1
      %p267 = scmp.ne.s32.totalorder %s262, %s264
      %p268 = scmp.eq.s32.totalorder %s113, 0
      %p269 = por %p267, %p268
      %p270 = scmp.ne.s32.totalorder %s262, %s264
      %p271 = scmp.eq.s32.totalorder %s118, 1
      %p272 = por %p270, %p271
      %p273 = scmp.ne.s32.totalorder %s264, %s265
      %p274 = scmp.eq.s32.totalorder %s118, 0
      %p275 = por %p273, %p274
      %p276 = scmp.ne.s32.totalorder %s264, %s265
      %p277 = scmp.eq.s32.totalorder %s119, 1
      %p278 = por %p276, %p277
      %p280 = scmp.ne.s32.totalorder %s265, %s279
      %p281 = scmp.eq.s32.totalorder %s119, 0
      %p282 = por %p280, %p281
      %s284 = sadd.s32 %s283, 1
      %p287 = scmp.eq.s32.totalorder %s113, 1
      %p288 = scmp.ne.s32.totalorder %s283, %s285
      %p289 = scmp.eq.s32.totalorder %s113, 0
      %p290 = por %p288, %p289
      %p291 = scmp.ne.s32.totalorder %s283, %s285
      %p292 = scmp.eq.s32.totalorder %s118, 1
      %p293 = por %p291, %p292
      %p294 = scmp.ne.s32.totalorder %s285, %s286
      %p295 = scmp.eq.s32.totalorder %s118, 0
      %p296 = por %p294, %p295
      %p297 = scmp.ne.s32.totalorder %s285, %s286
      %p298 = scmp.eq.s32.totalorder %s119, 1
      %p299 = por %p297, %p298
      %p301 = scmp.ne.s32.totalorder %s286, %s300
      %p302 = scmp.eq.s32.totalorder %s119, 0
      %p303 = por %p301, %p302
      %s305 = sadd.s32 %s304, 1
      %p308 = scmp.eq.s32.totalorder %s113, 1
      %p309 = scmp.ne.s32.totalorder %s304, %s306
      %p310 = scmp.eq.s32.totalorder %s113, 0
      %p311 = por %p309, %p310
      %p312 = scmp.ne.s32.totalorder %s304, %s306
      %p313 = scmp.eq.s32.totalorder %s118, 1
      %p314 = por %p312, %p313
      %p315 = scmp.ne.s32.totalorder %s306, %s307
      %p316 = scmp.eq.s32.totalorder %s118, 0
      %p317 = por %p315, %p316
      %p318 = scmp.ne.s32.totalorder %s306, %s307
      %p319 = scmp.eq.s32.totalorder %s119, 1
      %p320 = por %p318, %p319
      %p322 = scmp.ne.s32.totalorder %s307, %s321
      %p323 = scmp.eq.s32.totalorder %s119, 0
      %p324 = por %p322, %p323
      %s326 = sadd.s32 %s325, 1
      %p329 = scmp.eq.s32.totalorder %s113, 1
      %p330 = scmp.ne.s32.totalorder %s325, %s327
      %p331 = scmp.eq.s32.totalorder %s113, 0
      %p332 = por %p330, %p331
      %p333 = scmp.ne.s32.totalorder %s325, %s327
      %p334 = scmp.eq.s32.totalorder %s118, 1
      %p335 = por %p333, %p334
      %p336 = scmp.ne.s32.totalorder %s327, %s328
      %p337 = scmp.eq.s32.totalorder %s118, 0
      %p338 = por %p336, %p337
      %p339 = scmp.ne.s32.totalorder %s327, %s328
      %p340 = scmp.eq.s32.totalorder %s119, 1
      %p341 = por %p339, %p340
      %p343 = scmp.ne.s32.totalorder %s328, %s342
      %p344 = scmp.eq.s32.totalorder %s119, 0
      %p345 = por %p343, %p344
      %s347 = sadd.s32 %s346, 1
      %p350 = scmp.eq.s32.totalorder %s113, 1
      %p351 = scmp.ne.s32.totalorder %s346, %s348
      %p352 = scmp.eq.s32.totalorder %s113, 0
      %p353 = por %p351, %p352
      %p354 = scmp.ne.s32.totalorder %s346, %s348
      %p355 = scmp.eq.s32.totalorder %s118, 1
      %p356 = por %p354, %p355
      %p357 = scmp.ne.s32.totalorder %s348, %s349
      %p358 = scmp.eq.s32.totalorder %s118, 0
      %p359 = por %p357, %p358
      %p360 = scmp.ne.s32.totalorder %s348, %s349
      %p361 = scmp.eq.s32.totalorder %s119, 1
      %p362 = por %p360, %p361
      %p364 = scmp.ne.s32.totalorder %s349, %s363
      %p365 = scmp.eq.s32.totalorder %s119, 0
      %p366 = por %p364, %p365
      %s368 = sadd.s32 %s367, 1
      %p371 = scmp.eq.s32.totalorder %s113, 1
      %p372 = scmp.ne.s32.totalorder %s367, %s369
      %p373 = scmp.eq.s32.totalorder %s113, 0
      %p374 = por %p372, %p373
      %p375 = scmp.ne.s32.totalorder %s367, %s369
      %p376 = scmp.eq.s32.totalorder %s118, 1
      %p377 = por %p375, %p376
      %p378 = scmp.ne.s32.totalorder %s369, %s370
      %p379 = scmp.eq.s32.totalorder %s118, 0
      %p380 = por %p378, %p379
      %p381 = scmp.ne.s32.totalorder %s369, %s370
      %p382 = scmp.eq.s32.totalorder %s119, 1
      %p383 = por %p381, %p382
      %p385 = scmp.ne.s32.totalorder %s370, %s384
      %p386 = scmp.eq.s32.totalorder %s119, 0
      %p387 = por %p385, %p386
      %s389 = sadd.s32 %s388, 1
      %p392 = scmp.eq.s32.totalorder %s113, 1
      %p393 = scmp.ne.s32.totalorder %s388, %s390
      %p394 = scmp.eq.s32.totalorder %s113, 0
      %p395 = por %p393, %p394
      %p396 = scmp.ne.s32.totalorder %s388, %s390
      %p397 = scmp.eq.s32.totalorder %s118, 1
      %p398 = por %p396, %p397
      %p399 = scmp.ne.s32.totalorder %s390, %s391
      %p400 = scmp.eq.s32.totalorder %s118, 0
      %p401 = por %p399, %p400
      %p402 = scmp.ne.s32.totalorder %s390, %s391
      %p403 = scmp.eq.s32.totalorder %s119, 1
      %p404 = por %p402, %p403
      %p406 = scmp.ne.s32.totalorder %s391, %s405
      %p407 = scmp.eq.s32.totalorder %s119, 0
      %p408 = por %p406, %p407
      %s410 = sadd.s32 %s409, 1
      %p413 = scmp.eq.s32.totalorder %s113, 1
      %p414 = scmp.ne.s32.totalorder %s409, %s411
      %p415 = scmp.eq.s32.totalorder %s113, 0
      %p416 = por %p414, %p415
      %p417 = scmp.ne.s32.totalorder %s409, %s411
      %p418 = scmp.eq.s32.totalorder %s118, 1
      %p419 = por %p417, %p418
      %p420 = scmp.ne.s32.totalorder %s411, %s412
      %p421 = scmp.eq.s32.totalorder %s118, 0
      %p422 = por %p420, %p421
      %p423 = scmp.ne.s32.totalorder %s411, %s412
      %p424 = scmp.eq.s32.totalorder %s119, 1
      %p425 = por %p423, %p424
      %p427 = scmp.ne.s32.totalorder %s412, %s426
      %p428 = scmp.eq.s32.totalorder %s119, 0
      %p429 = por %p427, %p428
      %s431 = sadd.s32 %s430, 1
      %p434 = scmp.eq.s32.totalorder %s113, 1
      %p435 = scmp.ne.s32.totalorder %s430, %s432
      %p436 = scmp.eq.s32.totalorder %s113, 0
      %p437 = por %p435, %p436
      %p438 = scmp.ne.s32.totalorder %s430, %s432
      %p439 = scmp.eq.s32.totalorder %s118, 1
      %p440 = por %p438, %p439
      %p441 = scmp.ne.s32.totalorder %s432, %s433
      %p442 = scmp.eq.s32.totalorder %s118, 0
      %p443 = por %p441, %p442
      %p444 = scmp.ne.s32.totalorder %s432, %s433
      %p445 = scmp.eq.s32.totalorder %s119, 1
      %p446 = por %p444, %p445
      %p448 = scmp.ne.s32.totalorder %s433, %s447
      %p449 = scmp.eq.s32.totalorder %s119, 0
      %p450 = por %p448, %p449
      %s452 = sadd.s32 %s451, 1
      %p455 = scmp.eq.s32.totalorder %s113, 1
      %p456 = scmp.ne.s32.totalorder %s451, %s453
      %p457 = scmp.eq.s32.totalorder %s113, 0
      %p458 = por %p456, %p457
      %p459 = scmp.ne.s32.totalorder %s451, %s453
      %p460 = scmp.eq.s32.totalorder %s118, 1
      %p461 = por %p459, %p460
      %p462 = scmp.ne.s32.totalorder %s453, %s454
      %p463 = scmp.eq.s32.totalorder %s118, 0
      %p464 = por %p462, %p463
      %p465 = scmp.ne.s32.totalorder %s453, %s454
      %p466 = scmp.eq.s32.totalorder %s119, 1
      %p467 = por %p465, %p466
      %p469 = scmp.ne.s32.totalorder %s454, %s468
      %p470 = scmp.eq.s32.totalorder %s119, 0
      %p471 = por %p469, %p470
      %s473 = sadd.s32 %s472, 1
      %p476 = scmp.eq.s32.totalorder %s113, 1
      %p477 = scmp.ne.s32.totalorder %s472, %s474
      %p478 = scmp.eq.s32.totalorder %s113, 0
      %p479 = por %p477, %p478
      %p480 = scmp.ne.s32.totalorder %s472, %s474
      %p481 = scmp.eq.s32.totalorder %s118, 1
      %p482 = por %p480, %p481
      %p483 = scmp.ne.s32.totalorder %s474, %s475
      %p484 = scmp.eq.s32.totalorder %s118, 0
      %p485 = por %p483, %p484
      %p486 = scmp.ne.s32.totalorder %s474, %s475
      %p487 = scmp.eq.s32.totalorder %s119, 1
      %p488 = por %p486, %p487
      %p490 = scmp.ne.s32.totalorder %s475, %s489
      %p491 = scmp.eq.s32.totalorder %s119, 0
      %p492 = por %p490, %p491
      %s494 = sadd.s32 %s493, 1
      %p497 = scmp.eq.s32.totalorder %s113, 1
      %p498 = scmp.ne.s32.totalorder %s493, %s495
      %p499 = scmp.eq.s32.totalorder %s113, 0
      %p500 = por %p498, %p499
      %p501 = scmp.ne.s32.totalorder %s493, %s495
      %p502 = scmp.eq.s32.totalorder %s118, 1
      %p503 = por %p501, %p502
      %p504 = scmp.ne.s32.totalorder %s495, %s496
      %p505 = scmp.eq.s32.totalorder %s118, 0
      %p506 = por %p504, %p505
      %p507 = scmp.ne.s32.totalorder %s495, %s496
      %p508 = scmp.eq.s32.totalorder %s119, 1
      %p509 = por %p507, %p508
      %p511 = scmp.ne.s32.totalorder %s496, %s510
      %p512 = scmp.eq.s32.totalorder %s119, 0
      %p513 = por %p511, %p512
      %s515 = sadd.s32 %s514, 1
      %p518 = scmp.eq.s32.totalorder %s113, 1
      %p519 = scmp.ne.s32.totalorder %s514, %s516
      %p520 = scmp.eq.s32.totalorder %s113, 0
      %p521 = por %p519, %p520
      %p522 = scmp.ne.s32.totalorder %s514, %s516
      %p523 = scmp.eq.s32.totalorder %s118, 1
      %p524 = por %p522, %p523
      %p525 = scmp.ne.s32.totalorder %s516, %s517
      %p526 = scmp.eq.s32.totalorder %s118, 0
      %p527 = por %p525, %p526
      %p528 = scmp.ne.s32.totalorder %s516, %s517
      %p529 = scmp.eq.s32.totalorder %s119, 1
      %p530 = por %p528, %p529
      %p532 = scmp.ne.s32.totalorder %s517, %s531
      %p533 = scmp.eq.s32.totalorder %s119, 0
      %p534 = por %p532, %p533
      %s536 = sadd.s32 %s535, 1
      %p539 = scmp.eq.s32.totalorder %s113, 1
      %p540 = scmp.ne.s32.totalorder %s535, %s537
      %p541 = scmp.eq.s32.totalorder %s113, 0
      %p542 = por %p540, %p541
      %p543 = scmp.ne.s32.totalorder %s535, %s537
      %p544 = scmp.eq.s32.totalorder %s118, 1
      %p545 = por %p543, %p544
      %p546 = scmp.ne.s32.totalorder %s537, %s538
      %p547 = scmp.eq.s32.totalorder %s118, 0
      %p548 = por %p546, %p547
      %p549 = scmp.ne.s32.totalorder %s537, %s538
      %p550 = scmp.eq.s32.totalorder %s119, 1
      %p551 = por %p549, %p550
      %p553 = scmp.ne.s32.totalorder %s538, %s552
      %p554 = scmp.eq.s32.totalorder %s119, 0
      %p555 = por %p553, %p554
      %s557 = sadd.s32 %s556, 1
      %p560 = scmp.eq.s32.totalorder %s113, 1
      %p561 = scmp.ne.s32.totalorder %s556, %s558
      %p562 = scmp.eq.s32.totalorder %s113, 0
      %p563 = por %p561, %p562
      %p564 = scmp.ne.s32.totalorder %s556, %s558
      %p565 = scmp.eq.s32.totalorder %s118, 1
      %p566 = por %p564, %p565
      %p567 = scmp.ne.s32.totalorder %s558, %s559
      %p568 = scmp.eq.s32.totalorder %s118, 0
      %p569 = por %p567, %p568
      %p570 = scmp.ne.s32.totalorder %s558, %s559
      %p571 = scmp.eq.s32.totalorder %s119, 1
      %p572 = por %p570, %p571
      %p574 = scmp.ne.s32.totalorder %s559, %s573
      %p575 = scmp.eq.s32.totalorder %s119, 0
      %p576 = por %p574, %p575
      %s578 = sadd.s32 %s577, 1
      %p581 = scmp.eq.s32.totalorder %s113, 1
      %p582 = scmp.ne.s32.totalorder %s577, %s579
      %p583 = scmp.eq.s32.totalorder %s113, 0
      %p584 = por %p582, %p583
      %p585 = scmp.ne.s32.totalorder %s577, %s579
      %p586 = scmp.eq.s32.totalorder %s118, 1
      %p587 = por %p585, %p586
      %p588 = scmp.ne.s32.totalorder %s579, %s580
      %p589 = scmp.eq.s32.totalorder %s118, 0
      %p590 = por %p588, %p589
      %p591 = scmp.ne.s32.totalorder %s579, %s580
      %p592 = scmp.eq.s32.totalorder %s119, 1
      %p593 = por %p591, %p592
      %p595 = scmp.ne.s32.totalorder %s580, %s594
      %p596 = scmp.eq.s32.totalorder %s119, 0
      %p597 = por %p595, %p596
      %s599 = sadd.s32 %s598, 1
      %p602 = scmp.eq.s32.totalorder %s113, 1
      %p603 = scmp.ne.s32.totalorder %s598, %s600
      %p604 = scmp.eq.s32.totalorder %s113, 0
      %p605 = por %p603, %p604
      %p606 = scmp.ne.s32.totalorder %s598, %s600
      %p607 = scmp.eq.s32.totalorder %s118, 1
      %p608 = por %p606, %p607
      %p609 = scmp.ne.s32.totalorder %s600, %s601
      %p610 = scmp.eq.s32.totalorder %s118, 0
      %p611 = por %p609, %p610
      %p612 = scmp.ne.s32.totalorder %s600, %s601
      %p613 = scmp.eq.s32.totalorder %s119, 1
      %p614 = por %p612, %p613
      %p616 = scmp.ne.s32.totalorder %s601, %s615
      %p617 = scmp.eq.s32.totalorder %s119, 0
      %p618 = por %p616, %p617
      %s620 = sadd.s32 %s619, 1
      %p623 = scmp.eq.s32.totalorder %s113, 1
      %p624 = scmp.ne.s32.totalorder %s619, %s621
      %p625 = scmp.eq.s32.totalorder %s113, 0
      %p626 = por %p624, %p625
      %p627 = scmp.ne.s32.totalorder %s619, %s621
      %p628 = scmp.eq.s32.totalorder %s118, 1
      %p629 = por %p627, %p628
      %p630 = scmp.ne.s32.totalorder %s621, %s622
      %p631 = scmp.eq.s32.totalorder %s118, 0
      %p632 = por %p630, %p631
      %p633 = scmp.ne.s32.totalorder %s621, %s622
      %p634 = scmp.eq.s32.totalorder %s119, 1
      %p635 = por %p633, %p634
      %p637 = scmp.ne.s32.totalorder %s622, %s636
      %p638 = scmp.eq.s32.totalorder %s119, 0
      %p639 = por %p637, %p638
      %s641 = sadd.s32 %s640, 1
      %p644 = scmp.eq.s32.totalorder %s113, 1
      %p645 = scmp.ne.s32.totalorder %s640, %s642
      %p646 = scmp.eq.s32.totalorder %s113, 0
      %p647 = por %p645, %p646
      %p648 = scmp.ne.s32.totalorder %s640, %s642
      %p649 = scmp.eq.s32.totalorder %s118, 1
      %p650 = por %p648, %p649
      %p651 = scmp.ne.s32.totalorder %s642, %s643
      %p652 = scmp.eq.s32.totalorder %s118, 0
      %p653 = por %p651, %p652
      %p654 = scmp.ne.s32.totalorder %s642, %s643
      %p655 = scmp.eq.s32.totalorder %s119, 1
      %p656 = por %p654, %p655
      %p658 = scmp.ne.s32.totalorder %s643, %s657
      %p659 = scmp.eq.s32.totalorder %s119, 0
      %p660 = por %p658, %p659
      %s662 = sadd.s32 %s661, 1
      %p665 = scmp.eq.s32.totalorder %s113, 1
      %p666 = scmp.ne.s32.totalorder %s661, %s663
      %p667 = scmp.eq.s32.totalorder %s113, 0
      %p668 = por %p666, %p667
      %p669 = scmp.ne.s32.totalorder %s661, %s663
      %p670 = scmp.eq.s32.totalorder %s118, 1
      %p671 = por %p669, %p670
      %p672 = scmp.ne.s32.totalorder %s663, %s664
      %p673 = scmp.eq.s32.totalorder %s118, 0
      %p674 = por %p672, %p673
      %p675 = scmp.ne.s32.totalorder %s663, %s664
      %p676 = scmp.eq.s32.totalorder %s119, 1
      %p677 = por %p675, %p676
      %p679 = scmp.ne.s32.totalorder %s664, %s678
      %p680 = scmp.eq.s32.totalorder %s119, 0
      %p681 = por %p679, %p680
      %s683 = sadd.s32 %s682, 1
      %p686 = scmp.eq.s32.totalorder %s113, 1
      %p687 = scmp.ne.s32.totalorder %s682, %s684
      %p688 = scmp.eq.s32.totalorder %s113, 0
      %p689 = por %p687, %p688
      %p690 = scmp.ne.s32.totalorder %s682, %s684
      %p691 = scmp.eq.s32.totalorder %s118, 1
      %p692 = por %p690, %p691
      %p693 = scmp.ne.s32.totalorder %s684, %s685
      %p694 = scmp.eq.s32.totalorder %s118, 0
      %p695 = por %p693, %p694
      %p696 = scmp.ne.s32.totalorder %s684, %s685
      %p697 = scmp.eq.s32.totalorder %s119, 1
      %p698 = por %p696, %p697
      %p700 = scmp.ne.s32.totalorder %s685, %s699
      %p701 = scmp.eq.s32.totalorder %s119, 0
      %p702 = por %p700, %p701
      %s704 = sadd.s32 %s703, 1
      %p707 = scmp.eq.s32.totalorder %s113, 1
      %p708 = scmp.ne.s32.totalorder %s703, %s705
      %p709 = scmp.eq.s32.totalorder %s113, 0
      %p710 = por %p708, %p709
      %p711 = scmp.ne.s32.totalorder %s703, %s705
      %p712 = scmp.eq.s32.totalorder %s118, 1
      %p713 = por %p711, %p712
      %p714 = scmp.ne.s32.totalorder %s705, %s706
      %p715 = scmp.eq.s32.totalorder %s118, 0
      %p716 = por %p714, %p715
      %p717 = scmp.ne.s32.totalorder %s705, %s706
      %p718 = scmp.eq.s32.totalorder %s119, 1
      %p719 = por %p717, %p718
      %p721 = scmp.ne.s32.totalorder %s706, %s720
      %p722 = scmp.eq.s32.totalorder %s119, 0
      %p723 = por %p721, %p722
      %s725 = sadd.s32 %s724, 1
      %p728 = scmp.eq.s32.totalorder %s113, 1
      %p729 = scmp.ne.s32.totalorder %s724, %s726
      %p730 = scmp.eq.s32.totalorder %s113, 0
      %p731 = por %p729, %p730
      %p732 = scmp.ne.s32.totalorder %s724, %s726
      %p733 = scmp.eq.s32.totalorder %s118, 1
      %p734 = por %p732, %p733
      %p735 = scmp.ne.s32.totalorder %s726, %s727
      %p736 = scmp.eq.s32.totalorder %s118, 0
      %p737 = por %p735, %p736
      %p738 = scmp.ne.s32.totalorder %s726, %s727
      %p739 = scmp.eq.s32.totalorder %s119, 1
      %p740 = por %p738, %p739
      %p742 = scmp.ne.s32.totalorder %s727, %s741
      %p743 = scmp.eq.s32.totalorder %s119, 0
      %p744 = por %p742, %p743
      %s745 = ssub.s32 %s113, %s120
      %p746 = scmp.eq.s32.totalorder %s745, 0
      %s748 = sadd.s32 %s747, 1
      %s749 = scalar_select %p746, %s747, %s748
      %p752 = pneg %p746
      %p753 = scmp.eq.s32.totalorder %s113, 1
      %p754 = por %p752, %p753
      %p755 = scmp.ne.s32.totalorder %s747, %s750
      %p756 = scmp.eq.s32.totalorder %s113, 0
      %p757 = por %p755, %p756
      %p758 = scmp.ne.s32.totalorder %s747, %s750
      %p759 = scmp.eq.s32.totalorder %s118, 1
      %p760 = por %p758, %p759
      %p761 = scmp.ne.s32.totalorder %s750, %s751
      %p762 = scmp.eq.s32.totalorder %s118, 0
      %p763 = por %p761, %p762
      %p764 = scmp.ne.s32.totalorder %s750, %s751
      %p765 = scmp.eq.s32.totalorder %s119, 1
      %p766 = por %p764, %p765
      %p768 = scmp.ne.s32.totalorder %s751, %s767
      %p769 = scmp.eq.s32.totalorder %s119, 0
      %p770 = por %p768, %p769
      %s771 = ssub.s32 %s113, %s120
      %p772 = scmp.eq.s32.totalorder %s771, 0
      %s774 = sadd.s32 %s773, 1
      %s775 = scalar_select %p772, %s773, %s774
      %p778 = pneg %p772
      %p779 = scmp.eq.s32.totalorder %s113, 1
      %p780 = por %p778, %p779
      %p781 = scmp.ne.s32.totalorder %s773, %s776
      %p782 = scmp.eq.s32.totalorder %s113, 0
      %p783 = por %p781, %p782
      %p784 = scmp.ne.s32.totalorder %s773, %s776
      %p785 = scmp.eq.s32.totalorder %s118, 1
      %p786 = por %p784, %p785
      %p787 = scmp.ne.s32.totalorder %s776, %s777
      %p788 = scmp.eq.s32.totalorder %s118, 0
      %p789 = por %p787, %p788
      %p790 = scmp.ne.s32.totalorder %s776, %s777
      %p791 = scmp.eq.s32.totalorder %s119, 1
      %p792 = por %p790, %p791
      %p794 = scmp.ne.s32.totalorder %s777, %s793
      %p795 = scmp.eq.s32.totalorder %s119, 0
      %p796 = por %p794, %p795
      %s797 = ssub.s32 %s113, %s120
      %p798 = scmp.eq.s32.totalorder %s797, 0
      %s800 = sadd.s32 %s799, 1
      %s801 = scalar_select %p798, %s799, %s800
      %p804 = pneg %p798
      %p805 = scmp.eq.s32.totalorder %s113, 1
      %p806 = por %p804, %p805
      %p807 = scmp.ne.s32.totalorder %s799, %s802
      %p808 = scmp.eq.s32.totalorder %s113, 0
      %p809 = por %p807, %p808
      %p810 = scmp.ne.s32.totalorder %s799, %s802
      %p811 = scmp.eq.s32.totalorder %s118, 1
      %p812 = por %p810, %p811
      %p813 = scmp.ne.s32.totalorder %s802, %s803
      %p814 = scmp.eq.s32.totalorder %s118, 0
      %p815 = por %p813, %p814
      %p816 = scmp.ne.s32.totalorder %s802, %s803
      %p817 = scmp.eq.s32.totalorder %s119, 1
      %p818 = por %p816, %p817
      %p820 = scmp.ne.s32.totalorder %s803, %s819
      %p821 = scmp.eq.s32.totalorder %s119, 0
      %p822 = por %p820, %p821
      %s823 = ssub.s32 %s113, %s120
      %p824 = scmp.eq.s32.totalorder %s823, 0
      %s826 = sadd.s32 %s825, 1
      %s827 = scalar_select %p824, %s825, %s826
      %p830 = pneg %p824
      %p831 = scmp.eq.s32.totalorder %s113, 1
      %p832 = por %p830, %p831
      %p833 = scmp.ne.s32.totalorder %s825, %s828
      %p834 = scmp.eq.s32.totalorder %s113, 0
      %p835 = por %p833, %p834
      %p836 = scmp.ne.s32.totalorder %s825, %s828
      %p837 = scmp.eq.s32.totalorder %s118, 1
      %p838 = por %p836, %p837
      %p839 = scmp.ne.s32.totalorder %s828, %s829
      %p840 = scmp.eq.s32.totalorder %s118, 0
      %p841 = por %p839, %p840
      %p842 = scmp.ne.s32.totalorder %s828, %s829
      %p843 = scmp.eq.s32.totalorder %s119, 1
      %p844 = por %p842, %p843
      %p846 = scmp.ne.s32.totalorder %s829, %s845
      %p847 = scmp.eq.s32.totalorder %s119, 0
      %p848 = por %p846, %p847
      %s849 = ssub.s32 %s113, %s120
      %p850 = scmp.eq.s32.totalorder %s849, 0
      %s852 = sadd.s32 %s851, 1
      %s853 = scalar_select %p850, %s851, %s852
      %p856 = pneg %p850
      %p857 = scmp.eq.s32.totalorder %s113, 1
      %p858 = por %p856, %p857
      %p859 = scmp.ne.s32.totalorder %s851, %s854
      %p860 = scmp.eq.s32.totalorder %s113, 0
      %p861 = por %p859, %p860
      %p862 = scmp.ne.s32.totalorder %s851, %s854
      %p863 = scmp.eq.s32.totalorder %s118, 1
      %p864 = por %p862, %p863
      %p865 = scmp.ne.s32.totalorder %s854, %s855
      %p866 = scmp.eq.s32.totalorder %s118, 0
      %p867 = por %p865, %p866
      %p868 = scmp.ne.s32.totalorder %s854, %s855
      %p869 = scmp.eq.s32.totalorder %s119, 1
      %p870 = por %p868, %p869
      %p872 = scmp.ne.s32.totalorder %s855, %s871
      %p873 = scmp.eq.s32.totalorder %s119, 0
      %p874 = por %p872, %p873
      %s875 = ssub.s32 %s113, %s120
      %p876 = scmp.eq.s32.totalorder %s875, 0
      %s878 = sadd.s32 %s877, 1
      %s879 = scalar_select %p876, %s877, %s878
      %p882 = pneg %p876
      %p883 = scmp.eq.s32.totalorder %s113, 1
      %p884 = por %p882, %p883
      %p885 = scmp.ne.s32.totalorder %s877, %s880
      %p886 = scmp.eq.s32.totalorder %s113, 0
      %p887 = por %p885, %p886
      %p888 = scmp.ne.s32.totalorder %s877, %s880
      %p889 = scmp.eq.s32.totalorder %s118, 1
      %p890 = por %p888, %p889
      %p891 = scmp.ne.s32.totalorder %s880, %s881
      %p892 = scmp.eq.s32.totalorder %s118, 0
      %p893 = por %p891, %p892
      %p894 = scmp.ne.s32.totalorder %s880, %s881
      %p895 = scmp.eq.s32.totalorder %s119, 1
      %p896 = por %p894, %p895
      %p898 = scmp.ne.s32.totalorder %s881, %s897
      %p899 = scmp.eq.s32.totalorder %s119, 0
      %p900 = por %p898, %p899
      %s901 = ssub.s32 %s113, %s120
      %p902 = scmp.eq.s32.totalorder %s901, 0
      %s904 = sadd.s32 %s903, 1
      %s905 = scalar_select %p902, %s903, %s904
      %p908 = pneg %p902
      %p909 = scmp.eq.s32.totalorder %s113, 1
      %p910 = por %p908, %p909
      %p911 = scmp.ne.s32.totalorder %s903, %s906
      %p912 = scmp.eq.s32.totalorder %s113, 0
      %p913 = por %p911, %p912
      %p914 = scmp.ne.s32.totalorder %s903, %s906
      %p915 = scmp.eq.s32.totalorder %s118, 1
      %p916 = por %p914, %p915
      %p917 = scmp.ne.s32.totalorder %s906, %s907
      %p918 = scmp.eq.s32.totalorder %s118, 0
      %p919 = por %p917, %p918
      %p920 = scmp.ne.s32.totalorder %s906, %s907
      %p921 = scmp.eq.s32.totalorder %s119, 1
      %p922 = por %p920, %p921
      %p924 = scmp.ne.s32.totalorder %s907, %s923
      %p925 = scmp.eq.s32.totalorder %s119, 0
      %p926 = por %p924, %p925
      %s927 = ssub.s32 %s113, %s120
      %p928 = scmp.eq.s32.totalorder %s927, 0
      %s930 = sadd.s32 %s929, 1
      %s931 = scalar_select %p928, %s929, %s930
      %p934 = pneg %p928
      %p935 = scmp.eq.s32.totalorder %s113, 1
      %p936 = por %p934, %p935
      %p937 = scmp.ne.s32.totalorder %s929, %s932
      %p938 = scmp.eq.s32.totalorder %s113, 0
      %p939 = por %p937, %p938
      %p940 = scmp.ne.s32.totalorder %s929, %s932
      %p941 = scmp.eq.s32.totalorder %s118, 1
      %p942 = por %p940, %p941
      %p943 = scmp.ne.s32.totalorder %s932, %s933
      %p944 = scmp.eq.s32.totalorder %s118, 0
      %p945 = por %p943, %p944
      %p946 = scmp.ne.s32.totalorder %s932, %s933
      %p947 = scmp.eq.s32.totalorder %s119, 1
      %p948 = por %p946, %p947
      %p950 = scmp.ne.s32.totalorder %s933, %s949
      %p951 = scmp.eq.s32.totalorder %s119, 0
      %p952 = por %p950, %p951
      %s953 = ssub.s32 %s113, %s120
      %p954 = scmp.eq.s32.totalorder %s953, 0
      %s956 = sadd.s32 %s955, 1
      %s957 = scalar_select %p954, %s955, %s956
      %p960 = pneg %p954
      %p961 = scmp.eq.s32.totalorder %s113, 1
      %p962 = por %p960, %p961
      %p963 = scmp.ne.s32.totalorder %s955, %s958
      %p964 = scmp.eq.s32.totalorder %s113, 0
      %p965 = por %p963, %p964
      %p966 = scmp.ne.s32.totalorder %s955, %s958
      %p967 = scmp.eq.s32.totalorder %s118, 1
      %p968 = por %p966, %p967
      %p969 = scmp.ne.s32.totalorder %s958, %s959
      %p970 = scmp.eq.s32.totalorder %s118, 0
      %p971 = por %p969, %p970
      %p972 = scmp.ne.s32.totalorder %s958, %s959
      %p973 = scmp.eq.s32.totalorder %s119, 1
      %p974 = por %p972, %p973
      %p976 = scmp.ne.s32.totalorder %s959, %s975
      %p977 = scmp.eq.s32.totalorder %s119, 0
      %p978 = por %p976, %p977
      %s979 = ssub.s32 %s113, %s120
      %p980 = scmp.eq.s32.totalorder %s979, 0
      %s982 = sadd.s32 %s981, 1
      %s983 = scalar_select %p980, %s981, %s982
      %p986 = pneg %p980
      %p987 = scmp.eq.s32.totalorder %s113, 1
      %p988 = por %p986, %p987
      %p989 = scmp.ne.s32.totalorder %s981, %s984
      %p990 = scmp.eq.s32.totalorder %s113, 0
      %p991 = por %p989, %p990
      %p992 = scmp.ne.s32.totalorder %s981, %s984
      %p993 = scmp.eq.s32.totalorder %s118, 1
      %p994 = por %p992, %p993
      %p995 = scmp.ne.s32.totalorder %s984, %s985
      %p996 = scmp.eq.s32.totalorder %s118, 0
      %p997 = por %p995, %p996
      %p998 = scmp.ne.s32.totalorder %s984, %s985
      %p999 = scmp.eq.s32.totalorder %s119, 1
      %p1000 = por %p998, %p999
      %p1002 = scmp.ne.s32.totalorder %s985, %s1001
      %p1003 = scmp.eq.s32.totalorder %s119, 0
      %p1004 = por %p1002, %p1003
      %s1005 = ssub.s32 %s113, %s120
      %p1006 = scmp.eq.s32.totalorder %s1005, 0
      %s1008 = sadd.s32 %s1007, 1
      %s1009 = scalar_select %p1006, %s1007, %s1008
      %p1012 = pneg %p1006
      %p1013 = scmp.eq.s32.totalorder %s113, 1
      %p1014 = por %p1012, %p1013
      %p1015 = scmp.ne.s32.totalorder %s1007, %s1010
      %p1016 = scmp.eq.s32.totalorder %s113, 0
      %p1017 = por %p1015, %p1016
      %p1018 = scmp.ne.s32.totalorder %s1007, %s1010
      %p1019 = scmp.eq.s32.totalorder %s118, 1
      %p1020 = por %p1018, %p1019
      %p1021 = scmp.ne.s32.totalorder %s1010, %s1011
      %p1022 = scmp.eq.s32.totalorder %s118, 0
      %p1023 = por %p1021, %p1022
      %p1024 = scmp.ne.s32.totalorder %s1010, %s1011
      %p1025 = scmp.eq.s32.totalorder %s119, 1
      %p1026 = por %p1024, %p1025
      %p1028 = scmp.ne.s32.totalorder %s1011, %s1027
      %p1029 = scmp.eq.s32.totalorder %s119, 0
      %p1030 = por %p1028, %p1029
      %p1031 = scmp.le.s32.totalorder 1, %s113
      %p1032 = scmp.lt.s32.totalorder %s113, 3
      %p1033 = pnand %p1031, %p1032
      %p1034 = pneg %p1033
      // Predicated region
      $region9: #{mmt_forward.2} parent=5 // pred_check
        _
      $region10: #{mmt_forward.2} parent=5 // pred_check_branch
        %1036 = sbr.rel (%p1033) target = $region12
      $region11: #{mmt_forward.2} parent=5 // pred_region
        %s1037 = ssub.s32 %s113, 1
        // Predicated region
        $region13: #{mmt_forward.2} parent=11 // pred_check
          %p1038 = pneg %p212
        $region14: #{mmt_forward.2} parent=11 // pred_check_branch
          %1040 = sbr.rel (%p1038) target = $region16
        $region15: #{mmt_forward.2} parent=11 // pred_region
          %s1042 = ssub.s32 12288, 12288
          %1043 = vsyncadd [#allocation7], %s1042
          %s1044 = sshll.u32 [#allocation6], 4
          %s1045 = int_to_ptr.vmem [resolvable:$true] %s1044
          %1050 = dma.hbm_to_vmem [thread:$0]  %s7, 12288, %s1045, [#allocation7], 128, 128, 8
        $region16: #{mmt_forward.2} parent=11 // pred_fallthru
          _
        // Predicated region
        $region17: #{mmt_forward.2} parent=11 // pred_check
          %p1051 = pneg %p233
        $region18: #{mmt_forward.2} parent=11 // pred_check_branch
          %1053 = sbr.rel (%p1051) target = $region20
        $region19: #{mmt_forward.2} parent=11 // pred_region
          %s1055 = ssub.s32 32, 32
          %1056 = vsyncadd [#allocation7], %s1055
          %s1058 = sshll.u32 [#allocation8], 4
          %s1059 = int_to_ptr.vmem [resolvable:$true] %s1058
          %1061 = dma.hbm_to_vmem [thread:$0]  %s9, 32, %s1059, [#allocation7]
        $region20: #{mmt_forward.2} parent=11 // pred_fallthru
          _
        // Predicated region
        $region21: #{mmt_forward.2} parent=11 // pred_check
          %p1062 = pneg %p254
        $region22: #{mmt_forward.2} parent=11 // pred_check_branch
          %1064 = sbr.rel (%p1062) target = $region24
        $region23: #{mmt_forward.2} parent=11 // pred_region
          _
        $region24: #{mmt_forward.2} parent=11 // pred_fallthru
          _
        // Predicated region
        $region25: #{mmt_forward.2} parent=11 // pred_check
          %p1065 = pneg %p275
        $region26: #{mmt_forward.2} parent=11 // pred_check_branch
          %1067 = sbr.rel (%p1065) target = $region28
        $region27: #{mmt_forward.2} parent=11 // pred_region
          %s1069 = ssub.s32 32, 32
          %1070 = vsyncadd [#allocation10], %s1069
          %s1072 = sshll.u32 [#allocation9], 4
          %s1073 = int_to_ptr.vmem [resolvable:$true] %s1072
          %1075 = dma.hbm_to_vmem [thread:$0]  %s13, 32, %s1073, [#allocation10]
        $region28: #{mmt_forward.2} parent=11 // pred_fallthru
          _
        // Predicated region
        $region29: #{mmt_forward.2} parent=11 // pred_check
          %p1076 = pneg %p296
        $region30: #{mmt_forward.2} parent=11 // pred_check_branch
          %1078 = sbr.rel (%p1076) target = $region32
        $region31: #{mmt_forward.2} parent=11 // pred_region
          %s1080 = ssub.s32 12288, 12288
          %1081 = vsyncadd [#allocation10], %s1080
          %s1082 = sshll.u32 [#allocation11], 4
          %s1083 = int_to_ptr.vmem [resolvable:$true] %s1082
          %1088 = dma.hbm_to_vmem [thread:$0]  %s15, 12288, %s1083, [#allocation10], 128, 128, 8
        $region32: #{mmt_forward.2} parent=11 // pred_fallthru
          _
        // Predicated region
        $region33: #{mmt_forward.2} parent=11 // pred_check
          %p1089 = pneg %p317
        $region34: #{mmt_forward.2} parent=11 // pred_check_branch
          %1091 = sbr.rel (%p1089) target = $region36
        $region35: #{mmt_forward.2} parent=11 // pred_region
          %s1093 = ssub.s32 32, 32
          %1094 = vsyncadd [#allocation13], %s1093
          %s1096 = sshll.u32 [#allocation12], 4
          %s1097 = int_to_ptr.vmem [resolvable:$true] %s1096
          %1099 = dma.hbm_to_vmem [thread:$0]  %s17, 32, %s1097, [#allocation13]
        $region36: #{mmt_forward.2} parent=11 // pred_fallthru
          _
        // Predicated region
        $region37: #{mmt_forward.2} parent=11 // pred_check
          %p1100 = pneg %p338
        $region38: #{mmt_forward.2} parent=11 // pred_check_branch
          %1102 = sbr.rel (%p1100) target = $region40
        $region39: #{mmt_forward.2} parent=11 // pred_region
          _
        $region40: #{mmt_forward.2} parent=11 // pred_fallthru
          _
        // Predicated region
        $region41: #{mmt_forward.2} parent=11 // pred_check
          %p1103 = pneg %p359
        $region42: #{mmt_forward.2} parent=11 // pred_check_branch
          %1105 = sbr.rel (%p1103) target = $region44
        $region43: #{mmt_forward.2} parent=11 // pred_region
          %s1107 = ssub.s32 32, 32
          %1108 = vsyncadd [#allocation13], %s1107
          %s1110 = sshll.u32 [#allocation14], 4
          %s1111 = int_to_ptr.vmem [resolvable:$true] %s1110
          %1113 = dma.hbm_to_vmem [thread:$0]  %s21, 32, %s1111, [#allocation13]
        $region44: #{mmt_forward.2} parent=11 // pred_fallthru
          _
        // Predicated region
        $region45: #{mmt_forward.2} parent=11 // pred_check
          %p1114 = pneg %p380
        $region46: #{mmt_forward.2} parent=11 // pred_check_branch
          %1116 = sbr.rel (%p1114) target = $region48
        $region47: #{mmt_forward.2} parent=11 // pred_region
          %s1118 = ssub.s32 4096, 4096
          %1119 = vsyncadd [#allocation16], %s1118
          %s1120 = sshll.u32 [#allocation15], 4
          %s1121 = int_to_ptr.vmem [resolvable:$true] %s1120
          %1126 = dma.hbm_to_vmem [thread:$0]  %s23, 4096, %s1121, [#allocation16], 128, 128, 8
        $region48: #{mmt_forward.2} parent=11 // pred_fallthru
          _
        // Predicated region
        $region49: #{mmt_forward.2} parent=11 // pred_check
          %p1127 = pneg %p401
        $region50: #{mmt_forward.2} parent=11 // pred_check_branch
          %1129 = sbr.rel (%p1127) target = $region52
        $region51: #{mmt_forward.2} parent=11 // pred_region
          %s1131 = ssub.s32 32, 32
          %1132 = vsyncadd [#allocation16], %s1131
          %s1134 = sshll.u32 [#allocation17], 4
          %s1135 = int_to_ptr.vmem [resolvable:$true] %s1134
          %1137 = dma.hbm_to_vmem [thread:$0]  %s25, 32, %s1135, [#allocation16]
        $region52: #{mmt_forward.2} parent=11 // pred_fallthru
          _
        // Predicated region
        $region53: #{mmt_forward.2} parent=11 // pred_check
          %p1138 = pneg %p422
        $region54: #{mmt_forward.2} parent=11 // pred_check_branch
          %1140 = sbr.rel (%p1138) target = $region56
        $region55: #{mmt_forward.2} parent=11 // pred_region
          %s1142 = ssub.s32 4096, 4096
          %1143 = vsyncadd [#allocation19], %s1142
          %s1144 = sshll.u32 [#allocation18], 4
          %s1145 = int_to_ptr.vmem [resolvable:$true] %s1144
          %1150 = dma.hbm_to_vmem [thread:$0]  %s27, 4096, %s1145, [#allocation19], 128, 128, 8
        $region56: #{mmt_forward.2} parent=11 // pred_fallthru
          _
        // Predicated region
        $region57: #{mmt_forward.2} parent=11 // pred_check
          %p1151 = pneg %p443
        $region58: #{mmt_forward.2} parent=11 // pred_check_branch
          %1153 = sbr.rel (%p1151) target = $region60
        $region59: #{mmt_forward.2} parent=11 // pred_region
          %s1155 = ssub.s32 32, 32
          %1156 = vsyncadd [#allocation19], %s1155
          %s1158 = sshll.u32 [#allocation20], 4
          %s1159 = int_to_ptr.vmem [resolvable:$true] %s1158
          %1161 = dma.hbm_to_vmem [thread:$0]  %s29, 32, %s1159, [#allocation19]
        $region60: #{mmt_forward.2} parent=11 // pred_fallthru
          _
        // Predicated region
        $region61: #{mmt_forward.2} parent=11 // pred_check
          %p1162 = pneg %p464
        $region62: #{mmt_forward.2} parent=11 // pred_check_branch
          %1164 = sbr.rel (%p1162) target = $region64
        $region63: #{mmt_forward.2} parent=11 // pred_region
          %s1166 = ssub.s32 1024, 1024
          %1167 = vsyncadd [#allocation22], %s1166
          %s1168 = sshll.u32 [#allocation21], 4
          %s1169 = int_to_ptr.vmem [resolvable:$true] %s1168
          %1174 = dma.hbm_to_vmem [thread:$0]  %s31, 1024, %s1169, [#allocation22], 64, 64, 4
        $region64: #{mmt_forward.2} parent=11 // pred_fallthru
          _
        // Predicated region
        $region65: #{mmt_forward.2} parent=11 // pred_check
          %p1175 = pneg %p485
        $region66: #{mmt_forward.2} parent=11 // pred_check_branch
          %1177 = sbr.rel (%p1175) target = $region68
        $region67: #{mmt_forward.2} parent=11 // pred_region
          %s1179 = ssub.s32 16, 16
          %1180 = vsyncadd [#allocation22], %s1179
          %s1182 = sshll.u32 [#allocation23], 4
          %s1183 = int_to_ptr.vmem [resolvable:$true] %s1182
          %1185 = dma.hbm_to_vmem [thread:$0]  %s33, 16, %s1183, [#allocation22]
        $region68: #{mmt_forward.2} parent=11 // pred_fallthru
          _
        // Predicated region
        $region69: #{mmt_forward.2} parent=11 // pred_check
          %p1186 = pneg %p506
        $region70: #{mmt_forward.2} parent=11 // pred_check_branch
          %1188 = sbr.rel (%p1186) target = $region72
        $region71: #{mmt_forward.2} parent=11 // pred_region
          %s1190 = ssub.s32 1024, 1024
          %1191 = vsyncadd [#allocation25], %s1190
          %s1192 = sshll.u32 [#allocation24], 4
          %s1193 = int_to_ptr.vmem [resolvable:$true] %s1192
          %1198 = dma.hbm_to_vmem [thread:$0]  %s35, 1024, %s1193, [#allocation25], 64, 64, 4
        $region72: #{mmt_forward.2} parent=11 // pred_fallthru
          _
        // Predicated region
        $region73: #{mmt_forward.2} parent=11 // pred_check
          %p1199 = pneg %p527
        $region74: #{mmt_forward.2} parent=11 // pred_check_branch
          %1201 = sbr.rel (%p1199) target = $region76
        $region75: #{mmt_forward.2} parent=11 // pred_region
          %s1203 = ssub.s32 16, 16
          %1204 = vsyncadd [#allocation25], %s1203
          %s1206 = sshll.u32 [#allocation26], 4
          %s1207 = int_to_ptr.vmem [resolvable:$true] %s1206
          %1209 = dma.hbm_to_vmem [thread:$0]  %s37, 16, %s1207, [#allocation25]
        $region76: #{mmt_forward.2} parent=11 // pred_fallthru
          _
        // Predicated region
        $region77: #{mmt_forward.2} parent=11 // pred_check
          %p1210 = pneg %p548
        $region78: #{mmt_forward.2} parent=11 // pred_check_branch
          %1212 = sbr.rel (%p1210) target = $region80
        $region79: #{mmt_forward.2} parent=11 // pred_region
          %s1214 = ssub.s32 1024, 1024
          %1215 = vsyncadd [#allocation28], %s1214
          %s1216 = sshll.u32 [#allocation27], 4
          %s1217 = int_to_ptr.vmem [resolvable:$true] %s1216
          %1222 = dma.hbm_to_vmem [thread:$0]  %s39, 1024, %s1217, [#allocation28], 64, 64, 4
        $region80: #{mmt_forward.2} parent=11 // pred_fallthru
          _
        // Predicated region
        $region81: #{mmt_forward.2} parent=11 // pred_check
          %p1223 = pneg %p569
        $region82: #{mmt_forward.2} parent=11 // pred_check_branch
          %1225 = sbr.rel (%p1223) target = $region84
        $region83: #{mmt_forward.2} parent=11 // pred_region
          %s1227 = ssub.s32 16, 16
          %1228 = vsyncadd [#allocation28], %s1227
          %s1230 = sshll.u32 [#allocation29], 4
          %s1231 = int_to_ptr.vmem [resolvable:$true] %s1230
          %1233 = dma.hbm_to_vmem [thread:$0]  %s41, 16, %s1231, [#allocation28]
        $region84: #{mmt_forward.2} parent=11 // pred_fallthru
          _
        // Predicated region
        $region85: #{mmt_forward.2} parent=11 // pred_check
          %p1234 = pneg %p590
        $region86: #{mmt_forward.2} parent=11 // pred_check_branch
          %1236 = sbr.rel (%p1234) target = $region88
        $region87: #{mmt_forward.2} parent=11 // pred_region
          %s1238 = ssub.s32 1024, 1024
          %1239 = vsyncadd [#allocation31], %s1238
          %s1240 = sshll.u32 [#allocation30], 4
          %s1241 = int_to_ptr.vmem [resolvable:$true] %s1240
          %1246 = dma.hbm_to_vmem [thread:$0]  %s43, 1024, %s1241, [#allocation31], 64, 64, 4
        $region88: #{mmt_forward.2} parent=11 // pred_fallthru
          _
        // Predicated region
        $region89: #{mmt_forward.2} parent=11 // pred_check
          %p1247 = pneg %p611
        $region90: #{mmt_forward.2} parent=11 // pred_check_branch
          %1249 = sbr.rel (%p1247) target = $region92
        $region91: #{mmt_forward.2} parent=11 // pred_region
          %s1251 = ssub.s32 16, 16
          %1252 = vsyncadd [#allocation31], %s1251
          %s1254 = sshll.u32 [#allocation32], 4
          %s1255 = int_to_ptr.vmem [resolvable:$true] %s1254
          %1257 = dma.hbm_to_vmem [thread:$0]  %s45, 16, %s1255, [#allocation31]
        $region92: #{mmt_forward.2} parent=11 // pred_fallthru
          _
        // Predicated region
        $region93: #{mmt_forward.2} parent=11 // pred_check
          %p1258 = pneg %p632
        $region94: #{mmt_forward.2} parent=11 // pred_check_branch
          %1260 = sbr.rel (%p1258) target = $region96
        $region95: #{mmt_forward.2} parent=11 // pred_region
          %s1262 = ssub.s32 3072, 3072
          %1263 = vsyncadd [#allocation34], %s1262
          %s1264 = sshll.u32 [#allocation33], 4
          %s1265 = int_to_ptr.vmem [resolvable:$true] %s1264
          %1270 = dma.hbm_to_vmem [thread:$0]  %s47, 3072, %s1265, [#allocation34], 64, 64, 4
        $region96: #{mmt_forward.2} parent=11 // pred_fallthru
          _
        // Predicated region
        $region97: #{mmt_forward.2} parent=11 // pred_check
          %p1271 = pneg %p653
        $region98: #{mmt_forward.2} parent=11 // pred_check_branch
          %1273 = sbr.rel (%p1271) target = $region100
        $region99: #{mmt_forward.2} parent=11 // pred_region
          %s1275 = ssub.s32 16, 16
          %1276 = vsyncadd [#allocation34], %s1275
          %s1278 = sshll.u32 [#allocation35], 4
          %s1279 = int_to_ptr.vmem [resolvable:$true] %s1278
          %1281 = dma.hbm_to_vmem [thread:$0]  %s49, 16, %s1279, [#allocation34]
        $region100: #{mmt_forward.2} parent=11 // pred_fallthru
          _
        // Predicated region
        $region101: #{mmt_forward.2} parent=11 // pred_check
          %p1282 = pneg %p674
        $region102: #{mmt_forward.2} parent=11 // pred_check_branch
          %1284 = sbr.rel (%p1282) target = $region104
        $region103: #{mmt_forward.2} parent=11 // pred_region
          %s1286 = ssub.s32 1024, 1024
          %1287 = vsyncadd [#allocation37], %s1286
          %s1288 = sshll.u32 [#allocation36], 4
          %s1289 = int_to_ptr.vmem [resolvable:$true] %s1288
          %1294 = dma.hbm_to_vmem [thread:$0]  %s51, 1024, %s1289, [#allocation37], 64, 64, 4
        $region104: #{mmt_forward.2} parent=11 // pred_fallthru
          _
        // Predicated region
        $region105: #{mmt_forward.2} parent=11 // pred_check
          %p1295 = pneg %p695
        $region106: #{mmt_forward.2} parent=11 // pred_check_branch
          %1297 = sbr.rel (%p1295) target = $region108
        $region107: #{mmt_forward.2} parent=11 // pred_region
          %s1299 = ssub.s32 16, 16
          %1300 = vsyncadd [#allocation37], %s1299
          %s1302 = sshll.u32 [#allocation38], 4
          %s1303 = int_to_ptr.vmem [resolvable:$true] %s1302
          %1305 = dma.hbm_to_vmem [thread:$0]  %s53, 16, %s1303, [#allocation37]
        $region108: #{mmt_forward.2} parent=11 // pred_fallthru
          _
        // Predicated region
        $region109: #{mmt_forward.2} parent=11 // pred_check
          %p1306 = pneg %p716
        $region110: #{mmt_forward.2} parent=11 // pred_check_branch
          %1308 = sbr.rel (%p1306) target = $region112
        $region111: #{mmt_forward.2} parent=11 // pred_region
          %s1310 = ssub.s32 1024, 1024
          %1311 = vsyncadd [#allocation40], %s1310
          %s1312 = sshll.u32 [#allocation39], 4
          %s1313 = int_to_ptr.vmem [resolvable:$true] %s1312
          %1318 = dma.hbm_to_vmem [thread:$0]  %s55, 1024, %s1313, [#allocation40], 64, 64, 4
        $region112: #{mmt_forward.2} parent=11 // pred_fallthru
          _
        // Predicated region
        $region113: #{mmt_forward.2} parent=11 // pred_check
          %p1319 = pneg %p737
        $region114: #{mmt_forward.2} parent=11 // pred_check_branch
          %1321 = sbr.rel (%p1319) target = $region116
        $region115: #{mmt_forward.2} parent=11 // pred_region
          %s1323 = ssub.s32 16, 16
          %1324 = vsyncadd [#allocation40], %s1323
          %s1326 = sshll.u32 [#allocation41], 4
          %s1327 = int_to_ptr.vmem [resolvable:$true] %s1326
          %1329 = dma.hbm_to_vmem [thread:$0]  %s57, 16, %s1327, [#allocation40]
        $region116: #{mmt_forward.2} parent=11 // pred_fallthru
          _
      $region12: #{mmt_forward.2} parent=5 // pred_fallthru
        _
      %p1330 = scmp.lt.s32.totalorder %s113, 2
      // Predicated region
      $region117: #{mmt_forward.2} parent=5 // pred_check
        %p1331 = pneg %p1330
      $region118: #{mmt_forward.2} parent=5 // pred_check_branch
        %1333 = sbr.rel (%p1331) target = $region120
      $region119: #{mmt_forward.2} parent=5 // pred_region
        // Predicated region
        $region121: #{mmt_forward.2} parent=119 // pred_check
          %p1334 = pneg %p133
        $region122: #{mmt_forward.2} parent=119 // pred_check_branch
          %1336 = sbr.rel (%p1334) target = $region124
        $region123: #{mmt_forward.2} parent=119 // pred_region
          %p1337 = scmp.lt.s32.totalorder %s113, 1
          %s1338 = scalar_select %p1337, %s113, 1
          %s1339 = smul.addr %s1338, 6
          %s1340 = smul.addr %s1339, 8
          %s1341 = scalar_lea.vmem %s1, %s1340
        $region124: #{mmt_forward.2} parent=119 // pred_fallthru
          _
        // Predicated region
        $region125: #{mmt_forward.2} parent=119 // pred_check
          %p1342 = pneg %p159
        $region126: #{mmt_forward.2} parent=119 // pred_check_branch
          %1344 = sbr.rel (%p1342) target = $region128
        $region127: #{mmt_forward.2} parent=119 // pred_region
          %p1345 = scmp.lt.s32.totalorder %s113, 1
          %s1346 = scalar_select %p1345, %s113, 1
          %s1347 = smul.addr %s1346, 8
          %s1348 = scalar_lea.vmem %s3, %s1347
        $region128: #{mmt_forward.2} parent=119 // pred_fallthru
          _
        // Predicated region
        $region129: #{mmt_forward.2} parent=119 // pred_check
          %p1349 = pneg %p185
        $region130: #{mmt_forward.2} parent=119 // pred_check_branch
          %1351 = sbr.rel (%p1349) target = $region132
        $region131: #{mmt_forward.2} parent=119 // pred_region
          %s1352 = sand.u32 %s175, 1
          %s1353 = scalar_lea.sflag [#allocation4], %s1352
          %s1354 = sand.u32 %s175, 1
          %s1355 = smul.addr %s1354, 48
          %s1356 = scalar_lea.vmem [#allocation3], %s1355
          %s1358 = ssub.s32 768, 768
          %1359 = vsyncadd %s1353, %s1358
          %s1360 = smul.addr %s113, 6
          %s1361 = smul.addr %s1360, 128
          %s1362 = scalar_lea.hbm %s5, %s1361
          %s1364 = sshll.u32 %s1356, 4
          %s1365 = int_to_ptr.vmem [resolvable:$true] %s1364
          %1367 = dma.hbm_to_vmem [thread:$0]  %s1362, 768, %s1365, %s1353
        $region132: #{mmt_forward.2} parent=119 // pred_fallthru
          _
      $region120: #{mmt_forward.2} parent=5 // pred_fallthru
        _
      %p1368 = scmp.le.s32.totalorder 1, %s113
      %p1369 = scmp.lt.s32.totalorder %s113, 3
      %p1370 = pnand %p1368, %p1369
      %p1371 = pneg %p1370
      // Predicated region
      $region133: #{mmt_forward.2} parent=5 // pred_check
        _
      $region134: #{mmt_forward.2} parent=5 // pred_check_branch
        %1373 = sbr.rel (%p1370) target = $region136
      $region135: #{mmt_forward.2} parent=5 // pred_region
        %s1374 = ssub.s32 %s113, 1
        %s1375 = sand.u32 %s178, 1
        %s1376 = scalar_lea.sflag [#allocation4], %s1375
        %s1377 = sand.u32 %s178, 1
        %s1378 = smul.addr %s1377, 48
        %s1379 = scalar_lea.vmem [#allocation3], %s1378
        // Predicated region
        $region137: #{mmt_forward.2} parent=135 // pred_check
          %p1380 = pneg %p191
        $region138: #{mmt_forward.2} parent=135 // pred_check_branch
          %1382 = sbr.rel (%p1380) target = $region140
        $region139: #{mmt_forward.2} parent=135 // pred_region
          %1383 = dma.done %s1376, 768
        $region140: #{mmt_forward.2} parent=135 // pred_fallthru
          _
        // Predicated region
        $region141: #{mmt_forward.2} parent=135 // pred_check
          %p1384 = pneg %p212
        $region142: #{mmt_forward.2} parent=135 // pred_check_branch
          %1386 = sbr.rel (%p1384) target = $region144
        $region143: #{mmt_forward.2} parent=135 // pred_region
          %1387 = dma.done [#allocation7], 12288
        $region144: #{mmt_forward.2} parent=135 // pred_fallthru
          _
        // Predicated region
        $region145: #{mmt_forward.2} parent=135 // pred_check
          %p1388 = pneg %p233
        $region146: #{mmt_forward.2} parent=135 // pred_check_branch
          %1390 = sbr.rel (%p1388) target = $region148
        $region147: #{mmt_forward.2} parent=135 // pred_region
          %1391 = dma.done [#allocation7], 32
        $region148: #{mmt_forward.2} parent=135 // pred_fallthru
          _
        // Predicated region
        $region149: #{mmt_forward.2} parent=135 // pred_check
          %p1392 = pneg %p275
        $region150: #{mmt_forward.2} parent=135 // pred_check_branch
          %1394 = sbr.rel (%p1392) target = $region152
        $region151: #{mmt_forward.2} parent=135 // pred_region
          %1395 = dma.done [#allocation10], 32
        $region152: #{mmt_forward.2} parent=135 // pred_fallthru
          _
        // Predicated region
        $region153: #{mmt_forward.2} parent=135 // pred_check
          %p1396 = pneg %p296
        $region154: #{mmt_forward.2} parent=135 // pred_check_branch
          %1398 = sbr.rel (%p1396) target = $region156
        $region155: #{mmt_forward.2} parent=135 // pred_region
          %1399 = dma.done [#allocation10], 12288
        $region156: #{mmt_forward.2} parent=135 // pred_fallthru
          _
        // Predicated region
        $region157: #{mmt_forward.2} parent=135 // pred_check
          %p1400 = pneg %p317
        $region158: #{mmt_forward.2} parent=135 // pred_check_branch
          %1402 = sbr.rel (%p1400) target = $region160
        $region159: #{mmt_forward.2} parent=135 // pred_region
          %1403 = dma.done [#allocation13], 32
        $region160: #{mmt_forward.2} parent=135 // pred_fallthru
          _
        // Predicated region
        $region161: #{mmt_forward.2} parent=135 // pred_check
          %p1404 = pneg %p359
        $region162: #{mmt_forward.2} parent=135 // pred_check_branch
          %1406 = sbr.rel (%p1404) target = $region164
        $region163: #{mmt_forward.2} parent=135 // pred_region
          %1407 = dma.done [#allocation13], 32
        $region164: #{mmt_forward.2} parent=135 // pred_fallthru
          _
        // Predicated region
        $region165: #{mmt_forward.2} parent=135 // pred_check
          %p1408 = pneg %p380
        $region166: #{mmt_forward.2} parent=135 // pred_check_branch
          %1410 = sbr.rel (%p1408) target = $region168
        $region167: #{mmt_forward.2} parent=135 // pred_region
          %1411 = dma.done [#allocation16], 4096
        $region168: #{mmt_forward.2} parent=135 // pred_fallthru
          _
        // Predicated region
        $region169: #{mmt_forward.2} parent=135 // pred_check
          %p1412 = pneg %p401
        $region170: #{mmt_forward.2} parent=135 // pred_check_branch
          %1414 = sbr.rel (%p1412) target = $region172
        $region171: #{mmt_forward.2} parent=135 // pred_region
          %1415 = dma.done [#allocation16], 32
        $region172: #{mmt_forward.2} parent=135 // pred_fallthru
          _
        // Predicated region
        $region173: #{mmt_forward.2} parent=135 // pred_check
          %p1416 = pneg %p422
        $region174: #{mmt_forward.2} parent=135 // pred_check_branch
          %1418 = sbr.rel (%p1416) target = $region176
        $region175: #{mmt_forward.2} parent=135 // pred_region
          %1419 = dma.done [#allocation19], 4096
        $region176: #{mmt_forward.2} parent=135 // pred_fallthru
          _
        // Predicated region
        $region177: #{mmt_forward.2} parent=135 // pred_check
          %p1420 = pneg %p443
        $region178: #{mmt_forward.2} parent=135 // pred_check_branch
          %1422 = sbr.rel (%p1420) target = $region180
        $region179: #{mmt_forward.2} parent=135 // pred_region
          %1423 = dma.done [#allocation19], 32
        $region180: #{mmt_forward.2} parent=135 // pred_fallthru
          _
        // Predicated region
        $region181: #{mmt_forward.2} parent=135 // pred_check
          %p1424 = pneg %p464
        $region182: #{mmt_forward.2} parent=135 // pred_check_branch
          %1426 = sbr.rel (%p1424) target = $region184
        $region183: #{mmt_forward.2} parent=135 // pred_region
          %1427 = dma.done [#allocation22], 1024
        $region184: #{mmt_forward.2} parent=135 // pred_fallthru
          _
        // Predicated region
        $region185: #{mmt_forward.2} parent=135 // pred_check
          %p1428 = pneg %p485
        $region186: #{mmt_forward.2} parent=135 // pred_check_branch
          %1430 = sbr.rel (%p1428) target = $region188
        $region187: #{mmt_forward.2} parent=135 // pred_region
          %1431 = dma.done [#allocation22], 16
        $region188: #{mmt_forward.2} parent=135 // pred_fallthru
          _
        // Predicated region
        $region189: #{mmt_forward.2} parent=135 // pred_check
          %p1432 = pneg %p506
        $region190: #{mmt_forward.2} parent=135 // pred_check_branch
          %1434 = sbr.rel (%p1432) target = $region192
        $region191: #{mmt_forward.2} parent=135 // pred_region
          %1435 = dma.done [#allocation25], 1024
        $region192: #{mmt_forward.2} parent=135 // pred_fallthru
          _
        // Predicated region
        $region193: #{mmt_forward.2} parent=135 // pred_check
          %p1436 = pneg %p527
        $region194: #{mmt_forward.2} parent=135 // pred_check_branch
          %1438 = sbr.rel (%p1436) target = $region196
        $region195: #{mmt_forward.2} parent=135 // pred_region
          %1439 = dma.done [#allocation25], 16
        $region196: #{mmt_forward.2} parent=135 // pred_fallthru
          _
        // Predicated region
        $region197: #{mmt_forward.2} parent=135 // pred_check
          %p1440 = pneg %p548
        $region198: #{mmt_forward.2} parent=135 // pred_check_branch
          %1442 = sbr.rel (%p1440) target = $region200
        $region199: #{mmt_forward.2} parent=135 // pred_region
          %1443 = dma.done [#allocation28], 1024
        $region200: #{mmt_forward.2} parent=135 // pred_fallthru
          _
        // Predicated region
        $region201: #{mmt_forward.2} parent=135 // pred_check
          %p1444 = pneg %p569
        $region202: #{mmt_forward.2} parent=135 // pred_check_branch
          %1446 = sbr.rel (%p1444) target = $region204
        $region203: #{mmt_forward.2} parent=135 // pred_region
          %1447 = dma.done [#allocation28], 16
        $region204: #{mmt_forward.2} parent=135 // pred_fallthru
          _
        // Predicated region
        $region205: #{mmt_forward.2} parent=135 // pred_check
          %p1448 = pneg %p590
        $region206: #{mmt_forward.2} parent=135 // pred_check_branch
          %1450 = sbr.rel (%p1448) target = $region208
        $region207: #{mmt_forward.2} parent=135 // pred_region
          %1451 = dma.done [#allocation31], 1024
        $region208: #{mmt_forward.2} parent=135 // pred_fallthru
          _
        // Predicated region
        $region209: #{mmt_forward.2} parent=135 // pred_check
          %p1452 = pneg %p611
        $region210: #{mmt_forward.2} parent=135 // pred_check_branch
          %1454 = sbr.rel (%p1452) target = $region212
        $region211: #{mmt_forward.2} parent=135 // pred_region
          %1455 = dma.done [#allocation31], 16
        $region212: #{mmt_forward.2} parent=135 // pred_fallthru
          _
        // Predicated region
        $region213: #{mmt_forward.2} parent=135 // pred_check
          %p1456 = pneg %p632
        $region214: #{mmt_forward.2} parent=135 // pred_check_branch
          %1458 = sbr.rel (%p1456) target = $region216
        $region215: #{mmt_forward.2} parent=135 // pred_region
          %1459 = dma.done [#allocation34], 3072
        $region216: #{mmt_forward.2} parent=135 // pred_fallthru
          _
        // Predicated region
        $region217: #{mmt_forward.2} parent=135 // pred_check
          %p1460 = pneg %p653
        $region218: #{mmt_forward.2} parent=135 // pred_check_branch
          %1462 = sbr.rel (%p1460) target = $region220
        $region219: #{mmt_forward.2} parent=135 // pred_region
          %1463 = dma.done [#allocation34], 16
        $region220: #{mmt_forward.2} parent=135 // pred_fallthru
          _
        // Predicated region
        $region221: #{mmt_forward.2} parent=135 // pred_check
          %p1464 = pneg %p674
        $region222: #{mmt_forward.2} parent=135 // pred_check_branch
          %1466 = sbr.rel (%p1464) target = $region224
        $region223: #{mmt_forward.2} parent=135 // pred_region
          %1467 = dma.done [#allocation37], 1024
        $region224: #{mmt_forward.2} parent=135 // pred_fallthru
          _
        // Predicated region
        $region225: #{mmt_forward.2} parent=135 // pred_check
          %p1468 = pneg %p695
        $region226: #{mmt_forward.2} parent=135 // pred_check_branch
          %1470 = sbr.rel (%p1468) target = $region228
        $region227: #{mmt_forward.2} parent=135 // pred_region
          %1471 = dma.done [#allocation37], 16
        $region228: #{mmt_forward.2} parent=135 // pred_fallthru
          _
        // Predicated region
        $region229: #{mmt_forward.2} parent=135 // pred_check
          %p1472 = pneg %p716
        $region230: #{mmt_forward.2} parent=135 // pred_check_branch
          %1474 = sbr.rel (%p1472) target = $region232
        $region231: #{mmt_forward.2} parent=135 // pred_region
          %1475 = dma.done [#allocation40], 1024
        $region232: #{mmt_forward.2} parent=135 // pred_fallthru
          _
        // Predicated region
        $region233: #{mmt_forward.2} parent=135 // pred_check
          %p1476 = pneg %p737
        $region234: #{mmt_forward.2} parent=135 // pred_check_branch
          %1478 = sbr.rel (%p1476) target = $region236
        $region235: #{mmt_forward.2} parent=135 // pred_region
          %1479 = dma.done [#allocation40], 16
        $region236: #{mmt_forward.2} parent=135 // pred_fallthru
          _
        %p1480 = scmp.lt.s32.totalorder %s118, 1
        %s1481 = scalar_select %p1480, %s118, 1
        %s1482 = smul.addr %s1481, 6
        %s1483 = smul.addr %s1482, 8
        %s1484 = scalar_lea.vmem %s1, %s1483
        %p1485 = pneg %p139
        %p1486 = pneg %p136
        %p1487 = scmp.lt.s32.totalorder %s118, 1
        %s1488 = scalar_select %p1487, %s118, 1
        %s1489 = smul.addr %s1488, 8
        %s1490 = scalar_lea.vmem %s3, %s1489
        %p1491 = pneg %p165
        %p1492 = pneg %p162
        %s1493 = sand.u32 %s178, 1
        %s1494 = scalar_lea.sflag [#allocation4], %s1493
        %s1495 = sand.u32 %s178, 1
        %s1496 = smul.addr %s1495, 48
        %s1497 = scalar_lea.vmem [#allocation3], %s1496
        %p1498 = pneg %p191
        %p1499 = pneg %p188
        %p1500 = pneg %p212
        %p1501 = pneg %p209
        %p1502 = pneg %p233
        %p1503 = pneg %p230
        %p1504 = pneg %p254
        %p1505 = pneg %p251
        %p1506 = pneg %p275
        %p1507 = pneg %p272
        %p1508 = pneg %p296
        %p1509 = pneg %p293
        %p1510 = pneg %p317
        %p1511 = pneg %p314
        %p1512 = pneg %p338
        %p1513 = pneg %p335
        %p1514 = pneg %p359
        %p1515 = pneg %p356
        %p1516 = pneg %p380
        %p1517 = pneg %p377
        %p1518 = pneg %p401
        %p1519 = pneg %p398
        %p1520 = pneg %p422
        %p1521 = pneg %p419
        %p1522 = pneg %p443
        %p1523 = pneg %p440
        %p1524 = pneg %p464
        %p1525 = pneg %p461
        %p1526 = pneg %p485
        %p1527 = pneg %p482
        %p1528 = pneg %p506
        %p1529 = pneg %p503
        %p1530 = pneg %p527
        %p1531 = pneg %p524
        %p1532 = pneg %p548
        %p1533 = pneg %p545
        %p1534 = pneg %p569
        %p1535 = pneg %p566
        %p1536 = pneg %p590
        %p1537 = pneg %p587
        %p1538 = pneg %p611
        %p1539 = pneg %p608
        %p1540 = pneg %p632
        %p1541 = pneg %p629
        %p1542 = pneg %p653
        %p1543 = pneg %p650
        %p1544 = pneg %p674
        %p1545 = pneg %p671
        %p1546 = pneg %p695
        %p1547 = pneg %p692
        %p1548 = pneg %p716
        %p1549 = pneg %p713
        %p1550 = pneg %p737
        %p1551 = pneg %p734
        %p1552 = pneg %p763
        %p1553 = pneg %p760
        %s1554 = sand.u32 %s750, 1
        %s1555 = scalar_lea.sflag [#allocation5], %s1554
        %s1556 = sand.u32 %s750, 1
        %s1557 = smul.addr %s1556, 16
        %s1558 = scalar_lea.vmem [#allocation42], %s1557
        %p1559 = pneg %p789
        %p1560 = pneg %p786
        %s1561 = sand.u32 %s118, 1
        %s1562 = scalar_lea.sflag [#allocation44], %s1561
        %s1563 = sand.u32 %s776, 1
        %s1564 = smul.addr %s1563, 16
        %s1565 = scalar_lea.vmem [#allocation43], %s1564
        %p1566 = pneg %p815
        %p1567 = pneg %p812
        %s1568 = sand.u32 %s118, 1
        %s1569 = scalar_lea.sflag [#allocation44], %s1568
        %s1570 = sand.u32 %s802, 1
        %s1571 = smul.addr %s1570, 16
        %s1572 = scalar_lea.vmem [#allocation45], %s1571
        %p1573 = pneg %p841
        %p1574 = pneg %p838
        %p1575 = scmp.lt.s32.totalorder %s118, 1
        %s1576 = scalar_select %p1575, %s118, 1
        %s1577 = smul.addr %s1576, 8
        %s1578 = scalar_lea.vmem %s65, %s1577
        %p1579 = pneg %p867
        %p1580 = pneg %p864
        %p1581 = scmp.lt.s32.totalorder %s118, 1
        %s1582 = scalar_select %p1581, %s118, 1
        %s1583 = smul.addr %s1582, 8
        %s1584 = scalar_lea.vmem %s67, %s1583
        %p1585 = pneg %p893
        %p1586 = pneg %p890
        %p1587 = scmp.lt.s32.totalorder %s118, 1
        %s1588 = scalar_select %p1587, %s118, 1
        %s1589 = smul.addr %s1588, 8
        %s1590 = scalar_lea.vmem %s69, %s1589
        %p1591 = pneg %p919
        %p1592 = pneg %p916
        %s1593 = sand.u32 %s118, 1
        %s1594 = scalar_lea.sflag [#allocation47], %s1593
        %s1595 = sand.u32 %s906, 1
        %s1596 = smul.addr %s1595, 8
        %s1597 = scalar_lea.vmem [#allocation46], %s1596
        %p1598 = pneg %p945
        %p1599 = pneg %p942
        %s1600 = sand.u32 %s118, 1
        %s1601 = scalar_lea.sflag [#allocation47], %s1600
        %s1602 = sand.u32 %s932, 1
        %s1603 = smul.addr %s1602, 8
        %s1604 = scalar_lea.vmem [#allocation48], %s1603
        %p1605 = pneg %p971
        %p1606 = pneg %p968
        %s1607 = sand.u32 %s958, 1
        %s1608 = scalar_lea.sflag [#allocation50], %s1607
        %s1609 = sand.u32 %s958, 1
        %s1610 = smul.addr %s1609, 8
        %s1611 = scalar_lea.vmem [#allocation49], %s1610
        %p1612 = pneg %p997
        %p1613 = pneg %p994
        %p1614 = scmp.lt.s32.totalorder %s118, 1
        %s1615 = scalar_select %p1614, %s118, 1
        %s1616 = smul.addr %s1615, 8
        %s1617 = scalar_lea.vmem %s77, %s1616
        %p1618 = pneg %p1023
        %p1619 = pneg %p1020
        %p1620 = scmp.lt.s32.totalorder %s118, 1
        %s1621 = scalar_select %p1620, %s118, 1
        %s1622 = smul.addr %s1621, 8
        %s1623 = scalar_lea.vmem %s79, %s1622
        %p1624 = scmp.lt.s32.totalorder %s118, 1
        %s1625 = scalar_select %p1624, %s118, 1
        %s1626 = smul.addr %s1625, 6
        %s1627 = smul.addr %s1626, 8
        %s1628 = scalar_lea.vmem %s1, %s1627
        %p1629 = scmp.lt.s32.totalorder %s118, 1
        %s1630 = scalar_select %p1629, %s118, 1
        %s1631 = smul.addr %s1630, 8
        %s1632 = scalar_lea.vmem %s3, %s1631
        %p1633 = scmp.lt.s32.totalorder %s118, 1
        %s1634 = scalar_select %p1633, %s118, 1
        %s1635 = smul.addr %s1634, 8
        %s1636 = scalar_lea.vmem %s65, %s1635
        %p1637 = scmp.lt.s32.totalorder %s118, 1
        %s1638 = scalar_select %p1637, %s118, 1
        %s1639 = smul.addr %s1638, 8
        %s1640 = scalar_lea.vmem %s67, %s1639
        %p1641 = scmp.lt.s32.totalorder %s118, 1
        %s1642 = scalar_select %p1641, %s118, 1
        %s1643 = smul.addr %s1642, 8
        %s1644 = scalar_lea.vmem %s69, %s1643
        %p1645 = scmp.lt.s32.totalorder %s118, 1
        %s1646 = scalar_select %p1645, %s118, 1
        %s1647 = smul.addr %s1646, 8
        %s1648 = scalar_lea.vmem %s77, %s1647
        %p1649 = scmp.lt.s32.totalorder %s118, 1
        %s1650 = scalar_select %p1649, %s118, 1
        %s1651 = smul.addr %s1650, 8
        %s1652 = scalar_lea.vmem %s79, %s1651
        %v1654 = vld [vmem:[%s1628] sm:$0xff]
        %v1655 = vld [vmem:[%s1628 + $0x8] sm:$0xff]
        %v1656 = vld [vmem:[%s1628 + $0x10] sm:$0xff]
        %v1657 = vld [vmem:[%s1628 + $0x18] sm:$0xff]
        %v1658 = vld [vmem:[%s1628 + $0x20] sm:$0xff]
        %v1659 = vld [vmem:[%s1628 + $0x28] sm:$0xff]
        %v1660 = vpack.c.bf16 %v1654, %v1654
        %v1661 = vpack.c.bf16 %v1655, %v1655
        %v1662 = vpack.c.bf16 %v1656, %v1656
        %v1663 = vpack.c.bf16 %v1657, %v1657
        %v1664 = vpack.c.bf16 %v1658, %v1658
        %v1665 = vpack.c.bf16 %v1659, %v1659
        %v1666 = vld [vmem:[#allocation6] sm:$0xff]
        %v1667 = vld [vmem:[#allocation6 + $0x8] sm:$0xff]
        %v1668 = vld [vmem:[#allocation6 + $0x10] sm:$0xff]
        %v1669 = vld [vmem:[#allocation6 + $0x18] sm:$0xff]
        %v1670 = vld [vmem:[#allocation6 + $0x20] sm:$0xff]
        %v1671 = vld [vmem:[#allocation6 + $0x28] sm:$0xff]
        %v1672 = vld [vmem:[#allocation6 + $0x30] sm:$0xff]
        %v1673 = vld [vmem:[#allocation6 + $0x38] sm:$0xff]
        %v1674 = vld [vmem:[#allocation6 + $0x40] sm:$0xff]
        %v1675 = vld [vmem:[#allocation6 + $0x48] sm:$0xff]
        %v1676 = vld [vmem:[#allocation6 + $0x50] sm:$0xff]
        %v1677 = vld [vmem:[#allocation6 + $0x58] sm:$0xff]
        %v1678 = vld [vmem:[#allocation6 + $0x60] sm:$0xff]
        %v1679 = vld [vmem:[#allocation6 + $0x68] sm:$0xff]
        %v1680 = vld [vmem:[#allocation6 + $0x70] sm:$0xff]
        %v1681 = vld [vmem:[#allocation6 + $0x78] sm:$0xff]
        %v1682 = vld [vmem:[#allocation6 + $0x80] sm:$0xff]
        %v1683 = vld [vmem:[#allocation6 + $0x88] sm:$0xff]
        %v1684 = vld [vmem:[#allocation6 + $0x90] sm:$0xff]
        %v1685 = vld [vmem:[#allocation6 + $0x98] sm:$0xff]
        %v1686 = vld [vmem:[#allocation6 + $0xa0] sm:$0xff]
        %v1687 = vld [vmem:[#allocation6 + $0xa8] sm:$0xff]
        %v1688 = vld [vmem:[#allocation6 + $0xb0] sm:$0xff]
        %v1689 = vld [vmem:[#allocation6 + $0xb8] sm:$0xff]
        %v1690 = vld [vmem:[#allocation6 + $0xc0] sm:$0xff]
        %v1691 = vld [vmem:[#allocation6 + $0xc8] sm:$0xff]
        %v1692 = vld [vmem:[#allocation6 + $0xd0] sm:$0xff]
        %v1693 = vld [vmem:[#allocation6 + $0xd8] sm:$0xff]
        %v1694 = vld [vmem:[#allocation6 + $0xe0] sm:$0xff]
        %v1695 = vld [vmem:[#allocation6 + $0xe8] sm:$0xff]
        %v1696 = vld [vmem:[#allocation6 + $0xf0] sm:$0xff]
        %v1697 = vld [vmem:[#allocation6 + $0xf8] sm:$0xff]
        %v1698 = vld [vmem:[#allocation6 + $0x100] sm:$0xff]
        %v1699 = vld [vmem:[#allocation6 + $0x108] sm:$0xff]
        %v1700 = vld [vmem:[#allocation6 + $0x110] sm:$0xff]
        %v1701 = vld [vmem:[#allocation6 + $0x118] sm:$0xff]
        %v1702 = vld [vmem:[#allocation6 + $0x120] sm:$0xff]
        %v1703 = vld [vmem:[#allocation6 + $0x128] sm:$0xff]
        %v1704 = vld [vmem:[#allocation6 + $0x130] sm:$0xff]
        %v1705 = vld [vmem:[#allocation6 + $0x138] sm:$0xff]
        %v1706 = vld [vmem:[#allocation6 + $0x140] sm:$0xff]
        %v1707 = vld [vmem:[#allocation6 + $0x148] sm:$0xff]
        %v1708 = vld [vmem:[#allocation6 + $0x150] sm:$0xff]
        %v1709 = vld [vmem:[#allocation6 + $0x158] sm:$0xff]
        %v1710 = vld [vmem:[#allocation6 + $0x160] sm:$0xff]
        %v1711 = vld [vmem:[#allocation6 + $0x168] sm:$0xff]
        %v1712 = vld [vmem:[#allocation6 + $0x170] sm:$0xff]
        %v1713 = vld [vmem:[#allocation6 + $0x178] sm:$0xff]
        %v1714 = vld [vmem:[#allocation6 + $0x180] sm:$0xff]
        %v1715 = vld [vmem:[#allocation6 + $0x188] sm:$0xff]
        %v1716 = vld [vmem:[#allocation6 + $0x190] sm:$0xff]
        %v1717 = vld [vmem:[#allocation6 + $0x198] sm:$0xff]
        %v1718 = vld [vmem:[#allocation6 + $0x1a0] sm:$0xff]
        %v1719 = vld [vmem:[#allocation6 + $0x1a8] sm:$0xff]
        %v1720 = vld [vmem:[#allocation6 + $0x1b0] sm:$0xff]
        %v1721 = vld [vmem:[#allocation6 + $0x1b8] sm:$0xff]
        %v1722 = vld [vmem:[#allocation6 + $0x1c0] sm:$0xff]
        %v1723 = vld [vmem:[#allocation6 + $0x1c8] sm:$0xff]
        %v1724 = vld [vmem:[#allocation6 + $0x1d0] sm:$0xff]
        %v1725 = vld [vmem:[#allocation6 + $0x1d8] sm:$0xff]
        %v1726 = vld [vmem:[#allocation6 + $0x1e0] sm:$0xff]
        %v1727 = vld [vmem:[#allocation6 + $0x1e8] sm:$0xff]
        %v1728 = vld [vmem:[#allocation6 + $0x1f0] sm:$0xff]
        %v1729 = vld [vmem:[#allocation6 + $0x1f8] sm:$0xff]
        %v1730 = vld [vmem:[#allocation6 + $0x200] sm:$0xff]
        %v1731 = vld [vmem:[#allocation6 + $0x208] sm:$0xff]
        %v1732 = vld [vmem:[#allocation6 + $0x210] sm:$0xff]
        %v1733 = vld [vmem:[#allocation6 + $0x218] sm:$0xff]
        %v1734 = vld [vmem:[#allocation6 + $0x220] sm:$0xff]
        %v1735 = vld [vmem:[#allocation6 + $0x228] sm:$0xff]
        %v1736 = vld [vmem:[#allocation6 + $0x230] sm:$0xff]
        %v1737 = vld [vmem:[#allocation6 + $0x238] sm:$0xff]
        %v1738 = vld [vmem:[#allocation6 + $0x240] sm:$0xff]
        %v1739 = vld [vmem:[#allocation6 + $0x248] sm:$0xff]
        %v1740 = vld [vmem:[#allocation6 + $0x250] sm:$0xff]
        %v1741 = vld [vmem:[#allocation6 + $0x258] sm:$0xff]
        %v1742 = vld [vmem:[#allocation6 + $0x260] sm:$0xff]
        %v1743 = vld [vmem:[#allocation6 + $0x268] sm:$0xff]
        %v1744 = vld [vmem:[#allocation6 + $0x270] sm:$0xff]
        %v1745 = vld [vmem:[#allocation6 + $0x278] sm:$0xff]
        %v1746 = vld [vmem:[#allocation6 + $0x280] sm:$0xff]
        %v1747 = vld [vmem:[#allocation6 + $0x288] sm:$0xff]
        %v1748 = vld [vmem:[#allocation6 + $0x290] sm:$0xff]
        %v1749 = vld [vmem:[#allocation6 + $0x298] sm:$0xff]
        %v1750 = vld [vmem:[#allocation6 + $0x2a0] sm:$0xff]
        %v1751 = vld [vmem:[#allocation6 + $0x2a8] sm:$0xff]
        %v1752 = vld [vmem:[#allocation6 + $0x2b0] sm:$0xff]
        %v1753 = vld [vmem:[#allocation6 + $0x2b8] sm:$0xff]
        %v1754 = vld [vmem:[#allocation6 + $0x2c0] sm:$0xff]
        %v1755 = vld [vmem:[#allocation6 + $0x2c8] sm:$0xff]
        %v1756 = vld [vmem:[#allocation6 + $0x2d0] sm:$0xff]
        %v1757 = vld [vmem:[#allocation6 + $0x2d8] sm:$0xff]
        %v1758 = vld [vmem:[#allocation6 + $0x2e0] sm:$0xff]
        %v1759 = vld [vmem:[#allocation6 + $0x2e8] sm:$0xff]
        %v1760 = vld [vmem:[#allocation6 + $0x2f0] sm:$0xff]
        %v1761 = vld [vmem:[#allocation6 + $0x2f8] sm:$0xff]
        %v1762 = vld [vmem:[#allocation8] sm:$0x3]
        %v1764 = vlaneseq
        %v1765 = vshrl.u32 %v1764, 7
        %v1766 = vsub.s32 0, %v1765
        %v1767 = vrot.slane %v1762, %v1766
        %v1768 = vlaneseq
        %v1769 = vshrl.u32 %v1768, 7
        %v1770 = vsub.s32 1, %v1769
        %v1771 = vrot.slane %v1762, %v1770
        %v1870 = vunpack.c.l.b16 %v1666
        %v1871 = vunpack.c.h.b16 %v1666
        %v1872 = vunpack.c.l.b16 %v1667
        %v1873 = vunpack.c.h.b16 %v1667
        %v1874 = vunpack.c.l.b16 %v1668
        %v1875 = vunpack.c.h.b16 %v1668
        %v1876 = vunpack.c.l.b16 %v1669
        %v1877 = vunpack.c.h.b16 %v1669
        %v1878 = vunpack.c.l.b16 %v1670
        %v1879 = vunpack.c.h.b16 %v1670
        %v1880 = vunpack.c.l.b16 %v1671
        %v1881 = vunpack.c.h.b16 %v1671
        %v1882 = vunpack.c.l.b16 %v1672
        %v1883 = vunpack.c.h.b16 %v1672
        %v1884 = vunpack.c.l.b16 %v1673
        %v1885 = vunpack.c.h.b16 %v1673
        %v1886 = vunpack.c.l.b16 %v1674
        %v1887 = vunpack.c.h.b16 %v1674
        %v1888 = vunpack.c.l.b16 %v1675
        %v1889 = vunpack.c.h.b16 %v1675
        %v1890 = vunpack.c.l.b16 %v1676
        %v1891 = vunpack.c.h.b16 %v1676
        %v1892 = vunpack.c.l.b16 %v1677
        %v1893 = vunpack.c.h.b16 %v1677
        %v1894 = vunpack.c.l.b16 %v1678
        %v1895 = vunpack.c.h.b16 %v1678
        %v1896 = vunpack.c.l.b16 %v1679
        %v1897 = vunpack.c.h.b16 %v1679
        %v1898 = vunpack.c.l.b16 %v1680
        %v1899 = vunpack.c.h.b16 %v1680
        %v1900 = vunpack.c.l.b16 %v1681
        %v1901 = vunpack.c.h.b16 %v1681
        %v1902 = vunpack.c.l.b16 %v1682
        %v1903 = vunpack.c.h.b16 %v1682
        %v1904 = vunpack.c.l.b16 %v1683
        %v1905 = vunpack.c.h.b16 %v1683
        %v1906 = vunpack.c.l.b16 %v1684
        %v1907 = vunpack.c.h.b16 %v1684
        %v1908 = vunpack.c.l.b16 %v1685
        %v1909 = vunpack.c.h.b16 %v1685
        %v1910 = vunpack.c.l.b16 %v1686
        %v1911 = vunpack.c.h.b16 %v1686
        %v1912 = vunpack.c.l.b16 %v1687
        %v1913 = vunpack.c.h.b16 %v1687
        %v1914 = vunpack.c.l.b16 %v1688
        %v1915 = vunpack.c.h.b16 %v1688
        %v1916 = vunpack.c.l.b16 %v1689
        %v1917 = vunpack.c.h.b16 %v1689
        %v1918 = vunpack.c.l.b16 %v1690
        %v1919 = vunpack.c.h.b16 %v1690
        %v1920 = vunpack.c.l.b16 %v1691
        %v1921 = vunpack.c.h.b16 %v1691
        %v1922 = vunpack.c.l.b16 %v1692
        %v1923 = vunpack.c.h.b16 %v1692
        %v1924 = vunpack.c.l.b16 %v1693
        %v1925 = vunpack.c.h.b16 %v1693
        %v1926 = vunpack.c.l.b16 %v1694
        %v1927 = vunpack.c.h.b16 %v1694
        %v1928 = vunpack.c.l.b16 %v1695
        %v1929 = vunpack.c.h.b16 %v1695
        %v1930 = vunpack.c.l.b16 %v1696
        %v1931 = vunpack.c.h.b16 %v1696
        %v1932 = vunpack.c.l.b16 %v1697
        %v1933 = vunpack.c.h.b16 %v1697
        %v1934 = vunpack.c.l.b16 %v1698
        %v1935 = vunpack.c.h.b16 %v1698
        %v1936 = vunpack.c.l.b16 %v1699
        %v1937 = vunpack.c.h.b16 %v1699
        %v1938 = vunpack.c.l.b16 %v1700
        %v1939 = vunpack.c.h.b16 %v1700
        %v1940 = vunpack.c.l.b16 %v1701
        %v1941 = vunpack.c.h.b16 %v1701
        %v1942 = vunpack.c.l.b16 %v1702
        %v1943 = vunpack.c.h.b16 %v1702
        %v1944 = vunpack.c.l.b16 %v1703
        %v1945 = vunpack.c.h.b16 %v1703
        %v1946 = vunpack.c.l.b16 %v1704
        %v1947 = vunpack.c.h.b16 %v1704
        %v1948 = vunpack.c.l.b16 %v1705
        %v1949 = vunpack.c.h.b16 %v1705
        %v1950 = vunpack.c.l.b16 %v1706
        %v1951 = vunpack.c.h.b16 %v1706
        %v1952 = vunpack.c.l.b16 %v1707
        %v1953 = vunpack.c.h.b16 %v1707
        %v1954 = vunpack.c.l.b16 %v1708
        %v1955 = vunpack.c.h.b16 %v1708
        %v1956 = vunpack.c.l.b16 %v1709
        %v1957 = vunpack.c.h.b16 %v1709
        %v1958 = vunpack.c.l.b16 %v1710
        %v1959 = vunpack.c.h.b16 %v1710
        %v1960 = vunpack.c.l.b16 %v1711
        %v1961 = vunpack.c.h.b16 %v1711
        %v1962 = vunpack.c.l.b16 %v1712
        %v1963 = vunpack.c.h.b16 %v1712
        %v1964 = vunpack.c.l.b16 %v1713
        %v1965 = vunpack.c.h.b16 %v1713
        %v1966 = vunpack.c.l.b16 %v1714
        %v1967 = vunpack.c.h.b16 %v1714
        %v1968 = vunpack.c.l.b16 %v1715
        %v1969 = vunpack.c.h.b16 %v1715
        %v1970 = vunpack.c.l.b16 %v1716
        %v1971 = vunpack.c.h.b16 %v1716
        %v1972 = vunpack.c.l.b16 %v1717
        %v1973 = vunpack.c.h.b16 %v1717
        %v1974 = vunpack.c.l.b16 %v1718
        %v1975 = vunpack.c.h.b16 %v1718
        %v1976 = vunpack.c.l.b16 %v1719
        %v1977 = vunpack.c.h.b16 %v1719
        %v1978 = vunpack.c.l.b16 %v1720
        %v1979 = vunpack.c.h.b16 %v1720
        %v1980 = vunpack.c.l.b16 %v1721
        %v1981 = vunpack.c.h.b16 %v1721
        %v1982 = vunpack.c.l.b16 %v1722
        %v1983 = vunpack.c.h.b16 %v1722
        %v1984 = vunpack.c.l.b16 %v1723
        %v1985 = vunpack.c.h.b16 %v1723
        %v1986 = vunpack.c.l.b16 %v1724
        %v1987 = vunpack.c.h.b16 %v1724
        %v1988 = vunpack.c.l.b16 %v1725
        %v1989 = vunpack.c.h.b16 %v1725
        %v1990 = vunpack.c.l.b16 %v1726
        %v1991 = vunpack.c.h.b16 %v1726
        %v1992 = vunpack.c.l.b16 %v1727
        %v1993 = vunpack.c.h.b16 %v1727
        %v1994 = vunpack.c.l.b16 %v1728
        %v1995 = vunpack.c.h.b16 %v1728
        %v1996 = vunpack.c.l.b16 %v1729
        %v1997 = vunpack.c.h.b16 %v1729
        %v1998 = vunpack.c.l.b16 %v1730
        %v1999 = vunpack.c.h.b16 %v1730
        %v2000 = vunpack.c.l.b16 %v1731
        %v2001 = vunpack.c.h.b16 %v1731
        %v2002 = vunpack.c.l.b16 %v1732
        %v2003 = vunpack.c.h.b16 %v1732
        %v2004 = vunpack.c.l.b16 %v1733
        %v2005 = vunpack.c.h.b16 %v1733
        %v2006 = vunpack.c.l.b16 %v1734
        %v2007 = vunpack.c.h.b16 %v1734
        %v2008 = vunpack.c.l.b16 %v1735
        %v2009 = vunpack.c.h.b16 %v1735
        %v2010 = vunpack.c.l.b16 %v1736
        %v2011 = vunpack.c.h.b16 %v1736
        %v2012 = vunpack.c.l.b16 %v1737
        %v2013 = vunpack.c.h.b16 %v1737
        %v2014 = vunpack.c.l.b16 %v1738
        %v2015 = vunpack.c.h.b16 %v1738
        %v2016 = vunpack.c.l.b16 %v1739
        %v2017 = vunpack.c.h.b16 %v1739
        %v2018 = vunpack.c.l.b16 %v1740
        %v2019 = vunpack.c.h.b16 %v1740
        %v2020 = vunpack.c.l.b16 %v1741
        %v2021 = vunpack.c.h.b16 %v1741
        %v2022 = vunpack.c.l.b16 %v1742
        %v2023 = vunpack.c.h.b16 %v1742
        %v2024 = vunpack.c.l.b16 %v1743
        %v2025 = vunpack.c.h.b16 %v1743
        %v2026 = vunpack.c.l.b16 %v1744
        %v2027 = vunpack.c.h.b16 %v1744
        %v2028 = vunpack.c.l.b16 %v1745
        %v2029 = vunpack.c.h.b16 %v1745
        %v2030 = vunpack.c.l.b16 %v1746
        %v2031 = vunpack.c.h.b16 %v1746
        %v2032 = vunpack.c.l.b16 %v1747
        %v2033 = vunpack.c.h.b16 %v1747
        %v2034 = vunpack.c.l.b16 %v1748
        %v2035 = vunpack.c.h.b16 %v1748
        %v2036 = vunpack.c.l.b16 %v1749
        %v2037 = vunpack.c.h.b16 %v1749
        %v2038 = vunpack.c.l.b16 %v1750
        %v2039 = vunpack.c.h.b16 %v1750
        %v2040 = vunpack.c.l.b16 %v1751
        %v2041 = vunpack.c.h.b16 %v1751
        %v2042 = vunpack.c.l.b16 %v1752
        %v2043 = vunpack.c.h.b16 %v1752
        %v2044 = vunpack.c.l.b16 %v1753
        %v2045 = vunpack.c.h.b16 %v1753
        %v2046 = vunpack.c.l.b16 %v1754
        %v2047 = vunpack.c.h.b16 %v1754
        %v2048 = vunpack.c.l.b16 %v1755
        %v2049 = vunpack.c.h.b16 %v1755
        %v2050 = vunpack.c.l.b16 %v1756
        %v2051 = vunpack.c.h.b16 %v1756
        %v2052 = vunpack.c.l.b16 %v1757
        %v2053 = vunpack.c.h.b16 %v1757
        %v2054 = vunpack.c.l.b16 %v1758
        %v2055 = vunpack.c.h.b16 %v1758
        %v2056 = vunpack.c.l.b16 %v1759
        %v2057 = vunpack.c.h.b16 %v1759
        %v2058 = vunpack.c.l.b16 %v1760
        %v2059 = vunpack.c.h.b16 %v1760
        %v2060 = vunpack.c.l.b16 %v1761
        %v2061 = vunpack.c.h.b16 %v1761
        %v2062 = vpack.c.b16 %v1872, %v1870
        %v2063 = vpack.c.b16 %v1873, %v1871
        %v2064 = vpack.c.b16 %v1876, %v1874
        %v2065 = vpack.c.b16 %v1877, %v1875
        %v2066 = vpack.c.b16 %v1880, %v1878
        %v2067 = vpack.c.b16 %v1881, %v1879
        %v2068 = vpack.c.b16 %v1884, %v1882
        %v2069 = vpack.c.b16 %v1885, %v1883
        %v2070 = vpack.c.b16 %v1888, %v1886
        %v2071 = vpack.c.b16 %v1889, %v1887
        %v2072 = vpack.c.b16 %v1892, %v1890
        %v2073 = vpack.c.b16 %v1893, %v1891
        %v2074 = vpack.c.b16 %v1896, %v1894
        %v2075 = vpack.c.b16 %v1897, %v1895
        %v2076 = vpack.c.b16 %v1900, %v1898
        %v2077 = vpack.c.b16 %v1901, %v1899
        %v2078 = vpack.c.b16 %v1904, %v1902
        %v2079 = vpack.c.b16 %v1905, %v1903
        %v2080 = vpack.c.b16 %v1908, %v1906
        %v2081 = vpack.c.b16 %v1909, %v1907
        %v2082 = vpack.c.b16 %v1912, %v1910
        %v2083 = vpack.c.b16 %v1913, %v1911
        %v2084 = vpack.c.b16 %v1916, %v1914
        %v2085 = vpack.c.b16 %v1917, %v1915
        %v2086 = vpack.c.b16 %v1920, %v1918
        %v2087 = vpack.c.b16 %v1921, %v1919
        %v2088 = vpack.c.b16 %v1924, %v1922
        %v2089 = vpack.c.b16 %v1925, %v1923
        %v2090 = vpack.c.b16 %v1928, %v1926
        %v2091 = vpack.c.b16 %v1929, %v1927
        %v2092 = vpack.c.b16 %v1932, %v1930
        %v2093 = vpack.c.b16 %v1933, %v1931
        %v2094 = vpack.c.b16 %v1936, %v1934
        %v2095 = vpack.c.b16 %v1937, %v1935
        %v2096 = vpack.c.b16 %v1940, %v1938
        %v2097 = vpack.c.b16 %v1941, %v1939
        %v2098 = vpack.c.b16 %v1944, %v1942
        %v2099 = vpack.c.b16 %v1945, %v1943
        %v2100 = vpack.c.b16 %v1948, %v1946
        %v2101 = vpack.c.b16 %v1949, %v1947
        %v2102 = vpack.c.b16 %v1952, %v1950
        %v2103 = vpack.c.b16 %v1953, %v1951
        %v2104 = vpack.c.b16 %v1956, %v1954
        %v2105 = vpack.c.b16 %v1957, %v1955
        %v2106 = vpack.c.b16 %v1960, %v1958
        %v2107 = vpack.c.b16 %v1961, %v1959
        %v2108 = vpack.c.b16 %v1964, %v1962
        %v2109 = vpack.c.b16 %v1965, %v1963
        %v2110 = vpack.c.b16 %v1968, %v1966
        %v2111 = vpack.c.b16 %v1969, %v1967
        %v2112 = vpack.c.b16 %v1972, %v1970
        %v2113 = vpack.c.b16 %v1973, %v1971
        %v2114 = vpack.c.b16 %v1976, %v1974
        %v2115 = vpack.c.b16 %v1977, %v1975
        %v2116 = vpack.c.b16 %v1980, %v1978
        %v2117 = vpack.c.b16 %v1981, %v1979
        %v2118 = vpack.c.b16 %v1984, %v1982
        %v2119 = vpack.c.b16 %v1985, %v1983
        %v2120 = vpack.c.b16 %v1988, %v1986
        %v2121 = vpack.c.b16 %v1989, %v1987
        %v2122 = vpack.c.b16 %v1992, %v1990
        %v2123 = vpack.c.b16 %v1993, %v1991
        %v2124 = vpack.c.b16 %v1996, %v1994
        %v2125 = vpack.c.b16 %v1997, %v1995
        %v2126 = vpack.c.b16 %v2000, %v1998
        %v2127 = vpack.c.b16 %v2001, %v1999
        %v2128 = vpack.c.b16 %v2004, %v2002
        %v2129 = vpack.c.b16 %v2005, %v2003
        %v2130 = vpack.c.b16 %v2008, %v2006
        %v2131 = vpack.c.b16 %v2009, %v2007
        %v2132 = vpack.c.b16 %v2012, %v2010
        %v2133 = vpack.c.b16 %v2013, %v2011
        %v2134 = vpack.c.b16 %v2016, %v2014
        %v2135 = vpack.c.b16 %v2017, %v2015
        %v2136 = vpack.c.b16 %v2020, %v2018
        %v2137 = vpack.c.b16 %v2021, %v2019
        %v2138 = vpack.c.b16 %v2024, %v2022
        %v2139 = vpack.c.b16 %v2025, %v2023
        %v2140 = vpack.c.b16 %v2028, %v2026
        %v2141 = vpack.c.b16 %v2029, %v2027
        %v2142 = vpack.c.b16 %v2032, %v2030
        %v2143 = vpack.c.b16 %v2033, %v2031
        %v2144 = vpack.c.b16 %v2036, %v2034
        %v2145 = vpack.c.b16 %v2037, %v2035
        %v2146 = vpack.c.b16 %v2040, %v2038
        %v2147 = vpack.c.b16 %v2041, %v2039
        %v2148 = vpack.c.b16 %v2044, %v2042
        %v2149 = vpack.c.b16 %v2045, %v2043
        %v2150 = vpack.c.b16 %v2048, %v2046
        %v2151 = vpack.c.b16 %v2049, %v2047
        %v2152 = vpack.c.b16 %v2052, %v2050
        %v2153 = vpack.c.b16 %v2053, %v2051
        %v2154 = vpack.c.b16 %v2056, %v2054
        %v2155 = vpack.c.b16 %v2057, %v2055
        %v2156 = vpack.c.b16 %v2060, %v2058
        %v2157 = vpack.c.b16 %v2061, %v2059
        %2254 = vmatprep.subr.bf16.mxu0 %v2063
        %2255 = vmatpush1.bf16.msra.mxu0 %v2062
        %2256 = vmatprep.subr.bf16.mxu0 %v2065
        %2257 = vmatpush1.bf16.msra.mxu0 %v2064
        %2258 = vmatprep.subr.bf16.mxu0 %v2067
        %2259 = vmatpush1.bf16.msra.mxu0 %v2066
        %2260 = vmatprep.subr.bf16.mxu0 %v2069
        %2261 = vmatpush1.bf16.msra.mxu0 %v2068
        %2262 = vmatprep.subr.bf16.mxu0 %v2071
        %2263 = vmatpush1.bf16.msra.mxu0 %v2070
        %2264 = vmatprep.subr.bf16.mxu0 %v2073
        %2265 = vmatpush1.bf16.msra.mxu0 %v2072
        %2266 = vmatprep.subr.bf16.mxu0 %v2075
        %2267 = vmatpush1.bf16.msra.mxu0 %v2074
        %2268 = vmatprep.subr.bf16.mxu0 %v2077
        %2269 = vmatpush1.bf16.msra.mxu0 %v2076
        %2270 = vmatprep.subr.bf16.mxu0 %v2079
        %2271 = vmatpush1.bf16.msra.mxu0 %v2078
        %2272 = vmatprep.subr.bf16.mxu0 %v2081
        %2273 = vmatpush1.bf16.msra.mxu0 %v2080
        %2274 = vmatprep.subr.bf16.mxu0 %v2083
        %2275 = vmatpush1.bf16.msra.mxu0 %v2082
        %2276 = vmatprep.subr.bf16.mxu0 %v2085
        %2277 = vmatpush1.bf16.msra.mxu0 %v2084
        %2278 = vmatprep.subr.bf16.mxu0 %v2087
        %2279 = vmatpush1.bf16.msra.mxu0 %v2086
        %2280 = vmatprep.subr.bf16.mxu0 %v2089
        %2281 = vmatpush1.bf16.msra.mxu0 %v2088
        %2282 = vmatprep.subr.bf16.mxu0 %v2091
        %2283 = vmatpush1.bf16.msra.mxu0 %v2090
        %2284 = vmatprep.subr.bf16.mxu0 %v2093
        %2285 = vmatpush1.bf16.msra.mxu0 %v2092
        %2286 = vmatprep.mubr.bf16.mxu0 %v1661
        %2287 = vmatmul.mubr.bf16.gmra.mrb[0].mxu0 %v1660
        %v2288 = vpop.f32.mrb[0].mxu0
        %v2289 = vadd.f32 %v1767, %v2288
        %v2290 = vpop.f32.mrb[0].mxu0
        %v2291 = vadd.f32 %v1771, %v2290
        %v2292 = vpop.f32.mrb[0].mxu0
        %v2293 = vpop.f32.mrb[0].mxu0
        %2294 = vdwg.mxu0
        %2295 = vmatprep.subr.bf16.mxu0 %v2095
        %2296 = vmatpush1.bf16.msra.mxu0 %v2094
        %2297 = vmatprep.subr.bf16.mxu0 %v2097
        %2298 = vmatpush1.bf16.msra.mxu0 %v2096
        %2299 = vmatprep.subr.bf16.mxu0 %v2099
        %2300 = vmatpush1.bf16.msra.mxu0 %v2098
        %2301 = vmatprep.subr.bf16.mxu0 %v2101
        %2302 = vmatpush1.bf16.msra.mxu0 %v2100
        %2303 = vmatprep.subr.bf16.mxu0 %v2103
        %2304 = vmatpush1.bf16.msra.mxu0 %v2102
        %2305 = vmatprep.subr.bf16.mxu0 %v2105
        %2306 = vmatpush1.bf16.msra.mxu0 %v2104
        %2307 = vmatprep.subr.bf16.mxu0 %v2107
        %2308 = vmatpush1.bf16.msra.mxu0 %v2106
        %2309 = vmatprep.subr.bf16.mxu0 %v2109
        %2310 = vmatpush1.bf16.msra.mxu0 %v2108
        %2311 = vmatprep.subr.bf16.mxu0 %v2111
        %2312 = vmatpush1.bf16.msra.mxu0 %v2110
        %2313 = vmatprep.subr.bf16.mxu0 %v2113
        %2314 = vmatpush1.bf16.msra.mxu0 %v2112
        %2315 = vmatprep.subr.bf16.mxu0 %v2115
        %2316 = vmatpush1.bf16.msra.mxu0 %v2114
        %2317 = vmatprep.subr.bf16.mxu0 %v2117
        %2318 = vmatpush1.bf16.msra.mxu0 %v2116
        %2319 = vmatprep.subr.bf16.mxu0 %v2119
        %2320 = vmatpush1.bf16.msra.mxu0 %v2118
        %2321 = vmatprep.subr.bf16.mxu0 %v2121
        %2322 = vmatpush1.bf16.msra.mxu0 %v2120
        %2323 = vmatprep.subr.bf16.mxu0 %v2123
        %2324 = vmatpush1.bf16.msra.mxu0 %v2122
        %2325 = vmatprep.subr.bf16.mxu0 %v2125
        %2326 = vmatpush1.bf16.msra.mxu0 %v2124
        %2327 = vmatprep.mubr.bf16.mxu0 %v1663
        %2328 = vmatmul.mubr.bf16.gmra.mrb[0].mxu0 %v1662
        %v2329 = vpop.f32.mrb[0].mxu0
        %v2330 = vadd.f32 %v2289, %v2329
        %v2331 = vpop.f32.mrb[0].mxu0
        %v2332 = vadd.f32 %v2291, %v2331
        %v2333 = vpop.f32.mrb[0].mxu0
        %v2334 = vpop.f32.mrb[0].mxu0
        %2335 = vdwg.mxu0
        %2336 = vmatprep.subr.bf16.mxu0 %v2127
        %2337 = vmatpush1.bf16.msra.mxu0 %v2126
        %2338 = vmatprep.subr.bf16.mxu0 %v2129
        %2339 = vmatpush1.bf16.msra.mxu0 %v2128
        %2340 = vmatprep.subr.bf16.mxu0 %v2131
        %2341 = vmatpush1.bf16.msra.mxu0 %v2130
        %2342 = vmatprep.subr.bf16.mxu0 %v2133
        %2343 = vmatpush1.bf16.msra.mxu0 %v2132
        %2344 = vmatprep.subr.bf16.mxu0 %v2135
        %2345 = vmatpush1.bf16.msra.mxu0 %v2134
        %2346 = vmatprep.subr.bf16.mxu0 %v2137
        %2347 = vmatpush1.bf16.msra.mxu0 %v2136
        %2348 = vmatprep.subr.bf16.mxu0 %v2139
        %2349 = vmatpush1.bf16.msra.mxu0 %v2138
        %2350 = vmatprep.subr.bf16.mxu0 %v2141
        %2351 = vmatpush1.bf16.msra.mxu0 %v2140
        %2352 = vmatprep.subr.bf16.mxu0 %v2143
        %2353 = vmatpush1.bf16.msra.mxu0 %v2142
        %2354 = vmatprep.subr.bf16.mxu0 %v2145
        %2355 = vmatpush1.bf16.msra.mxu0 %v2144
        %2356 = vmatprep.subr.bf16.mxu0 %v2147
        %2357 = vmatpush1.bf16.msra.mxu0 %v2146
        %2358 = vmatprep.subr.bf16.mxu0 %v2149
        %2359 = vmatpush1.bf16.msra.mxu0 %v2148
        %2360 = vmatprep.subr.bf16.mxu0 %v2151
        %2361 = vmatpush1.bf16.msra.mxu0 %v2150
        %2362 = vmatprep.subr.bf16.mxu0 %v2153
        %2363 = vmatpush1.bf16.msra.mxu0 %v2152
        %2364 = vmatprep.subr.bf16.mxu0 %v2155
        %2365 = vmatpush1.bf16.msra.mxu0 %v2154
        %2366 = vmatprep.subr.bf16.mxu0 %v2157
        %2367 = vmatpush1.bf16.msra.mxu0 %v2156
        %2368 = vmatprep.mubr.bf16.mxu0 %v1665
        %2369 = vmatmul.mubr.bf16.gmra.mrb[0].mxu0 %v1664
        %v2370 = vpop.f32.mrb[0].mxu0
        %v2371 = vadd.f32 %v2330, %v2370
        %v2372 = vpop.f32.mrb[0].mxu0
        %v2373 = vadd.f32 %v2332, %v2372
        %v2374 = vpop.f32.mrb[0].mxu0
        %v2375 = vpop.f32.mrb[0].mxu0
        %2376 = vdwg.mxu0
        %v2377 = vld [vmem:[%s1632] sm:$0xff]
        %v2378 = vpack.c.bf16 %v2377, %v2377
        %v2379 = vld [vmem:[%s11] sm:$0xff]
        %v2380 = vld [vmem:[%s11 + $0x8] sm:$0xff]
        %v2381 = vld [vmem:[%s11 + $0x10] sm:$0xff]
        %v2382 = vld [vmem:[%s11 + $0x18] sm:$0xff]
        %v2383 = vld [vmem:[%s11 + $0x20] sm:$0xff]
        %v2384 = vld [vmem:[%s11 + $0x28] sm:$0xff]
        %v2385 = vld [vmem:[%s11 + $0x30] sm:$0xff]
        %v2386 = vld [vmem:[%s11 + $0x38] sm:$0xff]
        %v2387 = vld [vmem:[%s11 + $0x40] sm:$0xff]
        %v2388 = vld [vmem:[%s11 + $0x48] sm:$0xff]
        %v2389 = vld [vmem:[%s11 + $0x50] sm:$0xff]
        %v2390 = vld [vmem:[%s11 + $0x58] sm:$0xff]
        %v2391 = vld [vmem:[%s11 + $0x60] sm:$0xff]
        %v2392 = vld [vmem:[%s11 + $0x68] sm:$0xff]
        %v2393 = vld [vmem:[%s11 + $0x70] sm:$0xff]
        %v2394 = vld [vmem:[%s11 + $0x78] sm:$0xff]
        %v2395 = vld [vmem:[#allocation9] sm:$0x3]
        %v2397 = vlaneseq
        %v2398 = vshrl.u32 %v2397, 7
        %v2399 = vsub.s32 0, %v2398
        %v2400 = vrot.slane %v2395, %v2399
        %v2401 = vlaneseq
        %v2402 = vshrl.u32 %v2401, 7
        %v2403 = vsub.s32 1, %v2402
        %v2404 = vrot.slane %v2395, %v2403
        %v2423 = vunpack.c.l.b16 %v2379
        %v2424 = vunpack.c.h.b16 %v2379
        %v2425 = vunpack.c.l.b16 %v2380
        %v2426 = vunpack.c.h.b16 %v2380
        %v2427 = vunpack.c.l.b16 %v2381
        %v2428 = vunpack.c.h.b16 %v2381
        %v2429 = vunpack.c.l.b16 %v2382
        %v2430 = vunpack.c.h.b16 %v2382
        %v2431 = vunpack.c.l.b16 %v2383
        %v2432 = vunpack.c.h.b16 %v2383
        %v2433 = vunpack.c.l.b16 %v2384
        %v2434 = vunpack.c.h.b16 %v2384
        %v2435 = vunpack.c.l.b16 %v2385
        %v2436 = vunpack.c.h.b16 %v2385
        %v2437 = vunpack.c.l.b16 %v2386
        %v2438 = vunpack.c.h.b16 %v2386
        %v2439 = vunpack.c.l.b16 %v2387
        %v2440 = vunpack.c.h.b16 %v2387
        %v2441 = vunpack.c.l.b16 %v2388
        %v2442 = vunpack.c.h.b16 %v2388
        %v2443 = vunpack.c.l.b16 %v2389
        %v2444 = vunpack.c.h.b16 %v2389
        %v2445 = vunpack.c.l.b16 %v2390
        %v2446 = vunpack.c.h.b16 %v2390
        %v2447 = vunpack.c.l.b16 %v2391
        %v2448 = vunpack.c.h.b16 %v2391
        %v2449 = vunpack.c.l.b16 %v2392
        %v2450 = vunpack.c.h.b16 %v2392
        %v2451 = vunpack.c.l.b16 %v2393
        %v2452 = vunpack.c.h.b16 %v2393
        %v2453 = vunpack.c.l.b16 %v2394
        %v2454 = vunpack.c.h.b16 %v2394
        %v2455 = vpack.c.b16 %v2425, %v2423
        %v2456 = vpack.c.b16 %v2426, %v2424
        %v2457 = vpack.c.b16 %v2429, %v2427
        %v2458 = vpack.c.b16 %v2430, %v2428
        %v2459 = vpack.c.b16 %v2433, %v2431
        %v2460 = vpack.c.b16 %v2434, %v2432
        %v2461 = vpack.c.b16 %v2437, %v2435
        %v2462 = vpack.c.b16 %v2438, %v2436
        %v2463 = vpack.c.b16 %v2441, %v2439
        %v2464 = vpack.c.b16 %v2442, %v2440
        %v2465 = vpack.c.b16 %v2445, %v2443
        %v2466 = vpack.c.b16 %v2446, %v2444
        %v2467 = vpack.c.b16 %v2449, %v2447
        %v2468 = vpack.c.b16 %v2450, %v2448
        %v2469 = vpack.c.b16 %v2453, %v2451
        %v2470 = vpack.c.b16 %v2454, %v2452
        %2487 = vmatprep.subr.bf16.mxu0 %v2456
        %2488 = vmatpush1.bf16.msra.mxu0 %v2455
        %2489 = vmatprep.subr.bf16.mxu0 %v2458
        %2490 = vmatpush1.bf16.msra.mxu0 %v2457
        %2491 = vmatprep.subr.bf16.mxu0 %v2460
        %2492 = vmatpush1.bf16.msra.mxu0 %v2459
        %2493 = vmatprep.subr.bf16.mxu0 %v2462
        %2494 = vmatpush1.bf16.msra.mxu0 %v2461
        %2495 = vmatprep.subr.bf16.mxu0 %v2464
        %2496 = vmatpush1.bf16.msra.mxu0 %v2463
        %2497 = vmatprep.subr.bf16.mxu0 %v2466
        %2498 = vmatpush1.bf16.msra.mxu0 %v2465
        %2499 = vmatprep.subr.bf16.mxu0 %v2468
        %2500 = vmatpush1.bf16.msra.mxu0 %v2467
        %2501 = vmatprep.subr.bf16.mxu0 %v2470
        %2502 = vmatpush1.bf16.msra.mxu0 %v2469
        %2503 = vmatprep.subr.bf16.mxu0 0
        %2504 = vmatpush1.bf16.msra.mxu0 0
        %2505 = vmatprep.subr.bf16.mxu0 0
        %2506 = vmatpush1.bf16.msra.mxu0 0
        %2507 = vmatprep.subr.bf16.mxu0 0
        %2508 = vmatpush1.bf16.msra.mxu0 0
        %2509 = vmatprep.subr.bf16.mxu0 0
        %2510 = vmatpush1.bf16.msra.mxu0 0
        %2511 = vmatprep.subr.bf16.mxu0 0
        %2512 = vmatpush1.bf16.msra.mxu0 0
        %2513 = vmatprep.subr.bf16.mxu0 0
        %2514 = vmatpush1.bf16.msra.mxu0 0
        %2515 = vmatprep.subr.bf16.mxu0 0
        %2516 = vmatpush1.bf16.msra.mxu0 0
        %2517 = vmatprep.subr.bf16.mxu0 0
        %2518 = vmatpush1.bf16.msra.mxu0 0
        %2519 = vmatprep.mubr.bf16.mxu0 0
        %2520 = vmatmul.mubr.bf16.gmra.mrb[0].mxu0 %v2378
        %v2521 = vpop.f32.mrb[0].mxu0
        %v2522 = vadd.f32 %v2400, %v2521
        %v2523 = vpop.f32.mrb[0].mxu0
        %v2524 = vadd.f32 %v2404, %v2523
        %v2525 = vpop.f32.mrb[0].mxu0
        %v2526 = vpop.f32.mrb[0].mxu0
        %2527 = vdwg.mxu0
        %v2528 = vld [vmem:[%s1379] sm:$0xff]
        %v2529 = vld [vmem:[%s1379 + $0x8] sm:$0xff]
        %v2530 = vld [vmem:[%s1379 + $0x10] sm:$0xff]
        %v2531 = vld [vmem:[%s1379 + $0x18] sm:$0xff]
        %v2532 = vld [vmem:[%s1379 + $0x20] sm:$0xff]
        %v2533 = vld [vmem:[%s1379 + $0x28] sm:$0xff]
        %v2534 = vpack.c.bf16 %v2528, %v2528
        %v2535 = vpack.c.bf16 %v2529, %v2529
        %v2536 = vpack.c.bf16 %v2530, %v2530
        %v2537 = vpack.c.bf16 %v2531, %v2531
        %v2538 = vpack.c.bf16 %v2532, %v2532
        %v2539 = vpack.c.bf16 %v2533, %v2533
        %v2540 = vld [vmem:[#allocation11] sm:$0xff]
        %v2541 = vld [vmem:[#allocation11 + $0x8] sm:$0xff]
        %v2542 = vld [vmem:[#allocation11 + $0x10] sm:$0xff]
        %v2543 = vld [vmem:[#allocation11 + $0x18] sm:$0xff]
        %v2544 = vld [vmem:[#allocation11 + $0x20] sm:$0xff]
        %v2545 = vld [vmem:[#allocation11 + $0x28] sm:$0xff]
        %v2546 = vld [vmem:[#allocation11 + $0x30] sm:$0xff]
        %v2547 = vld [vmem:[#allocation11 + $0x38] sm:$0xff]
        %v2548 = vld [vmem:[#allocation11 + $0x40] sm:$0xff]
        %v2549 = vld [vmem:[#allocation11 + $0x48] sm:$0xff]
        %v2550 = vld [vmem:[#allocation11 + $0x50] sm:$0xff]
        %v2551 = vld [vmem:[#allocation11 + $0x58] sm:$0xff]
        %v2552 = vld [vmem:[#allocation11 + $0x60] sm:$0xff]
        %v2553 = vld [vmem:[#allocation11 + $0x68] sm:$0xff]
        %v2554 = vld [vmem:[#allocation11 + $0x70] sm:$0xff]
        %v2555 = vld [vmem:[#allocation11 + $0x78] sm:$0xff]
        %v2556 = vld [vmem:[#allocation11 + $0x80] sm:$0xff]
        %v2557 = vld [vmem:[#allocation11 + $0x88] sm:$0xff]
        %v2558 = vld [vmem:[#allocation11 + $0x90] sm:$0xff]
        %v2559 = vld [vmem:[#allocation11 + $0x98] sm:$0xff]
        %v2560 = vld [vmem:[#allocation11 + $0xa0] sm:$0xff]
        %v2561 = vld [vmem:[#allocation11 + $0xa8] sm:$0xff]
        %v2562 = vld [vmem:[#allocation11 + $0xb0] sm:$0xff]
        %v2563 = vld [vmem:[#allocation11 + $0xb8] sm:$0xff]
        %v2564 = vld [vmem:[#allocation11 + $0xc0] sm:$0xff]
        %v2565 = vld [vmem:[#allocation11 + $0xc8] sm:$0xff]
        %v2566 = vld [vmem:[#allocation11 + $0xd0] sm:$0xff]
        %v2567 = vld [vmem:[#allocation11 + $0xd8] sm:$0xff]
        %v2568 = vld [vmem:[#allocation11 + $0xe0] sm:$0xff]
        %v2569 = vld [vmem:[#allocation11 + $0xe8] sm:$0xff]
        %v2570 = vld [vmem:[#allocation11 + $0xf0] sm:$0xff]
        %v2571 = vld [vmem:[#allocation11 + $0xf8] sm:$0xff]
        %v2572 = vld [vmem:[#allocation11 + $0x100] sm:$0xff]
        %v2573 = vld [vmem:[#allocation11 + $0x108] sm:$0xff]
        %v2574 = vld [vmem:[#allocation11 + $0x110] sm:$0xff]
        %v2575 = vld [vmem:[#allocation11 + $0x118] sm:$0xff]
        %v2576 = vld [vmem:[#allocation11 + $0x120] sm:$0xff]
        %v2577 = vld [vmem:[#allocation11 + $0x128] sm:$0xff]
        %v2578 = vld [vmem:[#allocation11 + $0x130] sm:$0xff]
        %v2579 = vld [vmem:[#allocation11 + $0x138] sm:$0xff]
        %v2580 = vld [vmem:[#allocation11 + $0x140] sm:$0xff]
        %v2581 = vld [vmem:[#allocation11 + $0x148] sm:$0xff]
        %v2582 = vld [vmem:[#allocation11 + $0x150] sm:$0xff]
        %v2583 = vld [vmem:[#allocation11 + $0x158] sm:$0xff]
        %v2584 = vld [vmem:[#allocation11 + $0x160] sm:$0xff]
        %v2585 = vld [vmem:[#allocation11 + $0x168] sm:$0xff]
        %v2586 = vld [vmem:[#allocation11 + $0x170] sm:$0xff]
        %v2587 = vld [vmem:[#allocation11 + $0x178] sm:$0xff]
        %v2588 = vld [vmem:[#allocation11 + $0x180] sm:$0xff]
        %v2589 = vld [vmem:[#allocation11 + $0x188] sm:$0xff]
        %v2590 = vld [vmem:[#allocation11 + $0x190] sm:$0xff]
        %v2591 = vld [vmem:[#allocation11 + $0x198] sm:$0xff]
        %v2592 = vld [vmem:[#allocation11 + $0x1a0] sm:$0xff]
        %v2593 = vld [vmem:[#allocation11 + $0x1a8] sm:$0xff]
        %v2594 = vld [vmem:[#allocation11 + $0x1b0] sm:$0xff]
        %v2595 = vld [vmem:[#allocation11 + $0x1b8] sm:$0xff]
        %v2596 = vld [vmem:[#allocation11 + $0x1c0] sm:$0xff]
        %v2597 = vld [vmem:[#allocation11 + $0x1c8] sm:$0xff]
        %v2598 = vld [vmem:[#allocation11 + $0x1d0] sm:$0xff]
        %v2599 = vld [vmem:[#allocation11 + $0x1d8] sm:$0xff]
        %v2600 = vld [vmem:[#allocation11 + $0x1e0] sm:$0xff]
        %v2601 = vld [vmem:[#allocation11 + $0x1e8] sm:$0xff]
        %v2602 = vld [vmem:[#allocation11 + $0x1f0] sm:$0xff]
        %v2603 = vld [vmem:[#allocation11 + $0x1f8] sm:$0xff]
        %v2604 = vld [vmem:[#allocation11 + $0x200] sm:$0xff]
        %v2605 = vld [vmem:[#allocation11 + $0x208] sm:$0xff]
        %v2606 = vld [vmem:[#allocation11 + $0x210] sm:$0xff]
        %v2607 = vld [vmem:[#allocation11 + $0x218] sm:$0xff]
        %v2608 = vld [vmem:[#allocation11 + $0x220] sm:$0xff]
        %v2609 = vld [vmem:[#allocation11 + $0x228] sm:$0xff]
        %v2610 = vld [vmem:[#allocation11 + $0x230] sm:$0xff]
        %v2611 = vld [vmem:[#allocation11 + $0x238] sm:$0xff]
        %v2612 = vld [vmem:[#allocation11 + $0x240] sm:$0xff]
        %v2613 = vld [vmem:[#allocation11 + $0x248] sm:$0xff]
        %v2614 = vld [vmem:[#allocation11 + $0x250] sm:$0xff]
        %v2615 = vld [vmem:[#allocation11 + $0x258] sm:$0xff]
        %v2616 = vld [vmem:[#allocation11 + $0x260] sm:$0xff]
        %v2617 = vld [vmem:[#allocation11 + $0x268] sm:$0xff]
        %v2618 = vld [vmem:[#allocation11 + $0x270] sm:$0xff]
        %v2619 = vld [vmem:[#allocation11 + $0x278] sm:$0xff]
        %v2620 = vld [vmem:[#allocation11 + $0x280] sm:$0xff]
        %v2621 = vld [vmem:[#allocation11 + $0x288] sm:$0xff]
        %v2622 = vld [vmem:[#allocation11 + $0x290] sm:$0xff]
        %v2623 = vld [vmem:[#allocation11 + $0x298] sm:$0xff]
        %v2624 = vld [vmem:[#allocation11 + $0x2a0] sm:$0xff]
        %v2625 = vld [vmem:[#allocation11 + $0x2a8] sm:$0xff]
        %v2626 = vld [vmem:[#allocation11 + $0x2b0] sm:$0xff]
        %v2627 = vld [vmem:[#allocation11 + $0x2b8] sm:$0xff]
        %v2628 = vld [vmem:[#allocation11 + $0x2c0] sm:$0xff]
        %v2629 = vld [vmem:[#allocation11 + $0x2c8] sm:$0xff]
        %v2630 = vld [vmem:[#allocation11 + $0x2d0] sm:$0xff]
        %v2631 = vld [vmem:[#allocation11 + $0x2d8] sm:$0xff]
        %v2632 = vld [vmem:[#allocation11 + $0x2e0] sm:$0xff]
        %v2633 = vld [vmem:[#allocation11 + $0x2e8] sm:$0xff]
        %v2634 = vld [vmem:[#allocation11 + $0x2f0] sm:$0xff]
        %v2635 = vld [vmem:[#allocation11 + $0x2f8] sm:$0xff]
        %v2636 = vld [vmem:[#allocation12] sm:$0x3]
        %v2638 = vlaneseq
        %v2639 = vshrl.u32 %v2638, 7
        %v2640 = vsub.s32 0, %v2639
        %v2641 = vrot.slane %v2636, %v2640
        %v2642 = vlaneseq
        %v2643 = vshrl.u32 %v2642, 7
        %v2644 = vsub.s32 1, %v2643
        %v2645 = vrot.slane %v2636, %v2644
        %v2744 = vunpack.c.l.b16 %v2540
        %v2745 = vunpack.c.h.b16 %v2540
        %v2746 = vunpack.c.l.b16 %v2541
        %v2747 = vunpack.c.h.b16 %v2541
        %v2748 = vunpack.c.l.b16 %v2542
        %v2749 = vunpack.c.h.b16 %v2542
        %v2750 = vunpack.c.l.b16 %v2543
        %v2751 = vunpack.c.h.b16 %v2543
        %v2752 = vunpack.c.l.b16 %v2544
        %v2753 = vunpack.c.h.b16 %v2544
        %v2754 = vunpack.c.l.b16 %v2545
        %v2755 = vunpack.c.h.b16 %v2545
        %v2756 = vunpack.c.l.b16 %v2546
        %v2757 = vunpack.c.h.b16 %v2546
        %v2758 = vunpack.c.l.b16 %v2547
        %v2759 = vunpack.c.h.b16 %v2547
        %v2760 = vunpack.c.l.b16 %v2548
        %v2761 = vunpack.c.h.b16 %v2548
        %v2762 = vunpack.c.l.b16 %v2549
        %v2763 = vunpack.c.h.b16 %v2549
        %v2764 = vunpack.c.l.b16 %v2550
        %v2765 = vunpack.c.h.b16 %v2550
        %v2766 = vunpack.c.l.b16 %v2551
        %v2767 = vunpack.c.h.b16 %v2551
        %v2768 = vunpack.c.l.b16 %v2552
        %v2769 = vunpack.c.h.b16 %v2552
        %v2770 = vunpack.c.l.b16 %v2553
        %v2771 = vunpack.c.h.b16 %v2553
        %v2772 = vunpack.c.l.b16 %v2554
        %v2773 = vunpack.c.h.b16 %v2554
        %v2774 = vunpack.c.l.b16 %v2555
        %v2775 = vunpack.c.h.b16 %v2555
        %v2776 = vunpack.c.l.b16 %v2556
        %v2777 = vunpack.c.h.b16 %v2556
        %v2778 = vunpack.c.l.b16 %v2557
        %v2779 = vunpack.c.h.b16 %v2557
        %v2780 = vunpack.c.l.b16 %v2558
        %v2781 = vunpack.c.h.b16 %v2558
        %v2782 = vunpack.c.l.b16 %v2559
        %v2783 = vunpack.c.h.b16 %v2559
        %v2784 = vunpack.c.l.b16 %v2560
        %v2785 = vunpack.c.h.b16 %v2560
        %v2786 = vunpack.c.l.b16 %v2561
        %v2787 = vunpack.c.h.b16 %v2561
        %v2788 = vunpack.c.l.b16 %v2562
        %v2789 = vunpack.c.h.b16 %v2562
        %v2790 = vunpack.c.l.b16 %v2563
        %v2791 = vunpack.c.h.b16 %v2563
        %v2792 = vunpack.c.l.b16 %v2564
        %v2793 = vunpack.c.h.b16 %v2564
        %v2794 = vunpack.c.l.b16 %v2565
        %v2795 = vunpack.c.h.b16 %v2565
        %v2796 = vunpack.c.l.b16 %v2566
        %v2797 = vunpack.c.h.b16 %v2566
        %v2798 = vunpack.c.l.b16 %v2567
        %v2799 = vunpack.c.h.b16 %v2567
        %v2800 = vunpack.c.l.b16 %v2568
        %v2801 = vunpack.c.h.b16 %v2568
        %v2802 = vunpack.c.l.b16 %v2569
        %v2803 = vunpack.c.h.b16 %v2569
        %v2804 = vunpack.c.l.b16 %v2570
        %v2805 = vunpack.c.h.b16 %v2570
        %v2806 = vunpack.c.l.b16 %v2571
        %v2807 = vunpack.c.h.b16 %v2571
        %v2808 = vunpack.c.l.b16 %v2572
        %v2809 = vunpack.c.h.b16 %v2572
        %v2810 = vunpack.c.l.b16 %v2573
        %v2811 = vunpack.c.h.b16 %v2573
        %v2812 = vunpack.c.l.b16 %v2574
        %v2813 = vunpack.c.h.b16 %v2574
        %v2814 = vunpack.c.l.b16 %v2575
        %v2815 = vunpack.c.h.b16 %v2575
        %v2816 = vunpack.c.l.b16 %v2576
        %v2817 = vunpack.c.h.b16 %v2576
        %v2818 = vunpack.c.l.b16 %v2577
        %v2819 = vunpack.c.h.b16 %v2577
        %v2820 = vunpack.c.l.b16 %v2578
        %v2821 = vunpack.c.h.b16 %v2578
        %v2822 = vunpack.c.l.b16 %v2579
        %v2823 = vunpack.c.h.b16 %v2579
        %v2824 = vunpack.c.l.b16 %v2580
        %v2825 = vunpack.c.h.b16 %v2580
        %v2826 = vunpack.c.l.b16 %v2581
        %v2827 = vunpack.c.h.b16 %v2581
        %v2828 = vunpack.c.l.b16 %v2582
        %v2829 = vunpack.c.h.b16 %v2582
        %v2830 = vunpack.c.l.b16 %v2583
        %v2831 = vunpack.c.h.b16 %v2583
        %v2832 = vunpack.c.l.b16 %v2584
        %v2833 = vunpack.c.h.b16 %v2584
        %v2834 = vunpack.c.l.b16 %v2585
        %v2835 = vunpack.c.h.b16 %v2585
        %v2836 = vunpack.c.l.b16 %v2586
        %v2837 = vunpack.c.h.b16 %v2586
        %v2838 = vunpack.c.l.b16 %v2587
        %v2839 = vunpack.c.h.b16 %v2587
        %v2840 = vunpack.c.l.b16 %v2588
        %v2841 = vunpack.c.h.b16 %v2588
        %v2842 = vunpack.c.l.b16 %v2589
        %v2843 = vunpack.c.h.b16 %v2589
        %v2844 = vunpack.c.l.b16 %v2590
        %v2845 = vunpack.c.h.b16 %v2590
        %v2846 = vunpack.c.l.b16 %v2591
        %v2847 = vunpack.c.h.b16 %v2591
        %v2848 = vunpack.c.l.b16 %v2592
        %v2849 = vunpack.c.h.b16 %v2592
        %v2850 = vunpack.c.l.b16 %v2593
        %v2851 = vunpack.c.h.b16 %v2593
        %v2852 = vunpack.c.l.b16 %v2594
        %v2853 = vunpack.c.h.b16 %v2594
        %v2854 = vunpack.c.l.b16 %v2595
        %v2855 = vunpack.c.h.b16 %v2595
        %v2856 = vunpack.c.l.b16 %v2596
        %v2857 = vunpack.c.h.b16 %v2596
        %v2858 = vunpack.c.l.b16 %v2597
        %v2859 = vunpack.c.h.b16 %v2597
        %v2860 = vunpack.c.l.b16 %v2598
        %v2861 = vunpack.c.h.b16 %v2598
        %v2862 = vunpack.c.l.b16 %v2599
        %v2863 = vunpack.c.h.b16 %v2599
        %v2864 = vunpack.c.l.b16 %v2600
        %v2865 = vunpack.c.h.b16 %v2600
        %v2866 = vunpack.c.l.b16 %v2601
        %v2867 = vunpack.c.h.b16 %v2601
        %v2868 = vunpack.c.l.b16 %v2602
        %v2869 = vunpack.c.h.b16 %v2602
        %v2870 = vunpack.c.l.b16 %v2603
        %v2871 = vunpack.c.h.b16 %v2603
        %v2872 = vunpack.c.l.b16 %v2604
        %v2873 = vunpack.c.h.b16 %v2604
        %v2874 = vunpack.c.l.b16 %v2605
        %v2875 = vunpack.c.h.b16 %v2605
        %v2876 = vunpack.c.l.b16 %v2606
        %v2877 = vunpack.c.h.b16 %v2606
        %v2878 = vunpack.c.l.b16 %v2607
        %v2879 = vunpack.c.h.b16 %v2607
        %v2880 = vunpack.c.l.b16 %v2608
        %v2881 = vunpack.c.h.b16 %v2608
        %v2882 = vunpack.c.l.b16 %v2609
        %v2883 = vunpack.c.h.b16 %v2609
        %v2884 = vunpack.c.l.b16 %v2610
        %v2885 = vunpack.c.h.b16 %v2610
        %v2886 = vunpack.c.l.b16 %v2611
        %v2887 = vunpack.c.h.b16 %v2611
        %v2888 = vunpack.c.l.b16 %v2612
        %v2889 = vunpack.c.h.b16 %v2612
        %v2890 = vunpack.c.l.b16 %v2613
        %v2891 = vunpack.c.h.b16 %v2613
        %v2892 = vunpack.c.l.b16 %v2614
        %v2893 = vunpack.c.h.b16 %v2614
        %v2894 = vunpack.c.l.b16 %v2615
        %v2895 = vunpack.c.h.b16 %v2615
        %v2896 = vunpack.c.l.b16 %v2616
        %v2897 = vunpack.c.h.b16 %v2616
        %v2898 = vunpack.c.l.b16 %v2617
        %v2899 = vunpack.c.h.b16 %v2617
        %v2900 = vunpack.c.l.b16 %v2618
        %v2901 = vunpack.c.h.b16 %v2618
        %v2902 = vunpack.c.l.b16 %v2619
        %v2903 = vunpack.c.h.b16 %v2619
        %v2904 = vunpack.c.l.b16 %v2620
        %v2905 = vunpack.c.h.b16 %v2620
        %v2906 = vunpack.c.l.b16 %v2621
        %v2907 = vunpack.c.h.b16 %v2621
        %v2908 = vunpack.c.l.b16 %v2622
        %v2909 = vunpack.c.h.b16 %v2622
        %v2910 = vunpack.c.l.b16 %v2623
        %v2911 = vunpack.c.h.b16 %v2623
        %v2912 = vunpack.c.l.b16 %v2624
        %v2913 = vunpack.c.h.b16 %v2624
        %v2914 = vunpack.c.l.b16 %v2625
        %v2915 = vunpack.c.h.b16 %v2625
        %v2916 = vunpack.c.l.b16 %v2626
        %v2917 = vunpack.c.h.b16 %v2626
        %v2918 = vunpack.c.l.b16 %v2627
        %v2919 = vunpack.c.h.b16 %v2627
        %v2920 = vunpack.c.l.b16 %v2628
        %v2921 = vunpack.c.h.b16 %v2628
        %v2922 = vunpack.c.l.b16 %v2629
        %v2923 = vunpack.c.h.b16 %v2629
        %v2924 = vunpack.c.l.b16 %v2630
        %v2925 = vunpack.c.h.b16 %v2630
        %v2926 = vunpack.c.l.b16 %v2631
        %v2927 = vunpack.c.h.b16 %v2631
        %v2928 = vunpack.c.l.b16 %v2632
        %v2929 = vunpack.c.h.b16 %v2632
        %v2930 = vunpack.c.l.b16 %v2633
        %v2931 = vunpack.c.h.b16 %v2633
        %v2932 = vunpack.c.l.b16 %v2634
        %v2933 = vunpack.c.h.b16 %v2634
        %v2934 = vunpack.c.l.b16 %v2635
        %v2935 = vunpack.c.h.b16 %v2635
        %v2936 = vpack.c.b16 %v2746, %v2744
        %v2937 = vpack.c.b16 %v2747, %v2745
        %v2938 = vpack.c.b16 %v2750, %v2748
        %v2939 = vpack.c.b16 %v2751, %v2749
        %v2940 = vpack.c.b16 %v2754, %v2752
        %v2941 = vpack.c.b16 %v2755, %v2753
        %v2942 = vpack.c.b16 %v2758, %v2756
        %v2943 = vpack.c.b16 %v2759, %v2757
        %v2944 = vpack.c.b16 %v2762, %v2760
        %v2945 = vpack.c.b16 %v2763, %v2761
        %v2946 = vpack.c.b16 %v2766, %v2764
        %v2947 = vpack.c.b16 %v2767, %v2765
        %v2948 = vpack.c.b16 %v2770, %v2768
        %v2949 = vpack.c.b16 %v2771, %v2769
        %v2950 = vpack.c.b16 %v2774, %v2772
        %v2951 = vpack.c.b16 %v2775, %v2773
        %v2952 = vpack.c.b16 %v2778, %v2776
        %v2953 = vpack.c.b16 %v2779, %v2777
        %v2954 = vpack.c.b16 %v2782, %v2780
        %v2955 = vpack.c.b16 %v2783, %v2781
        %v2956 = vpack.c.b16 %v2786, %v2784
        %v2957 = vpack.c.b16 %v2787, %v2785
        %v2958 = vpack.c.b16 %v2790, %v2788
        %v2959 = vpack.c.b16 %v2791, %v2789
        %v2960 = vpack.c.b16 %v2794, %v2792
        %v2961 = vpack.c.b16 %v2795, %v2793
        %v2962 = vpack.c.b16 %v2798, %v2796
        %v2963 = vpack.c.b16 %v2799, %v2797
        %v2964 = vpack.c.b16 %v2802, %v2800
        %v2965 = vpack.c.b16 %v2803, %v2801
        %v2966 = vpack.c.b16 %v2806, %v2804
        %v2967 = vpack.c.b16 %v2807, %v2805
        %v2968 = vpack.c.b16 %v2810, %v2808
        %v2969 = vpack.c.b16 %v2811, %v2809
        %v2970 = vpack.c.b16 %v2814, %v2812
        %v2971 = vpack.c.b16 %v2815, %v2813
        %v2972 = vpack.c.b16 %v2818, %v2816
        %v2973 = vpack.c.b16 %v2819, %v2817
        %v2974 = vpack.c.b16 %v2822, %v2820
        %v2975 = vpack.c.b16 %v2823, %v2821
        %v2976 = vpack.c.b16 %v2826, %v2824
        %v2977 = vpack.c.b16 %v2827, %v2825
        %v2978 = vpack.c.b16 %v2830, %v2828
        %v2979 = vpack.c.b16 %v2831, %v2829
        %v2980 = vpack.c.b16 %v2834, %v2832
        %v2981 = vpack.c.b16 %v2835, %v2833
        %v2982 = vpack.c.b16 %v2838, %v2836
        %v2983 = vpack.c.b16 %v2839, %v2837
        %v2984 = vpack.c.b16 %v2842, %v2840
        %v2985 = vpack.c.b16 %v2843, %v2841
        %v2986 = vpack.c.b16 %v2846, %v2844
        %v2987 = vpack.c.b16 %v2847, %v2845
        %v2988 = vpack.c.b16 %v2850, %v2848
        %v2989 = vpack.c.b16 %v2851, %v2849
        %v2990 = vpack.c.b16 %v2854, %v2852
        %v2991 = vpack.c.b16 %v2855, %v2853
        %v2992 = vpack.c.b16 %v2858, %v2856
        %v2993 = vpack.c.b16 %v2859, %v2857
        %v2994 = vpack.c.b16 %v2862, %v2860
        %v2995 = vpack.c.b16 %v2863, %v2861
        %v2996 = vpack.c.b16 %v2866, %v2864
        %v2997 = vpack.c.b16 %v2867, %v2865
        %v2998 = vpack.c.b16 %v2870, %v2868
        %v2999 = vpack.c.b16 %v2871, %v2869
        %v3000 = vpack.c.b16 %v2874, %v2872
        %v3001 = vpack.c.b16 %v2875, %v2873
        %v3002 = vpack.c.b16 %v2878, %v2876
        %v3003 = vpack.c.b16 %v2879, %v2877
        %v3004 = vpack.c.b16 %v2882, %v2880
        %v3005 = vpack.c.b16 %v2883, %v2881
        %v3006 = vpack.c.b16 %v2886, %v2884
        %v3007 = vpack.c.b16 %v2887, %v2885
        %v3008 = vpack.c.b16 %v2890, %v2888
        %v3009 = vpack.c.b16 %v2891, %v2889
        %v3010 = vpack.c.b16 %v2894, %v2892
        %v3011 = vpack.c.b16 %v2895, %v2893
        %v3012 = vpack.c.b16 %v2898, %v2896
        %v3013 = vpack.c.b16 %v2899, %v2897
        %v3014 = vpack.c.b16 %v2902, %v2900
        %v3015 = vpack.c.b16 %v2903, %v2901
        %v3016 = vpack.c.b16 %v2906, %v2904
        %v3017 = vpack.c.b16 %v2907, %v2905
        %v3018 = vpack.c.b16 %v2910, %v2908
        %v3019 = vpack.c.b16 %v2911, %v2909
        %v3020 = vpack.c.b16 %v2914, %v2912
        %v3021 = vpack.c.b16 %v2915, %v2913
        %v3022 = vpack.c.b16 %v2918, %v2916
        %v3023 = vpack.c.b16 %v2919, %v2917
        %v3024 = vpack.c.b16 %v2922, %v2920
        %v3025 = vpack.c.b16 %v2923, %v2921
        %v3026 = vpack.c.b16 %v2926, %v2924
        %v3027 = vpack.c.b16 %v2927, %v2925
        %v3028 = vpack.c.b16 %v2930, %v2928
        %v3029 = vpack.c.b16 %v2931, %v2929
        %v3030 = vpack.c.b16 %v2934, %v2932
        %v3031 = vpack.c.b16 %v2935, %v2933
        %3128 = vmatprep.subr.bf16.mxu0 %v2937
        %3129 = vmatpush1.bf16.msra.mxu0 %v2936
        %3130 = vmatprep.subr.bf16.mxu0 %v2939
        %3131 = vmatpush1.bf16.msra.mxu0 %v2938
        %3132 = vmatprep.subr.bf16.mxu0 %v2941
        %3133 = vmatpush1.bf16.msra.mxu0 %v2940
        %3134 = vmatprep.subr.bf16.mxu0 %v2943
        %3135 = vmatpush1.bf16.msra.mxu0 %v2942
        %3136 = vmatprep.subr.bf16.mxu0 %v2945
        %3137 = vmatpush1.bf16.msra.mxu0 %v2944
        %3138 = vmatprep.subr.bf16.mxu0 %v2947
        %3139 = vmatpush1.bf16.msra.mxu0 %v2946
        %3140 = vmatprep.subr.bf16.mxu0 %v2949
        %3141 = vmatpush1.bf16.msra.mxu0 %v2948
        %3142 = vmatprep.subr.bf16.mxu0 %v2951
        %3143 = vmatpush1.bf16.msra.mxu0 %v2950
        %3144 = vmatprep.subr.bf16.mxu0 %v2953
        %3145 = vmatpush1.bf16.msra.mxu0 %v2952
        %3146 = vmatprep.subr.bf16.mxu0 %v2955
        %3147 = vmatpush1.bf16.msra.mxu0 %v2954
        %3148 = vmatprep.subr.bf16.mxu0 %v2957
        %3149 = vmatpush1.bf16.msra.mxu0 %v2956
        %3150 = vmatprep.subr.bf16.mxu0 %v2959
        %3151 = vmatpush1.bf16.msra.mxu0 %v2958
        %3152 = vmatprep.subr.bf16.mxu0 %v2961
        %3153 = vmatpush1.bf16.msra.mxu0 %v2960
        %3154 = vmatprep.subr.bf16.mxu0 %v2963
        %3155 = vmatpush1.bf16.msra.mxu0 %v2962
        %3156 = vmatprep.subr.bf16.mxu0 %v2965
        %3157 = vmatpush1.bf16.msra.mxu0 %v2964
        %3158 = vmatprep.subr.bf16.mxu0 %v2967
        %3159 = vmatpush1.bf16.msra.mxu0 %v2966
        %3160 = vmatprep.mubr.bf16.mxu0 %v2535
        %3161 = vmatmul.mubr.bf16.gmra.mrb[0].mxu0 %v2534
        %v3162 = vpop.f32.mrb[0].mxu0
        %v3163 = vadd.f32 %v2641, %v3162
        %v3164 = vpop.f32.mrb[0].mxu0
        %v3165 = vadd.f32 %v2645, %v3164
        %v3166 = vpop.f32.mrb[0].mxu0
        %v3167 = vpop.f32.mrb[0].mxu0
        %3168 = vdwg.mxu0
        %3169 = vmatprep.subr.bf16.mxu0 %v2969
        %3170 = vmatpush1.bf16.msra.mxu0 %v2968
        %3171 = vmatprep.subr.bf16.mxu0 %v2971
        %3172 = vmatpush1.bf16.msra.mxu0 %v2970
        %3173 = vmatprep.subr.bf16.mxu0 %v2973
        %3174 = vmatpush1.bf16.msra.mxu0 %v2972
        %3175 = vmatprep.subr.bf16.mxu0 %v2975
        %3176 = vmatpush1.bf16.msra.mxu0 %v2974
        %3177 = vmatprep.subr.bf16.mxu0 %v2977
        %3178 = vmatpush1.bf16.msra.mxu0 %v2976
        %3179 = vmatprep.subr.bf16.mxu0 %v2979
        %3180 = vmatpush1.bf16.msra.mxu0 %v2978
        %3181 = vmatprep.subr.bf16.mxu0 %v2981
        %3182 = vmatpush1.bf16.msra.mxu0 %v2980
        %3183 = vmatprep.subr.bf16.mxu0 %v2983
        %3184 = vmatpush1.bf16.msra.mxu0 %v2982
        %3185 = vmatprep.subr.bf16.mxu0 %v2985
        %3186 = vmatpush1.bf16.msra.mxu0 %v2984
        %3187 = vmatprep.subr.bf16.mxu0 %v2987
        %3188 = vmatpush1.bf16.msra.mxu0 %v2986
        %3189 = vmatprep.subr.bf16.mxu0 %v2989
        %3190 = vmatpush1.bf16.msra.mxu0 %v2988
        %3191 = vmatprep.subr.bf16.mxu0 %v2991
        %3192 = vmatpush1.bf16.msra.mxu0 %v2990
        %3193 = vmatprep.subr.bf16.mxu0 %v2993
        %3194 = vmatpush1.bf16.msra.mxu0 %v2992
        %3195 = vmatprep.subr.bf16.mxu0 %v2995
        %3196 = vmatpush1.bf16.msra.mxu0 %v2994
        %3197 = vmatprep.subr.bf16.mxu0 %v2997
        %3198 = vmatpush1.bf16.msra.mxu0 %v2996
        %3199 = vmatprep.subr.bf16.mxu0 %v2999
        %3200 = vmatpush1.bf16.msra.mxu0 %v2998
        %3201 = vmatprep.mubr.bf16.mxu0 %v2537
        %3202 = vmatmul.mubr.bf16.gmra.mrb[0].mxu0 %v2536
        %v3203 = vpop.f32.mrb[0].mxu0
        %v3204 = vadd.f32 %v3163, %v3203
        %v3205 = vpop.f32.mrb[0].mxu0
        %v3206 = vadd.f32 %v3165, %v3205
        %v3207 = vpop.f32.mrb[0].mxu0
        %v3208 = vpop.f32.mrb[0].mxu0
        %3209 = vdwg.mxu0
        %3210 = vmatprep.subr.bf16.mxu0 %v3001
        %3211 = vmatpush1.bf16.msra.mxu0 %v3000
        %3212 = vmatprep.subr.bf16.mxu0 %v3003
        %3213 = vmatpush1.bf16.msra.mxu0 %v3002
        %3214 = vmatprep.subr.bf16.mxu0 %v3005
        %3215 = vmatpush1.bf16.msra.mxu0 %v3004
        %3216 = vmatprep.subr.bf16.mxu0 %v3007
        %3217 = vmatpush1.bf16.msra.mxu0 %v3006
        %3218 = vmatprep.subr.bf16.mxu0 %v3009
        %3219 = vmatpush1.bf16.msra.mxu0 %v3008
        %3220 = vmatprep.subr.bf16.mxu0 %v3011
        %3221 = vmatpush1.bf16.msra.mxu0 %v3010
        %3222 = vmatprep.subr.bf16.mxu0 %v3013
        %3223 = vmatpush1.bf16.msra.mxu0 %v3012
        %3224 = vmatprep.subr.bf16.mxu0 %v3015
        %3225 = vmatpush1.bf16.msra.mxu0 %v3014
        %3226 = vmatprep.subr.bf16.mxu0 %v3017
        %3227 = vmatpush1.bf16.msra.mxu0 %v3016
        %3228 = vmatprep.subr.bf16.mxu0 %v3019
        %3229 = vmatpush1.bf16.msra.mxu0 %v3018
        %3230 = vmatprep.subr.bf16.mxu0 %v3021
        %3231 = vmatpush1.bf16.msra.mxu0 %v3020
        %3232 = vmatprep.subr.bf16.mxu0 %v3023
        %3233 = vmatpush1.bf16.msra.mxu0 %v3022
        %3234 = vmatprep.subr.bf16.mxu0 %v3025
        %3235 = vmatpush1.bf16.msra.mxu0 %v3024
        %3236 = vmatprep.subr.bf16.mxu0 %v3027
        %3237 = vmatpush1.bf16.msra.mxu0 %v3026
        %3238 = vmatprep.subr.bf16.mxu0 %v3029
        %3239 = vmatpush1.bf16.msra.mxu0 %v3028
        %3240 = vmatprep.subr.bf16.mxu0 %v3031
        %3241 = vmatpush1.bf16.msra.mxu0 %v3030
        %3242 = vmatprep.mubr.bf16.mxu0 %v2539
        %3243 = vmatmul.mubr.bf16.gmra.mrb[0].mxu0 %v2538
        %v3244 = vpop.f32.mrb[0].mxu0
        %v3245 = vadd.f32 %v3204, %v3244
        %v3246 = vpop.f32.mrb[0].mxu0
        %v3247 = vadd.f32 %v3206, %v3246
        %v3248 = vpop.f32.mrb[0].mxu0
        %v3249 = vpop.f32.mrb[0].mxu0
        %3250 = vdwg.mxu0
        %3251 = vst [vmem:[%s1558] sm:$0xff] %v2371
        %3252 = vst [vmem:[%s1558 + $0x8] sm:$0xff] %v2373
        %3253 = vst [vmem:[%s1565] sm:$0xff] %v2522
        %3254 = vst [vmem:[%s1565 + $0x8] sm:$0xff] %v2524
        %3255 = vst [vmem:[%s1572] sm:$0xff] %v3245
        %3256 = vst [vmem:[%s1572 + $0x8] sm:$0xff] %v3247
        %v3257 = vpack.c.bf16 %v2371, %v2371
        %v3258 = vpack.c.bf16 %v2373, %v2373
        %v3259 = vld [vmem:[%s19] sm:$0xff]
        %v3260 = vld [vmem:[%s19 + $0x8] sm:$0xff]
        %v3261 = vld [vmem:[%s19 + $0x10] sm:$0xff]
        %v3262 = vld [vmem:[%s19 + $0x18] sm:$0xff]
        %v3263 = vld [vmem:[%s19 + $0x20] sm:$0xff]
        %v3264 = vld [vmem:[%s19 + $0x28] sm:$0xff]
        %v3265 = vld [vmem:[%s19 + $0x30] sm:$0xff]
        %v3266 = vld [vmem:[%s19 + $0x38] sm:$0xff]
        %v3267 = vld [vmem:[%s19 + $0x40] sm:$0xff]
        %v3268 = vld [vmem:[%s19 + $0x48] sm:$0xff]
        %v3269 = vld [vmem:[%s19 + $0x50] sm:$0xff]
        %v3270 = vld [vmem:[%s19 + $0x58] sm:$0xff]
        %v3271 = vld [vmem:[%s19 + $0x60] sm:$0xff]
        %v3272 = vld [vmem:[%s19 + $0x68] sm:$0xff]
        %v3273 = vld [vmem:[%s19 + $0x70] sm:$0xff]
        %v3274 = vld [vmem:[%s19 + $0x78] sm:$0xff]
        %v3275 = vld [vmem:[%s19 + $0x80] sm:$0xff]
        %v3276 = vld [vmem:[%s19 + $0x88] sm:$0xff]
        %v3277 = vld [vmem:[%s19 + $0x90] sm:$0xff]
        %v3278 = vld [vmem:[%s19 + $0x98] sm:$0xff]
        %v3279 = vld [vmem:[%s19 + $0xa0] sm:$0xff]
        %v3280 = vld [vmem:[%s19 + $0xa8] sm:$0xff]
        %v3281 = vld [vmem:[%s19 + $0xb0] sm:$0xff]
        %v3282 = vld [vmem:[%s19 + $0xb8] sm:$0xff]
        %v3283 = vld [vmem:[%s19 + $0xc0] sm:$0xff]
        %v3284 = vld [vmem:[%s19 + $0xc8] sm:$0xff]
        %v3285 = vld [vmem:[%s19 + $0xd0] sm:$0xff]
        %v3286 = vld [vmem:[%s19 + $0xd8] sm:$0xff]
        %v3287 = vld [vmem:[%s19 + $0xe0] sm:$0xff]
        %v3288 = vld [vmem:[%s19 + $0xe8] sm:$0xff]
        %v3289 = vld [vmem:[%s19 + $0xf0] sm:$0xff]
        %v3290 = vld [vmem:[%s19 + $0xf8] sm:$0xff]
        %v3291 = vld [vmem:[#allocation14] sm:$0x3]
        %v3293 = vlaneseq
        %v3294 = vshrl.u32 %v3293, 7
        %v3295 = vsub.s32 0, %v3294
        %v3296 = vrot.slane %v3291, %v3295
        %v3297 = vlaneseq
        %v3298 = vshrl.u32 %v3297, 7
        %v3299 = vsub.s32 1, %v3298
        %v3300 = vrot.slane %v3291, %v3299
        %v3335 = vunpack.c.l.b16 %v3259
        %v3336 = vunpack.c.h.b16 %v3259
        %v3337 = vunpack.c.l.b16 %v3260
        %v3338 = vunpack.c.h.b16 %v3260
        %v3339 = vunpack.c.l.b16 %v3261
        %v3340 = vunpack.c.h.b16 %v3261
        %v3341 = vunpack.c.l.b16 %v3262
        %v3342 = vunpack.c.h.b16 %v3262
        %v3343 = vunpack.c.l.b16 %v3263
        %v3344 = vunpack.c.h.b16 %v3263
        %v3345 = vunpack.c.l.b16 %v3264
        %v3346 = vunpack.c.h.b16 %v3264
        %v3347 = vunpack.c.l.b16 %v3265
        %v3348 = vunpack.c.h.b16 %v3265
        %v3349 = vunpack.c.l.b16 %v3266
        %v3350 = vunpack.c.h.b16 %v3266
        %v3351 = vunpack.c.l.b16 %v3267
        %v3352 = vunpack.c.h.b16 %v3267
        %v3353 = vunpack.c.l.b16 %v3268
        %v3354 = vunpack.c.h.b16 %v3268
        %v3355 = vunpack.c.l.b16 %v3269
        %v3356 = vunpack.c.h.b16 %v3269
        %v3357 = vunpack.c.l.b16 %v3270
        %v3358 = vunpack.c.h.b16 %v3270
        %v3359 = vunpack.c.l.b16 %v3271
        %v3360 = vunpack.c.h.b16 %v3271
        %v3361 = vunpack.c.l.b16 %v3272
        %v3362 = vunpack.c.h.b16 %v3272
        %v3363 = vunpack.c.l.b16 %v3273
        %v3364 = vunpack.c.h.b16 %v3273
        %v3365 = vunpack.c.l.b16 %v3274
        %v3366 = vunpack.c.h.b16 %v3274
        %v3367 = vunpack.c.l.b16 %v3275
        %v3368 = vunpack.c.h.b16 %v3275
        %v3369 = vunpack.c.l.b16 %v3276
        %v3370 = vunpack.c.h.b16 %v3276
        %v3371 = vunpack.c.l.b16 %v3277
        %v3372 = vunpack.c.h.b16 %v3277
        %v3373 = vunpack.c.l.b16 %v3278
        %v3374 = vunpack.c.h.b16 %v3278
        %v3375 = vunpack.c.l.b16 %v3279
        %v3376 = vunpack.c.h.b16 %v3279
        %v3377 = vunpack.c.l.b16 %v3280
        %v3378 = vunpack.c.h.b16 %v3280
        %v3379 = vunpack.c.l.b16 %v3281
        %v3380 = vunpack.c.h.b16 %v3281
        %v3381 = vunpack.c.l.b16 %v3282
        %v3382 = vunpack.c.h.b16 %v3282
        %v3383 = vunpack.c.l.b16 %v3283
        %v3384 = vunpack.c.h.b16 %v3283
        %v3385 = vunpack.c.l.b16 %v3284
        %v3386 = vunpack.c.h.b16 %v3284
        %v3387 = vunpack.c.l.b16 %v3285
        %v3388 = vunpack.c.h.b16 %v3285
        %v3389 = vunpack.c.l.b16 %v3286
        %v3390 = vunpack.c.h.b16 %v3286
        %v3391 = vunpack.c.l.b16 %v3287
        %v3392 = vunpack.c.h.b16 %v3287
        %v3393 = vunpack.c.l.b16 %v3288
        %v3394 = vunpack.c.h.b16 %v3288
        %v3395 = vunpack.c.l.b16 %v3289
        %v3396 = vunpack.c.h.b16 %v3289
        %v3397 = vunpack.c.l.b16 %v3290
        %v3398 = vunpack.c.h.b16 %v3290
        %v3399 = vpack.c.b16 %v3337, %v3335
        %v3400 = vpack.c.b16 %v3338, %v3336
        %v3401 = vpack.c.b16 %v3341, %v3339
        %v3402 = vpack.c.b16 %v3342, %v3340
        %v3403 = vpack.c.b16 %v3345, %v3343
        %v3404 = vpack.c.b16 %v3346, %v3344
        %v3405 = vpack.c.b16 %v3349, %v3347
        %v3406 = vpack.c.b16 %v3350, %v3348
        %v3407 = vpack.c.b16 %v3353, %v3351
        %v3408 = vpack.c.b16 %v3354, %v3352
        %v3409 = vpack.c.b16 %v3357, %v3355
        %v3410 = vpack.c.b16 %v3358, %v3356
        %v3411 = vpack.c.b16 %v3361, %v3359
        %v3412 = vpack.c.b16 %v3362, %v3360
        %v3413 = vpack.c.b16 %v3365, %v3363
        %v3414 = vpack.c.b16 %v3366, %v3364
        %v3415 = vpack.c.b16 %v3369, %v3367
        %v3416 = vpack.c.b16 %v3370, %v3368
        %v3417 = vpack.c.b16 %v3373, %v3371
        %v3418 = vpack.c.b16 %v3374, %v3372
        %v3419 = vpack.c.b16 %v3377, %v3375
        %v3420 = vpack.c.b16 %v3378, %v3376
        %v3421 = vpack.c.b16 %v3381, %v3379
        %v3422 = vpack.c.b16 %v3382, %v3380
        %v3423 = vpack.c.b16 %v3385, %v3383
        %v3424 = vpack.c.b16 %v3386, %v3384
        %v3425 = vpack.c.b16 %v3389, %v3387
        %v3426 = vpack.c.b16 %v3390, %v3388
        %v3427 = vpack.c.b16 %v3393, %v3391
        %v3428 = vpack.c.b16 %v3394, %v3392
        %v3429 = vpack.c.b16 %v3397, %v3395
        %v3430 = vpack.c.b16 %v3398, %v3396
        %3463 = vmatprep.subr.bf16.mxu0 %v3400
        %3464 = vmatpush1.bf16.msra.mxu0 %v3399
        %3465 = vmatprep.subr.bf16.mxu0 %v3402
        %3466 = vmatpush1.bf16.msra.mxu0 %v3401
        %3467 = vmatprep.subr.bf16.mxu0 %v3404
        %3468 = vmatpush1.bf16.msra.mxu0 %v3403
        %3469 = vmatprep.subr.bf16.mxu0 %v3406
        %3470 = vmatpush1.bf16.msra.mxu0 %v3405
        %3471 = vmatprep.subr.bf16.mxu0 %v3408
        %3472 = vmatpush1.bf16.msra.mxu0 %v3407
        %3473 = vmatprep.subr.bf16.mxu0 %v3410
        %3474 = vmatpush1.bf16.msra.mxu0 %v3409
        %3475 = vmatprep.subr.bf16.mxu0 %v3412
        %3476 = vmatpush1.bf16.msra.mxu0 %v3411
        %3477 = vmatprep.subr.bf16.mxu0 %v3414
        %3478 = vmatpush1.bf16.msra.mxu0 %v3413
        %3479 = vmatprep.subr.bf16.mxu0 %v3416
        %3480 = vmatpush1.bf16.msra.mxu0 %v3415
        %3481 = vmatprep.subr.bf16.mxu0 %v3418
        %3482 = vmatpush1.bf16.msra.mxu0 %v3417
        %3483 = vmatprep.subr.bf16.mxu0 %v3420
        %3484 = vmatpush1.bf16.msra.mxu0 %v3419
        %3485 = vmatprep.subr.bf16.mxu0 %v3422
        %3486 = vmatpush1.bf16.msra.mxu0 %v3421
        %3487 = vmatprep.subr.bf16.mxu0 %v3424
        %3488 = vmatpush1.bf16.msra.mxu0 %v3423
        %3489 = vmatprep.subr.bf16.mxu0 %v3426
        %3490 = vmatpush1.bf16.msra.mxu0 %v3425
        %3491 = vmatprep.subr.bf16.mxu0 %v3428
        %3492 = vmatpush1.bf16.msra.mxu0 %v3427
        %3493 = vmatprep.subr.bf16.mxu0 %v3430
        %3494 = vmatpush1.bf16.msra.mxu0 %v3429
        %3495 = vmatprep.mubr.bf16.mxu0 %v3258
        %3496 = vmatmul.mubr.bf16.gmra.mrb[0].mxu0 %v3257
        %v3497 = vpop.f32.mrb[0].mxu0
        %v3498 = vadd.f32 %v3296, %v3497
        %v3499 = vpop.f32.mrb[0].mxu0
        %v3500 = vadd.f32 %v3300, %v3499
        %v3501 = vpop.f32.mrb[0].mxu0
        %v3502 = vpop.f32.mrb[0].mxu0
        %3503 = vdwg.mxu0
        %vm3504 = vcmp.ge.f32.partialorder %v3498, 0.0
        %vm3505 = vcmp.ge.f32.partialorder %v3500, 0.0
        %v3506 = vmul.f32 %v3498, 0.1
        %v3507 = vmul.f32 %v3500, 0.1
        %v3508 = vsel %vm3504, %v3498, %v3506
        %v3509 = vsel %vm3505, %v3500, %v3507
        %v3510 = vpack.c.bf16 %v2522, %v2522
        %v3511 = vpack.c.bf16 %v2524, %v2524
        %v3512 = vld [vmem:[#allocation15] sm:$0xff]
        %v3513 = vld [vmem:[#allocation15 + $0x8] sm:$0xff]
        %v3514 = vld [vmem:[#allocation15 + $0x10] sm:$0xff]
        %v3515 = vld [vmem:[#allocation15 + $0x18] sm:$0xff]
        %v3516 = vld [vmem:[#allocation15 + $0x20] sm:$0xff]
        %v3517 = vld [vmem:[#allocation15 + $0x28] sm:$0xff]
        %v3518 = vld [vmem:[#allocation15 + $0x30] sm:$0xff]
        %v3519 = vld [vmem:[#allocation15 + $0x38] sm:$0xff]
        %v3520 = vld [vmem:[#allocation15 + $0x40] sm:$0xff]
        %v3521 = vld [vmem:[#allocation15 + $0x48] sm:$0xff]
        %v3522 = vld [vmem:[#allocation15 + $0x50] sm:$0xff]
        %v3523 = vld [vmem:[#allocation15 + $0x58] sm:$0xff]
        %v3524 = vld [vmem:[#allocation15 + $0x60] sm:$0xff]
        %v3525 = vld [vmem:[#allocation15 + $0x68] sm:$0xff]
        %v3526 = vld [vmem:[#allocation15 + $0x70] sm:$0xff]
        %v3527 = vld [vmem:[#allocation15 + $0x78] sm:$0xff]
        %v3528 = vld [vmem:[#allocation15 + $0x80] sm:$0xff]
        %v3529 = vld [vmem:[#allocation15 + $0x88] sm:$0xff]
        %v3530 = vld [vmem:[#allocation15 + $0x90] sm:$0xff]
        %v3531 = vld [vmem:[#allocation15 + $0x98] sm:$0xff]
        %v3532 = vld [vmem:[#allocation15 + $0xa0] sm:$0xff]
        %v3533 = vld [vmem:[#allocation15 + $0xa8] sm:$0xff]
        %v3534 = vld [vmem:[#allocation15 + $0xb0] sm:$0xff]
        %v3535 = vld [vmem:[#allocation15 + $0xb8] sm:$0xff]
        %v3536 = vld [vmem:[#allocation15 + $0xc0] sm:$0xff]
        %v3537 = vld [vmem:[#allocation15 + $0xc8] sm:$0xff]
        %v3538 = vld [vmem:[#allocation15 + $0xd0] sm:$0xff]
        %v3539 = vld [vmem:[#allocation15 + $0xd8] sm:$0xff]
        %v3540 = vld [vmem:[#allocation15 + $0xe0] sm:$0xff]
        %v3541 = vld [vmem:[#allocation15 + $0xe8] sm:$0xff]
        %v3542 = vld [vmem:[#allocation15 + $0xf0] sm:$0xff]
        %v3543 = vld [vmem:[#allocation15 + $0xf8] sm:$0xff]
        %v3544 = vld [vmem:[#allocation17] sm:$0x3]
        %v3546 = vlaneseq
        %v3547 = vshrl.u32 %v3546, 7
        %v3548 = vsub.s32 0, %v3547
        %v3549 = vrot.slane %v3544, %v3548
        %v3550 = vlaneseq
        %v3551 = vshrl.u32 %v3550, 7
        %v3552 = vsub.s32 1, %v3551
        %v3553 = vrot.slane %v3544, %v3552
        %v3588 = vunpack.c.l.b16 %v3512
        %v3589 = vunpack.c.h.b16 %v3512
        %v3590 = vunpack.c.l.b16 %v3513
        %v3591 = vunpack.c.h.b16 %v3513
        %v3592 = vunpack.c.l.b16 %v3514
        %v3593 = vunpack.c.h.b16 %v3514
        %v3594 = vunpack.c.l.b16 %v3515
        %v3595 = vunpack.c.h.b16 %v3515
        %v3596 = vunpack.c.l.b16 %v3516
        %v3597 = vunpack.c.h.b16 %v3516
        %v3598 = vunpack.c.l.b16 %v3517
        %v3599 = vunpack.c.h.b16 %v3517
        %v3600 = vunpack.c.l.b16 %v3518
        %v3601 = vunpack.c.h.b16 %v3518
        %v3602 = vunpack.c.l.b16 %v3519
        %v3603 = vunpack.c.h.b16 %v3519
        %v3604 = vunpack.c.l.b16 %v3520
        %v3605 = vunpack.c.h.b16 %v3520
        %v3606 = vunpack.c.l.b16 %v3521
        %v3607 = vunpack.c.h.b16 %v3521
        %v3608 = vunpack.c.l.b16 %v3522
        %v3609 = vunpack.c.h.b16 %v3522
        %v3610 = vunpack.c.l.b16 %v3523
        %v3611 = vunpack.c.h.b16 %v3523
        %v3612 = vunpack.c.l.b16 %v3524
        %v3613 = vunpack.c.h.b16 %v3524
        %v3614 = vunpack.c.l.b16 %v3525
        %v3615 = vunpack.c.h.b16 %v3525
        %v3616 = vunpack.c.l.b16 %v3526
        %v3617 = vunpack.c.h.b16 %v3526
        %v3618 = vunpack.c.l.b16 %v3527
        %v3619 = vunpack.c.h.b16 %v3527
        %v3620 = vunpack.c.l.b16 %v3528
        %v3621 = vunpack.c.h.b16 %v3528
        %v3622 = vunpack.c.l.b16 %v3529
        %v3623 = vunpack.c.h.b16 %v3529
        %v3624 = vunpack.c.l.b16 %v3530
        %v3625 = vunpack.c.h.b16 %v3530
        %v3626 = vunpack.c.l.b16 %v3531
        %v3627 = vunpack.c.h.b16 %v3531
        %v3628 = vunpack.c.l.b16 %v3532
        %v3629 = vunpack.c.h.b16 %v3532
        %v3630 = vunpack.c.l.b16 %v3533
        %v3631 = vunpack.c.h.b16 %v3533
        %v3632 = vunpack.c.l.b16 %v3534
        %v3633 = vunpack.c.h.b16 %v3534
        %v3634 = vunpack.c.l.b16 %v3535
        %v3635 = vunpack.c.h.b16 %v3535
        %v3636 = vunpack.c.l.b16 %v3536
        %v3637 = vunpack.c.h.b16 %v3536
        %v3638 = vunpack.c.l.b16 %v3537
        %v3639 = vunpack.c.h.b16 %v3537
        %v3640 = vunpack.c.l.b16 %v3538
        %v3641 = vunpack.c.h.b16 %v3538
        %v3642 = vunpack.c.l.b16 %v3539
        %v3643 = vunpack.c.h.b16 %v3539
        %v3644 = vunpack.c.l.b16 %v3540
        %v3645 = vunpack.c.h.b16 %v3540
        %v3646 = vunpack.c.l.b16 %v3541
        %v3647 = vunpack.c.h.b16 %v3541
        %v3648 = vunpack.c.l.b16 %v3542
        %v3649 = vunpack.c.h.b16 %v3542
        %v3650 = vunpack.c.l.b16 %v3543
        %v3651 = vunpack.c.h.b16 %v3543
        %v3652 = vpack.c.b16 %v3590, %v3588
        %v3653 = vpack.c.b16 %v3591, %v3589
        %v3654 = vpack.c.b16 %v3594, %v3592
        %v3655 = vpack.c.b16 %v3595, %v3593
        %v3656 = vpack.c.b16 %v3598, %v3596
        %v3657 = vpack.c.b16 %v3599, %v3597
        %v3658 = vpack.c.b16 %v3602, %v3600
        %v3659 = vpack.c.b16 %v3603, %v3601
        %v3660 = vpack.c.b16 %v3606, %v3604
        %v3661 = vpack.c.b16 %v3607, %v3605
        %v3662 = vpack.c.b16 %v3610, %v3608
        %v3663 = vpack.c.b16 %v3611, %v3609
        %v3664 = vpack.c.b16 %v3614, %v3612
        %v3665 = vpack.c.b16 %v3615, %v3613
        %v3666 = vpack.c.b16 %v3618, %v3616
        %v3667 = vpack.c.b16 %v3619, %v3617
        %v3668 = vpack.c.b16 %v3622, %v3620
        %v3669 = vpack.c.b16 %v3623, %v3621
        %v3670 = vpack.c.b16 %v3626, %v3624
        %v3671 = vpack.c.b16 %v3627, %v3625
        %v3672 = vpack.c.b16 %v3630, %v3628
        %v3673 = vpack.c.b16 %v3631, %v3629
        %v3674 = vpack.c.b16 %v3634, %v3632
        %v3675 = vpack.c.b16 %v3635, %v3633
        %v3676 = vpack.c.b16 %v3638, %v3636
        %v3677 = vpack.c.b16 %v3639, %v3637
        %v3678 = vpack.c.b16 %v3642, %v3640
        %v3679 = vpack.c.b16 %v3643, %v3641
        %v3680 = vpack.c.b16 %v3646, %v3644
        %v3681 = vpack.c.b16 %v3647, %v3645
        %v3682 = vpack.c.b16 %v3650, %v3648
        %v3683 = vpack.c.b16 %v3651, %v3649
        %3716 = vmatprep.subr.bf16.mxu0 %v3653
        %3717 = vmatpush1.bf16.msra.mxu0 %v3652
        %3718 = vmatprep.subr.bf16.mxu0 %v3655
        %3719 = vmatpush1.bf16.msra.mxu0 %v3654
        %3720 = vmatprep.subr.bf16.mxu0 %v3657
        %3721 = vmatpush1.bf16.msra.mxu0 %v3656
        %3722 = vmatprep.subr.bf16.mxu0 %v3659
        %3723 = vmatpush1.bf16.msra.mxu0 %v3658
        %3724 = vmatprep.subr.bf16.mxu0 %v3661
        %3725 = vmatpush1.bf16.msra.mxu0 %v3660
        %3726 = vmatprep.subr.bf16.mxu0 %v3663
        %3727 = vmatpush1.bf16.msra.mxu0 %v3662
        %3728 = vmatprep.subr.bf16.mxu0 %v3665
        %3729 = vmatpush1.bf16.msra.mxu0 %v3664
        %3730 = vmatprep.subr.bf16.mxu0 %v3667
        %3731 = vmatpush1.bf16.msra.mxu0 %v3666
        %3732 = vmatprep.subr.bf16.mxu0 %v3669
        %3733 = vmatpush1.bf16.msra.mxu0 %v3668
        %3734 = vmatprep.subr.bf16.mxu0 %v3671
        %3735 = vmatpush1.bf16.msra.mxu0 %v3670
        %3736 = vmatprep.subr.bf16.mxu0 %v3673
        %3737 = vmatpush1.bf16.msra.mxu0 %v3672
        %3738 = vmatprep.subr.bf16.mxu0 %v3675
        %3739 = vmatpush1.bf16.msra.mxu0 %v3674
        %3740 = vmatprep.subr.bf16.mxu0 %v3677
        %3741 = vmatpush1.bf16.msra.mxu0 %v3676
        %3742 = vmatprep.subr.bf16.mxu0 %v3679
        %3743 = vmatpush1.bf16.msra.mxu0 %v3678
        %3744 = vmatprep.subr.bf16.mxu0 %v3681
        %3745 = vmatpush1.bf16.msra.mxu0 %v3680
        %3746 = vmatprep.subr.bf16.mxu0 %v3683
        %3747 = vmatpush1.bf16.msra.mxu0 %v3682
        %3748 = vmatprep.mubr.bf16.mxu0 %v3511
        %3749 = vmatmul.mubr.bf16.gmra.mrb[0].mxu0 %v3510
        %v3750 = vpop.f32.mrb[0].mxu0
        %v3751 = vadd.f32 %v3549, %v3750
        %v3752 = vpop.f32.mrb[0].mxu0
        %v3753 = vadd.f32 %v3553, %v3752
        %v3754 = vpop.f32.mrb[0].mxu0
        %v3755 = vpop.f32.mrb[0].mxu0
        %3756 = vdwg.mxu0
        %vm3757 = vcmp.ge.f32.partialorder %v3751, 0.0
        %vm3758 = vcmp.ge.f32.partialorder %v3753, 0.0
        %v3759 = vmul.f32 %v3751, 0.1
        %v3760 = vmul.f32 %v3753, 0.1
        %v3761 = vsel %vm3757, %v3751, %v3759
        %v3762 = vsel %vm3758, %v3753, %v3760
        %v3763 = vpack.c.bf16 %v3245, %v3245
        %v3764 = vpack.c.bf16 %v3247, %v3247
        %v3765 = vld [vmem:[#allocation18] sm:$0xff]
        %v3766 = vld [vmem:[#allocation18 + $0x8] sm:$0xff]
        %v3767 = vld [vmem:[#allocation18 + $0x10] sm:$0xff]
        %v3768 = vld [vmem:[#allocation18 + $0x18] sm:$0xff]
        %v3769 = vld [vmem:[#allocation18 + $0x20] sm:$0xff]
        %v3770 = vld [vmem:[#allocation18 + $0x28] sm:$0xff]
        %v3771 = vld [vmem:[#allocation18 + $0x30] sm:$0xff]
        %v3772 = vld [vmem:[#allocation18 + $0x38] sm:$0xff]
        %v3773 = vld [vmem:[#allocation18 + $0x40] sm:$0xff]
        %v3774 = vld [vmem:[#allocation18 + $0x48] sm:$0xff]
        %v3775 = vld [vmem:[#allocation18 + $0x50] sm:$0xff]
        %v3776 = vld [vmem:[#allocation18 + $0x58] sm:$0xff]
        %v3777 = vld [vmem:[#allocation18 + $0x60] sm:$0xff]
        %v3778 = vld [vmem:[#allocation18 + $0x68] sm:$0xff]
        %v3779 = vld [vmem:[#allocation18 + $0x70] sm:$0xff]
        %v3780 = vld [vmem:[#allocation18 + $0x78] sm:$0xff]
        %v3781 = vld [vmem:[#allocation18 + $0x80] sm:$0xff]
        %v3782 = vld [vmem:[#allocation18 + $0x88] sm:$0xff]
        %v3783 = vld [vmem:[#allocation18 + $0x90] sm:$0xff]
        %v3784 = vld [vmem:[#allocation18 + $0x98] sm:$0xff]
        %v3785 = vld [vmem:[#allocation18 + $0xa0] sm:$0xff]
        %v3786 = vld [vmem:[#allocation18 + $0xa8] sm:$0xff]
        %v3787 = vld [vmem:[#allocation18 + $0xb0] sm:$0xff]
        %v3788 = vld [vmem:[#allocation18 + $0xb8] sm:$0xff]
        %v3789 = vld [vmem:[#allocation18 + $0xc0] sm:$0xff]
        %v3790 = vld [vmem:[#allocation18 + $0xc8] sm:$0xff]
        %v3791 = vld [vmem:[#allocation18 + $0xd0] sm:$0xff]
        %v3792 = vld [vmem:[#allocation18 + $0xd8] sm:$0xff]
        %v3793 = vld [vmem:[#allocation18 + $0xe0] sm:$0xff]
        %v3794 = vld [vmem:[#allocation18 + $0xe8] sm:$0xff]
        %v3795 = vld [vmem:[#allocation18 + $0xf0] sm:$0xff]
        %v3796 = vld [vmem:[#allocation18 + $0xf8] sm:$0xff]
        %v3797 = vld [vmem:[#allocation20] sm:$0x3]
        %v3799 = vlaneseq
        %v3800 = vshrl.u32 %v3799, 7
        %v3801 = vsub.s32 0, %v3800
        %v3802 = vrot.slane %v3797, %v3801
        %v3803 = vlaneseq
        %v3804 = vshrl.u32 %v3803, 7
        %v3805 = vsub.s32 1, %v3804
        %v3806 = vrot.slane %v3797, %v3805
        %v3841 = vunpack.c.l.b16 %v3765
        %v3842 = vunpack.c.h.b16 %v3765
        %v3843 = vunpack.c.l.b16 %v3766
        %v3844 = vunpack.c.h.b16 %v3766
        %v3845 = vunpack.c.l.b16 %v3767
        %v3846 = vunpack.c.h.b16 %v3767
        %v3847 = vunpack.c.l.b16 %v3768
        %v3848 = vunpack.c.h.b16 %v3768
        %v3849 = vunpack.c.l.b16 %v3769
        %v3850 = vunpack.c.h.b16 %v3769
        %v3851 = vunpack.c.l.b16 %v3770
        %v3852 = vunpack.c.h.b16 %v3770
        %v3853 = vunpack.c.l.b16 %v3771
        %v3854 = vunpack.c.h.b16 %v3771
        %v3855 = vunpack.c.l.b16 %v3772
        %v3856 = vunpack.c.h.b16 %v3772
        %v3857 = vunpack.c.l.b16 %v3773
        %v3858 = vunpack.c.h.b16 %v3773
        %v3859 = vunpack.c.l.b16 %v3774
        %v3860 = vunpack.c.h.b16 %v3774
        %v3861 = vunpack.c.l.b16 %v3775
        %v3862 = vunpack.c.h.b16 %v3775
        %v3863 = vunpack.c.l.b16 %v3776
        %v3864 = vunpack.c.h.b16 %v3776
        %v3865 = vunpack.c.l.b16 %v3777
        %v3866 = vunpack.c.h.b16 %v3777
        %v3867 = vunpack.c.l.b16 %v3778
        %v3868 = vunpack.c.h.b16 %v3778
        %v3869 = vunpack.c.l.b16 %v3779
        %v3870 = vunpack.c.h.b16 %v3779
        %v3871 = vunpack.c.l.b16 %v3780
        %v3872 = vunpack.c.h.b16 %v3780
        %v3873 = vunpack.c.l.b16 %v3781
        %v3874 = vunpack.c.h.b16 %v3781
        %v3875 = vunpack.c.l.b16 %v3782
        %v3876 = vunpack.c.h.b16 %v3782
        %v3877 = vunpack.c.l.b16 %v3783
        %v3878 = vunpack.c.h.b16 %v3783
        %v3879 = vunpack.c.l.b16 %v3784
        %v3880 = vunpack.c.h.b16 %v3784
        %v3881 = vunpack.c.l.b16 %v3785
        %v3882 = vunpack.c.h.b16 %v3785
        %v3883 = vunpack.c.l.b16 %v3786
        %v3884 = vunpack.c.h.b16 %v3786
        %v3885 = vunpack.c.l.b16 %v3787
        %v3886 = vunpack.c.h.b16 %v3787
        %v3887 = vunpack.c.l.b16 %v3788
        %v3888 = vunpack.c.h.b16 %v3788
        %v3889 = vunpack.c.l.b16 %v3789
        %v3890 = vunpack.c.h.b16 %v3789
        %v3891 = vunpack.c.l.b16 %v3790
        %v3892 = vunpack.c.h.b16 %v3790
        %v3893 = vunpack.c.l.b16 %v3791
        %v3894 = vunpack.c.h.b16 %v3791
        %v3895 = vunpack.c.l.b16 %v3792
        %v3896 = vunpack.c.h.b16 %v3792
        %v3897 = vunpack.c.l.b16 %v3793
        %v3898 = vunpack.c.h.b16 %v3793
        %v3899 = vunpack.c.l.b16 %v3794
        %v3900 = vunpack.c.h.b16 %v3794
        %v3901 = vunpack.c.l.b16 %v3795
        %v3902 = vunpack.c.h.b16 %v3795
        %v3903 = vunpack.c.l.b16 %v3796
        %v3904 = vunpack.c.h.b16 %v3796
        %v3905 = vpack.c.b16 %v3843, %v3841
        %v3906 = vpack.c.b16 %v3844, %v3842
        %v3907 = vpack.c.b16 %v3847, %v3845
        %v3908 = vpack.c.b16 %v3848, %v3846
        %v3909 = vpack.c.b16 %v3851, %v3849
        %v3910 = vpack.c.b16 %v3852, %v3850
        %v3911 = vpack.c.b16 %v3855, %v3853
        %v3912 = vpack.c.b16 %v3856, %v3854
        %v3913 = vpack.c.b16 %v3859, %v3857
        %v3914 = vpack.c.b16 %v3860, %v3858
        %v3915 = vpack.c.b16 %v3863, %v3861
        %v3916 = vpack.c.b16 %v3864, %v3862
        %v3917 = vpack.c.b16 %v3867, %v3865
        %v3918 = vpack.c.b16 %v3868, %v3866
        %v3919 = vpack.c.b16 %v3871, %v3869
        %v3920 = vpack.c.b16 %v3872, %v3870
        %v3921 = vpack.c.b16 %v3875, %v3873
        %v3922 = vpack.c.b16 %v3876, %v3874
        %v3923 = vpack.c.b16 %v3879, %v3877
        %v3924 = vpack.c.b16 %v3880, %v3878
        %v3925 = vpack.c.b16 %v3883, %v3881
        %v3926 = vpack.c.b16 %v3884, %v3882
        %v3927 = vpack.c.b16 %v3887, %v3885
        %v3928 = vpack.c.b16 %v3888, %v3886
        %v3929 = vpack.c.b16 %v3891, %v3889
        %v3930 = vpack.c.b16 %v3892, %v3890
        %v3931 = vpack.c.b16 %v3895, %v3893
        %v3932 = vpack.c.b16 %v3896, %v3894
        %v3933 = vpack.c.b16 %v3899, %v3897
        %v3934 = vpack.c.b16 %v3900, %v3898
        %v3935 = vpack.c.b16 %v3903, %v3901
        %v3936 = vpack.c.b16 %v3904, %v3902
        %3969 = vmatprep.subr.bf16.mxu0 %v3906
        %3970 = vmatpush1.bf16.msra.mxu0 %v3905
        %3971 = vmatprep.subr.bf16.mxu0 %v3908
        %3972 = vmatpush1.bf16.msra.mxu0 %v3907
        %3973 = vmatprep.subr.bf16.mxu0 %v3910
        %3974 = vmatpush1.bf16.msra.mxu0 %v3909
        %3975 = vmatprep.subr.bf16.mxu0 %v3912
        %3976 = vmatpush1.bf16.msra.mxu0 %v3911
        %3977 = vmatprep.subr.bf16.mxu0 %v3914
        %3978 = vmatpush1.bf16.msra.mxu0 %v3913
        %3979 = vmatprep.subr.bf16.mxu0 %v3916
        %3980 = vmatpush1.bf16.msra.mxu0 %v3915
        %3981 = vmatprep.subr.bf16.mxu0 %v3918
        %3982 = vmatpush1.bf16.msra.mxu0 %v3917
        %3983 = vmatprep.subr.bf16.mxu0 %v3920
        %3984 = vmatpush1.bf16.msra.mxu0 %v3919
        %3985 = vmatprep.subr.bf16.mxu0 %v3922
        %3986 = vmatpush1.bf16.msra.mxu0 %v3921
        %3987 = vmatprep.subr.bf16.mxu0 %v3924
        %3988 = vmatpush1.bf16.msra.mxu0 %v3923
        %3989 = vmatprep.subr.bf16.mxu0 %v3926
        %3990 = vmatpush1.bf16.msra.mxu0 %v3925
        %3991 = vmatprep.subr.bf16.mxu0 %v3928
        %3992 = vmatpush1.bf16.msra.mxu0 %v3927
        %3993 = vmatprep.subr.bf16.mxu0 %v3930
        %3994 = vmatpush1.bf16.msra.mxu0 %v3929
        %3995 = vmatprep.subr.bf16.mxu0 %v3932
        %3996 = vmatpush1.bf16.msra.mxu0 %v3931
        %3997 = vmatprep.subr.bf16.mxu0 %v3934
        %3998 = vmatpush1.bf16.msra.mxu0 %v3933
        %3999 = vmatprep.subr.bf16.mxu0 %v3936
        %4000 = vmatpush1.bf16.msra.mxu0 %v3935
        %4001 = vmatprep.mubr.bf16.mxu0 %v3764
        %4002 = vmatmul.mubr.bf16.gmra.mrb[0].mxu0 %v3763
        %v4003 = vpop.f32.mrb[0].mxu0
        %v4004 = vadd.f32 %v3802, %v4003
        %v4005 = vpop.f32.mrb[0].mxu0
        %v4006 = vadd.f32 %v3806, %v4005
        %v4007 = vpop.f32.mrb[0].mxu0
        %v4008 = vpop.f32.mrb[0].mxu0
        %4009 = vdwg.mxu0
        %vm4010 = vcmp.ge.f32.partialorder %v4004, 0.0
        %vm4011 = vcmp.ge.f32.partialorder %v4006, 0.0
        %v4012 = vmul.f32 %v4004, 0.1
        %v4013 = vmul.f32 %v4006, 0.1
        %v4014 = vsel %vm4010, %v4004, %v4012
        %v4015 = vsel %vm4011, %v4006, %v4013
        %v4016 = vpack.c.bf16 %v3508, %v3508
        %v4017 = vld [vmem:[#allocation21] sm:$0xf]
        %v4018 = vld [vmem:[#allocation21 + $0x4] sm:$0xf]
        %v4019 = vld [vmem:[#allocation21 + $0x8] sm:$0xf]
        %v4020 = vld [vmem:[#allocation21 + $0xc] sm:$0xf]
        %v4021 = vld [vmem:[#allocation21 + $0x10] sm:$0xf]
        %v4022 = vld [vmem:[#allocation21 + $0x14] sm:$0xf]
        %v4023 = vld [vmem:[#allocation21 + $0x18] sm:$0xf]
        %v4024 = vld [vmem:[#allocation21 + $0x1c] sm:$0xf]
        %v4025 = vld [vmem:[#allocation21 + $0x20] sm:$0xf]
        %v4026 = vld [vmem:[#allocation21 + $0x24] sm:$0xf]
        %v4027 = vld [vmem:[#allocation21 + $0x28] sm:$0xf]
        %v4028 = vld [vmem:[#allocation21 + $0x2c] sm:$0xf]
        %v4029 = vld [vmem:[#allocation21 + $0x30] sm:$0xf]
        %v4030 = vld [vmem:[#allocation21 + $0x34] sm:$0xf]
        %v4031 = vld [vmem:[#allocation21 + $0x38] sm:$0xf]
        %v4032 = vld [vmem:[#allocation21 + $0x3c] sm:$0xf]
        %v4033 = vld [vmem:[#allocation23] sm:$0x1]
        %v4035 = vlaneseq
        %v4036 = vshrl.u32 %v4035, 7
        %v4037 = vsub.s32 0, %v4036
        %v4038 = vrot.slane %v4033, %v4037
        %v4056 = vunpack.c.l.b16 %v4017
        %v4057 = vunpack.c.l.b16 %v4018
        %v4058 = vunpack.c.l.b16 %v4019
        %v4059 = vunpack.c.l.b16 %v4020
        %v4060 = vunpack.c.l.b16 %v4021
        %v4061 = vunpack.c.l.b16 %v4022
        %v4062 = vunpack.c.l.b16 %v4023
        %v4063 = vunpack.c.l.b16 %v4024
        %v4064 = vunpack.c.l.b16 %v4025
        %v4065 = vunpack.c.l.b16 %v4026
        %v4066 = vunpack.c.l.b16 %v4027
        %v4067 = vunpack.c.l.b16 %v4028
        %v4068 = vunpack.c.l.b16 %v4029
        %v4069 = vunpack.c.l.b16 %v4030
        %v4070 = vunpack.c.l.b16 %v4031
        %v4071 = vunpack.c.l.b16 %v4032
        %v4072 = vpack.c.b16 %v4057, %v4056
        %v4073 = vpack.c.b16 %v4059, %v4058
        %v4074 = vpack.c.b16 %v4061, %v4060
        %v4075 = vpack.c.b16 %v4063, %v4062
        %v4076 = vpack.c.b16 %v4065, %v4064
        %v4077 = vpack.c.b16 %v4067, %v4066
        %v4078 = vpack.c.b16 %v4069, %v4068
        %v4079 = vpack.c.b16 %v4071, %v4070
        %4088 = vmatprep.subr.bf16.mxu0 0
        %4089 = vmatpush1.bf16.msra.mxu0 %v4072
        %4090 = vmatprep.subr.bf16.mxu0 0
        %4091 = vmatpush1.bf16.msra.mxu0 %v4073
        %4092 = vmatprep.subr.bf16.mxu0 0
        %4093 = vmatpush1.bf16.msra.mxu0 %v4074
        %4094 = vmatprep.subr.bf16.mxu0 0
        %4095 = vmatpush1.bf16.msra.mxu0 %v4075
        %4096 = vmatprep.subr.bf16.mxu0 0
        %4097 = vmatpush1.bf16.msra.mxu0 %v4076
        %4098 = vmatprep.subr.bf16.mxu0 0
        %4099 = vmatpush1.bf16.msra.mxu0 %v4077
        %4100 = vmatprep.subr.bf16.mxu0 0
        %4101 = vmatpush1.bf16.msra.mxu0 %v4078
        %4102 = vmatprep.subr.bf16.mxu0 0
        %4103 = vmatpush1.bf16.msra.mxu0 %v4079
        %4104 = vmatprep.subr.bf16.mxu0 0
        %4105 = vmatpush1.bf16.msra.mxu0 0
        %4106 = vmatprep.subr.bf16.mxu0 0
        %4107 = vmatpush1.bf16.msra.mxu0 0
        %4108 = vmatprep.subr.bf16.mxu0 0
        %4109 = vmatpush1.bf16.msra.mxu0 0
        %4110 = vmatprep.subr.bf16.mxu0 0
        %4111 = vmatpush1.bf16.msra.mxu0 0
        %4112 = vmatprep.subr.bf16.mxu0 0
        %4113 = vmatpush1.bf16.msra.mxu0 0
        %4114 = vmatprep.subr.bf16.mxu0 0
        %4115 = vmatpush1.bf16.msra.mxu0 0
        %4116 = vmatprep.subr.bf16.mxu0 0
        %4117 = vmatpush1.bf16.msra.mxu0 0
        %4118 = vmatprep.subr.bf16.mxu0 0
        %4119 = vmatpush1.bf16.msra.mxu0 0
        %4120 = vmatprep.mubr.bf16.mxu0 0
        %4121 = vmatmul.mubr.bf16.gmra.mrb[0].mxu0 %v4016
        %v4122 = vpop.f32.mrb[0].mxu0
        %v4123 = vadd.f32 %v4038, %v4122
        %v4124 = vpop.f32.mrb[0].mxu0
        %v4125 = vpop.f32.mrb[0].mxu0
        %v4126 = vpop.f32.mrb[0].mxu0
        %4127 = vdwg.mxu0
        %v4128 = vpack.c.bf16 %v3761, %v3761
        %v4129 = vld [vmem:[#allocation24] sm:$0xf]
        %v4130 = vld [vmem:[#allocation24 + $0x4] sm:$0xf]
        %v4131 = vld [vmem:[#allocation24 + $0x8] sm:$0xf]
        %v4132 = vld [vmem:[#allocation24 + $0xc] sm:$0xf]
        %v4133 = vld [vmem:[#allocation24 + $0x10] sm:$0xf]
        %v4134 = vld [vmem:[#allocation24 + $0x14] sm:$0xf]
        %v4135 = vld [vmem:[#allocation24 + $0x18] sm:$0xf]
        %v4136 = vld [vmem:[#allocation24 + $0x1c] sm:$0xf]
        %v4137 = vld [vmem:[#allocation24 + $0x20] sm:$0xf]
        %v4138 = vld [vmem:[#allocation24 + $0x24] sm:$0xf]
        %v4139 = vld [vmem:[#allocation24 + $0x28] sm:$0xf]
        %v4140 = vld [vmem:[#allocation24 + $0x2c] sm:$0xf]
        %v4141 = vld [vmem:[#allocation24 + $0x30] sm:$0xf]
        %v4142 = vld [vmem:[#allocation24 + $0x34] sm:$0xf]
        %v4143 = vld [vmem:[#allocation24 + $0x38] sm:$0xf]
        %v4144 = vld [vmem:[#allocation24 + $0x3c] sm:$0xf]
        %v4145 = vld [vmem:[#allocation26] sm:$0x1]
        %v4147 = vlaneseq
        %v4148 = vshrl.u32 %v4147, 7
        %v4149 = vsub.s32 0, %v4148
        %v4150 = vrot.slane %v4145, %v4149
        %v4168 = vunpack.c.l.b16 %v4129
        %v4169 = vunpack.c.l.b16 %v4130
        %v4170 = vunpack.c.l.b16 %v4131
        %v4171 = vunpack.c.l.b16 %v4132
        %v4172 = vunpack.c.l.b16 %v4133
        %v4173 = vunpack.c.l.b16 %v4134
        %v4174 = vunpack.c.l.b16 %v4135
        %v4175 = vunpack.c.l.b16 %v4136
        %v4176 = vunpack.c.l.b16 %v4137
        %v4177 = vunpack.c.l.b16 %v4138
        %v4178 = vunpack.c.l.b16 %v4139
        %v4179 = vunpack.c.l.b16 %v4140
        %v4180 = vunpack.c.l.b16 %v4141
        %v4181 = vunpack.c.l.b16 %v4142
        %v4182 = vunpack.c.l.b16 %v4143
        %v4183 = vunpack.c.l.b16 %v4144
        %v4184 = vpack.c.b16 %v4169, %v4168
        %v4185 = vpack.c.b16 %v4171, %v4170
        %v4186 = vpack.c.b16 %v4173, %v4172
        %v4187 = vpack.c.b16 %v4175, %v4174
        %v4188 = vpack.c.b16 %v4177, %v4176
        %v4189 = vpack.c.b16 %v4179, %v4178
        %v4190 = vpack.c.b16 %v4181, %v4180
        %v4191 = vpack.c.b16 %v4183, %v4182
        %4200 = vmatprep.subr.bf16.mxu0 0
        %4201 = vmatpush1.bf16.msra.mxu0 %v4184
        %4202 = vmatprep.subr.bf16.mxu0 0
        %4203 = vmatpush1.bf16.msra.mxu0 %v4185
        %4204 = vmatprep.subr.bf16.mxu0 0
        %4205 = vmatpush1.bf16.msra.mxu0 %v4186
        %4206 = vmatprep.subr.bf16.mxu0 0
        %4207 = vmatpush1.bf16.msra.mxu0 %v4187
        %4208 = vmatprep.subr.bf16.mxu0 0
        %4209 = vmatpush1.bf16.msra.mxu0 %v4188
        %4210 = vmatprep.subr.bf16.mxu0 0
        %4211 = vmatpush1.bf16.msra.mxu0 %v4189
        %4212 = vmatprep.subr.bf16.mxu0 0
        %4213 = vmatpush1.bf16.msra.mxu0 %v4190
        %4214 = vmatprep.subr.bf16.mxu0 0
        %4215 = vmatpush1.bf16.msra.mxu0 %v4191
        %4216 = vmatprep.subr.bf16.mxu0 0
        %4217 = vmatpush1.bf16.msra.mxu0 0
        %4218 = vmatprep.subr.bf16.mxu0 0
        %4219 = vmatpush1.bf16.msra.mxu0 0
        %4220 = vmatprep.subr.bf16.mxu0 0
        %4221 = vmatpush1.bf16.msra.mxu0 0
        %4222 = vmatprep.subr.bf16.mxu0 0
        %4223 = vmatpush1.bf16.msra.mxu0 0
        %4224 = vmatprep.subr.bf16.mxu0 0
        %4225 = vmatpush1.bf16.msra.mxu0 0
        %4226 = vmatprep.subr.bf16.mxu0 0
        %4227 = vmatpush1.bf16.msra.mxu0 0
        %4228 = vmatprep.subr.bf16.mxu0 0
        %4229 = vmatpush1.bf16.msra.mxu0 0
        %4230 = vmatprep.subr.bf16.mxu0 0
        %4231 = vmatpush1.bf16.msra.mxu0 0
        %4232 = vmatprep.mubr.bf16.mxu0 0
        %4233 = vmatmul.mubr.bf16.gmra.mrb[0].mxu0 %v4128
        %v4234 = vpop.f32.mrb[0].mxu0
        %v4235 = vadd.f32 %v4150, %v4234
        %v4236 = vpop.f32.mrb[0].mxu0
        %v4237 = vpop.f32.mrb[0].mxu0
        %v4238 = vpop.f32.mrb[0].mxu0
        %4239 = vdwg.mxu0
        %v4240 = vpack.c.bf16 %v4014, %v4014
        %v4241 = vld [vmem:[#allocation27] sm:$0xf]
        %v4242 = vld [vmem:[#allocation27 + $0x4] sm:$0xf]
        %v4243 = vld [vmem:[#allocation27 + $0x8] sm:$0xf]
        %v4244 = vld [vmem:[#allocation27 + $0xc] sm:$0xf]
        %v4245 = vld [vmem:[#allocation27 + $0x10] sm:$0xf]
        %v4246 = vld [vmem:[#allocation27 + $0x14] sm:$0xf]
        %v4247 = vld [vmem:[#allocation27 + $0x18] sm:$0xf]
        %v4248 = vld [vmem:[#allocation27 + $0x1c] sm:$0xf]
        %v4249 = vld [vmem:[#allocation27 + $0x20] sm:$0xf]
        %v4250 = vld [vmem:[#allocation27 + $0x24] sm:$0xf]
        %v4251 = vld [vmem:[#allocation27 + $0x28] sm:$0xf]
        %v4252 = vld [vmem:[#allocation27 + $0x2c] sm:$0xf]
        %v4253 = vld [vmem:[#allocation27 + $0x30] sm:$0xf]
        %v4254 = vld [vmem:[#allocation27 + $0x34] sm:$0xf]
        %v4255 = vld [vmem:[#allocation27 + $0x38] sm:$0xf]
        %v4256 = vld [vmem:[#allocation27 + $0x3c] sm:$0xf]
        %v4257 = vld [vmem:[#allocation29] sm:$0x1]
        %v4259 = vlaneseq
        %v4260 = vshrl.u32 %v4259, 7
        %v4261 = vsub.s32 0, %v4260
        %v4262 = vrot.slane %v4257, %v4261
        %v4280 = vunpack.c.l.b16 %v4241
        %v4281 = vunpack.c.l.b16 %v4242
        %v4282 = vunpack.c.l.b16 %v4243
        %v4283 = vunpack.c.l.b16 %v4244
        %v4284 = vunpack.c.l.b16 %v4245
        %v4285 = vunpack.c.l.b16 %v4246
        %v4286 = vunpack.c.l.b16 %v4247
        %v4287 = vunpack.c.l.b16 %v4248
        %v4288 = vunpack.c.l.b16 %v4249
        %v4289 = vunpack.c.l.b16 %v4250
        %v4290 = vunpack.c.l.b16 %v4251
        %v4291 = vunpack.c.l.b16 %v4252
        %v4292 = vunpack.c.l.b16 %v4253
        %v4293 = vunpack.c.l.b16 %v4254
        %v4294 = vunpack.c.l.b16 %v4255
        %v4295 = vunpack.c.l.b16 %v4256
        %v4296 = vpack.c.b16 %v4281, %v4280
        %v4297 = vpack.c.b16 %v4283, %v4282
        %v4298 = vpack.c.b16 %v4285, %v4284
        %v4299 = vpack.c.b16 %v4287, %v4286
        %v4300 = vpack.c.b16 %v4289, %v4288
        %v4301 = vpack.c.b16 %v4291, %v4290
        %v4302 = vpack.c.b16 %v4293, %v4292
        %v4303 = vpack.c.b16 %v4295, %v4294
        %4312 = vmatprep.subr.bf16.mxu0 0
        %4313 = vmatpush1.bf16.msra.mxu0 %v4296
        %4314 = vmatprep.subr.bf16.mxu0 0
        %4315 = vmatpush1.bf16.msra.mxu0 %v4297
        %4316 = vmatprep.subr.bf16.mxu0 0
        %4317 = vmatpush1.bf16.msra.mxu0 %v4298
        %4318 = vmatprep.subr.bf16.mxu0 0
        %4319 = vmatpush1.bf16.msra.mxu0 %v4299
        %4320 = vmatprep.subr.bf16.mxu0 0
        %4321 = vmatpush1.bf16.msra.mxu0 %v4300
        %4322 = vmatprep.subr.bf16.mxu0 0
        %4323 = vmatpush1.bf16.msra.mxu0 %v4301
        %4324 = vmatprep.subr.bf16.mxu0 0
        %4325 = vmatpush1.bf16.msra.mxu0 %v4302
        %4326 = vmatprep.subr.bf16.mxu0 0
        %4327 = vmatpush1.bf16.msra.mxu0 %v4303
        %4328 = vmatprep.subr.bf16.mxu0 0
        %4329 = vmatpush1.bf16.msra.mxu0 0
        %4330 = vmatprep.subr.bf16.mxu0 0
        %4331 = vmatpush1.bf16.msra.mxu0 0
        %4332 = vmatprep.subr.bf16.mxu0 0
        %4333 = vmatpush1.bf16.msra.mxu0 0
        %4334 = vmatprep.subr.bf16.mxu0 0
        %4335 = vmatpush1.bf16.msra.mxu0 0
        %4336 = vmatprep.subr.bf16.mxu0 0
        %4337 = vmatpush1.bf16.msra.mxu0 0
        %4338 = vmatprep.subr.bf16.mxu0 0
        %4339 = vmatpush1.bf16.msra.mxu0 0
        %4340 = vmatprep.subr.bf16.mxu0 0
        %4341 = vmatpush1.bf16.msra.mxu0 0
        %4342 = vmatprep.subr.bf16.mxu0 0
        %4343 = vmatpush1.bf16.msra.mxu0 0
        %4344 = vmatprep.mubr.bf16.mxu0 0
        %4345 = vmatmul.mubr.bf16.gmra.mrb[0].mxu0 %v4240
        %v4346 = vpop.f32.mrb[0].mxu0
        %v4347 = vadd.f32 %v4262, %v4346
        %v4348 = vpop.f32.mrb[0].mxu0
        %v4349 = vpop.f32.mrb[0].mxu0
        %v4350 = vpop.f32.mrb[0].mxu0
        %4351 = vdwg.mxu0
        %4352 = vst [vmem:[%s1636] sm:$0xff] %v4123
        %4353 = vst [vmem:[%s1640] sm:$0xff] %v4235
        %4354 = vst [vmem:[%s1644] sm:$0xff] %v4347
        %v4355 = vpack.c.bf16 %v3762, %v3509
        %v4356 = vpack.c.bf16 %v4015, %v4015
        %v4357 = vld [vmem:[#allocation30] sm:$0xf]
        %v4358 = vld [vmem:[#allocation30 + $0x4] sm:$0xf]
        %v4359 = vld [vmem:[#allocation30 + $0x8] sm:$0xf]
        %v4360 = vld [vmem:[#allocation30 + $0xc] sm:$0xf]
        %v4361 = vld [vmem:[#allocation30 + $0x10] sm:$0xf]
        %v4362 = vld [vmem:[#allocation30 + $0x14] sm:$0xf]
        %v4363 = vld [vmem:[#allocation30 + $0x18] sm:$0xf]
        %v4364 = vld [vmem:[#allocation30 + $0x1c] sm:$0xf]
        %v4365 = vld [vmem:[#allocation30 + $0x20] sm:$0xf]
        %v4366 = vld [vmem:[#allocation30 + $0x24] sm:$0xf]
        %v4367 = vld [vmem:[#allocation30 + $0x28] sm:$0xf]
        %v4368 = vld [vmem:[#allocation30 + $0x2c] sm:$0xf]
        %v4369 = vld [vmem:[#allocation30 + $0x30] sm:$0xf]
        %v4370 = vld [vmem:[#allocation30 + $0x34] sm:$0xf]
        %v4371 = vld [vmem:[#allocation30 + $0x38] sm:$0xf]
        %v4372 = vld [vmem:[#allocation30 + $0x3c] sm:$0xf]
        %v4373 = vld [vmem:[#allocation32] sm:$0x1]
        %v4375 = vlaneseq
        %v4376 = vshrl.u32 %v4375, 7
        %v4377 = vsub.s32 0, %v4376
        %v4378 = vrot.slane %v4373, %v4377
        %v4396 = vunpack.c.l.b16 %v4357
        %v4397 = vunpack.c.l.b16 %v4358
        %v4398 = vunpack.c.l.b16 %v4359
        %v4399 = vunpack.c.l.b16 %v4360
        %v4400 = vunpack.c.l.b16 %v4361
        %v4401 = vunpack.c.l.b16 %v4362
        %v4402 = vunpack.c.l.b16 %v4363
        %v4403 = vunpack.c.l.b16 %v4364
        %v4404 = vunpack.c.l.b16 %v4365
        %v4405 = vunpack.c.l.b16 %v4366
        %v4406 = vunpack.c.l.b16 %v4367
        %v4407 = vunpack.c.l.b16 %v4368
        %v4408 = vunpack.c.l.b16 %v4369
        %v4409 = vunpack.c.l.b16 %v4370
        %v4410 = vunpack.c.l.b16 %v4371
        %v4411 = vunpack.c.l.b16 %v4372
        %v4412 = vpack.c.b16 %v4397, %v4396
        %v4413 = vpack.c.b16 %v4399, %v4398
        %v4414 = vpack.c.b16 %v4401, %v4400
        %v4415 = vpack.c.b16 %v4403, %v4402
        %v4416 = vpack.c.b16 %v4405, %v4404
        %v4417 = vpack.c.b16 %v4407, %v4406
        %v4418 = vpack.c.b16 %v4409, %v4408
        %v4419 = vpack.c.b16 %v4411, %v4410
        %4428 = vmatprep.subr.bf16.mxu0 0
        %4429 = vmatpush1.bf16.msra.mxu0 %v4412
        %4430 = vmatprep.subr.bf16.mxu0 0
        %4431 = vmatpush1.bf16.msra.mxu0 %v4413
        %4432 = vmatprep.subr.bf16.mxu0 0
        %4433 = vmatpush1.bf16.msra.mxu0 %v4414
        %4434 = vmatprep.subr.bf16.mxu0 0
        %4435 = vmatpush1.bf16.msra.mxu0 %v4415
        %4436 = vmatprep.subr.bf16.mxu0 0
        %4437 = vmatpush1.bf16.msra.mxu0 %v4416
        %4438 = vmatprep.subr.bf16.mxu0 0
        %4439 = vmatpush1.bf16.msra.mxu0 %v4417
        %4440 = vmatprep.subr.bf16.mxu0 0
        %4441 = vmatpush1.bf16.msra.mxu0 %v4418
        %4442 = vmatprep.subr.bf16.mxu0 0
        %4443 = vmatpush1.bf16.msra.mxu0 %v4419
        %4444 = vmatprep.subr.bf16.mxu0 0
        %4445 = vmatpush1.bf16.msra.mxu0 0
        %4446 = vmatprep.subr.bf16.mxu0 0
        %4447 = vmatpush1.bf16.msra.mxu0 0
        %4448 = vmatprep.subr.bf16.mxu0 0
        %4449 = vmatpush1.bf16.msra.mxu0 0
        %4450 = vmatprep.subr.bf16.mxu0 0
        %4451 = vmatpush1.bf16.msra.mxu0 0
        %4452 = vmatprep.subr.bf16.mxu0 0
        %4453 = vmatpush1.bf16.msra.mxu0 0
        %4454 = vmatprep.subr.bf16.mxu0 0
        %4455 = vmatpush1.bf16.msra.mxu0 0
        %4456 = vmatprep.subr.bf16.mxu0 0
        %4457 = vmatpush1.bf16.msra.mxu0 0
        %4458 = vmatprep.subr.bf16.mxu0 0
        %4459 = vmatpush1.bf16.msra.mxu0 0
        %4460 = vmatprep.mubr.bf16.mxu0 0
        %4461 = vmatmul.mubr.bf16.gmra.mrb[0].mxu0 %v4355
        %v4462 = vpop.f32.mrb[0].mxu0
        %v4463 = vadd.f32 %v4378, %v4462
        %v4464 = vpop.f32.mrb[0].mxu0
        %v4465 = vpop.f32.mrb[0].mxu0
        %v4466 = vadd.f32 %v4378, %v4465
        %v4467 = vpop.f32.mrb[0].mxu0
        %4468 = vmatprep.mubr.bf16.mxu0 0
        %4469 = vmatmul.mubr.bf16.gmra.mrb[0].mxu0 %v4356
        %v4470 = vpop.f32.mrb[0].mxu0
        %v4471 = vadd.f32 %v4378, %v4470
        %v4472 = vpop.f32.mrb[0].mxu0
        %v4473 = vpop.f32.mrb[0].mxu0
        %v4474 = vpop.f32.mrb[0].mxu0
        %4475 = vdwg.mxu0
        %4476 = vst [vmem:[%s1597] sm:$0xff] %v4463
        %4477 = vst [vmem:[%s1604] sm:$0xff] %v4466
        %4478 = vst [vmem:[%s1611] sm:$0xff] %v4471
        %v4479 = vpack.c.bf16 %v4463, %v4463
        %v4480 = vpack.c.bf16 %v4466, %v4466
        %v4481 = vpack.c.bf16 %v4471, %v4471
        %v4482 = vld [vmem:[#allocation33] sm:$0xf]
        %v4483 = vld [vmem:[#allocation33 + $0x4] sm:$0xf]
        %v4484 = vld [vmem:[#allocation33 + $0x8] sm:$0xf]
        %v4485 = vld [vmem:[#allocation33 + $0xc] sm:$0xf]
        %v4486 = vld [vmem:[#allocation33 + $0x10] sm:$0xf]
        %v4487 = vld [vmem:[#allocation33 + $0x14] sm:$0xf]
        %v4488 = vld [vmem:[#allocation33 + $0x18] sm:$0xf]
        %v4489 = vld [vmem:[#allocation33 + $0x1c] sm:$0xf]
        %v4490 = vld [vmem:[#allocation33 + $0x20] sm:$0xf]
        %v4491 = vld [vmem:[#allocation33 + $0x24] sm:$0xf]
        %v4492 = vld [vmem:[#allocation33 + $0x28] sm:$0xf]
        %v4493 = vld [vmem:[#allocation33 + $0x2c] sm:$0xf]
        %v4494 = vld [vmem:[#allocation33 + $0x30] sm:$0xf]
        %v4495 = vld [vmem:[#allocation33 + $0x34] sm:$0xf]
        %v4496 = vld [vmem:[#allocation33 + $0x38] sm:$0xf]
        %v4497 = vld [vmem:[#allocation33 + $0x3c] sm:$0xf]
        %v4498 = vld [vmem:[#allocation33 + $0x40] sm:$0xf]
        %v4499 = vld [vmem:[#allocation33 + $0x44] sm:$0xf]
        %v4500 = vld [vmem:[#allocation33 + $0x48] sm:$0xf]
        %v4501 = vld [vmem:[#allocation33 + $0x4c] sm:$0xf]
        %v4502 = vld [vmem:[#allocation33 + $0x50] sm:$0xf]
        %v4503 = vld [vmem:[#allocation33 + $0x54] sm:$0xf]
        %v4504 = vld [vmem:[#allocation33 + $0x58] sm:$0xf]
        %v4505 = vld [vmem:[#allocation33 + $0x5c] sm:$0xf]
        %v4506 = vld [vmem:[#allocation33 + $0x60] sm:$0xf]
        %v4507 = vld [vmem:[#allocation33 + $0x64] sm:$0xf]
        %v4508 = vld [vmem:[#allocation33 + $0x68] sm:$0xf]
        %v4509 = vld [vmem:[#allocation33 + $0x6c] sm:$0xf]
        %v4510 = vld [vmem:[#allocation33 + $0x70] sm:$0xf]
        %v4511 = vld [vmem:[#allocation33 + $0x74] sm:$0xf]
        %v4512 = vld [vmem:[#allocation33 + $0x78] sm:$0xf]
        %v4513 = vld [vmem:[#allocation33 + $0x7c] sm:$0xf]
        %v4514 = vld [vmem:[#allocation33 + $0x80] sm:$0xf]
        %v4515 = vld [vmem:[#allocation33 + $0x84] sm:$0xf]
        %v4516 = vld [vmem:[#allocation33 + $0x88] sm:$0xf]
        %v4517 = vld [vmem:[#allocation33 + $0x8c] sm:$0xf]
        %v4518 = vld [vmem:[#allocation33 + $0x90] sm:$0xf]
        %v4519 = vld [vmem:[#allocation33 + $0x94] sm:$0xf]
        %v4520 = vld [vmem:[#allocation33 + $0x98] sm:$0xf]
        %v4521 = vld [vmem:[#allocation33 + $0x9c] sm:$0xf]
        %v4522 = vld [vmem:[#allocation33 + $0xa0] sm:$0xf]
        %v4523 = vld [vmem:[#allocation33 + $0xa4] sm:$0xf]
        %v4524 = vld [vmem:[#allocation33 + $0xa8] sm:$0xf]
        %v4525 = vld [vmem:[#allocation33 + $0xac] sm:$0xf]
        %v4526 = vld [vmem:[#allocation33 + $0xb0] sm:$0xf]
        %v4527 = vld [vmem:[#allocation33 + $0xb4] sm:$0xf]
        %v4528 = vld [vmem:[#allocation33 + $0xb8] sm:$0xf]
        %v4529 = vld [vmem:[#allocation33 + $0xbc] sm:$0xf]
        %v4530 = vld [vmem:[#allocation35] sm:$0x1]
        %v4532 = vlaneseq
        %v4533 = vshrl.u32 %v4532, 7
        %v4534 = vsub.s32 0, %v4533
        %v4535 = vrot.slane %v4530, %v4534
        %v4585 = vunpack.c.l.b16 %v4482
        %v4586 = vunpack.c.l.b16 %v4483
        %v4587 = vunpack.c.l.b16 %v4484
        %v4588 = vunpack.c.l.b16 %v4485
        %v4589 = vunpack.c.l.b16 %v4486
        %v4590 = vunpack.c.l.b16 %v4487
        %v4591 = vunpack.c.l.b16 %v4488
        %v4592 = vunpack.c.l.b16 %v4489
        %v4593 = vunpack.c.l.b16 %v4490
        %v4594 = vunpack.c.l.b16 %v4491
        %v4595 = vunpack.c.l.b16 %v4492
        %v4596 = vunpack.c.l.b16 %v4493
        %v4597 = vunpack.c.l.b16 %v4494
        %v4598 = vunpack.c.l.b16 %v4495
        %v4599 = vunpack.c.l.b16 %v4496
        %v4600 = vunpack.c.l.b16 %v4497
        %v4601 = vunpack.c.l.b16 %v4498
        %v4602 = vunpack.c.l.b16 %v4499
        %v4603 = vunpack.c.l.b16 %v4500
        %v4604 = vunpack.c.l.b16 %v4501
        %v4605 = vunpack.c.l.b16 %v4502
        %v4606 = vunpack.c.l.b16 %v4503
        %v4607 = vunpack.c.l.b16 %v4504
        %v4608 = vunpack.c.l.b16 %v4505
        %v4609 = vunpack.c.l.b16 %v4506
        %v4610 = vunpack.c.l.b16 %v4507
        %v4611 = vunpack.c.l.b16 %v4508
        %v4612 = vunpack.c.l.b16 %v4509
        %v4613 = vunpack.c.l.b16 %v4510
        %v4614 = vunpack.c.l.b16 %v4511
        %v4615 = vunpack.c.l.b16 %v4512
        %v4616 = vunpack.c.l.b16 %v4513
        %v4617 = vunpack.c.l.b16 %v4514
        %v4618 = vunpack.c.l.b16 %v4515
        %v4619 = vunpack.c.l.b16 %v4516
        %v4620 = vunpack.c.l.b16 %v4517
        %v4621 = vunpack.c.l.b16 %v4518
        %v4622 = vunpack.c.l.b16 %v4519
        %v4623 = vunpack.c.l.b16 %v4520
        %v4624 = vunpack.c.l.b16 %v4521
        %v4625 = vunpack.c.l.b16 %v4522
        %v4626 = vunpack.c.l.b16 %v4523
        %v4627 = vunpack.c.l.b16 %v4524
        %v4628 = vunpack.c.l.b16 %v4525
        %v4629 = vunpack.c.l.b16 %v4526
        %v4630 = vunpack.c.l.b16 %v4527
        %v4631 = vunpack.c.l.b16 %v4528
        %v4632 = vunpack.c.l.b16 %v4529
        %v4633 = vpack.c.b16 %v4586, %v4585
        %v4634 = vpack.c.b16 %v4588, %v4587
        %v4635 = vpack.c.b16 %v4590, %v4589
        %v4636 = vpack.c.b16 %v4592, %v4591
        %v4637 = vpack.c.b16 %v4594, %v4593
        %v4638 = vpack.c.b16 %v4596, %v4595
        %v4639 = vpack.c.b16 %v4598, %v4597
        %v4640 = vpack.c.b16 %v4600, %v4599
        %v4641 = vpack.c.b16 %v4602, %v4601
        %v4642 = vpack.c.b16 %v4604, %v4603
        %v4643 = vpack.c.b16 %v4606, %v4605
        %v4644 = vpack.c.b16 %v4608, %v4607
        %v4645 = vpack.c.b16 %v4610, %v4609
        %v4646 = vpack.c.b16 %v4612, %v4611
        %v4647 = vpack.c.b16 %v4614, %v4613
        %v4648 = vpack.c.b16 %v4616, %v4615
        %v4649 = vpack.c.b16 %v4618, %v4617
        %v4650 = vpack.c.b16 %v4620, %v4619
        %v4651 = vpack.c.b16 %v4622, %v4621
        %v4652 = vpack.c.b16 %v4624, %v4623
        %v4653 = vpack.c.b16 %v4626, %v4625
        %v4654 = vpack.c.b16 %v4628, %v4627
        %v4655 = vpack.c.b16 %v4630, %v4629
        %v4656 = vpack.c.b16 %v4632, %v4631
        %4681 = vmatprep.subr.bf16.mxu0 0
        %4682 = vmatpush1.bf16.msra.mxu0 %v4633
        %4683 = vmatprep.subr.bf16.mxu0 0
        %4684 = vmatpush1.bf16.msra.mxu0 %v4634
        %4685 = vmatprep.subr.bf16.mxu0 0
        %4686 = vmatpush1.bf16.msra.mxu0 %v4635
        %4687 = vmatprep.subr.bf16.mxu0 0
        %4688 = vmatpush1.bf16.msra.mxu0 %v4636
        %4689 = vmatprep.subr.bf16.mxu0 0
        %4690 = vmatpush1.bf16.msra.mxu0 %v4637
        %4691 = vmatprep.subr.bf16.mxu0 0
        %4692 = vmatpush1.bf16.msra.mxu0 %v4638
        %4693 = vmatprep.subr.bf16.mxu0 0
        %4694 = vmatpush1.bf16.msra.mxu0 %v4639
        %4695 = vmatprep.subr.bf16.mxu0 0
        %4696 = vmatpush1.bf16.msra.mxu0 %v4640
        %4697 = vmatprep.subr.bf16.mxu0 0
        %4698 = vmatpush1.bf16.msra.mxu0 %v4641
        %4699 = vmatprep.subr.bf16.mxu0 0
        %4700 = vmatpush1.bf16.msra.mxu0 %v4642
        %4701 = vmatprep.subr.bf16.mxu0 0
        %4702 = vmatpush1.bf16.msra.mxu0 %v4643
        %4703 = vmatprep.subr.bf16.mxu0 0
        %4704 = vmatpush1.bf16.msra.mxu0 %v4644
        %4705 = vmatprep.subr.bf16.mxu0 0
        %4706 = vmatpush1.bf16.msra.mxu0 %v4645
        %4707 = vmatprep.subr.bf16.mxu0 0
        %4708 = vmatpush1.bf16.msra.mxu0 %v4646
        %4709 = vmatprep.subr.bf16.mxu0 0
        %4710 = vmatpush1.bf16.msra.mxu0 %v4647
        %4711 = vmatprep.subr.bf16.mxu0 0
        %4712 = vmatpush1.bf16.msra.mxu0 %v4648
        %4713 = vmatprep.mubr.bf16.mxu0 %v4480
        %4714 = vmatmul.mubr.bf16.gmra.mrb[0].mxu0 %v4479
        %v4715 = vpop.f32.mrb[0].mxu0
        %v4716 = vadd.f32 %v4535, %v4715
        %v4717 = vpop.f32.mrb[0].mxu0
        %v4718 = vpop.f32.mrb[0].mxu0
        %v4719 = vpop.f32.mrb[0].mxu0
        %4720 = vdwg.mxu0
        %4721 = vmatprep.subr.bf16.mxu0 0
        %4722 = vmatpush1.bf16.msra.mxu0 %v4649
        %4723 = vmatprep.subr.bf16.mxu0 0
        %4724 = vmatpush1.bf16.msra.mxu0 %v4650
        %4725 = vmatprep.subr.bf16.mxu0 0
        %4726 = vmatpush1.bf16.msra.mxu0 %v4651
        %4727 = vmatprep.subr.bf16.mxu0 0
        %4728 = vmatpush1.bf16.msra.mxu0 %v4652
        %4729 = vmatprep.subr.bf16.mxu0 0
        %4730 = vmatpush1.bf16.msra.mxu0 %v4653
        %4731 = vmatprep.subr.bf16.mxu0 0
        %4732 = vmatpush1.bf16.msra.mxu0 %v4654
        %4733 = vmatprep.subr.bf16.mxu0 0
        %4734 = vmatpush1.bf16.msra.mxu0 %v4655
        %4735 = vmatprep.subr.bf16.mxu0 0
        %4736 = vmatpush1.bf16.msra.mxu0 %v4656
        %4737 = vmatprep.subr.bf16.mxu0 0
        %4738 = vmatpush1.bf16.msra.mxu0 0
        %4739 = vmatprep.subr.bf16.mxu0 0
        %4740 = vmatpush1.bf16.msra.mxu0 0
        %4741 = vmatprep.subr.bf16.mxu0 0
        %4742 = vmatpush1.bf16.msra.mxu0 0
        %4743 = vmatprep.subr.bf16.mxu0 0
        %4744 = vmatpush1.bf16.msra.mxu0 0
        %4745 = vmatprep.subr.bf16.mxu0 0
        %4746 = vmatpush1.bf16.msra.mxu0 0
        %4747 = vmatprep.subr.bf16.mxu0 0
        %4748 = vmatpush1.bf16.msra.mxu0 0
        %4749 = vmatprep.subr.bf16.mxu0 0
        %4750 = vmatpush1.bf16.msra.mxu0 0
        %4751 = vmatprep.subr.bf16.mxu0 0
        %4752 = vmatpush1.bf16.msra.mxu0 0
        %4753 = vmatprep.mubr.bf16.mxu0 0
        %4754 = vmatmul.mubr.bf16.gmra.mrb[0].mxu0 %v4481
        %v4755 = vpop.f32.mrb[0].mxu0
        %v4756 = vadd.f32 %v4716, %v4755
        %v4757 = vpop.f32.mrb[0].mxu0
        %v4758 = vpop.f32.mrb[0].mxu0
        %v4759 = vpop.f32.mrb[0].mxu0
        %4760 = vdwg.mxu0
        %vm4761 = vcmp.ge.f32.partialorder %v4756, 0.0
        %v4762 = vmul.f32 %v4756, 0.1
        %v4763 = vsel %vm4761, %v4756, %v4762
        %v4764 = vpack.c.bf16 %v4763, %v4763
        %v4765 = vld [vmem:[#allocation36] sm:$0xf]
        %v4766 = vld [vmem:[#allocation36 + $0x4] sm:$0xf]
        %v4767 = vld [vmem:[#allocation36 + $0x8] sm:$0xf]
        %v4768 = vld [vmem:[#allocation36 + $0xc] sm:$0xf]
        %v4769 = vld [vmem:[#allocation36 + $0x10] sm:$0xf]
        %v4770 = vld [vmem:[#allocation36 + $0x14] sm:$0xf]
        %v4771 = vld [vmem:[#allocation36 + $0x18] sm:$0xf]
        %v4772 = vld [vmem:[#allocation36 + $0x1c] sm:$0xf]
        %v4773 = vld [vmem:[#allocation36 + $0x20] sm:$0xf]
        %v4774 = vld [vmem:[#allocation36 + $0x24] sm:$0xf]
        %v4775 = vld [vmem:[#allocation36 + $0x28] sm:$0xf]
        %v4776 = vld [vmem:[#allocation36 + $0x2c] sm:$0xf]
        %v4777 = vld [vmem:[#allocation36 + $0x30] sm:$0xf]
        %v4778 = vld [vmem:[#allocation36 + $0x34] sm:$0xf]
        %v4779 = vld [vmem:[#allocation36 + $0x38] sm:$0xf]
        %v4780 = vld [vmem:[#allocation36 + $0x3c] sm:$0xf]
        %v4781 = vld [vmem:[#allocation38] sm:$0x1]
        %v4783 = vlaneseq
        %v4784 = vshrl.u32 %v4783, 7
        %v4785 = vsub.s32 0, %v4784
        %v4786 = vrot.slane %v4781, %v4785
        %v4804 = vunpack.c.l.b16 %v4765
        %v4805 = vunpack.c.l.b16 %v4766
        %v4806 = vunpack.c.l.b16 %v4767
        %v4807 = vunpack.c.l.b16 %v4768
        %v4808 = vunpack.c.l.b16 %v4769
        %v4809 = vunpack.c.l.b16 %v4770
        %v4810 = vunpack.c.l.b16 %v4771
        %v4811 = vunpack.c.l.b16 %v4772
        %v4812 = vunpack.c.l.b16 %v4773
        %v4813 = vunpack.c.l.b16 %v4774
        %v4814 = vunpack.c.l.b16 %v4775
        %v4815 = vunpack.c.l.b16 %v4776
        %v4816 = vunpack.c.l.b16 %v4777
        %v4817 = vunpack.c.l.b16 %v4778
        %v4818 = vunpack.c.l.b16 %v4779
        %v4819 = vunpack.c.l.b16 %v4780
        %v4820 = vpack.c.b16 %v4805, %v4804
        %v4821 = vpack.c.b16 %v4807, %v4806
        %v4822 = vpack.c.b16 %v4809, %v4808
        %v4823 = vpack.c.b16 %v4811, %v4810
        %v4824 = vpack.c.b16 %v4813, %v4812
        %v4825 = vpack.c.b16 %v4815, %v4814
        %v4826 = vpack.c.b16 %v4817, %v4816
        %v4827 = vpack.c.b16 %v4819, %v4818
        %4836 = vmatprep.subr.bf16.mxu0 0
        %4837 = vmatpush1.bf16.msra.mxu0 %v4820
        %4838 = vmatprep.subr.bf16.mxu0 0
        %4839 = vmatpush1.bf16.msra.mxu0 %v4821
        %4840 = vmatprep.subr.bf16.mxu0 0
        %4841 = vmatpush1.bf16.msra.mxu0 %v4822
        %4842 = vmatprep.subr.bf16.mxu0 0
        %4843 = vmatpush1.bf16.msra.mxu0 %v4823
        %4844 = vmatprep.subr.bf16.mxu0 0
        %4845 = vmatpush1.bf16.msra.mxu0 %v4824
        %4846 = vmatprep.subr.bf16.mxu0 0
        %4847 = vmatpush1.bf16.msra.mxu0 %v4825
        %4848 = vmatprep.subr.bf16.mxu0 0
        %4849 = vmatpush1.bf16.msra.mxu0 %v4826
        %4850 = vmatprep.subr.bf16.mxu0 0
        %4851 = vmatpush1.bf16.msra.mxu0 %v4827
        %4852 = vmatprep.subr.bf16.mxu0 0
        %4853 = vmatpush1.bf16.msra.mxu0 0
        %4854 = vmatprep.subr.bf16.mxu0 0
        %4855 = vmatpush1.bf16.msra.mxu0 0
        %4856 = vmatprep.subr.bf16.mxu0 0
        %4857 = vmatpush1.bf16.msra.mxu0 0
        %4858 = vmatprep.subr.bf16.mxu0 0
        %4859 = vmatpush1.bf16.msra.mxu0 0
        %4860 = vmatprep.subr.bf16.mxu0 0
        %4861 = vmatpush1.bf16.msra.mxu0 0
        %4862 = vmatprep.subr.bf16.mxu0 0
        %4863 = vmatpush1.bf16.msra.mxu0 0
        %4864 = vmatprep.subr.bf16.mxu0 0
        %4865 = vmatpush1.bf16.msra.mxu0 0
        %4866 = vmatprep.subr.bf16.mxu0 0
        %4867 = vmatpush1.bf16.msra.mxu0 0
        %4868 = vmatprep.mubr.bf16.mxu0 0
        %4869 = vmatmul.mubr.bf16.gmra.mrb[0].mxu0 %v4764
        %v4870 = vpop.f32.mrb[0].mxu0
        %v4871 = vadd.f32 %v4786, %v4870
        %v4872 = vpop.f32.mrb[0].mxu0
        %v4873 = vpop.f32.mrb[0].mxu0
        %v4874 = vpop.f32.mrb[0].mxu0
        %4875 = vdwg.mxu0
        %4876 = vst [vmem:[%s1648] sm:$0xff] %v4871
        %v4877 = vrot.slane %v4463, 4
        %v4878 = vadd.f32 %v4463, %v4877
        %v4879 = vrot.slane %v4878, 2
        %v4880 = vadd.f32 %v4878, %v4879
        %v4881 = vrot.slane %v4880, 1
        %v4882 = vadd.f32 %v4880, %v4881
        %4883 = vst [vmem:[#allocation2] sm:$0x1] %v4882
        %v4884 = vrot.slane %v4466, 4
        %v4885 = vadd.f32 %v4466, %v4884
        %v4886 = vrot.slane %v4885, 2
        %v4887 = vadd.f32 %v4885, %v4886
        %v4888 = vrot.slane %v4887, 1
        %v4889 = vadd.f32 %v4887, %v4888
        %4890 = vst [vmem:[#allocation2 + $0x1] sm:$0x1] %v4889
        %v4891 = vrot.slane %v4471, 4
        %v4892 = vadd.f32 %v4471, %v4891
        %v4893 = vrot.slane %v4892, 2
        %v4894 = vadd.f32 %v4892, %v4893
        %v4895 = vrot.slane %v4894, 1
        %v4896 = vadd.f32 %v4894, %v4895
        %4897 = vst [vmem:[#allocation2 + $0x2] sm:$0x1] %v4896
        %v4898 = vrot.slane %v4123, 4
        %v4899 = vadd.f32 %v4123, %v4898
        %v4900 = vrot.slane %v4899, 2
        %v4901 = vadd.f32 %v4899, %v4900
        %v4902 = vrot.slane %v4901, 1
        %v4903 = vadd.f32 %v4901, %v4902
        %4904 = vst [vmem:[#allocation2 + $0x3] sm:$0x1] %v4903
        %v4905 = vrot.slane %v4235, 4
        %v4906 = vadd.f32 %v4235, %v4905
        %v4907 = vrot.slane %v4906, 2
        %v4908 = vadd.f32 %v4906, %v4907
        %v4909 = vrot.slane %v4908, 1
        %v4910 = vadd.f32 %v4908, %v4909
        %4911 = vst [vmem:[#allocation2 + $0x4] sm:$0x1] %v4910
        %v4912 = vrot.slane %v4347, 4
        %v4913 = vadd.f32 %v4347, %v4912
        %v4914 = vrot.slane %v4913, 2
        %v4915 = vadd.f32 %v4913, %v4914
        %v4916 = vrot.slane %v4915, 1
        %v4917 = vadd.f32 %v4915, %v4916
        %4918 = vst [vmem:[#allocation2 + $0x5] sm:$0x1] %v4917
        %v4919 = vld [vmem:[#allocation2] sm:$0x3f]
        %v4920 = vmul.f32 %v4919, 0.125
        %v4921 = vpack.c.bf16 %v4920, %v4920
        %v4922 = vld [vmem:[#allocation39] sm:$0xf]
        %v4923 = vld [vmem:[#allocation39 + $0x4] sm:$0xf]
        %v4924 = vld [vmem:[#allocation39 + $0x8] sm:$0xf]
        %v4925 = vld [vmem:[#allocation39 + $0xc] sm:$0xf]
        %v4926 = vld [vmem:[#allocation39 + $0x10] sm:$0xf]
        %v4927 = vld [vmem:[#allocation39 + $0x14] sm:$0xf]
        %v4928 = vld [vmem:[#allocation39 + $0x18] sm:$0xf]
        %v4929 = vld [vmem:[#allocation39 + $0x1c] sm:$0xf]
        %v4930 = vld [vmem:[#allocation39 + $0x20] sm:$0xf]
        %v4931 = vld [vmem:[#allocation39 + $0x24] sm:$0xf]
        %v4932 = vld [vmem:[#allocation39 + $0x28] sm:$0xf]
        %v4933 = vld [vmem:[#allocation39 + $0x2c] sm:$0xf]
        %v4934 = vld [vmem:[#allocation39 + $0x30] sm:$0xf]
        %v4935 = vld [vmem:[#allocation39 + $0x34] sm:$0xf]
        %v4936 = vld [vmem:[#allocation39 + $0x38] sm:$0xf]
        %v4937 = vld [vmem:[#allocation39 + $0x3c] sm:$0xf]
        %v4938 = vld [vmem:[#allocation41] sm:$0x1]
        %v4940 = vlaneseq
        %v4941 = vshrl.u32 %v4940, 7
        %v4942 = vsub.s32 0, %v4941
        %v4943 = vrot.slane %v4938, %v4942
        %v4961 = vunpack.c.l.b16 %v4922
        %v4962 = vunpack.c.l.b16 %v4923
        %v4963 = vunpack.c.l.b16 %v4924
        %v4964 = vunpack.c.l.b16 %v4925
        %v4965 = vunpack.c.l.b16 %v4926
        %v4966 = vunpack.c.l.b16 %v4927
        %v4967 = vunpack.c.l.b16 %v4928
        %v4968 = vunpack.c.l.b16 %v4929
        %v4969 = vunpack.c.l.b16 %v4930
        %v4970 = vunpack.c.l.b16 %v4931
        %v4971 = vunpack.c.l.b16 %v4932
        %v4972 = vunpack.c.l.b16 %v4933
        %v4973 = vunpack.c.l.b16 %v4934
        %v4974 = vunpack.c.l.b16 %v4935
        %v4975 = vunpack.c.l.b16 %v4936
        %v4976 = vunpack.c.l.b16 %v4937
        %v4977 = vpack.c.b16 %v4962, %v4961
        %v4978 = vpack.c.b16 %v4964, %v4963
        %v4979 = vpack.c.b16 %v4966, %v4965
        %v4980 = vpack.c.b16 %v4968, %v4967
        %v4981 = vpack.c.b16 %v4970, %v4969
        %v4982 = vpack.c.b16 %v4972, %v4971
        %v4983 = vpack.c.b16 %v4974, %v4973
        %v4984 = vpack.c.b16 %v4976, %v4975
        %4993 = vmatprep.subr.bf16.mxu0 0
        %4994 = vmatpush1.bf16.msra.mxu0 %v4977
        %4995 = vmatprep.subr.bf16.mxu0 0
        %4996 = vmatpush1.bf16.msra.mxu0 %v4978
        %4997 = vmatprep.subr.bf16.mxu0 0
        %4998 = vmatpush1.bf16.msra.mxu0 %v4979
        %4999 = vmatprep.subr.bf16.mxu0 0
        %5000 = vmatpush1.bf16.msra.mxu0 %v4980
        %5001 = vmatprep.subr.bf16.mxu0 0
        %5002 = vmatpush1.bf16.msra.mxu0 %v4981
        %5003 = vmatprep.subr.bf16.mxu0 0
        %5004 = vmatpush1.bf16.msra.mxu0 %v4982
        %5005 = vmatprep.subr.bf16.mxu0 0
        %5006 = vmatpush1.bf16.msra.mxu0 %v4983
        %5007 = vmatprep.subr.bf16.mxu0 0
        %5008 = vmatpush1.bf16.msra.mxu0 %v4984
        %5009 = vmatprep.subr.bf16.mxu0 0
        %5010 = vmatpush1.bf16.msra.mxu0 0
        %5011 = vmatprep.subr.bf16.mxu0 0
        %5012 = vmatpush1.bf16.msra.mxu0 0
        %5013 = vmatprep.subr.bf16.mxu0 0
        %5014 = vmatpush1.bf16.msra.mxu0 0
        %5015 = vmatprep.subr.bf16.mxu0 0
        %5016 = vmatpush1.bf16.msra.mxu0 0
        %5017 = vmatprep.subr.bf16.mxu0 0
        %5018 = vmatpush1.bf16.msra.mxu0 0
        %5019 = vmatprep.subr.bf16.mxu0 0
        %5020 = vmatpush1.bf16.msra.mxu0 0
        %5021 = vmatprep.subr.bf16.mxu0 0
        %5022 = vmatpush1.bf16.msra.mxu0 0
        %5023 = vmatprep.subr.bf16.mxu0 0
        %5024 = vmatpush1.bf16.msra.mxu0 0
        %5025 = vmatprep.mubr.bf16.mxu0 0
        %5026 = vmatmul.mubr.bf16.gmra.mrb[0].mxu0 %v4921
        %v5027 = vpop.f32.mrb[0].mxu0
        %v5028 = vadd.f32 %v4943, %v5027
        %v5029 = vpop.f32.mrb[0].mxu0
        %v5030 = vpop.f32.mrb[0].mxu0
        %v5031 = vpop.f32.mrb[0].mxu0
        %5032 = vdwg.mxu0
        %5033 = vst [vmem:[%s1652] sm:$0x3f] %v5028
        %s5034 = sand.u32 %s750, 1
        %s5035 = scalar_lea.sflag [#allocation5], %s5034
        %s5036 = sand.u32 %s750, 1
        %s5037 = smul.addr %s5036, 16
        %s5038 = scalar_lea.vmem [#allocation42], %s5037
        %s5039 = sand.u32 %s118, 1
        %s5040 = scalar_lea.sflag [#allocation44], %s5039
        %s5041 = sand.u32 %s776, 1
        %s5042 = smul.addr %s5041, 16
        %s5043 = scalar_lea.vmem [#allocation43], %s5042
        %s5044 = sand.u32 %s118, 1
        %s5045 = scalar_lea.sflag [#allocation44], %s5044
        %s5046 = sand.u32 %s802, 1
        %s5047 = smul.addr %s5046, 16
        %s5048 = scalar_lea.vmem [#allocation45], %s5047
        %p5049 = scmp.lt.s32.totalorder %s118, 1
        %s5050 = scalar_select %p5049, %s118, 1
        %s5051 = smul.addr %s5050, 8
        %s5052 = scalar_lea.vmem %s65, %s5051
        %p5053 = scmp.lt.s32.totalorder %s118, 1
        %s5054 = scalar_select %p5053, %s118, 1
        %s5055 = smul.addr %s5054, 8
        %s5056 = scalar_lea.vmem %s67, %s5055
        %p5057 = scmp.lt.s32.totalorder %s118, 1
        %s5058 = scalar_select %p5057, %s118, 1
        %s5059 = smul.addr %s5058, 8
        %s5060 = scalar_lea.vmem %s69, %s5059
        %s5061 = sand.u32 %s118, 1
        %s5062 = scalar_lea.sflag [#allocation47], %s5061
        %s5063 = sand.u32 %s906, 1
        %s5064 = smul.addr %s5063, 8
        %s5065 = scalar_lea.vmem [#allocation46], %s5064
        %s5066 = sand.u32 %s118, 1
        %s5067 = scalar_lea.sflag [#allocation47], %s5066
        %s5068 = sand.u32 %s932, 1
        %s5069 = smul.addr %s5068, 8
        %s5070 = scalar_lea.vmem [#allocation48], %s5069
        %s5071 = sand.u32 %s958, 1
        %s5072 = scalar_lea.sflag [#allocation50], %s5071
        %s5073 = sand.u32 %s958, 1
        %s5074 = smul.addr %s5073, 8
        %s5075 = scalar_lea.vmem [#allocation49], %s5074
        %p5076 = scmp.lt.s32.totalorder %s118, 1
        %s5077 = scalar_select %p5076, %s118, 1
        %s5078 = smul.addr %s5077, 8
        %s5079 = scalar_lea.vmem %s77, %s5078
        %p5080 = scmp.lt.s32.totalorder %s118, 1
        %s5081 = scalar_select %p5080, %s118, 1
        %s5082 = smul.addr %s5081, 8
        %s5083 = scalar_lea.vmem %s79, %s5082
        // Predicated region
        $region237: #{mmt_forward.2} parent=135 // pred_check
          %p5084 = pneg %p760
        $region238: #{mmt_forward.2} parent=135 // pred_check_branch
          %5086 = sbr.rel (%p5084) target = $region240
        $region239: #{mmt_forward.2} parent=135 // pred_region
          %s5088 = ssub.s32 256, 256
          %5089 = vsyncadd %s5035, %s5088
          %s5090 = smul.addr %s118, 2
          %s5091 = smul.addr %s5090, 128
          %s5092 = scalar_lea.hbm %s59, %s5091
          %s5094 = sshll.u32 %s5038, 4
          %s5095 = int_to_ptr.vmem [resolvable:$true] %s5094
          %5097 = dma.vmem_to_hbm [thread:$0]  %s5095, 256, %s5092, %s5035
        $region240: #{mmt_forward.2} parent=135 // pred_fallthru
          _
        // Predicated region
        $region241: #{mmt_forward.2} parent=135 // pred_check
          %p5098 = pneg %p786
        $region242: #{mmt_forward.2} parent=135 // pred_check_branch
          %5100 = sbr.rel (%p5098) target = $region244
        $region243: #{mmt_forward.2} parent=135 // pred_region
          %s5102 = ssub.s32 256, 256
          %5103 = vsyncadd %s5040, %s5102
          %s5104 = smul.addr %s118, 2
          %s5105 = smul.addr %s5104, 128
          %s5106 = scalar_lea.hbm %s61, %s5105
          %s5108 = sshll.u32 %s5043, 4
          %s5109 = int_to_ptr.vmem [resolvable:$true] %s5108
          %5111 = dma.vmem_to_hbm [thread:$0]  %s5109, 256, %s5106, %s5040
        $region244: #{mmt_forward.2} parent=135 // pred_fallthru
          _
        // Predicated region
        $region245: #{mmt_forward.2} parent=135 // pred_check
          %p5112 = pneg %p812
        $region246: #{mmt_forward.2} parent=135 // pred_check_branch
          %5114 = sbr.rel (%p5112) target = $region248
        $region247: #{mmt_forward.2} parent=135 // pred_region
          %s5116 = ssub.s32 256, 256
          %5117 = vsyncadd %s5045, %s5116
          %s5118 = smul.addr %s118, 2
          %s5119 = smul.addr %s5118, 128
          %s5120 = scalar_lea.hbm %s63, %s5119
          %s5122 = sshll.u32 %s5048, 4
          %s5123 = int_to_ptr.vmem [resolvable:$true] %s5122
          %5125 = dma.vmem_to_hbm [thread:$0]  %s5123, 256, %s5120, %s5045
        $region248: #{mmt_forward.2} parent=135 // pred_fallthru
          _
        // Predicated region
        $region249: #{mmt_forward.2} parent=135 // pred_check
          %p5126 = pneg %p838
        $region250: #{mmt_forward.2} parent=135 // pred_check_branch
          %5128 = sbr.rel (%p5126) target = $region252
        $region251: #{mmt_forward.2} parent=135 // pred_region
          _
        $region252: #{mmt_forward.2} parent=135 // pred_fallthru
          _
        // Predicated region
        $region253: #{mmt_forward.2} parent=135 // pred_check
          %p5129 = pneg %p864
        $region254: #{mmt_forward.2} parent=135 // pred_check_branch
          %5131 = sbr.rel (%p5129) target = $region256
        $region255: #{mmt_forward.2} parent=135 // pred_region
          _
        $region256: #{mmt_forward.2} parent=135 // pred_fallthru
          _
        // Predicated region
        $region257: #{mmt_forward.2} parent=135 // pred_check
          %p5132 = pneg %p890
        $region258: #{mmt_forward.2} parent=135 // pred_check_branch
          %5134 = sbr.rel (%p5132) target = $region260
        $region259: #{mmt_forward.2} parent=135 // pred_region
          _
        $region260: #{mmt_forward.2} parent=135 // pred_fallthru
          _
        // Predicated region
        $region261: #{mmt_forward.2} parent=135 // pred_check
          %p5135 = pneg %p916
        $region262: #{mmt_forward.2} parent=135 // pred_check_branch
          %5137 = sbr.rel (%p5135) target = $region264
        $region263: #{mmt_forward.2} parent=135 // pred_region
          %s5139 = ssub.s32 128, 128
          %5140 = vsyncadd %s5062, %s5139
          %s5141 = smul.addr %s118, 128
          %s5142 = scalar_lea.hbm %s71, %s5141
          %s5144 = sshll.u32 %s5065, 4
          %s5145 = int_to_ptr.vmem [resolvable:$true] %s5144
          %5147 = dma.vmem_to_hbm [thread:$0]  %s5145, 128, %s5142, %s5062
        $region264: #{mmt_forward.2} parent=135 // pred_fallthru
          _
        // Predicated region
        $region265: #{mmt_forward.2} parent=135 // pred_check
          %p5148 = pneg %p942
        $region266: #{mmt_forward.2} parent=135 // pred_check_branch
          %5150 = sbr.rel (%p5148) target = $region268
        $region267: #{mmt_forward.2} parent=135 // pred_region
          %s5152 = ssub.s32 128, 128
          %5153 = vsyncadd %s5067, %s5152
          %s5154 = smul.addr %s118, 128
          %s5155 = scalar_lea.hbm %s73, %s5154
          %s5157 = sshll.u32 %s5070, 4
          %s5158 = int_to_ptr.vmem [resolvable:$true] %s5157
          %5160 = dma.vmem_to_hbm [thread:$0]  %s5158, 128, %s5155, %s5067
        $region268: #{mmt_forward.2} parent=135 // pred_fallthru
          _
        // Predicated region
        $region269: #{mmt_forward.2} parent=135 // pred_check
          %p5161 = pneg %p968
        $region270: #{mmt_forward.2} parent=135 // pred_check_branch
          %5163 = sbr.rel (%p5161) target = $region272
        $region271: #{mmt_forward.2} parent=135 // pred_region
          %s5165 = ssub.s32 128, 128
          %5166 = vsyncadd %s5072, %s5165
          %s5167 = smul.addr %s118, 128
          %s5168 = scalar_lea.hbm %s75, %s5167
          %s5170 = sshll.u32 %s5075, 4
          %s5171 = int_to_ptr.vmem [resolvable:$true] %s5170
          %5173 = dma.vmem_to_hbm [thread:$0]  %s5171, 128, %s5168, %s5072
        $region272: #{mmt_forward.2} parent=135 // pred_fallthru
          _
        // Predicated region
        $region273: #{mmt_forward.2} parent=135 // pred_check
          %p5174 = pneg %p994
        $region274: #{mmt_forward.2} parent=135 // pred_check_branch
          %5176 = sbr.rel (%p5174) target = $region276
        $region275: #{mmt_forward.2} parent=135 // pred_region
          _
        $region276: #{mmt_forward.2} parent=135 // pred_fallthru
          _
        // Predicated region
        $region277: #{mmt_forward.2} parent=135 // pred_check
          %p5177 = pneg %p1020
        $region278: #{mmt_forward.2} parent=135 // pred_check_branch
          %5179 = sbr.rel (%p5177) target = $region280
        $region279: #{mmt_forward.2} parent=135 // pred_region
          _
        $region280: #{mmt_forward.2} parent=135 // pred_fallthru
          _
      $region136: #{mmt_forward.2} parent=5 // pred_fallthru
        _
      %p5180 = scmp.le.s32.totalorder 2, %s113
      // Predicated region
      $region281: #{mmt_forward.2} parent=5 // pred_check
        %p5181 = pneg %p5180
      $region282: #{mmt_forward.2} parent=5 // pred_check_branch
        %5183 = sbr.rel (%p5181) target = $region284
      $region283: #{mmt_forward.2} parent=5 // pred_region
        %s5184 = ssub.s32 %s113, 2
        // Predicated region
        $region285: #{mmt_forward.2} parent=283 // pred_check
          %p5185 = pneg %p766
        $region286: #{mmt_forward.2} parent=283 // pred_check_branch
          %5187 = sbr.rel (%p5185) target = $region288
        $region287: #{mmt_forward.2} parent=283 // pred_region
          %s5188 = sand.u32 %s751, 1
          %s5189 = scalar_lea.sflag [#allocation5], %s5188
          %s5190 = sand.u32 %s751, 1
          %s5191 = smul.addr %s5190, 16
          %s5192 = scalar_lea.vmem [#allocation42], %s5191
          %5193 = dma.done %s5189, 256
        $region288: #{mmt_forward.2} parent=283 // pred_fallthru
          _
        // Predicated region
        $region289: #{mmt_forward.2} parent=283 // pred_check
          %p5194 = pneg %p792
        $region290: #{mmt_forward.2} parent=283 // pred_check_branch
          %5196 = sbr.rel (%p5194) target = $region292
        $region291: #{mmt_forward.2} parent=283 // pred_region
          %s5197 = sand.u32 %s119, 1
          %s5198 = scalar_lea.sflag [#allocation44], %s5197
          %s5199 = sand.u32 %s777, 1
          %s5200 = smul.addr %s5199, 16
          %s5201 = scalar_lea.vmem [#allocation43], %s5200
          %5202 = dma.done %s5198, 256
        $region292: #{mmt_forward.2} parent=283 // pred_fallthru
          _
        // Predicated region
        $region293: #{mmt_forward.2} parent=283 // pred_check
          %p5203 = pneg %p818
        $region294: #{mmt_forward.2} parent=283 // pred_check_branch
          %5205 = sbr.rel (%p5203) target = $region296
        $region295: #{mmt_forward.2} parent=283 // pred_region
          %s5206 = sand.u32 %s119, 1
          %s5207 = scalar_lea.sflag [#allocation44], %s5206
          %s5208 = sand.u32 %s803, 1
          %s5209 = smul.addr %s5208, 16
          %s5210 = scalar_lea.vmem [#allocation45], %s5209
          %5211 = dma.done %s5207, 256
        $region296: #{mmt_forward.2} parent=283 // pred_fallthru
          _
        // Predicated region
        $region297: #{mmt_forward.2} parent=283 // pred_check
          %p5212 = pneg %p844
        $region298: #{mmt_forward.2} parent=283 // pred_check_branch
          %5214 = sbr.rel (%p5212) target = $region300
        $region299: #{mmt_forward.2} parent=283 // pred_region
          %p5215 = scmp.lt.s32.totalorder %s119, 1
          %s5216 = scalar_select %p5215, %s119, 1
          %s5217 = smul.addr %s5216, 8
          %s5218 = scalar_lea.vmem %s65, %s5217
        $region300: #{mmt_forward.2} parent=283 // pred_fallthru
          _
        // Predicated region
        $region301: #{mmt_forward.2} parent=283 // pred_check
          %p5219 = pneg %p870
        $region302: #{mmt_forward.2} parent=283 // pred_check_branch
          %5221 = sbr.rel (%p5219) target = $region304
        $region303: #{mmt_forward.2} parent=283 // pred_region
          %p5222 = scmp.lt.s32.totalorder %s119, 1
          %s5223 = scalar_select %p5222, %s119, 1
          %s5224 = smul.addr %s5223, 8
          %s5225 = scalar_lea.vmem %s67, %s5224
        $region304: #{mmt_forward.2} parent=283 // pred_fallthru
          _
        // Predicated region
        $region305: #{mmt_forward.2} parent=283 // pred_check
          %p5226 = pneg %p896
        $region306: #{mmt_forward.2} parent=283 // pred_check_branch
          %5228 = sbr.rel (%p5226) target = $region308
        $region307: #{mmt_forward.2} parent=283 // pred_region
          %p5229 = scmp.lt.s32.totalorder %s119, 1
          %s5230 = scalar_select %p5229, %s119, 1
          %s5231 = smul.addr %s5230, 8
          %s5232 = scalar_lea.vmem %s69, %s5231
        $region308: #{mmt_forward.2} parent=283 // pred_fallthru
          _
        // Predicated region
        $region309: #{mmt_forward.2} parent=283 // pred_check
          %p5233 = pneg %p922
        $region310: #{mmt_forward.2} parent=283 // pred_check_branch
          %5235 = sbr.rel (%p5233) target = $region312
        $region311: #{mmt_forward.2} parent=283 // pred_region
          %s5236 = sand.u32 %s119, 1
          %s5237 = scalar_lea.sflag [#allocation47], %s5236
          %s5238 = sand.u32 %s907, 1
          %s5239 = smul.addr %s5238, 8
          %s5240 = scalar_lea.vmem [#allocation46], %s5239
          %5241 = dma.done %s5237, 128
        $region312: #{mmt_forward.2} parent=283 // pred_fallthru
          _
        // Predicated region
        $region313: #{mmt_forward.2} parent=283 // pred_check
          %p5242 = pneg %p948
        $region314: #{mmt_forward.2} parent=283 // pred_check_branch
          %5244 = sbr.rel (%p5242) target = $region316
        $region315: #{mmt_forward.2} parent=283 // pred_region
          %s5245 = sand.u32 %s119, 1
          %s5246 = scalar_lea.sflag [#allocation47], %s5245
          %s5247 = sand.u32 %s933, 1
          %s5248 = smul.addr %s5247, 8
          %s5249 = scalar_lea.vmem [#allocation48], %s5248
          %5250 = dma.done %s5246, 128
        $region316: #{mmt_forward.2} parent=283 // pred_fallthru
          _
        // Predicated region
        $region317: #{mmt_forward.2} parent=283 // pred_check
          %p5251 = pneg %p974
        $region318: #{mmt_forward.2} parent=283 // pred_check_branch
          %5253 = sbr.rel (%p5251) target = $region320
        $region319: #{mmt_forward.2} parent=283 // pred_region
          %s5254 = sand.u32 %s959, 1
          %s5255 = scalar_lea.sflag [#allocation50], %s5254
          %s5256 = sand.u32 %s959, 1
          %s5257 = smul.addr %s5256, 8
          %s5258 = scalar_lea.vmem [#allocation49], %s5257
          %5259 = dma.done %s5255, 128
        $region320: #{mmt_forward.2} parent=283 // pred_fallthru
          _
        // Predicated region
        $region321: #{mmt_forward.2} parent=283 // pred_check
          %p5260 = pneg %p1000
        $region322: #{mmt_forward.2} parent=283 // pred_check_branch
          %5262 = sbr.rel (%p5260) target = $region324
        $region323: #{mmt_forward.2} parent=283 // pred_region
          %p5263 = scmp.lt.s32.totalorder %s119, 1
          %s5264 = scalar_select %p5263, %s119, 1
          %s5265 = smul.addr %s5264, 8
          %s5266 = scalar_lea.vmem %s77, %s5265
        $region324: #{mmt_forward.2} parent=283 // pred_fallthru
          _
        // Predicated region
        $region325: #{mmt_forward.2} parent=283 // pred_check
          %p5267 = pneg %p1026
        $region326: #{mmt_forward.2} parent=283 // pred_check_branch
          %5269 = sbr.rel (%p5267) target = $region328
        $region327: #{mmt_forward.2} parent=283 // pred_region
          %p5270 = scmp.lt.s32.totalorder %s119, 1
          %s5271 = scalar_select %p5270, %s119, 1
          %s5272 = smul.addr %s5271, 8
          %s5273 = scalar_lea.vmem %s79, %s5272
        $region328: #{mmt_forward.2} parent=283 // pred_fallthru
          _
      $region284: #{mmt_forward.2} parent=5 // pred_fallthru
        _
    $region6: #{mmt_forward.2} parent=1 // loop_footer
      %s117 = sadd.s32 1, %s113
    $region7: #{mmt_forward.2} parent=1 // loop_footer_branch
      %112 = sbr.rel target = $region3
    $region8: #{mmt_forward.2} parent=1 // loop_exit
      _
    %5274 = vsyncpa [#allocation4], 1
    %s5275 = scalar_lea.sflag [#allocation4], 1
    %5276 = vsyncpa %s5275, 1
    %5277 = vsyncpa [#allocation7], 1
    %5278 = vsyncpa [#allocation10], 1
    %5279 = vsyncpa [#allocation13], 1
    %5280 = vsyncpa [#allocation16], 1
    %5281 = vsyncpa [#allocation19], 1
    %5282 = vsyncpa [#allocation22], 1
    %5283 = vsyncpa [#allocation25], 1
    %5284 = vsyncpa [#allocation28], 1
    %5285 = vsyncpa [#allocation31], 1
    %5286 = vsyncpa [#allocation34], 1
    %5287 = vsyncpa [#allocation37], 1
    %5288 = vsyncpa [#allocation40], 1
    %5289 = vsyncpa [#allocation5], 1
    %s5290 = scalar_lea.sflag [#allocation5], 1
    %5291 = vsyncpa %s5290, 1
    %5292 = vsyncpa [#allocation44], 1
    %s5293 = scalar_lea.sflag [#allocation44], 1
    %5294 = vsyncpa %s5293, 1
    %5295 = vsyncpa [#allocation47], 1
    %s5296 = scalar_lea.sflag [#allocation47], 1
    %5297 = vsyncpa %s5296, 1
    %5298 = vsyncpa [#allocation50], 1
    %s5299 = scalar_lea.sflag [#allocation50], 1
    %5300 = vsyncpa %s5299, 1

</llo_original>
